<compile_context>
chip_gen: v7x
topology: tpu7x:2x2x1
jax: 0.10.0
libtpu: 0.0.40
codegen_flags: <defaults>
</compile_context>

<pallas_src>
import functools

import jax
import jax.numpy as jnp
from jax.experimental import pallas as pl
from jax.experimental.pallas import tpu as pltpu

# ----- small synthetic sizes consistent with the module -----
B = 2            # batch
T = 8            # decoder steps == output frames (reduction_factor == 1)
ENC = 32         # encoder_output_size (idim)
SPK = 16         # speaker_embedding_size
ODIM = 20        # num_features (odim)
DUNITS = 64      # cfg.dunits
DLAYERS = 2      # cfg.dlayers (hard-wired to 2 in the recurrence kernel)
PRENET_UNITS = 32    # cfg.prenet_units
PRENET_LAYERS = 2    # cfg.prenet_layers (hard-wired to 2 in the prepass kernel)
POSTNET_LAYERS = 3   # cfg.postnet_layers (hard-wired to 3 in the postnet kernel)
POSTNET_CHANS = 32   # cfg.postnet_chans
POSTNET_FILTS = 5    # cfg.postnet_filts
REDUCTION_FACTOR = 1
USE_CONCATE = True


def _full2(shape):
    return pl.BlockSpec(shape, lambda i: (0, 0))


def _full3(shape):
    return pl.BlockSpec(shape, lambda i: (0, 0, 0))


def _lstm_cell(gates, c_prev, H):
    # PyTorch LSTMCell gate order: i, f, g, o
    i = jax.nn.sigmoid(gates[:, 0:H])
    f = jax.nn.sigmoid(gates[:, H:2 * H])
    g = jnp.tanh(gates[:, 2 * H:3 * H])
    o = jax.nn.sigmoid(gates[:, 3 * H:4 * H])
    c_new = f * c_prev + i * g
    h_new = o * jnp.tanh(c_new)
    return h_new, c_new


# ---------------------------------------------------------------------------
# Kernel 1: batched pre-pass over all T*B rows (prenet + non-recurrent gate /
# feat_out projections with fused weights).
# ---------------------------------------------------------------------------
def prepass_kernel(yprev_ref, hs_ref,
                   wp1_ref, bp1_ref, wp2_ref, bp2_ref,
                   w0hs_ref, w0p_ref, b0_ref, wfhs_ref,
                   g0pre_ref, outpre_ref):
    # Prenet: 2 x (Linear + ReLU); dropout_rate == 0.0 so dropout is identity.
    p = jnp.maximum(
        jnp.dot(yprev_ref[...], wp1_ref[...],
                preferred_element_type=jnp.float32) + bp1_ref[...], 0.0)
    p = jnp.maximum(
        jnp.dot(p, wp2_ref[...],
                preferred_element_type=jnp.float32) + bp2_ref[...], 0.0)
    hs = hs_ref[...]                      # (T*B, ENC+SPK) = concat([h, spk])
    # LSTM-0 input projection, everything except the recurrent z0 @ W0_hh term.
    g0pre_ref[...] = (jnp.dot(hs, w0hs_ref[...], preferred_element_type=jnp.float32)
                      + jnp.dot(p, w0p_ref[...], preferred_element_type=jnp.float32)
                      + b0_ref[...])
    # feat_out (bias-free) terms on [h, spk]; z1 @ Wf_z is added in the recurrence.
    outpre_ref[...] = jnp.dot(hs, wfhs_ref[...], preferred_element_type=jnp.float32)


def run_prepass(yprev_flat, hs_flat, wp1, bp1, wp2, bp2, w0hs, w0p, b0, wfhs):
    TB = yprev_flat.shape[0]
    return pl.pallas_call(
        prepass_kernel,
        out_shape=(jax.ShapeDtypeStruct((TB, 4 * DUNITS), jnp.float32),
                   jax.ShapeDtypeStruct((TB, ODIM), jnp.float32)),
        grid=(1,),
        in_specs=[_full2(yprev_flat.shape), _full2(hs_flat.shape),
                  _full2(wp1.shape), _full2(bp1.shape),
                  _full2(wp2.shape), _full2(bp2.shape),
                  _full2(w0hs.shape), _full2(w0p.shape),
                  _full2(b0.shape), _full2(wfhs.shape)],
        out_specs=(_full2((TB, 4 * DUNITS)), _full2((TB, ODIM))),
        compiler_params=pltpu.CompilerParams(dimension_semantics=("parallel",)),
    )(yprev_flat, hs_flat, wp1, bp1, wp2, bp2, w0hs, w0p, b0, wfhs)


# ---------------------------------------------------------------------------
# Kernel 2: serial LSTM recurrence, single grid step, in-kernel unrolled loop
# over T.  State (z0, c0, z1, c1) lives in VMEM scratch; output block is fully
# VMEM-resident and written back to HBM once.
# ---------------------------------------------------------------------------
def recurrence_kernel(g0pre_ref, outpre_ref,
                      w0hh_ref, w1x_ref, w1hh_ref, b1_ref, wfz_ref,
                      out_ref,
                      z0_ref, c0_ref, z1_ref, c1_ref, *, T, B, H):
    # self._zero_state(...)
    z0_ref[...] = jnp.zeros_like(z0_ref)
    c0_ref[...] = jnp.zeros_like(c0_ref)
    z1_ref[...] = jnp.zeros_like(z1_ref)
    c1_ref[...] = jnp.zeros_like(c1_ref)
    # Hoist the bias broadcast out of the time loop (JAX does not CSE it).
    b1 = jnp.broadcast_to(b1_ref[...], (B, 4 * H))

    def step(t, carry):
        # LSTM layer 0: precomputed input projection + recurrent term.
        g0 = g0pre_ref[t] + jnp.dot(z0_ref[...], w0hh_ref[...],
                                    preferred_element_type=jnp.float32)
        z0, c0 = _lstm_cell(g0, c0_ref[...], H)
        z0_ref[...] = z0
        c0_ref[...] = c0
        # LSTM layer 1: input is layer-0 new hidden state.
        g1 = (jnp.dot(z0, w1x_ref[...], preferred_element_type=jnp.float32)
              + jnp.dot(z1_ref[...], w1hh_ref[...], preferred_element_type=jnp.float32)
              + b1)
        z1, c1 = _lstm_cell(g1, c1_ref[...], H)
        z1_ref[...] = z1
        c1_ref[...] = c1
        # feat_out on concat([z1, h, spk]): h/spk terms precomputed in outpre.
        out_ref[t] = outpre_ref[t] + jnp.dot(z1, wfz_ref[...],
                                             preferred_element_type=jnp.float32)
        return carry

    jax.lax.fori_loop(0, T, step, 0, unroll=True)


def run_recurrence(g0pre, outpre, w0hh, w1x, w1hh, b1, wfz):
    Tn, Bn, _ = g0pre.shape
    return pl.pallas_call(
        functools.partial(recurrence_kernel, T=Tn, B=Bn, H=DUNITS),
        out_shape=jax.ShapeDtypeStruct((Tn, Bn, ODIM), jnp.float32),
        grid=(1,),
        in_specs=[_full3(g0pre.shape), _full3(outpre.shape),
                  _full2(w0hh.shape), _full2(w1x.shape), _full2(w1hh.shape),
                  _full2(b1.shape), _full2(wfz.shape)],
        out_specs=_full3((Tn, Bn, ODIM)),
        scratch_shapes=[pltpu.VMEM((Bn, DUNITS), jnp.float32)] * 4,
        compiler_params=pltpu.CompilerParams(dimension_semantics=("arbitrary",)),
    )(g0pre, outpre, w0hh, w1x, w1hh, b1, wfz)


# ---------------------------------------------------------------------------
# Kernel 3: fused postnet (3 x conv1d "same", bias-free, tanh on all but the
# last layer; im2col -> one matmul per layer per batch row) + residual add +
# length masking.  All intermediates / zero padding live in VMEM scratch.
# ---------------------------------------------------------------------------
def postnet_kernel(before_ref, w0_ref, w1_ref, w2_ref, lens_ref,
                   after_ref, beforem_ref,
                   pad0_ref, pad1_ref, pad2_ref, *, K, T, B, PAD):
    # Zero once; only the [PAD:PAD+T] center is ever overwritten, so the halo
    # stays zero across batch rows ("same" zero padding).
    pad0_ref[...] = jnp.zeros_like(pad0_ref)
    pad1_ref[...] = jnp.zeros_like(pad1_ref)
    pad2_ref[...] = jnp.zeros_like(pad2_ref)

    def im2col(ref):
        # (T+K-1, Cin) padded buffer -> (T, K*Cin), column order (k, ci) which
        # matches w.reshape(K*Cin, Cout).
        return jnp.concatenate([ref[k:k + T, :] for k in range(K)], axis=-1)

    for b in range(B):
        pad0_ref[PAD:PAD + T, :] = before_ref[b]
        y0 = jnp.tanh(jnp.dot(im2col(pad0_ref), w0_ref[...],
                              preferred_element_type=jnp.float32))
        pad1_ref[PAD:PAD + T, :] = y0
        y1 = jnp.tanh(jnp.dot(im2col(pad1_ref), w1_ref[...],
                              preferred_element_type=jnp.float32))
        pad2_ref[PAD:PAD + T, :] = y1
        # last layer: conv only (no tanh); stash the postnet residual in after_ref
        after_ref[b] = jnp.dot(im2col(pad2_ref), w2_ref[...],
                               preferred_element_type=jnp.float32)

    # residual add + sequence-length masking (vectorized over batch)
    lens = lens_ref[...]                                          # (B, 1) int32
    t_idx = jax.lax.broadcasted_iota(jnp.int32, (B, T), 1)
    mask = (t_idx < lens).astype(jnp.float32)[:, :, None]
    before = before_ref[...]
    after_ref[...] = (before + after_ref[...]) * mask
    beforem_ref[...] = before * mask


def run_postnet(before_bto, w0f, w1f, w2f, lens):
    Bn, Tn, O = before_bto.shape
    K = POSTNET_FILTS
    PAD = (K - 1) // 2
    return pl.pallas_call(
        functools.partial(postnet_kernel, K=K, T=Tn, B=Bn, PAD=PAD),
        out_shape=(jax.ShapeDtypeStruct((Bn, Tn, O), jnp.float32),
                   jax.ShapeDtypeStruct((Bn, Tn, O), jnp.float32)),
        grid=(1,),
        in_specs=[_full3(before_bto.shape), _full2(w0f.shape), _full2(w1f.shape),
                  _full2(w2f.shape), _full2(lens.shape)],
        out_specs=(_full3((Bn, Tn, O)), _full3((Bn, Tn, O))),
        scratch_shapes=[pltpu.VMEM((Tn + K - 1, ODIM), jnp.float32),
                        pltpu.VMEM((Tn + K - 1, POSTNET_CHANS), jnp.float32),
                        pltpu.VMEM((Tn + K - 1, POSTNET_CHANS), jnp.float32)],
        compiler_params=pltpu.CompilerParams(dimension_semantics=("parallel",)),
    )(before_bto, w0f, w1f, w2f, lens)


# ---------------------------------------------------------------------------
# Full forward = Tacotron2Decoder.forward(h_t, h_t_lengths, targets, spk_emb)
# ---------------------------------------------------------------------------
def tacotron2_decoder_forward(params, h_t, h_t_lengths, target_audio_features,
                              speaker_embedding):
    r = REDUCTION_FACTOR
    if r > 1:
        target_audio_features = target_audio_features[:, r - 1::r]
    Bn, Tn, _ = h_t.shape

    # ---- trace-time weight fusion (split weights -> single matmuls) ----
    w0hs = jnp.concatenate([params["w0h"], params["w0s"]], axis=0)   # (ENC+SPK, 4H)
    wfhs = jnp.concatenate([params["wfh"], params["wfs"]], axis=0)   # (ENC+SPK, ODIM)
    pw0f = params["pw0"].reshape(POSTNET_FILTS * ODIM, POSTNET_CHANS)
    pw1f = params["pw1"].reshape(POSTNET_FILTS * POSTNET_CHANS, POSTNET_CHANS)
    pw2f = params["pw2"].reshape(POSTNET_FILTS * POSTNET_CHANS, ODIM)

    # ---- layout plumbing (lane/sublane-dense T*B-row slabs for the pre-pass) ----
    h_tm = jnp.transpose(h_t, (1, 0, 2))                       # (T, B, ENC)
    y_tm = jnp.transpose(target_audio_features, (1, 0, 2))     # (T, B, ODIM)
    # teacher forcing: prev_out at step t is y[t-1], zeros at t == 0
    yprev_tm = jnp.concatenate(
        [jnp.zeros((1, Bn, ODIM), jnp.float32), y_tm[:-1]], axis=0)
    h_flat = h_tm.reshape(Tn * Bn, ENC)
    yprev_flat = yprev_tm.reshape(Tn * Bn, ODIM)
    spk_flat = jnp.tile(speaker_embedding, (Tn, 1))            # row t*B+b -> spk[b]
    hs_flat = jnp.concatenate([h_flat, spk_flat], axis=-1)     # (T*B, ENC+SPK)

    # ---- kernel 1: batched non-recurrent projections ----
    g0pre_flat, outpre_flat = run_prepass(
        yprev_flat, hs_flat,
        params["wp1"], params["bp1"], params["wp2"], params["bp2"],
        w0hs, params["w0p"], params["b0"], wfhs)
    g0pre = g0pre_flat.reshape(Tn, Bn, 4 * DUNITS)
    outpre = outpre_flat.reshape(Tn, Bn, ODIM)

    # ---- kernel 2: serial recurrence ----
    before_tm = run_recurrence(g0pre, outpre, params["w0hh"], params["w1x"],
                               params["w1hh"], params["b1"], params["wfz"])
    before_bto = jnp.transpose(before_tm, (1, 0, 2))           # (B, T, ODIM)

    # ---- kernel 3: fused postnet + residual + mask ----
    lens = (h_t_lengths // r * r).astype(jnp.int32).reshape(Bn, 1)
    after_outs, before_outs = run_postnet(before_bto, pw0f, pw1f, pw2f, lens)
    return after_outs, before_outs


# ---------------------------------------------------------------------------
# Deterministic synthetic parameters (shapes from Tacotron2Decoder.__init__;
# weights are stored pre-transposed as (in, out) and conv as (K, Cin, Cout)).
# ---------------------------------------------------------------------------
def init_params(key):
    names_shapes = [
        ("wp1", (ODIM, PRENET_UNITS)), ("bp1", (1, PRENET_UNITS)),
        ("wp2", (PRENET_UNITS, PRENET_UNITS)), ("bp2", (1, PRENET_UNITS)),
        ("w0h", (ENC, 4 * DUNITS)), ("w0p", (PRENET_UNITS, 4 * DUNITS)),
        ("w0s", (SPK, 4 * DUNITS)), ("w0hh", (DUNITS, 4 * DUNITS)), ("b0", (1, 4 * DUNITS)),
        ("w1x", (DUNITS, 4 * DUNITS)), ("w1hh", (DUNITS, 4 * DUNITS)), ("b1", (1, 4 * DUNITS)),
        ("wfz", (DUNITS, ODIM * REDUCTION_FACTOR)),
        ("wfh", (ENC, ODIM * REDUCTION_FACTOR)),
        ("wfs", (SPK, ODIM * REDUCTION_FACTOR)),
        ("pw0", (POSTNET_FILTS, ODIM, POSTNET_CHANS)),
        ("pw1", (POSTNET_FILTS, POSTNET_CHANS, POSTNET_CHANS)),
        ("pw2", (POSTNET_FILTS, POSTNET_CHANS, ODIM)),
    ]
    keys = jax.random.split(key, len(names_shapes))
    return {name: 0.1 * jax.random.normal(k, shape, dtype=jnp.float32)
            for k, (name, shape) in zip(keys, names_shapes)}


if __name__ == "__main__":
    key = jax.random.PRNGKey(0)
    kp, kh, ky, ks = jax.random.split(key, 4)
    params = init_params(kp)

    h_t = jax.random.normal(kh, (B, T, ENC), dtype=jnp.float32)
    h_t_lengths = jnp.array([T, T - 3], dtype=jnp.int32)
    target_audio_features = jax.random.normal(
        ky, (B, T * REDUCTION_FACTOR, ODIM), dtype=jnp.float32)
    speaker_embedding = jax.random.normal(ks, (B, SPK), dtype=jnp.float32)

    fwd = jax.jit(functools.partial(tacotron2_decoder_forward, params))
    after_outs, before_outs = fwd(h_t, h_t_lengths, target_audio_features,
                                  speaker_embedding)
    jax.block_until_ready((after_outs, before_outs))

    assert after_outs.shape == (B, T, ODIM)
    assert before_outs.shape == (B, T, ODIM)
    assert bool(jnp.all(jnp.isfinite(after_outs)))
    assert bool(jnp.all(jnp.isfinite(before_outs)))
    print("KERNEL_OK")
</pallas_src>

<mosaic_0001>
module attributes {stable_mosaic.version = 11 : i64} {
  func.func @prepass_kernel(%arg0: i32, %arg1: memref<16x20xf32, #tpu.memory_space<vmem>>, %arg2: memref<16x48xf32, #tpu.memory_space<vmem>>, %arg3: memref<20x32xf32, #tpu.memory_space<vmem>>, %arg4: memref<1x32xf32, #tpu.memory_space<vmem>>, %arg5: memref<32x32xf32, #tpu.memory_space<vmem>>, %arg6: memref<1x32xf32, #tpu.memory_space<vmem>>, %arg7: memref<48x256xf32, #tpu.memory_space<vmem>>, %arg8: memref<32x256xf32, #tpu.memory_space<vmem>>, %arg9: memref<1x256xf32, #tpu.memory_space<vmem>>, %arg10: memref<48x20xf32, #tpu.memory_space<vmem>>, %arg11: memref<16x256xf32, #tpu.memory_space<vmem>>, %arg12: memref<16x20xf32, #tpu.memory_space<vmem>>) attributes {dimension_semantics = [#tpu.dimension_semantics<parallel>], iteration_bounds = array<i64: 1>, scalar_prefetch = 0 : i64, scratch_operands = 0 : i64, tpu.core_type = #tpu.core_type<tc>, window_params = [{pipeline_mode = #tpu.pipeline_mode<synchronous>, transform_indices = @transform_0, window_bounds = array<i64: 16, 20>}, {pipeline_mode = #tpu.pipeline_mode<synchronous>, transform_indices = @transform_1, window_bounds = array<i64: 16, 48>}, {pipeline_mode = #tpu.pipeline_mode<synchronous>, transform_indices = @transform_2, window_bounds = array<i64: 20, 32>}, {pipeline_mode = #tpu.pipeline_mode<synchronous>, transform_indices = @transform_3, window_bounds = array<i64: 1, 32>}, {pipeline_mode = #tpu.pipeline_mode<synchronous>, transform_indices = @transform_4, window_bounds = array<i64: 32, 32>}, {pipeline_mode = #tpu.pipeline_mode<synchronous>, transform_indices = @transform_5, window_bounds = array<i64: 1, 32>}, {pipeline_mode = #tpu.pipeline_mode<synchronous>, transform_indices = @transform_6, window_bounds = array<i64: 48, 256>}, {pipeline_mode = #tpu.pipeline_mode<synchronous>, transform_indices = @transform_7, window_bounds = array<i64: 32, 256>}, {pipeline_mode = #tpu.pipeline_mode<synchronous>, transform_indices = @transform_8, window_bounds = array<i64: 1, 256>}, {pipeline_mode = #tpu.pipeline_mode<synchronous>, transform_indices = @transform_9, window_bounds = array<i64: 48, 20>}, {pipeline_mode = #tpu.pipeline_mode<synchronous>, transform_indices = @transform_10, window_bounds = array<i64: 16, 256>}, {pipeline_mode = #tpu.pipeline_mode<synchronous>, transform_indices = @transform_11, window_bounds = array<i64: 16, 20>}]} {
    %c0 = arith.constant 0 : index
    %c0_0 = arith.constant 0 : index
    %0 = vector.load %arg1[%c0, %c0_0] : memref<16x20xf32, #tpu.memory_space<vmem>>, vector<16x20xf32>
    %c0_1 = arith.constant 0 : index
    %c0_2 = arith.constant 0 : index
    %1 = vector.load %arg3[%c0_1, %c0_2] : memref<20x32xf32, #tpu.memory_space<vmem>>, vector<20x32xf32>
    %cst = arith.constant dense<0.000000e+00> : vector<16x32xf32>
    %2 = tpu.matmul %0, %1, %cst {dimension_numbers = #tpu.dot_dimension_numbers<[1], [0], [0], [1], [0, 0, 1, 1], [], []>} : vector<16x20xf32>, vector<20x32xf32>, vector<16x32xf32> -> vector<16x32xf32>
    %c0_3 = arith.constant 0 : index
    %c0_4 = arith.constant 0 : index
    %3 = vector.load %arg4[%c0_3, %c0_4] : memref<1x32xf32, #tpu.memory_space<vmem>>, vector<1x32xf32>
    %4 = vector.broadcast %3 : vector<1x32xf32> to vector<16x32xf32>
    %5 = arith.addf %2, %4 : vector<16x32xf32>
    %cst_5 = arith.constant 0.000000e+00 : f32
    %6 = vector.broadcast %cst_5 : f32 to vector<16x32xf32>
    %7 = arith.maximumf %5, %6 : vector<16x32xf32>
    %c0_6 = arith.constant 0 : index
    %c0_7 = arith.constant 0 : index
    %8 = vector.load %arg5[%c0_6, %c0_7] : memref<32x32xf32, #tpu.memory_space<vmem>>, vector<32x32xf32>
    %cst_8 = arith.constant dense<0.000000e+00> : vector<16x32xf32>
    %9 = tpu.matmul %7, %8, %cst_8 {dimension_numbers = #tpu.dot_dimension_numbers<[1], [0], [0], [1], [0, 0, 1, 1], [], []>} : vector<16x32xf32>, vector<32x32xf32>, vector<16x32xf32> -> vector<16x32xf32>
    %c0_9 = arith.constant 0 : index
    %c0_10 = arith.constant 0 : index
    %10 = vector.load %arg6[%c0_9, %c0_10] : memref<1x32xf32, #tpu.memory_space<vmem>>, vector<1x32xf32>
    %11 = vector.broadcast %10 : vector<1x32xf32> to vector<16x32xf32>
    %12 = arith.addf %9, %11 : vector<16x32xf32>
    %cst_11 = arith.constant 0.000000e+00 : f32
    %13 = vector.broadcast %cst_11 : f32 to vector<16x32xf32>
    %14 = arith.maximumf %12, %13 : vector<16x32xf32>
    %c0_12 = arith.constant 0 : index
    %c0_13 = arith.constant 0 : index
    %15 = vector.load %arg2[%c0_12, %c0_13] : memref<16x48xf32, #tpu.memory_space<vmem>>, vector<16x48xf32>
    %c0_14 = arith.constant 0 : index
    %c0_15 = arith.constant 0 : index
    %16 = vector.load %arg7[%c0_14, %c0_15] : memref<48x256xf32, #tpu.memory_space<vmem>>, vector<48x256xf32>
    %cst_16 = arith.constant dense<0.000000e+00> : vector<16x256xf32>
    %17 = tpu.matmul %15, %16, %cst_16 {dimension_numbers = #tpu.dot_dimension_numbers<[1], [0], [0], [1], [0, 0, 1, 1], [], []>} : vector<16x48xf32>, vector<48x256xf32>, vector<16x256xf32> -> vector<16x256xf32>
    %c0_17 = arith.constant 0 : index
    %c0_18 = arith.constant 0 : index
    %18 = vector.load %arg8[%c0_17, %c0_18] : memref<32x256xf32, #tpu.memory_space<vmem>>, vector<32x256xf32>
    %cst_19 = arith.constant dense<0.000000e+00> : vector<16x256xf32>
    %19 = tpu.matmul %14, %18, %cst_19 {dimension_numbers = #tpu.dot_dimension_numbers<[1], [0], [0], [1], [0, 0, 1, 1], [], []>} : vector<16x32xf32>, vector<32x256xf32>, vector<16x256xf32> -> vector<16x256xf32>
    %20 = arith.addf %17, %19 : vector<16x256xf32>
    %c0_20 = arith.constant 0 : index
    %c0_21 = arith.constant 0 : index
    %21 = vector.load %arg9[%c0_20, %c0_21] : memref<1x256xf32, #tpu.memory_space<vmem>>, vector<1x256xf32>
    %22 = vector.broadcast %21 : vector<1x256xf32> to vector<16x256xf32>
    %23 = arith.addf %20, %22 : vector<16x256xf32>
    %c0_22 = arith.constant 0 : index
    %c0_23 = arith.constant 0 : index
    %24 = vector.load %arg11[%c0_22, %c0_23] : memref<16x256xf32, #tpu.memory_space<vmem>>, vector<16x256xf32>
    tpu.vector_store %arg11[%c0_22, %c0_23], %23 {strides = array<i32>} : memref<16x256xf32, #tpu.memory_space<vmem>>, vector<16x256xf32>,
    %c0_24 = arith.constant 0 : index
    %c0_25 = arith.constant 0 : index
    %25 = vector.load %arg10[%c0_24, %c0_25] : memref<48x20xf32, #tpu.memory_space<vmem>>, vector<48x20xf32>
    %cst_26 = arith.constant dense<0.000000e+00> : vector<16x20xf32>
    %26 = tpu.matmul %15, %25, %cst_26 {dimension_numbers = #tpu.dot_dimension_numbers<[1], [0], [0], [1], [0, 0, 1, 1], [], []>} : vector<16x48xf32>, vector<48x20xf32>, vector<16x20xf32> -> vector<16x20xf32>
    %c0_27 = arith.constant 0 : index
    %c0_28 = arith.constant 0 : index
    %27 = vector.load %arg12[%c0_27, %c0_28] : memref<16x20xf32, #tpu.memory_space<vmem>>, vector<16x20xf32>
    tpu.vector_store %arg12[%c0_27, %c0_28], %26 {strides = array<i32>} : memref<16x20xf32, #tpu.memory_space<vmem>>, vector<16x20xf32>,
    return
  }
  func.func @transform_0(%arg0: i32) -> (i32, i32) {
    %c0_i32 = arith.constant 0 : i32
    %c0_i32_0 = arith.constant 0 : i32
    %c0_i32_1 = arith.constant 0 : i32
    return %c0_i32, %c0_i32_0 : i32, i32
  }
  func.func @transform_1(%arg0: i32) -> (i32, i32) {
    %c0_i32 = arith.constant 0 : i32
    %c0_i32_0 = arith.constant 0 : i32
    %c0_i32_1 = arith.constant 0 : i32
    return %c0_i32, %c0_i32_0 : i32, i32
  }
  func.func @transform_2(%arg0: i32) -> (i32, i32) {
    %c0_i32 = arith.constant 0 : i32
    %c0_i32_0 = arith.constant 0 : i32
    %c0_i32_1 = arith.constant 0 : i32
    return %c0_i32, %c0_i32_0 : i32, i32
  }
  func.func @transform_3(%arg0: i32) -> (i32, i32) {
    %c0_i32 = arith.constant 0 : i32
    %c0_i32_0 = arith.constant 0 : i32
    %c0_i32_1 = arith.constant 0 : i32
    return %c0_i32, %c0_i32_0 : i32, i32
  }
  func.func @transform_4(%arg0: i32) -> (i32, i32) {
    %c0_i32 = arith.constant 0 : i32
    %c0_i32_0 = arith.constant 0 : i32
    %c0_i32_1 = arith.constant 0 : i32
    return %c0_i32, %c0_i32_0 : i32, i32
  }
  func.func @transform_5(%arg0: i32) -> (i32, i32) {
    %c0_i32 = arith.constant 0 : i32
    %c0_i32_0 = arith.constant 0 : i32
    %c0_i32_1 = arith.constant 0 : i32
    return %c0_i32, %c0_i32_0 : i32, i32
  }
  func.func @transform_6(%arg0: i32) -> (i32, i32) {
    %c0_i32 = arith.constant 0 : i32
    %c0_i32_0 = arith.constant 0 : i32
    %c0_i32_1 = arith.constant 0 : i32
    return %c0_i32, %c0_i32_0 : i32, i32
  }
  func.func @transform_7(%arg0: i32) -> (i32, i32) {
    %c0_i32 = arith.constant 0 : i32
    %c0_i32_0 = arith.constant 0 : i32
    %c0_i32_1 = arith.constant 0 : i32
    return %c0_i32, %c0_i32_0 : i32, i32
  }
  func.func @transform_8(%arg0: i32) -> (i32, i32) {
    %c0_i32 = arith.constant 0 : i32
    %c0_i32_0 = arith.constant 0 : i32
    %c0_i32_1 = arith.constant 0 : i32
    return %c0_i32, %c0_i32_0 : i32, i32
  }
  func.func @transform_9(%arg0: i32) -> (i32, i32) {
    %c0_i32 = arith.constant 0 : i32
    %c0_i32_0 = arith.constant 0 : i32
    %c0_i32_1 = arith.constant 0 : i32
    return %c0_i32, %c0_i32_0 : i32, i32
  }
  func.func @transform_10(%arg0: i32) -> (i32, i32) {
    %c0_i32 = arith.constant 0 : i32
    %c0_i32_0 = arith.constant 0 : i32
    %c0_i32_1 = arith.constant 0 : i32
    return %c0_i32, %c0_i32_0 : i32, i32
  }
  func.func @transform_11(%arg0: i32) -> (i32, i32) {
    %c0_i32 = arith.constant 0 : i32
    %c0_i32_0 = arith.constant 0 : i32
    %c0_i32_1 = arith.constant 0 : i32
    return %c0_i32, %c0_i32_0 : i32, i32
  }
}

module attributes {stable_mosaic.version = 11 : i64} {
  func.func @postnet_kernel(%arg0: i32, %arg1: memref<2x8x20xf32, #tpu.memory_space<vmem>>, %arg2: memref<100x32xf32, #tpu.memory_space<vmem>>, %arg3: memref<160x32xf32, #tpu.memory_space<vmem>>, %arg4: memref<160x20xf32, #tpu.memory_space<vmem>>, %arg5: memref<2x1xi32, #tpu.memory_space<vmem>>, %arg6: memref<2x8x20xf32, #tpu.memory_space<vmem>>, %arg7: memref<2x8x20xf32, #tpu.memory_space<vmem>>, %arg8: memref<12x20xf32, #tpu.memory_space<vmem>>, %arg9: memref<12x32xf32, #tpu.memory_space<vmem>>, %arg10: memref<12x32xf32, #tpu.memory_space<vmem>>) attributes {dimension_semantics = [#tpu.dimension_semantics<parallel>], iteration_bounds = array<i64: 1>, scalar_prefetch = 0 : i64, scratch_operands = 3 : i64, tpu.core_type = #tpu.core_type<tc>, window_params = [{pipeline_mode = #tpu.pipeline_mode<synchronous>, transform_indices = @transform_0, window_bounds = array<i64: 2, 8, 20>}, {pipeline_mode = #tpu.pipeline_mode<synchronous>, transform_indices = @transform_1, window_bounds = array<i64: 100, 32>}, {pipeline_mode = #tpu.pipeline_mode<synchronous>, transform_indices = @transform_2, window_bounds = array<i64: 160, 32>}, {pipeline_mode = #tpu.pipeline_mode<synchronous>, transform_indices = @transform_3, window_bounds = array<i64: 160, 20>}, {pipeline_mode = #tpu.pipeline_mode<synchronous>, transform_indices = @transform_4, window_bounds = array<i64: 2, 1>}, {pipeline_mode = #tpu.pipeline_mode<synchronous>, transform_indices = @transform_5, window_bounds = array<i64: 2, 8, 20>}, {pipeline_mode = #tpu.pipeline_mode<synchronous>, transform_indices = @transform_6, window_bounds = array<i64: 2, 8, 20>}]} {
    %cst = arith.constant 0.000000e+00 : f32
    %0 = vector.broadcast %cst : f32 to vector<12x20xf32>
    %c0 = arith.constant 0 : index
    %c0_0 = arith.constant 0 : index
    %1 = vector.load %arg8[%c0, %c0_0] : memref<12x20xf32, #tpu.memory_space<vmem>>, vector<12x20xf32>
    tpu.vector_store %arg8[%c0, %c0_0], %0 {strides = array<i32>} : memref<12x20xf32, #tpu.memory_space<vmem>>, vector<12x20xf32>,
    %cst_1 = arith.constant 0.000000e+00 : f32
    %2 = vector.broadcast %cst_1 : f32 to vector<12x32xf32>
    %c0_2 = arith.constant 0 : index
    %c0_3 = arith.constant 0 : index
    %3 = vector.load %arg9[%c0_2, %c0_3] : memref<12x32xf32, #tpu.memory_space<vmem>>, vector<12x32xf32>
    tpu.vector_store %arg9[%c0_2, %c0_3], %2 {strides = array<i32>} : memref<12x32xf32, #tpu.memory_space<vmem>>, vector<12x32xf32>,
    %cst_4 = arith.constant 0.000000e+00 : f32
    %4 = vector.broadcast %cst_4 : f32 to vector<12x32xf32>
    %c0_5 = arith.constant 0 : index
    %c0_6 = arith.constant 0 : index
    %5 = vector.load %arg10[%c0_5, %c0_6] : memref<12x32xf32, #tpu.memory_space<vmem>>, vector<12x32xf32>
    tpu.vector_store %arg10[%c0_5, %c0_6], %4 {strides = array<i32>} : memref<12x32xf32, #tpu.memory_space<vmem>>, vector<12x32xf32>,
    %c0_7 = arith.constant 0 : index
    %c0_8 = arith.constant 0 : index
    %c0_9 = arith.constant 0 : index
    %6 = vector.load %arg1[%c0_7, %c0_8, %c0_9] : memref<2x8x20xf32, #tpu.memory_space<vmem>>, vector<1x8x20xf32>
    %7 = vector.shape_cast %6 : vector<1x8x20xf32> to vector<8x20xf32>
    %c2 = arith.constant 2 : index
    %c0_10 = arith.constant 0 : index
    %8 = vector.load %arg8[%c2, %c0_10] : memref<12x20xf32, #tpu.memory_space<vmem>>, vector<8x20xf32>
    tpu.vector_store %arg8[%c2, %c0_10], %7 {strides = array<i32>} : memref<12x20xf32, #tpu.memory_space<vmem>>, vector<8x20xf32>,
    %c0_11 = arith.constant 0 : index
    %c0_12 = arith.constant 0 : index
    %9 = vector.load %arg8[%c0_11, %c0_12] : memref<12x20xf32, #tpu.memory_space<vmem>>, vector<8x20xf32>
    %c1 = arith.constant 1 : index
    %c0_13 = arith.constant 0 : index
    %10 = vector.load %arg8[%c1, %c0_13] : memref<12x20xf32, #tpu.memory_space<vmem>>, vector<8x20xf32>
    %c2_14 = arith.constant 2 : index
    %c0_15 = arith.constant 0 : index
    %11 = vector.load %arg8[%c2_14, %c0_15] : memref<12x20xf32, #tpu.memory_space<vmem>>, vector<8x20xf32>
    %c3 = arith.constant 3 : index
    %c0_16 = arith.constant 0 : index
    %12 = vector.load %arg8[%c3, %c0_16] : memref<12x20xf32, #tpu.memory_space<vmem>>, vector<8x20xf32>
    %c4 = arith.constant 4 : index
    %c0_17 = arith.constant 0 : index
    %13 = vector.load %arg8[%c4, %c0_17] : memref<12x20xf32, #tpu.memory_space<vmem>>, vector<8x20xf32>
    %14 = tpu.concatenate %9, %10, %11, %12, %13 in 1 : vector<8x20xf32>, vector<8x20xf32>, vector<8x20xf32>, vector<8x20xf32>, vector<8x20xf32> -> vector<8x100xf32>
    %c0_18 = arith.constant 0 : index
    %c0_19 = arith.constant 0 : index
    %15 = vector.load %arg2[%c0_18, %c0_19] : memref<100x32xf32, #tpu.memory_space<vmem>>, vector<100x32xf32>
    %cst_20 = arith.constant dense<0.000000e+00> : vector<8x32xf32>
    %16 = tpu.matmul %14, %15, %cst_20 {dimension_numbers = #tpu.dot_dimension_numbers<[1], [0], [0], [1], [0, 0, 1, 1], [], []>} : vector<8x100xf32>, vector<100x32xf32>, vector<8x32xf32> -> vector<8x32xf32>
    %17 = math.tanh %16 : vector<8x32xf32>
    %c2_21 = arith.constant 2 : index
    %c0_22 = arith.constant 0 : index
    %18 = vector.load %arg9[%c2_21, %c0_22] : memref<12x32xf32, #tpu.memory_space<vmem>>, vector<8x32xf32>
    tpu.vector_store %arg9[%c2_21, %c0_22], %17 {strides = array<i32>} : memref<12x32xf32, #tpu.memory_space<vmem>>, vector<8x32xf32>,
    %c0_23 = arith.constant 0 : index
    %c0_24 = arith.constant 0 : index
    %19 = vector.load %arg9[%c0_23, %c0_24] : memref<12x32xf32, #tpu.memory_space<vmem>>, vector<8x32xf32>
    %c1_25 = arith.constant 1 : index
    %c0_26 = arith.constant 0 : index
    %20 = vector.load %arg9[%c1_25, %c0_26] : memref<12x32xf32, #tpu.memory_space<vmem>>, vector<8x32xf32>
    %c2_27 = arith.constant 2 : index
    %c0_28 = arith.constant 0 : index
    %21 = vector.load %arg9[%c2_27, %c0_28] : memref<12x32xf32, #tpu.memory_space<vmem>>, vector<8x32xf32>
    %c3_29 = arith.constant 3 : index
    %c0_30 = arith.constant 0 : index
    %22 = vector.load %arg9[%c3_29, %c0_30] : memref<12x32xf32, #tpu.memory_space<vmem>>, vector<8x32xf32>
    %c4_31 = arith.constant 4 : index
    %c0_32 = arith.constant 0 : index
    %23 = vector.load %arg9[%c4_31, %c0_32] : memref<12x32xf32, #tpu.memory_space<vmem>>, vector<8x32xf32>
    %24 = tpu.concatenate %19, %20, %21, %22, %23 in 1 : vector<8x32xf32>, vector<8x32xf32>, vector<8x32xf32>, vector<8x32xf32>, vector<8x32xf32> -> vector<8x160xf32>
    %c0_33 = arith.constant 0 : index
    %c0_34 = arith.constant 0 : index
    %25 = vector.load %arg3[%c0_33, %c0_34] : memref<160x32xf32, #tpu.memory_space<vmem>>, vector<160x32xf32>
    %cst_35 = arith.constant dense<0.000000e+00> : vector<8x32xf32>
    %26 = tpu.matmul %24, %25, %cst_35 {dimension_numbers = #tpu.dot_dimension_numbers<[1], [0], [0], [1], [0, 0, 1, 1], [], []>} : vector<8x160xf32>, vector<160x32xf32>, vector<8x32xf32> -> vector<8x32xf32>
    %27 = math.tanh %26 : vector<8x32xf32>
    %c2_36 = arith.constant 2 : index
    %c0_37 = arith.constant 0 : index
    %28 = vector.load %arg10[%c2_36, %c0_37] : memref<12x32xf32, #tpu.memory_space<vmem>>, vector<8x32xf32>
    tpu.vector_store %arg10[%c2_36, %c0_37], %27 {strides = array<i32>} : memref<12x32xf32, #tpu.memory_space<vmem>>, vector<8x32xf32>,
    %c0_38 = arith.constant 0 : index
    %c0_39 = arith.constant 0 : index
    %29 = vector.load %arg10[%c0_38, %c0_39] : memref<12x32xf32, #tpu.memory_space<vmem>>, vector<8x32xf32>
    %c1_40 = arith.constant 1 : index
    %c0_41 = arith.constant 0 : index
    %30 = vector.load %arg10[%c1_40, %c0_41] : memref<12x32xf32, #tpu.memory_space<vmem>>, vector<8x32xf32>
    %c2_42 = arith.constant 2 : index
    %c0_43 = arith.constant 0 : index
    %31 = vector.load %arg10[%c2_42, %c0_43] : memref<12x32xf32, #tpu.memory_space<vmem>>, vector<8x32xf32>
    %c3_44 = arith.constant 3 : index
    %c0_45 = arith.constant 0 : index
    %32 = vector.load %arg10[%c3_44, %c0_45] : memref<12x32xf32, #tpu.memory_space<vmem>>, vector<8x32xf32>
    %c4_46 = arith.constant 4 : index
    %c0_47 = arith.constant 0 : index
    %33 = vector.load %arg10[%c4_46, %c0_47] : memref<12x32xf32, #tpu.memory_space<vmem>>, vector<8x32xf32>
    %34 = tpu.concatenate %29, %30, %31, %32, %33 in 1 : vector<8x32xf32>, vector<8x32xf32>, vector<8x32xf32>, vector<8x32xf32>, vector<8x32xf32> -> vector<8x160xf32>
    %c0_48 = arith.constant 0 : index
    %c0_49 = arith.constant 0 : index
    %35 = vector.load %arg4[%c0_48, %c0_49] : memref<160x20xf32, #tpu.memory_space<vmem>>, vector<160x20xf32>
    %cst_50 = arith.constant dense<0.000000e+00> : vector<8x20xf32>
    %36 = tpu.matmul %34, %35, %cst_50 {dimension_numbers = #tpu.dot_dimension_numbers<[1], [0], [0], [1], [0, 0, 1, 1], [], []>} : vector<8x160xf32>, vector<160x20xf32>, vector<8x20xf32> -> vector<8x20xf32>
    %c0_51 = arith.constant 0 : index
    %c0_52 = arith.constant 0 : index
    %c0_53 = arith.constant 0 : index
    %37 = vector.load %arg6[%c0_51, %c0_52, %c0_53] : memref<2x8x20xf32, #tpu.memory_space<vmem>>, vector<1x8x20xf32>
    %38 = vector.shape_cast %37 : vector<1x8x20xf32> to vector<8x20xf32>
    %39 = vector.shape_cast %36 : vector<8x20xf32> to vector<1x8x20xf32>
    tpu.vector_store %arg6[%c0_51, %c0_52, %c0_53], %39 {strides = array<i32>} : memref<2x8x20xf32, #tpu.memory_space<vmem>>, vector<1x8x20xf32>,
    %c1_54 = arith.constant 1 : index
    %c0_55 = arith.constant 0 : index
    %c0_56 = arith.constant 0 : index
    %40 = vector.load %arg1[%c1_54, %c0_55, %c0_56] : memref<2x8x20xf32, #tpu.memory_space<vmem>>, vector<1x8x20xf32>
    %41 = vector.shape_cast %40 : vector<1x8x20xf32> to vector<8x20xf32>
    %c2_57 = arith.constant 2 : index
    %c0_58 = arith.constant 0 : index
    %42 = vector.load %arg8[%c2_57, %c0_58] : memref<12x20xf32, #tpu.memory_space<vmem>>, vector<8x20xf32>
    tpu.vector_store %arg8[%c2_57, %c0_58], %41 {strides = array<i32>} : memref<12x20xf32, #tpu.memory_space<vmem>>, vector<8x20xf32>,
    %c0_59 = arith.constant 0 : index
    %c0_60 = arith.constant 0 : index
    %43 = vector.load %arg8[%c0_59, %c0_60] : memref<12x20xf32, #tpu.memory_space<vmem>>, vector<8x20xf32>
    %c1_61 = arith.constant 1 : index
    %c0_62 = arith.constant 0 : index
    %44 = vector.load %arg8[%c1_61, %c0_62] : memref<12x20xf32, #tpu.memory_space<vmem>>, vector<8x20xf32>
    %c2_63 = arith.constant 2 : index
    %c0_64 = arith.constant 0 : index
    %45 = vector.load %arg8[%c2_63, %c0_64] : memref<12x20xf32, #tpu.memory_space<vmem>>, vector<8x20xf32>
    %c3_65 = arith.constant 3 : index
    %c0_66 = arith.constant 0 : index
    %46 = vector.load %arg8[%c3_65, %c0_66] : memref<12x20xf32, #tpu.memory_space<vmem>>, vector<8x20xf32>
    %c4_67 = arith.constant 4 : index
    %c0_68 = arith.constant 0 : index
    %47 = vector.load %arg8[%c4_67, %c0_68] : memref<12x20xf32, #tpu.memory_space<vmem>>, vector<8x20xf32>
    %48 = tpu.concatenate %43, %44, %45, %46, %47 in 1 : vector<8x20xf32>, vector<8x20xf32>, vector<8x20xf32>, vector<8x20xf32>, vector<8x20xf32> -> vector<8x100xf32>
    %c0_69 = arith.constant 0 : index
    %c0_70 = arith.constant 0 : index
    %49 = vector.load %arg2[%c0_69, %c0_70] : memref<100x32xf32, #tpu.memory_space<vmem>>, vector<100x32xf32>
    %cst_71 = arith.constant dense<0.000000e+00> : vector<8x32xf32>
    %50 = tpu.matmul %48, %49, %cst_71 {dimension_numbers = #tpu.dot_dimension_numbers<[1], [0], [0], [1], [0, 0, 1, 1], [], []>} : vector<8x100xf32>, vector<100x32xf32>, vector<8x32xf32> -> vector<8x32xf32>
    %51 = math.tanh %50 : vector<8x32xf32>
    %c2_72 = arith.constant 2 : index
    %c0_73 = arith.constant 0 : index
    %52 = vector.load %arg9[%c2_72, %c0_73] : memref<12x32xf32, #tpu.memory_space<vmem>>, vector<8x32xf32>
    tpu.vector_store %arg9[%c2_72, %c0_73], %51 {strides = array<i32>} : memref<12x32xf32, #tpu.memory_space<vmem>>, vector<8x32xf32>,
    %c0_74 = arith.constant 0 : index
    %c0_75 = arith.constant 0 : index
    %53 = vector.load %arg9[%c0_74, %c0_75] : memref<12x32xf32, #tpu.memory_space<vmem>>, vector<8x32xf32>
    %c1_76 = arith.constant 1 : index
    %c0_77 = arith.constant 0 : index
    %54 = vector.load %arg9[%c1_76, %c0_77] : memref<12x32xf32, #tpu.memory_space<vmem>>, vector<8x32xf32>
    %c2_78 = arith.constant 2 : index
    %c0_79 = arith.constant 0 : index
    %55 = vector.load %arg9[%c2_78, %c0_79] : memref<12x32xf32, #tpu.memory_space<vmem>>, vector<8x32xf32>
    %c3_80 = arith.constant 3 : index
    %c0_81 = arith.constant 0 : index
    %56 = vector.load %arg9[%c3_80, %c0_81] : memref<12x32xf32, #tpu.memory_space<vmem>>, vector<8x32xf32>
    %c4_82 = arith.constant 4 : index
    %c0_83 = arith.constant 0 : index
    %57 = vector.load %arg9[%c4_82, %c0_83] : memref<12x32xf32, #tpu.memory_space<vmem>>, vector<8x32xf32>
    %58 = tpu.concatenate %53, %54, %55, %56, %57 in 1 : vector<8x32xf32>, vector<8x32xf32>, vector<8x32xf32>, vector<8x32xf32>, vector<8x32xf32> -> vector<8x160xf32>
    %c0_84 = arith.constant 0 : index
    %c0_85 = arith.constant 0 : index
    %59 = vector.load %arg3[%c0_84, %c0_85] : memref<160x32xf32, #tpu.memory_space<vmem>>, vector<160x32xf32>
    %cst_86 = arith.constant dense<0.000000e+00> : vector<8x32xf32>
    %60 = tpu.matmul %58, %59, %cst_86 {dimension_numbers = #tpu.dot_dimension_numbers<[1], [0], [0], [1], [0, 0, 1, 1], [], []>} : vector<8x160xf32>, vector<160x32xf32>, vector<8x32xf32> -> vector<8x32xf32>
    %61 = math.tanh %60 : vector<8x32xf32>
    %c2_87 = arith.constant 2 : index
    %c0_88 = arith.constant 0 : index
    %62 = vector.load %arg10[%c2_87, %c0_88] : memref<12x32xf32, #tpu.memory_space<vmem>>, vector<8x32xf32>
    tpu.vector_store %arg10[%c2_87, %c0_88], %61 {strides = array<i32>} : memref<12x32xf32, #tpu.memory_space<vmem>>, vector<8x32xf32>,
    %c0_89 = arith.constant 0 : index
    %c0_90 = arith.constant 0 : index
    %63 = vector.load %arg10[%c0_89, %c0_90] : memref<12x32xf32, #tpu.memory_space<vmem>>, vector<8x32xf32>
    %c1_91 = arith.constant 1 : index
    %c0_92 = arith.constant 0 : index
    %64 = vector.load %arg10[%c1_91, %c0_92] : memref<12x32xf32, #tpu.memory_space<vmem>>, vector<8x32xf32>
    %c2_93 = arith.constant 2 : index
    %c0_94 = arith.constant 0 : index
    %65 = vector.load %arg10[%c2_93, %c0_94] : memref<12x32xf32, #tpu.memory_space<vmem>>, vector<8x32xf32>
    %c3_95 = arith.constant 3 : index
    %c0_96 = arith.constant 0 : index
    %66 = vector.load %arg10[%c3_95, %c0_96] : memref<12x32xf32, #tpu.memory_space<vmem>>, vector<8x32xf32>
    %c4_97 = arith.constant 4 : index
    %c0_98 = arith.constant 0 : index
    %67 = vector.load %arg10[%c4_97, %c0_98] : memref<12x32xf32, #tpu.memory_space<vmem>>, vector<8x32xf32>
    %68 = tpu.concatenate %63, %64, %65, %66, %67 in 1 : vector<8x32xf32>, vector<8x32xf32>, vector<8x32xf32>, vector<8x32xf32>, vector<8x32xf32> -> vector<8x160xf32>
    %c0_99 = arith.constant 0 : index
    %c0_100 = arith.constant 0 : index
    %69 = vector.load %arg4[%c0_99, %c0_100] : memref<160x20xf32, #tpu.memory_space<vmem>>, vector<160x20xf32>
    %cst_101 = arith.constant dense<0.000000e+00> : vector<8x20xf32>
    %70 = tpu.matmul %68, %69, %cst_101 {dimension_numbers = #tpu.dot_dimension_numbers<[1], [0], [0], [1], [0, 0, 1, 1], [], []>} : vector<8x160xf32>, vector<160x20xf32>, vector<8x20xf32> -> vector<8x20xf32>
    %c1_102 = arith.constant 1 : index
    %c0_103 = arith.constant 0 : index
    %c0_104 = arith.constant 0 : index
    %71 = vector.load %arg6[%c1_102, %c0_103, %c0_104] : memref<2x8x20xf32, #tpu.memory_space<vmem>>, vector<1x8x20xf32>
    %72 = vector.shape_cast %71 : vector<1x8x20xf32> to vector<8x20xf32>
    %73 = vector.shape_cast %70 : vector<8x20xf32> to vector<1x8x20xf32>
    tpu.vector_store %arg6[%c1_102, %c0_103, %c0_104], %73 {strides = array<i32>} : memref<2x8x20xf32, #tpu.memory_space<vmem>>, vector<1x8x20xf32>,
    %c0_105 = arith.constant 0 : index
    %c0_106 = arith.constant 0 : index
    %74 = vector.load %arg5[%c0_105, %c0_106] : memref<2x1xi32, #tpu.memory_space<vmem>>, vector<2x1xi32>
    %75 = tpu.iota {dimensions = array<i32: 1>} : vector<2x8xi32>
    %76 = vector.broadcast %74 : vector<2x1xi32> to vector<2x8xi32>
    %77 = arith.cmpi slt, %75, %76 : vector<2x8xi32>
    %78 = arith.extui %77 : vector<2x8xi1> to vector<2x8xi32>
    %79 = arith.sitofp %78 : vector<2x8xi32> to vector<2x8xf32>
    %80 = vector.shape_cast %79 : vector<2x8xf32> to vector<2x8x1xf32>
    %c0_107 = arith.constant 0 : index
    %c0_108 = arith.constant 0 : index
    %c0_109 = arith.constant 0 : index
    %81 = vector.load %arg1[%c0_107, %c0_108, %c0_109] : memref<2x8x20xf32, #tpu.memory_space<vmem>>, vector<2x8x20xf32>
    %c0_110 = arith.constant 0 : index
    %c0_111 = arith.constant 0 : index
    %c0_112 = arith.constant 0 : index
    %82 = vector.load %arg6[%c0_110, %c0_111, %c0_112] : memref<2x8x20xf32, #tpu.memory_space<vmem>>, vector<2x8x20xf32>
    %83 = arith.addf %81, %82 : vector<2x8x20xf32>
    %84 = vector.broadcast %80 : vector<2x8x1xf32> to vector<2x8x20xf32>
    %85 = arith.mulf %83, %84 : vector<2x8x20xf32>
    %c0_113 = arith.constant 0 : index
    %c0_114 = arith.constant 0 : index
    %c0_115 = arith.constant 0 : index
    %86 = vector.load %arg6[%c0_113, %c0_114, %c0_115] : memref<2x8x20xf32, #tpu.memory_space<vmem>>, vector<2x8x20xf32>
    tpu.vector_store %arg6[%c0_113, %c0_114, %c0_115], %85 {strides = array<i32>} : memref<2x8x20xf32, #tpu.memory_space<vmem>>, vector<2x8x20xf32>,
    %87 = vector.broadcast %80 : vector<2x8x1xf32> to vector<2x8x20xf32>
    %88 = arith.mulf %81, %87 : vector<2x8x20xf32>
    %c0_116 = arith.constant 0 : index
    %c0_117 = arith.constant 0 : index
    %c0_118 = arith.constant 0 : index
    %89 = vector.load %arg7[%c0_116, %c0_117, %c0_118] : memref<2x8x20xf32, #tpu.memory_space<vmem>>, vector<2x8x20xf32>
    tpu.vector_store %arg7[%c0_116, %c0_117, %c0_118], %88 {strides = array<i32>} : memref<2x8x20xf32, #tpu.memory_space<vmem>>, vector<2x8x20xf32>,
    return
  }
  func.func @transform_0(%arg0: i32) -> (i32, i32, i32) {
    %c0_i32 = arith.constant 0 : i32
    %c0_i32_0 = arith.constant 0 : i32
    %c0_i32_1 = arith.constant 0 : i32
    %c0_i32_2 = arith.constant 0 : i32
    return %c0_i32, %c0_i32_0, %c0_i32_1 : i32, i32, i32
  }
  func.func @transform_1(%arg0: i32) -> (i32, i32) {
    %c0_i32 = arith.constant 0 : i32
    %c0_i32_0 = arith.constant 0 : i32
    %c0_i32_1 = arith.constant 0 : i32
    return %c0_i32, %c0_i32_0 : i32, i32
  }
  func.func @transform_2(%arg0: i32) -> (i32, i32) {
    %c0_i32 = arith.constant 0 : i32
    %c0_i32_0 = arith.constant 0 : i32
    %c0_i32_1 = arith.constant 0 : i32
    return %c0_i32, %c0_i32_0 : i32, i32
  }
  func.func @transform_3(%arg0: i32) -> (i32, i32) {
    %c0_i32 = arith.constant 0 : i32
    %c0_i32_0 = arith.constant 0 : i32
    %c0_i32_1 = arith.constant 0 : i32
    return %c0_i32, %c0_i32_0 : i32, i32
  }
  func.func @transform_4(%arg0: i32) -> (i32, i32) {
    %c0_i32 = arith.constant 0 : i32
    %c0_i32_0 = arith.constant 0 : i32
    %c0_i32_1 = arith.constant 0 : i32
    return %c0_i32, %c0_i32_0 : i32, i32
  }
  func.func @transform_5(%arg0: i32) -> (i32, i32, i32) {
    %c0_i32 = arith.constant 0 : i32
    %c0_i32_0 = arith.constant 0 : i32
    %c0_i32_1 = arith.constant 0 : i32
    %c0_i32_2 = arith.constant 0 : i32
    return %c0_i32, %c0_i32_0, %c0_i32_1 : i32, i32, i32
  }
  func.func @transform_6(%arg0: i32) -> (i32, i32, i32) {
    %c0_i32 = arith.constant 0 : i32
    %c0_i32_0 = arith.constant 0 : i32
    %c0_i32_1 = arith.constant 0 : i32
    %c0_i32_2 = arith.constant 0 : i32
    return %c0_i32, %c0_i32_0, %c0_i32_1 : i32, i32, i32
  }
}

module attributes {stable_mosaic.version = 11 : i64} {
  func.func @recurrence_kernel(%arg0: i32, %arg1: memref<8x2x256xf32, #tpu.memory_space<vmem>>, %arg2: memref<8x2x20xf32, #tpu.memory_space<vmem>>, %arg3: memref<64x256xf32, #tpu.memory_space<vmem>>, %arg4: memref<64x256xf32, #tpu.memory_space<vmem>>, %arg5: memref<64x256xf32, #tpu.memory_space<vmem>>, %arg6: memref<1x256xf32, #tpu.memory_space<vmem>>, %arg7: memref<64x20xf32, #tpu.memory_space<vmem>>, %arg8: memref<8x2x20xf32, #tpu.memory_space<vmem>>, %arg9: memref<2x64xf32, #tpu.memory_space<vmem>>, %arg10: memref<2x64xf32, #tpu.memory_space<vmem>>, %arg11: memref<2x64xf32, #tpu.memory_space<vmem>>, %arg12: memref<2x64xf32, #tpu.memory_space<vmem>>) attributes {dimension_semantics = [#tpu.dimension_semantics<arbitrary>], iteration_bounds = array<i64: 1>, scalar_prefetch = 0 : i64, scratch_operands = 4 : i64, tpu.core_type = #tpu.core_type<tc>, window_params = [{pipeline_mode = #tpu.pipeline_mode<synchronous>, transform_indices = @transform_0, window_bounds = array<i64: 8, 2, 256>}, {pipeline_mode = #tpu.pipeline_mode<synchronous>, transform_indices = @transform_1, window_bounds = array<i64: 8, 2, 20>}, {pipeline_mode = #tpu.pipeline_mode<synchronous>, transform_indices = @transform_2, window_bounds = array<i64: 64, 256>}, {pipeline_mode = #tpu.pipeline_mode<synchronous>, transform_indices = @transform_3, window_bounds = array<i64: 64, 256>}, {pipeline_mode = #tpu.pipeline_mode<synchronous>, transform_indices = @transform_4, window_bounds = array<i64: 64, 256>}, {pipeline_mode = #tpu.pipeline_mode<synchronous>, transform_indices = @transform_5, window_bounds = array<i64: 1, 256>}, {pipeline_mode = #tpu.pipeline_mode<synchronous>, transform_indices = @transform_6, window_bounds = array<i64: 64, 20>}, {pipeline_mode = #tpu.pipeline_mode<synchronous>, transform_indices = @transform_7, window_bounds = array<i64: 8, 2, 20>}]} {
    %cst = arith.constant 0.000000e+00 : f32
    %0 = vector.broadcast %cst : f32 to vector<2x64xf32>
    %c0 = arith.constant 0 : index
    %c0_0 = arith.constant 0 : index
    %1 = vector.load %arg9[%c0, %c0_0] : memref<2x64xf32, #tpu.memory_space<vmem>>, vector<2x64xf32>
    tpu.vector_store %arg9[%c0, %c0_0], %0 {strides = array<i32>} : memref<2x64xf32, #tpu.memory_space<vmem>>, vector<2x64xf32>,
    %cst_1 = arith.constant 0.000000e+00 : f32
    %2 = vector.broadcast %cst_1 : f32 to vector<2x64xf32>
    %c0_2 = arith.constant 0 : index
    %c0_3 = arith.constant 0 : index
    %3 = vector.load %arg10[%c0_2, %c0_3] : memref<2x64xf32, #tpu.memory_space<vmem>>, vector<2x64xf32>
    tpu.vector_store %arg10[%c0_2, %c0_3], %2 {strides = array<i32>} : memref<2x64xf32, #tpu.memory_space<vmem>>, vector<2x64xf32>,
    %cst_4 = arith.constant 0.000000e+00 : f32
    %4 = vector.broadcast %cst_4 : f32 to vector<2x64xf32>
    %c0_5 = arith.constant 0 : index
    %c0_6 = arith.constant 0 : index
    %5 = vector.load %arg11[%c0_5, %c0_6] : memref<2x64xf32, #tpu.memory_space<vmem>>, vector<2x64xf32>
    tpu.vector_store %arg11[%c0_5, %c0_6], %4 {strides = array<i32>} : memref<2x64xf32, #tpu.memory_space<vmem>>, vector<2x64xf32>,
    %cst_7 = arith.constant 0.000000e+00 : f32
    %6 = vector.broadcast %cst_7 : f32 to vector<2x64xf32>
    %c0_8 = arith.constant 0 : index
    %c0_9 = arith.constant 0 : index
    %7 = vector.load %arg12[%c0_8, %c0_9] : memref<2x64xf32, #tpu.memory_space<vmem>>, vector<2x64xf32>
    tpu.vector_store %arg12[%c0_8, %c0_9], %6 {strides = array<i32>} : memref<2x64xf32, #tpu.memory_space<vmem>>, vector<2x64xf32>,
    %c0_10 = arith.constant 0 : index
    %c0_11 = arith.constant 0 : index
    %8 = vector.load %arg6[%c0_10, %c0_11] : memref<1x256xf32, #tpu.memory_space<vmem>>, vector<1x256xf32>
    %9 = vector.shape_cast %8 : vector<1x256xf32> to vector<1x256xf32>
    %10 = vector.broadcast %9 : vector<1x256xf32> to vector<2x256xf32>
    %c0_i32 = arith.constant 0 : i32
    %11 = arith.index_cast %c0_i32 : i32 to index
    %c0_12 = arith.constant 0 : index
    %c0_13 = arith.constant 0 : index
    %12 = vector.load %arg1[%11, %c0_12, %c0_13] : memref<8x2x256xf32, #tpu.memory_space<vmem>>, vector<1x2x256xf32>
    %13 = vector.shape_cast %12 : vector<1x2x256xf32> to vector<2x256xf32>
    %c0_14 = arith.constant 0 : index
    %c0_15 = arith.constant 0 : index
    %14 = vector.load %arg9[%c0_14, %c0_15] : memref<2x64xf32, #tpu.memory_space<vmem>>, vector<2x64xf32>
    %c0_16 = arith.constant 0 : index
    %c0_17 = arith.constant 0 : index
    %15 = vector.load %arg3[%c0_16, %c0_17] : memref<64x256xf32, #tpu.memory_space<vmem>>, vector<64x256xf32>
    %cst_18 = arith.constant dense<0.000000e+00> : vector<2x256xf32>
    %16 = tpu.matmul %14, %15, %cst_18 {dimension_numbers = #tpu.dot_dimension_numbers<[1], [0], [0], [1], [0, 0, 1, 1], [], []>} : vector<2x64xf32>, vector<64x256xf32>, vector<2x256xf32> -> vector<2x256xf32>
    %17 = arith.addf %13, %16 : vector<2x256xf32>
    %c0_19 = arith.constant 0 : index
    %c0_20 = arith.constant 0 : index
    %18 = vector.load %arg10[%c0_19, %c0_20] : memref<2x64xf32, #tpu.memory_space<vmem>>, vector<2x64xf32>
    %19 = vector.extract_strided_slice %17 {offsets = [0, 0], sizes = [2, 64], strides = [1, 1]} : vector<2x256xf32> to vector<2x64xf32>
    %20 = arith.negf %19 : vector<2x64xf32>
    %21 = math.exp %20 : vector<2x64xf32>
    %cst_21 = arith.constant 1.000000e+00 : f32
    %22 = vector.broadcast %cst_21 : f32 to vector<2x64xf32>
    %23 = arith.addf %22, %21 : vector<2x64xf32>
    %24 = arith.divf %22, %23 : vector<2x64xf32>
    %25 = vector.extract_strided_slice %17 {offsets = [0, 64], sizes = [2, 64], strides = [1, 1]} : vector<2x256xf32> to vector<2x64xf32>
    %26 = arith.negf %25 : vector<2x64xf32>
    %27 = math.exp %26 : vector<2x64xf32>
    %cst_22 = arith.constant 1.000000e+00 : f32
    %28 = vector.broadcast %cst_22 : f32 to vector<2x64xf32>
    %29 = arith.addf %28, %27 : vector<2x64xf32>
    %30 = arith.divf %28, %29 : vector<2x64xf32>
    %31 = vector.extract_strided_slice %17 {offsets = [0, 128], sizes = [2, 64], strides = [1, 1]} : vector<2x256xf32> to vector<2x64xf32>
    %32 = math.tanh %31 : vector<2x64xf32>
    %33 = vector.extract_strided_slice %17 {offsets = [0, 192], sizes = [2, 64], strides = [1, 1]} : vector<2x256xf32> to vector<2x64xf32>
    %34 = arith.negf %33 : vector<2x64xf32>
    %35 = math.exp %34 : vector<2x64xf32>
    %cst_23 = arith.constant 1.000000e+00 : f32
    %36 = vector.broadcast %cst_23 : f32 to vector<2x64xf32>
    %37 = arith.addf %36, %35 : vector<2x64xf32>
    %38 = arith.divf %36, %37 : vector<2x64xf32>
    %39 = arith.mulf %30, %18 : vector<2x64xf32>
    %40 = arith.mulf %24, %32 : vector<2x64xf32>
    %41 = arith.addf %39, %40 : vector<2x64xf32>
    %42 = math.tanh %41 : vector<2x64xf32>
    %43 = arith.mulf %38, %42 : vector<2x64xf32>
    %c0_24 = arith.constant 0 : index
    %c0_25 = arith.constant 0 : index
    %44 = vector.load %arg9[%c0_24, %c0_25] : memref<2x64xf32, #tpu.memory_space<vmem>>, vector<2x64xf32>
    tpu.vector_store %arg9[%c0_24, %c0_25], %43 {strides = array<i32>} : memref<2x64xf32, #tpu.memory_space<vmem>>, vector<2x64xf32>,
    %c0_26 = arith.constant 0 : index
    %c0_27 = arith.constant 0 : index
    %45 = vector.load %arg10[%c0_26, %c0_27] : memref<2x64xf32, #tpu.memory_space<vmem>>, vector<2x64xf32>
    tpu.vector_store %arg10[%c0_26, %c0_27], %41 {strides = array<i32>} : memref<2x64xf32, #tpu.memory_space<vmem>>, vector<2x64xf32>,
    %c0_28 = arith.constant 0 : index
    %c0_29 = arith.constant 0 : index
    %46 = vector.load %arg4[%c0_28, %c0_29] : memref<64x256xf32, #tpu.memory_space<vmem>>, vector<64x256xf32>
    %cst_30 = arith.constant dense<0.000000e+00> : vector<2x256xf32>
    %47 = tpu.matmul %43, %46, %cst_30 {dimension_numbers = #tpu.dot_dimension_numbers<[1], [0], [0], [1], [0, 0, 1, 1], [], []>} : vector<2x64xf32>, vector<64x256xf32>, vector<2x256xf32> -> vector<2x256xf32>
    %c0_31 = arith.constant 0 : index
    %c0_32 = arith.constant 0 : index
    %48 = vector.load %arg11[%c0_31, %c0_32] : memref<2x64xf32, #tpu.memory_space<vmem>>, vector<2x64xf32>
    %c0_33 = arith.constant 0 : index
    %c0_34 = arith.constant 0 : index
    %49 = vector.load %arg5[%c0_33, %c0_34] : memref<64x256xf32, #tpu.memory_space<vmem>>, vector<64x256xf32>
    %cst_35 = arith.constant dense<0.000000e+00> : vector<2x256xf32>
    %50 = tpu.matmul %48, %49, %cst_35 {dimension_numbers = #tpu.dot_dimension_numbers<[1], [0], [0], [1], [0, 0, 1, 1], [], []>} : vector<2x64xf32>, vector<64x256xf32>, vector<2x256xf32> -> vector<2x256xf32>
    %51 = arith.addf %47, %50 : vector<2x256xf32>
    %52 = arith.addf %51, %10 : vector<2x256xf32>
    %c0_36 = arith.constant 0 : index
    %c0_37 = arith.constant 0 : index
    %53 = vector.load %arg12[%c0_36, %c0_37] : memref<2x64xf32, #tpu.memory_space<vmem>>, vector<2x64xf32>
    %54 = vector.extract_strided_slice %52 {offsets = [0, 0], sizes = [2, 64], strides = [1, 1]} : vector<2x256xf32> to vector<2x64xf32>
    %55 = arith.negf %54 : vector<2x64xf32>
    %56 = math.exp %55 : vector<2x64xf32>
    %cst_38 = arith.constant 1.000000e+00 : f32
    %57 = vector.broadcast %cst_38 : f32 to vector<2x64xf32>
    %58 = arith.addf %57, %56 : vector<2x64xf32>
    %59 = arith.divf %57, %58 : vector<2x64xf32>
    %60 = vector.extract_strided_slice %52 {offsets = [0, 64], sizes = [2, 64], strides = [1, 1]} : vector<2x256xf32> to vector<2x64xf32>
    %61 = arith.negf %60 : vector<2x64xf32>
    %62 = math.exp %61 : vector<2x64xf32>
    %cst_39 = arith.constant 1.000000e+00 : f32
    %63 = vector.broadcast %cst_39 : f32 to vector<2x64xf32>
    %64 = arith.addf %63, %62 : vector<2x64xf32>
    %65 = arith.divf %63, %64 : vector<2x64xf32>
    %66 = vector.extract_strided_slice %52 {offsets = [0, 128], sizes = [2, 64], strides = [1, 1]} : vector<2x256xf32> to vector<2x64xf32>
    %67 = math.tanh %66 : vector<2x64xf32>
    %68 = vector.extract_strided_slice %52 {offsets = [0, 192], sizes = [2, 64], strides = [1, 1]} : vector<2x256xf32> to vector<2x64xf32>
    %69 = arith.negf %68 : vector<2x64xf32>
    %70 = math.exp %69 : vector<2x64xf32>
    %cst_40 = arith.constant 1.000000e+00 : f32
    %71 = vector.broadcast %cst_40 : f32 to vector<2x64xf32>
    %72 = arith.addf %71, %70 : vector<2x64xf32>
    %73 = arith.divf %71, %72 : vector<2x64xf32>
    %74 = arith.mulf %65, %53 : vector<2x64xf32>
    %75 = arith.mulf %59, %67 : vector<2x64xf32>
    %76 = arith.addf %74, %75 : vector<2x64xf32>
    %77 = math.tanh %76 : vector<2x64xf32>
    %78 = arith.mulf %73, %77 : vector<2x64xf32>
    %c0_41 = arith.constant 0 : index
    %c0_42 = arith.constant 0 : index
    %79 = vector.load %arg11[%c0_41, %c0_42] : memref<2x64xf32, #tpu.memory_space<vmem>>, vector<2x64xf32>
    tpu.vector_store %arg11[%c0_41, %c0_42], %78 {strides = array<i32>} : memref<2x64xf32, #tpu.memory_space<vmem>>, vector<2x64xf32>,
    %c0_43 = arith.constant 0 : index
    %c0_44 = arith.constant 0 : index
    %80 = vector.load %arg12[%c0_43, %c0_44] : memref<2x64xf32, #tpu.memory_space<vmem>>, vector<2x64xf32>
    tpu.vector_store %arg12[%c0_43, %c0_44], %76 {strides = array<i32>} : memref<2x64xf32, #tpu.memory_space<vmem>>, vector<2x64xf32>,
    %81 = arith.index_cast %c0_i32 : i32 to index
    %c0_45 = arith.constant 0 : index
    %c0_46 = arith.constant 0 : index
    %82 = vector.load %arg2[%81, %c0_45, %c0_46] : memref<8x2x20xf32, #tpu.memory_space<vmem>>, vector<1x2x20xf32>
    %83 = vector.shape_cast %82 : vector<1x2x20xf32> to vector<2x20xf32>
    %c0_47 = arith.constant 0 : index
    %c0_48 = arith.constant 0 : index
    %84 = vector.load %arg7[%c0_47, %c0_48] : memref<64x20xf32, #tpu.memory_space<vmem>>, vector<64x20xf32>
    %cst_49 = arith.constant dense<0.000000e+00> : vector<2x20xf32>
    %85 = tpu.matmul %78, %84, %cst_49 {dimension_numbers = #tpu.dot_dimension_numbers<[1], [0], [0], [1], [0, 0, 1, 1], [], []>} : vector<2x64xf32>, vector<64x20xf32>, vector<2x20xf32> -> vector<2x20xf32>
    %86 = arith.addf %83, %85 : vector<2x20xf32>
    %87 = arith.index_cast %c0_i32 : i32 to index
    %c0_50 = arith.constant 0 : index
    %c0_51 = arith.constant 0 : index
    %88 = vector.load %arg8[%87, %c0_50, %c0_51] : memref<8x2x20xf32, #tpu.memory_space<vmem>>, vector<1x2x20xf32>
    %89 = vector.shape_cast %88 : vector<1x2x20xf32> to vector<2x20xf32>
    %90 = vector.shape_cast %86 : vector<2x20xf32> to vector<1x2x20xf32>
    tpu.vector_store %arg8[%87, %c0_50, %c0_51], %90 {strides = array<i32>} : memref<8x2x20xf32, #tpu.memory_space<vmem>>, vector<1x2x20xf32>,
    %c1_i32 = arith.constant 1 : i32
    %91 = arith.index_cast %c1_i32 : i32 to index
    %c0_52 = arith.constant 0 : index
    %c0_53 = arith.constant 0 : index
    %92 = vector.load %arg1[%91, %c0_52, %c0_53] : memref<8x2x256xf32, #tpu.memory_space<vmem>>, vector<1x2x256xf32>
    %93 = vector.shape_cast %92 : vector<1x2x256xf32> to vector<2x256xf32>
    %c0_54 = arith.constant 0 : index
    %c0_55 = arith.constant 0 : index
    %94 = vector.load %arg9[%c0_54, %c0_55] : memref<2x64xf32, #tpu.memory_space<vmem>>, vector<2x64xf32>
    %c0_56 = arith.constant 0 : index
    %c0_57 = arith.constant 0 : index
    %95 = vector.load %arg3[%c0_56, %c0_57] : memref<64x256xf32, #tpu.memory_space<vmem>>, vector<64x256xf32>
    %cst_58 = arith.constant dense<0.000000e+00> : vector<2x256xf32>
    %96 = tpu.matmul %94, %95, %cst_58 {dimension_numbers = #tpu.dot_dimension_numbers<[1], [0], [0], [1], [0, 0, 1, 1], [], []>} : vector<2x64xf32>, vector<64x256xf32>, vector<2x256xf32> -> vector<2x256xf32>
    %97 = arith.addf %93, %96 : vector<2x256xf32>
    %c0_59 = arith.constant 0 : index
    %c0_60 = arith.constant 0 : index
    %98 = vector.load %arg10[%c0_59, %c0_60] : memref<2x64xf32, #tpu.memory_space<vmem>>, vector<2x64xf32>
    %99 = vector.extract_strided_slice %97 {offsets = [0, 0], sizes = [2, 64], strides = [1, 1]} : vector<2x256xf32> to vector<2x64xf32>
    %100 = arith.negf %99 : vector<2x64xf32>
    %101 = math.exp %100 : vector<2x64xf32>
    %cst_61 = arith.constant 1.000000e+00 : f32
    %102 = vector.broadcast %cst_61 : f32 to vector<2x64xf32>
    %103 = arith.addf %102, %101 : vector<2x64xf32>
    %104 = arith.divf %102, %103 : vector<2x64xf32>
    %105 = vector.extract_strided_slice %97 {offsets = [0, 64], sizes = [2, 64], strides = [1, 1]} : vector<2x256xf32> to vector<2x64xf32>
    %106 = arith.negf %105 : vector<2x64xf32>
    %107 = math.exp %106 : vector<2x64xf32>
    %cst_62 = arith.constant 1.000000e+00 : f32
    %108 = vector.broadcast %cst_62 : f32 to vector<2x64xf32>
    %109 = arith.addf %108, %107 : vector<2x64xf32>
    %110 = arith.divf %108, %109 : vector<2x64xf32>
    %111 = vector.extract_strided_slice %97 {offsets = [0, 128], sizes = [2, 64], strides = [1, 1]} : vector<2x256xf32> to vector<2x64xf32>
    %112 = math.tanh %111 : vector<2x64xf32>
    %113 = vector.extract_strided_slice %97 {offsets = [0, 192], sizes = [2, 64], strides = [1, 1]} : vector<2x256xf32> to vector<2x64xf32>
    %114 = arith.negf %113 : vector<2x64xf32>
    %115 = math.exp %114 : vector<2x64xf32>
    %cst_63 = arith.constant 1.000000e+00 : f32
    %116 = vector.broadcast %cst_63 : f32 to vector<2x64xf32>
    %117 = arith.addf %116, %115 : vector<2x64xf32>
    %118 = arith.divf %116, %117 : vector<2x64xf32>
    %119 = arith.mulf %110, %98 : vector<2x64xf32>
    %120 = arith.mulf %104, %112 : vector<2x64xf32>
    %121 = arith.addf %119, %120 : vector<2x64xf32>
    %122 = math.tanh %121 : vector<2x64xf32>
    %123 = arith.mulf %118, %122 : vector<2x64xf32>
    %c0_64 = arith.constant 0 : index
    %c0_65 = arith.constant 0 : index
    %124 = vector.load %arg9[%c0_64, %c0_65] : memref<2x64xf32, #tpu.memory_space<vmem>>, vector<2x64xf32>
    tpu.vector_store %arg9[%c0_64, %c0_65], %123 {strides = array<i32>} : memref<2x64xf32, #tpu.memory_space<vmem>>, vector<2x64xf32>,
    %c0_66 = arith.constant 0 : index
    %c0_67 = arith.constant 0 : index
    %125 = vector.load %arg10[%c0_66, %c0_67] : memref<2x64xf32, #tpu.memory_space<vmem>>, vector<2x64xf32>
    tpu.vector_store %arg10[%c0_66, %c0_67], %121 {strides = array<i32>} : memref<2x64xf32, #tpu.memory_space<vmem>>, vector<2x64xf32>,
    %c0_68 = arith.constant 0 : index
    %c0_69 = arith.constant 0 : index
    %126 = vector.load %arg4[%c0_68, %c0_69] : memref<64x256xf32, #tpu.memory_space<vmem>>, vector<64x256xf32>
    %cst_70 = arith.constant dense<0.000000e+00> : vector<2x256xf32>
    %127 = tpu.matmul %123, %126, %cst_70 {dimension_numbers = #tpu.dot_dimension_numbers<[1], [0], [0], [1], [0, 0, 1, 1], [], []>} : vector<2x64xf32>, vector<64x256xf32>, vector<2x256xf32> -> vector<2x256xf32>
    %c0_71 = arith.constant 0 : index
    %c0_72 = arith.constant 0 : index
    %128 = vector.load %arg11[%c0_71, %c0_72] : memref<2x64xf32, #tpu.memory_space<vmem>>, vector<2x64xf32>
    %c0_73 = arith.constant 0 : index
    %c0_74 = arith.constant 0 : index
    %129 = vector.load %arg5[%c0_73, %c0_74] : memref<64x256xf32, #tpu.memory_space<vmem>>, vector<64x256xf32>
    %cst_75 = arith.constant dense<0.000000e+00> : vector<2x256xf32>
    %130 = tpu.matmul %128, %129, %cst_75 {dimension_numbers = #tpu.dot_dimension_numbers<[1], [0], [0], [1], [0, 0, 1, 1], [], []>} : vector<2x64xf32>, vector<64x256xf32>, vector<2x256xf32> -> vector<2x256xf32>
    %131 = arith.addf %127, %130 : vector<2x256xf32>
    %132 = arith.addf %131, %10 : vector<2x256xf32>
    %c0_76 = arith.constant 0 : index
    %c0_77 = arith.constant 0 : index
    %133 = vector.load %arg12[%c0_76, %c0_77] : memref<2x64xf32, #tpu.memory_space<vmem>>, vector<2x64xf32>
    %134 = vector.extract_strided_slice %132 {offsets = [0, 0], sizes = [2, 64], strides = [1, 1]} : vector<2x256xf32> to vector<2x64xf32>
    %135 = arith.negf %134 : vector<2x64xf32>
    %136 = math.exp %135 : vector<2x64xf32>
    %cst_78 = arith.constant 1.000000e+00 : f32
    %137 = vector.broadcast %cst_78 : f32 to vector<2x64xf32>
    %138 = arith.addf %137, %136 : vector<2x64xf32>
    %139 = arith.divf %137, %138 : vector<2x64xf32>
    %140 = vector.extract_strided_slice %132 {offsets = [0, 64], sizes = [2, 64], strides = [1, 1]} : vector<2x256xf32> to vector<2x64xf32>
    %141 = arith.negf %140 : vector<2x64xf32>
    %142 = math.exp %141 : vector<2x64xf32>
    %cst_79 = arith.constant 1.000000e+00 : f32
    %143 = vector.broadcast %cst_79 : f32 to vector<2x64xf32>
    %144 = arith.addf %143, %142 : vector<2x64xf32>
    %145 = arith.divf %143, %144 : vector<2x64xf32>
    %146 = vector.extract_strided_slice %132 {offsets = [0, 128], sizes = [2, 64], strides = [1, 1]} : vector<2x256xf32> to vector<2x64xf32>
    %147 = math.tanh %146 : vector<2x64xf32>
    %148 = vector.extract_strided_slice %132 {offsets = [0, 192], sizes = [2, 64], strides = [1, 1]} : vector<2x256xf32> to vector<2x64xf32>
    %149 = arith.negf %148 : vector<2x64xf32>
    %150 = math.exp %149 : vector<2x64xf32>
    %cst_80 = arith.constant 1.000000e+00 : f32
    %151 = vector.broadcast %cst_80 : f32 to vector<2x64xf32>
    %152 = arith.addf %151, %150 : vector<2x64xf32>
    %153 = arith.divf %151, %152 : vector<2x64xf32>
    %154 = arith.mulf %145, %133 : vector<2x64xf32>
    %155 = arith.mulf %139, %147 : vector<2x64xf32>
    %156 = arith.addf %154, %155 : vector<2x64xf32>
    %157 = math.tanh %156 : vector<2x64xf32>
    %158 = arith.mulf %153, %157 : vector<2x64xf32>
    %c0_81 = arith.constant 0 : index
    %c0_82 = arith.constant 0 : index
    %159 = vector.load %arg11[%c0_81, %c0_82] : memref<2x64xf32, #tpu.memory_space<vmem>>, vector<2x64xf32>
    tpu.vector_store %arg11[%c0_81, %c0_82], %158 {strides = array<i32>} : memref<2x64xf32, #tpu.memory_space<vmem>>, vector<2x64xf32>,
    %c0_83 = arith.constant 0 : index
    %c0_84 = arith.constant 0 : index
    %160 = vector.load %arg12[%c0_83, %c0_84] : memref<2x64xf32, #tpu.memory_space<vmem>>, vector<2x64xf32>
    tpu.vector_store %arg12[%c0_83, %c0_84], %156 {strides = array<i32>} : memref<2x64xf32, #tpu.memory_space<vmem>>, vector<2x64xf32>,
    %161 = arith.index_cast %c1_i32 : i32 to index
    %c0_85 = arith.constant 0 : index
    %c0_86 = arith.constant 0 : index
    %162 = vector.load %arg2[%161, %c0_85, %c0_86] : memref<8x2x20xf32, #tpu.memory_space<vmem>>, vector<1x2x20xf32>
    %163 = vector.shape_cast %162 : vector<1x2x20xf32> to vector<2x20xf32>
    %c0_87 = arith.constant 0 : index
    %c0_88 = arith.constant 0 : index
    %164 = vector.load %arg7[%c0_87, %c0_88] : memref<64x20xf32, #tpu.memory_space<vmem>>, vector<64x20xf32>
    %cst_89 = arith.constant dense<0.000000e+00> : vector<2x20xf32>
    %165 = tpu.matmul %158, %164, %cst_89 {dimension_numbers = #tpu.dot_dimension_numbers<[1], [0], [0], [1], [0, 0, 1, 1], [], []>} : vector<2x64xf32>, vector<64x20xf32>, vector<2x20xf32> -> vector<2x20xf32>
    %166 = arith.addf %163, %165 : vector<2x20xf32>
    %167 = arith.index_cast %c1_i32 : i32 to index
    %c0_90 = arith.constant 0 : index
    %c0_91 = arith.constant 0 : index
    %168 = vector.load %arg8[%167, %c0_90, %c0_91] : memref<8x2x20xf32, #tpu.memory_space<vmem>>, vector<1x2x20xf32>
    %169 = vector.shape_cast %168 : vector<1x2x20xf32> to vector<2x20xf32>
    %170 = vector.shape_cast %166 : vector<2x20xf32> to vector<1x2x20xf32>
    tpu.vector_store %arg8[%167, %c0_90, %c0_91], %170 {strides = array<i32>} : memref<8x2x20xf32, #tpu.memory_space<vmem>>, vector<1x2x20xf32>,
    %c2_i32 = arith.constant 2 : i32
    %171 = arith.index_cast %c2_i32 : i32 to index
    %c0_92 = arith.constant 0 : index
    %c0_93 = arith.constant 0 : index
    %172 = vector.load %arg1[%171, %c0_92, %c0_93] : memref<8x2x256xf32, #tpu.memory_space<vmem>>, vector<1x2x256xf32>
    %173 = vector.shape_cast %172 : vector<1x2x256xf32> to vector<2x256xf32>
    %c0_94 = arith.constant 0 : index
    %c0_95 = arith.constant 0 : index
    %174 = vector.load %arg9[%c0_94, %c0_95] : memref<2x64xf32, #tpu.memory_space<vmem>>, vector<2x64xf32>
    %c0_96 = arith.constant 0 : index
    %c0_97 = arith.constant 0 : index
    %175 = vector.load %arg3[%c0_96, %c0_97] : memref<64x256xf32, #tpu.memory_space<vmem>>, vector<64x256xf32>
    %cst_98 = arith.constant dense<0.000000e+00> : vector<2x256xf32>
    %176 = tpu.matmul %174, %175, %cst_98 {dimension_numbers = #tpu.dot_dimension_numbers<[1], [0], [0], [1], [0, 0, 1, 1], [], []>} : vector<2x64xf32>, vector<64x256xf32>, vector<2x256xf32> -> vector<2x256xf32>
    %177 = arith.addf %173, %176 : vector<2x256xf32>
    %c0_99 = arith.constant 0 : index
    %c0_100 = arith.constant 0 : index
    %178 = vector.load %arg10[%c0_99, %c0_100] : memref<2x64xf32, #tpu.memory_space<vmem>>, vector<2x64xf32>
    %179 = vector.extract_strided_slice %177 {offsets = [0, 0], sizes = [2, 64], strides = [1, 1]} : vector<2x256xf32> to vector<2x64xf32>
    %180 = arith.negf %179 : vector<2x64xf32>
    %181 = math.exp %180 : vector<2x64xf32>
    %cst_101 = arith.constant 1.000000e+00 : f32
    %182 = vector.broadcast %cst_101 : f32 to vector<2x64xf32>
    %183 = arith.addf %182, %181 : vector<2x64xf32>
    %184 = arith.divf %182, %183 : vector<2x64xf32>
    %185 = vector.extract_strided_slice %177 {offsets = [0, 64], sizes = [2, 64], strides = [1, 1]} : vector<2x256xf32> to vector<2x64xf32>
    %186 = arith.negf %185 : vector<2x64xf32>
    %187 = math.exp %186 : vector<2x64xf32>
    %cst_102 = arith.constant 1.000000e+00 : f32
    %188 = vector.broadcast %cst_102 : f32 to vector<2x64xf32>
    %189 = arith.addf %188, %187 : vector<2x64xf32>
    %190 = arith.divf %188, %189 : vector<2x64xf32>
    %191 = vector.extract_strided_slice %177 {offsets = [0, 128], sizes = [2, 64], strides = [1, 1]} : vector<2x256xf32> to vector<2x64xf32>
    %192 = math.tanh %191 : vector<2x64xf32>
    %193 = vector.extract_strided_slice %177 {offsets = [0, 192], sizes = [2, 64], strides = [1, 1]} : vector<2x256xf32> to vector<2x64xf32>
    %194 = arith.negf %193 : vector<2x64xf32>
    %195 = math.exp %194 : vector<2x64xf32>
    %cst_103 = arith.constant 1.000000e+00 : f32
    %196 = vector.broadcast %cst_103 : f32 to vector<2x64xf32>
    %197 = arith.addf %196, %195 : vector<2x64xf32>
    %198 = arith.divf %196, %197 : vector<2x64xf32>
    %199 = arith.mulf %190, %178 : vector<2x64xf32>
    %200 = arith.mulf %184, %192 : vector<2x64xf32>
    %201 = arith.addf %199, %200 : vector<2x64xf32>
    %202 = math.tanh %201 : vector<2x64xf32>
    %203 = arith.mulf %198, %202 : vector<2x64xf32>
    %c0_104 = arith.constant 0 : index
    %c0_105 = arith.constant 0 : index
    %204 = vector.load %arg9[%c0_104, %c0_105] : memref<2x64xf32, #tpu.memory_space<vmem>>, vector<2x64xf32>
    tpu.vector_store %arg9[%c0_104, %c0_105], %203 {strides = array<i32>} : memref<2x64xf32, #tpu.memory_space<vmem>>, vector<2x64xf32>,
    %c0_106 = arith.constant 0 : index
    %c0_107 = arith.constant 0 : index
    %205 = vector.load %arg10[%c0_106, %c0_107] : memref<2x64xf32, #tpu.memory_space<vmem>>, vector<2x64xf32>
    tpu.vector_store %arg10[%c0_106, %c0_107], %201 {strides = array<i32>} : memref<2x64xf32, #tpu.memory_space<vmem>>, vector<2x64xf32>,
    %c0_108 = arith.constant 0 : index
    %c0_109 = arith.constant 0 : index
    %206 = vector.load %arg4[%c0_108, %c0_109] : memref<64x256xf32, #tpu.memory_space<vmem>>, vector<64x256xf32>
    %cst_110 = arith.constant dense<0.000000e+00> : vector<2x256xf32>
    %207 = tpu.matmul %203, %206, %cst_110 {dimension_numbers = #tpu.dot_dimension_numbers<[1], [0], [0], [1], [0, 0, 1, 1], [], []>} : vector<2x64xf32>, vector<64x256xf32>, vector<2x256xf32> -> vector<2x256xf32>
    %c0_111 = arith.constant 0 : index
    %c0_112 = arith.constant 0 : index
    %208 = vector.load %arg11[%c0_111, %c0_112] : memref<2x64xf32, #tpu.memory_space<vmem>>, vector<2x64xf32>
    %c0_113 = arith.constant 0 : index
    %c0_114 = arith.constant 0 : index
    %209 = vector.load %arg5[%c0_113, %c0_114] : memref<64x256xf32, #tpu.memory_space<vmem>>, vector<64x256xf32>
    %cst_115 = arith.constant dense<0.000000e+00> : vector<2x256xf32>
    %210 = tpu.matmul %208, %209, %cst_115 {dimension_numbers = #tpu.dot_dimension_numbers<[1], [0], [0], [1], [0, 0, 1, 1], [], []>} : vector<2x64xf32>, vector<64x256xf32>, vector<2x256xf32> -> vector<2x256xf32>
    %211 = arith.addf %207, %210 : vector<2x256xf32>
    %212 = arith.addf %211, %10 : vector<2x256xf32>
    %c0_116 = arith.constant 0 : index
    %c0_117 = arith.constant 0 : index
    %213 = vector.load %arg12[%c0_116, %c0_117] : memref<2x64xf32, #tpu.memory_space<vmem>>, vector<2x64xf32>
    %214 = vector.extract_strided_slice %212 {offsets = [0, 0], sizes = [2, 64], strides = [1, 1]} : vector<2x256xf32> to vector<2x64xf32>
    %215 = arith.negf %214 : vector<2x64xf32>
    %216 = math.exp %215 : vector<2x64xf32>
    %cst_118 = arith.constant 1.000000e+00 : f32
    %217 = vector.broadcast %cst_118 : f32 to vector<2x64xf32>
    %218 = arith.addf %217, %216 : vector<2x64xf32>
    %219 = arith.divf %217, %218 : vector<2x64xf32>
    %220 = vector.extract_strided_slice %212 {offsets = [0, 64], sizes = [2, 64], strides = [1, 1]} : vector<2x256xf32> to vector<2x64xf32>
    %221 = arith.negf %220 : vector<2x64xf32>
    %222 = math.exp %221 : vector<2x64xf32>
    %cst_119 = arith.constant 1.000000e+00 : f32
    %223 = vector.broadcast %cst_119 : f32 to vector<2x64xf32>
    %224 = arith.addf %223, %222 : vector<2x64xf32>
    %225 = arith.divf %223, %224 : vector<2x64xf32>
    %226 = vector.extract_strided_slice %212 {offsets = [0, 128], sizes = [2, 64], strides = [1, 1]} : vector<2x256xf32> to vector<2x64xf32>
    %227 = math.tanh %226 : vector<2x64xf32>
    %228 = vector.extract_strided_slice %212 {offsets = [0, 192], sizes = [2, 64], strides = [1, 1]} : vector<2x256xf32> to vector<2x64xf32>
    %229 = arith.negf %228 : vector<2x64xf32>
    %230 = math.exp %229 : vector<2x64xf32>
    %cst_120 = arith.constant 1.000000e+00 : f32
    %231 = vector.broadcast %cst_120 : f32 to vector<2x64xf32>
    %232 = arith.addf %231, %230 : vector<2x64xf32>
    %233 = arith.divf %231, %232 : vector<2x64xf32>
    %234 = arith.mulf %225, %213 : vector<2x64xf32>
    %235 = arith.mulf %219, %227 : vector<2x64xf32>
    %236 = arith.addf %234, %235 : vector<2x64xf32>
    %237 = math.tanh %236 : vector<2x64xf32>
    %238 = arith.mulf %233, %237 : vector<2x64xf32>
    %c0_121 = arith.constant 0 : index
    %c0_122 = arith.constant 0 : index
    %239 = vector.load %arg11[%c0_121, %c0_122] : memref<2x64xf32, #tpu.memory_space<vmem>>, vector<2x64xf32>
    tpu.vector_store %arg11[%c0_121, %c0_122], %238 {strides = array<i32>} : memref<2x64xf32, #tpu.memory_space<vmem>>, vector<2x64xf32>,
    %c0_123 = arith.constant 0 : index
    %c0_124 = arith.constant 0 : index
    %240 = vector.load %arg12[%c0_123, %c0_124] : memref<2x64xf32, #tpu.memory_space<vmem>>, vector<2x64xf32>
    tpu.vector_store %arg12[%c0_123, %c0_124], %236 {strides = array<i32>} : memref<2x64xf32, #tpu.memory_space<vmem>>, vector<2x64xf32>,
    %241 = arith.index_cast %c2_i32 : i32 to index
    %c0_125 = arith.constant 0 : index
    %c0_126 = arith.constant 0 : index
    %242 = vector.load %arg2[%241, %c0_125, %c0_126] : memref<8x2x20xf32, #tpu.memory_space<vmem>>, vector<1x2x20xf32>
    %243 = vector.shape_cast %242 : vector<1x2x20xf32> to vector<2x20xf32>
    %c0_127 = arith.constant 0 : index
    %c0_128 = arith.constant 0 : index
    %244 = vector.load %arg7[%c0_127, %c0_128] : memref<64x20xf32, #tpu.memory_space<vmem>>, vector<64x20xf32>
    %cst_129 = arith.constant dense<0.000000e+00> : vector<2x20xf32>
    %245 = tpu.matmul %238, %244, %cst_129 {dimension_numbers = #tpu.dot_dimension_numbers<[1], [0], [0], [1], [0, 0, 1, 1], [], []>} : vector<2x64xf32>, vector<64x20xf32>, vector<2x20xf32> -> vector<2x20xf32>
    %246 = arith.addf %243, %245 : vector<2x20xf32>
    %247 = arith.index_cast %c2_i32 : i32 to index
    %c0_130 = arith.constant 0 : index
    %c0_131 = arith.constant 0 : index
    %248 = vector.load %arg8[%247, %c0_130, %c0_131] : memref<8x2x20xf32, #tpu.memory_space<vmem>>, vector<1x2x20xf32>
    %249 = vector.shape_cast %248 : vector<1x2x20xf32> to vector<2x20xf32>
    %250 = vector.shape_cast %246 : vector<2x20xf32> to vector<1x2x20xf32>
    tpu.vector_store %arg8[%247, %c0_130, %c0_131], %250 {strides = array<i32>} : memref<8x2x20xf32, #tpu.memory_space<vmem>>, vector<1x2x20xf32>,
    %c3_i32 = arith.constant 3 : i32
    %251 = arith.index_cast %c3_i32 : i32 to index
    %c0_132 = arith.constant 0 : index
    %c0_133 = arith.constant 0 : index
    %252 = vector.load %arg1[%251, %c0_132, %c0_133] : memref<8x2x256xf32, #tpu.memory_space<vmem>>, vector<1x2x256xf32>
    %253 = vector.shape_cast %252 : vector<1x2x256xf32> to vector<2x256xf32>
    %c0_134 = arith.constant 0 : index
    %c0_135 = arith.constant 0 : index
    %254 = vector.load %arg9[%c0_134, %c0_135] : memref<2x64xf32, #tpu.memory_space<vmem>>, vector<2x64xf32>
    %c0_136 = arith.constant 0 : index
    %c0_137 = arith.constant 0 : index
    %255 = vector.load %arg3[%c0_136, %c0_137] : memref<64x256xf32, #tpu.memory_space<vmem>>, vector<64x256xf32>
    %cst_138 = arith.constant dense<0.000000e+00> : vector<2x256xf32>
    %256 = tpu.matmul %254, %255, %cst_138 {dimension_numbers = #tpu.dot_dimension_numbers<[1], [0], [0], [1], [0, 0, 1, 1], [], []>} : vector<2x64xf32>, vector<64x256xf32>, vector<2x256xf32> -> vector<2x256xf32>
    %257 = arith.addf %253, %256 : vector<2x256xf32>
    %c0_139 = arith.constant 0 : index
    %c0_140 = arith.constant 0 : index
    %258 = vector.load %arg10[%c0_139, %c0_140] : memref<2x64xf32, #tpu.memory_space<vmem>>, vector<2x64xf32>
    %259 = vector.extract_strided_slice %257 {offsets = [0, 0], sizes = [2, 64], strides = [1, 1]} : vector<2x256xf32> to vector<2x64xf32>
    %260 = arith.negf %259 : vector<2x64xf32>
    %261 = math.exp %260 : vector<2x64xf32>
    %cst_141 = arith.constant 1.000000e+00 : f32
    %262 = vector.broadcast %cst_141 : f32 to vector<2x64xf32>
    %263 = arith.addf %262, %261 : vector<2x64xf32>
    %264 = arith.divf %262, %263 : vector<2x64xf32>
    %265 = vector.extract_strided_slice %257 {offsets = [0, 64], sizes = [2, 64], strides = [1, 1]} : vector<2x256xf32> to vector<2x64xf32>
    %266 = arith.negf %265 : vector<2x64xf32>
    %267 = math.exp %266 : vector<2x64xf32>
    %cst_142 = arith.constant 1.000000e+00 : f32
    %268 = vector.broadcast %cst_142 : f32 to vector<2x64xf32>
    %269 = arith.addf %268, %267 : vector<2x64xf32>
    %270 = arith.divf %268, %269 : vector<2x64xf32>
    %271 = vector.extract_strided_slice %257 {offsets = [0, 128], sizes = [2, 64], strides = [1, 1]} : vector<2x256xf32> to vector<2x64xf32>
    %272 = math.tanh %271 : vector<2x64xf32>
    %273 = vector.extract_strided_slice %257 {offsets = [0, 192], sizes = [2, 64], strides = [1, 1]} : vector<2x256xf32> to vector<2x64xf32>
    %274 = arith.negf %273 : vector<2x64xf32>
    %275 = math.exp %274 : vector<2x64xf32>
    %cst_143 = arith.constant 1.000000e+00 : f32
    %276 = vector.broadcast %cst_143 : f32 to vector<2x64xf32>
    %277 = arith.addf %276, %275 : vector<2x64xf32>
    %278 = arith.divf %276, %277 : vector<2x64xf32>
    %279 = arith.mulf %270, %258 : vector<2x64xf32>
    %280 = arith.mulf %264, %272 : vector<2x64xf32>
    %281 = arith.addf %279, %280 : vector<2x64xf32>
    %282 = math.tanh %281 : vector<2x64xf32>
    %283 = arith.mulf %278, %282 : vector<2x64xf32>
    %c0_144 = arith.constant 0 : index
    %c0_145 = arith.constant 0 : index
    %284 = vector.load %arg9[%c0_144, %c0_145] : memref<2x64xf32, #tpu.memory_space<vmem>>, vector<2x64xf32>
    tpu.vector_store %arg9[%c0_144, %c0_145], %283 {strides = array<i32>} : memref<2x64xf32, #tpu.memory_space<vmem>>, vector<2x64xf32>,
    %c0_146 = arith.constant 0 : index
    %c0_147 = arith.constant 0 : index
    %285 = vector.load %arg10[%c0_146, %c0_147] : memref<2x64xf32, #tpu.memory_space<vmem>>, vector<2x64xf32>
    tpu.vector_store %arg10[%c0_146, %c0_147], %281 {strides = array<i32>} : memref<2x64xf32, #tpu.memory_space<vmem>>, vector<2x64xf32>,
    %c0_148 = arith.constant 0 : index
    %c0_149 = arith.constant 0 : index
    %286 = vector.load %arg4[%c0_148, %c0_149] : memref<64x256xf32, #tpu.memory_space<vmem>>, vector<64x256xf32>
    %cst_150 = arith.constant dense<0.000000e+00> : vector<2x256xf32>
    %287 = tpu.matmul %283, %286, %cst_150 {dimension_numbers = #tpu.dot_dimension_numbers<[1], [0], [0], [1], [0, 0, 1, 1], [], []>} : vector<2x64xf32>, vector<64x256xf32>, vector<2x256xf32> -> vector<2x256xf32>
    %c0_151 = arith.constant 0 : index
    %c0_152 = arith.constant 0 : index
    %288 = vector.load %arg11[%c0_151, %c0_152] : memref<2x64xf32, #tpu.memory_space<vmem>>, vector<2x64xf32>
    %c0_153 = arith.constant 0 : index
    %c0_154 = arith.constant 0 : index
    %289 = vector.load %arg5[%c0_153, %c0_154] : memref<64x256xf32, #tpu.memory_space<vmem>>, vector<64x256xf32>
    %cst_155 = arith.constant dense<0.000000e+00> : vector<2x256xf32>
    %290 = tpu.matmul %288, %289, %cst_155 {dimension_numbers = #tpu.dot_dimension_numbers<[1], [0], [0], [1], [0, 0, 1, 1], [], []>} : vector<2x64xf32>, vector<64x256xf32>, vector<2x256xf32> -> vector<2x256xf32>
    %291 = arith.addf %287, %290 : vector<2x256xf32>
    %292 = arith.addf %291, %10 : vector<2x256xf32>
    %c0_156 = arith.constant 0 : index
    %c0_157 = arith.constant 0 : index
    %293 = vector.load %arg12[%c0_156, %c0_157] : memref<2x64xf32, #tpu.memory_space<vmem>>, vector<2x64xf32>
    %294 = vector.extract_strided_slice %292 {offsets = [0, 0], sizes = [2, 64], strides = [1, 1]} : vector<2x256xf32> to vector<2x64xf32>
    %295 = arith.negf %294 : vector<2x64xf32>
    %296 = math.exp %295 : vector<2x64xf32>
    %cst_158 = arith.constant 1.000000e+00 : f32
    %297 = vector.broadcast %cst_158 : f32 to vector<2x64xf32>
    %298 = arith.addf %297, %296 : vector<2x64xf32>
    %299 = arith.divf %297, %298 : vector<2x64xf32>
    %300 = vector.extract_strided_slice %292 {offsets = [0, 64], sizes = [2, 64], strides = [1, 1]} : vector<2x256xf32> to vector<2x64xf32>
    %301 = arith.negf %300 : vector<2x64xf32>
    %302 = math.exp %301 : vector<2x64xf32>
    %cst_159 = arith.constant 1.000000e+00 : f32
    %303 = vector.broadcast %cst_159 : f32 to vector<2x64xf32>
    %304 = arith.addf %303, %302 : vector<2x64xf32>
    %305 = arith.divf %303, %304 : vector<2x64xf32>
    %306 = vector.extract_strided_slice %292 {offsets = [0, 128], sizes = [2, 64], strides = [1, 1]} : vector<2x256xf32> to vector<2x64xf32>
    %307 = math.tanh %306 : vector<2x64xf32>
    %308 = vector.extract_strided_slice %292 {offsets = [0, 192], sizes = [2, 64], strides = [1, 1]} : vector<2x256xf32> to vector<2x64xf32>
    %309 = arith.negf %308 : vector<2x64xf32>
    %310 = math.exp %309 : vector<2x64xf32>
    %cst_160 = arith.constant 1.000000e+00 : f32
    %311 = vector.broadcast %cst_160 : f32 to vector<2x64xf32>
    %312 = arith.addf %311, %310 : vector<2x64xf32>
    %313 = arith.divf %311, %312 : vector<2x64xf32>
    %314 = arith.mulf %305, %293 : vector<2x64xf32>
    %315 = arith.mulf %299, %307 : vector<2x64xf32>
    %316 = arith.addf %314, %315 : vector<2x64xf32>
    %317 = math.tanh %316 : vector<2x64xf32>
    %318 = arith.mulf %313, %317 : vector<2x64xf32>
    %c0_161 = arith.constant 0 : index
    %c0_162 = arith.constant 0 : index
    %319 = vector.load %arg11[%c0_161, %c0_162] : memref<2x64xf32, #tpu.memory_space<vmem>>, vector<2x64xf32>
    tpu.vector_store %arg11[%c0_161, %c0_162], %318 {strides = array<i32>} : memref<2x64xf32, #tpu.memory_space<vmem>>, vector<2x64xf32>,
    %c0_163 = arith.constant 0 : index
    %c0_164 = arith.constant 0 : index
    %320 = vector.load %arg12[%c0_163, %c0_164] : memref<2x64xf32, #tpu.memory_space<vmem>>, vector<2x64xf32>
    tpu.vector_store %arg12[%c0_163, %c0_164], %316 {strides = array<i32>} : memref<2x64xf32, #tpu.memory_space<vmem>>, vector<2x64xf32>,
    %321 = arith.index_cast %c3_i32 : i32 to index
    %c0_165 = arith.constant 0 : index
    %c0_166 = arith.constant 0 : index
    %322 = vector.load %arg2[%321, %c0_165, %c0_166] : memref<8x2x20xf32, #tpu.memory_space<vmem>>, vector<1x2x20xf32>
    %323 = vector.shape_cast %322 : vector<1x2x20xf32> to vector<2x20xf32>
    %c0_167 = arith.constant 0 : index
    %c0_168 = arith.constant 0 : index
    %324 = vector.load %arg7[%c0_167, %c0_168] : memref<64x20xf32, #tpu.memory_space<vmem>>, vector<64x20xf32>
    %cst_169 = arith.constant dense<0.000000e+00> : vector<2x20xf32>
    %325 = tpu.matmul %318, %324, %cst_169 {dimension_numbers = #tpu.dot_dimension_numbers<[1], [0], [0], [1], [0, 0, 1, 1], [], []>} : vector<2x64xf32>, vector<64x20xf32>, vector<2x20xf32> -> vector<2x20xf32>
    %326 = arith.addf %323, %325 : vector<2x20xf32>
    %327 = arith.index_cast %c3_i32 : i32 to index
    %c0_170 = arith.constant 0 : index
    %c0_171 = arith.constant 0 : index
    %328 = vector.load %arg8[%327, %c0_170, %c0_171] : memref<8x2x20xf32, #tpu.memory_space<vmem>>, vector<1x2x20xf32>
    %329 = vector.shape_cast %328 : vector<1x2x20xf32> to vector<2x20xf32>
    %330 = vector.shape_cast %326 : vector<2x20xf32> to vector<1x2x20xf32>
    tpu.vector_store %arg8[%327, %c0_170, %c0_171], %330 {strides = array<i32>} : memref<8x2x20xf32, #tpu.memory_space<vmem>>, vector<1x2x20xf32>,
    %c4_i32 = arith.constant 4 : i32
    %331 = arith.index_cast %c4_i32 : i32 to index
    %c0_172 = arith.constant 0 : index
    %c0_173 = arith.constant 0 : index
    %332 = vector.load %arg1[%331, %c0_172, %c0_173] : memref<8x2x256xf32, #tpu.memory_space<vmem>>, vector<1x2x256xf32>
    %333 = vector.shape_cast %332 : vector<1x2x256xf32> to vector<2x256xf32>
    %c0_174 = arith.constant 0 : index
    %c0_175 = arith.constant 0 : index
    %334 = vector.load %arg9[%c0_174, %c0_175] : memref<2x64xf32, #tpu.memory_space<vmem>>, vector<2x64xf32>
    %c0_176 = arith.constant 0 : index
    %c0_177 = arith.constant 0 : index
    %335 = vector.load %arg3[%c0_176, %c0_177] : memref<64x256xf32, #tpu.memory_space<vmem>>, vector<64x256xf32>
    %cst_178 = arith.constant dense<0.000000e+00> : vector<2x256xf32>
    %336 = tpu.matmul %334, %335, %cst_178 {dimension_numbers = #tpu.dot_dimension_numbers<[1], [0], [0], [1], [0, 0, 1, 1], [], []>} : vector<2x64xf32>, vector<64x256xf32>, vector<2x256xf32> -> vector<2x256xf32>
    %337 = arith.addf %333, %336 : vector<2x256xf32>
    %c0_179 = arith.constant 0 : index
    %c0_180 = arith.constant 0 : index
    %338 = vector.load %arg10[%c0_179, %c0_180] : memref<2x64xf32, #tpu.memory_space<vmem>>, vector<2x64xf32>
    %339 = vector.extract_strided_slice %337 {offsets = [0, 0], sizes = [2, 64], strides = [1, 1]} : vector<2x256xf32> to vector<2x64xf32>
    %340 = arith.negf %339 : vector<2x64xf32>
    %341 = math.exp %340 : vector<2x64xf32>
    %cst_181 = arith.constant 1.000000e+00 : f32
    %342 = vector.broadcast %cst_181 : f32 to vector<2x64xf32>
    %343 = arith.addf %342, %341 : vector<2x64xf32>
    %344 = arith.divf %342, %343 : vector<2x64xf32>
    %345 = vector.extract_strided_slice %337 {offsets = [0, 64], sizes = [2, 64], strides = [1, 1]} : vector<2x256xf32> to vector<2x64xf32>
    %346 = arith.negf %345 : vector<2x64xf32>
    %347 = math.exp %346 : vector<2x64xf32>
    %cst_182 = arith.constant 1.000000e+00 : f32
    %348 = vector.broadcast %cst_182 : f32 to vector<2x64xf32>
    %349 = arith.addf %348, %347 : vector<2x64xf32>
    %350 = arith.divf %348, %349 : vector<2x64xf32>
    %351 = vector.extract_strided_slice %337 {offsets = [0, 128], sizes = [2, 64], strides = [1, 1]} : vector<2x256xf32> to vector<2x64xf32>
    %352 = math.tanh %351 : vector<2x64xf32>
    %353 = vector.extract_strided_slice %337 {offsets = [0, 192], sizes = [2, 64], strides = [1, 1]} : vector<2x256xf32> to vector<2x64xf32>
    %354 = arith.negf %353 : vector<2x64xf32>
    %355 = math.exp %354 : vector<2x64xf32>
    %cst_183 = arith.constant 1.000000e+00 : f32
    %356 = vector.broadcast %cst_183 : f32 to vector<2x64xf32>
    %357 = arith.addf %356, %355 : vector<2x64xf32>
    %358 = arith.divf %356, %357 : vector<2x64xf32>
    %359 = arith.mulf %350, %338 : vector<2x64xf32>
    %360 = arith.mulf %344, %352 : vector<2x64xf32>
    %361 = arith.addf %359, %360 : vector<2x64xf32>
    %362 = math.tanh %361 : vector<2x64xf32>
    %363 = arith.mulf %358, %362 : vector<2x64xf32>
    %c0_184 = arith.constant 0 : index
    %c0_185 = arith.constant 0 : index
    %364 = vector.load %arg9[%c0_184, %c0_185] : memref<2x64xf32, #tpu.memory_space<vmem>>, vector<2x64xf32>
    tpu.vector_store %arg9[%c0_184, %c0_185], %363 {strides = array<i32>} : memref<2x64xf32, #tpu.memory_space<vmem>>, vector<2x64xf32>,
    %c0_186 = arith.constant 0 : index
    %c0_187 = arith.constant 0 : index
    %365 = vector.load %arg10[%c0_186, %c0_187] : memref<2x64xf32, #tpu.memory_space<vmem>>, vector<2x64xf32>
    tpu.vector_store %arg10[%c0_186, %c0_187], %361 {strides = array<i32>} : memref<2x64xf32, #tpu.memory_space<vmem>>, vector<2x64xf32>,
    %c0_188 = arith.constant 0 : index
    %c0_189 = arith.constant 0 : index
    %366 = vector.load %arg4[%c0_188, %c0_189] : memref<64x256xf32, #tpu.memory_space<vmem>>, vector<64x256xf32>
    %cst_190 = arith.constant dense<0.000000e+00> : vector<2x256xf32>
    %367 = tpu.matmul %363, %366, %cst_190 {dimension_numbers = #tpu.dot_dimension_numbers<[1], [0], [0], [1], [0, 0, 1, 1], [], []>} : vector<2x64xf32>, vector<64x256xf32>, vector<2x256xf32> -> vector<2x256xf32>
    %c0_191 = arith.constant 0 : index
    %c0_192 = arith.constant 0 : index
    %368 = vector.load %arg11[%c0_191, %c0_192] : memref<2x64xf32, #tpu.memory_space<vmem>>, vector<2x64xf32>
    %c0_193 = arith.constant 0 : index
    %c0_194 = arith.constant 0 : index
    %369 = vector.load %arg5[%c0_193, %c0_194] : memref<64x256xf32, #tpu.memory_space<vmem>>, vector<64x256xf32>
    %cst_195 = arith.constant dense<0.000000e+00> : vector<2x256xf32>
    %370 = tpu.matmul %368, %369, %cst_195 {dimension_numbers = #tpu.dot_dimension_numbers<[1], [0], [0], [1], [0, 0, 1, 1], [], []>} : vector<2x64xf32>, vector<64x256xf32>, vector<2x256xf32> -> vector<2x256xf32>
    %371 = arith.addf %367, %370 : vector<2x256xf32>
    %372 = arith.addf %371, %10 : vector<2x256xf32>
    %c0_196 = arith.constant 0 : index
    %c0_197 = arith.constant 0 : index
    %373 = vector.load %arg12[%c0_196, %c0_197] : memref<2x64xf32, #tpu.memory_space<vmem>>, vector<2x64xf32>
    %374 = vector.extract_strided_slice %372 {offsets = [0, 0], sizes = [2, 64], strides = [1, 1]} : vector<2x256xf32> to vector<2x64xf32>
    %375 = arith.negf %374 : vector<2x64xf32>
    %376 = math.exp %375 : vector<2x64xf32>
    %cst_198 = arith.constant 1.000000e+00 : f32
    %377 = vector.broadcast %cst_198 : f32 to vector<2x64xf32>
    %378 = arith.addf %377, %376 : vector<2x64xf32>
    %379 = arith.divf %377, %378 : vector<2x64xf32>
    %380 = vector.extract_strided_slice %372 {offsets = [0, 64], sizes = [2, 64], strides = [1, 1]} : vector<2x256xf32> to vector<2x64xf32>
    %381 = arith.negf %380 : vector<2x64xf32>
    %382 = math.exp %381 : vector<2x64xf32>
    %cst_199 = arith.constant 1.000000e+00 : f32
    %383 = vector.broadcast %cst_199 : f32 to vector<2x64xf32>
    %384 = arith.addf %383, %382 : vector<2x64xf32>
    %385 = arith.divf %383, %384 : vector<2x64xf32>
    %386 = vector.extract_strided_slice %372 {offsets = [0, 128], sizes = [2, 64], strides = [1, 1]} : vector<2x256xf32> to vector<2x64xf32>
    %387 = math.tanh %386 : vector<2x64xf32>
    %388 = vector.extract_strided_slice %372 {offsets = [0, 192], sizes = [2, 64], strides = [1, 1]} : vector<2x256xf32> to vector<2x64xf32>
    %389 = arith.negf %388 : vector<2x64xf32>
    %390 = math.exp %389 : vector<2x64xf32>
    %cst_200 = arith.constant 1.000000e+00 : f32
    %391 = vector.broadcast %cst_200 : f32 to vector<2x64xf32>
    %392 = arith.addf %391, %390 : vector<2x64xf32>
    %393 = arith.divf %391, %392 : vector<2x64xf32>
    %394 = arith.mulf %385, %373 : vector<2x64xf32>
    %395 = arith.mulf %379, %387 : vector<2x64xf32>
    %396 = arith.addf %394, %395 : vector<2x64xf32>
    %397 = math.tanh %396 : vector<2x64xf32>
    %398 = arith.mulf %393, %397 : vector<2x64xf32>
    %c0_201 = arith.constant 0 : index
    %c0_202 = arith.constant 0 : index
    %399 = vector.load %arg11[%c0_201, %c0_202] : memref<2x64xf32, #tpu.memory_space<vmem>>, vector<2x64xf32>
    tpu.vector_store %arg11[%c0_201, %c0_202], %398 {strides = array<i32>} : memref<2x64xf32, #tpu.memory_space<vmem>>, vector<2x64xf32>,
    %c0_203 = arith.constant 0 : index
    %c0_204 = arith.constant 0 : index
    %400 = vector.load %arg12[%c0_203, %c0_204] : memref<2x64xf32, #tpu.memory_space<vmem>>, vector<2x64xf32>
    tpu.vector_store %arg12[%c0_203, %c0_204], %396 {strides = array<i32>} : memref<2x64xf32, #tpu.memory_space<vmem>>, vector<2x64xf32>,
    %401 = arith.index_cast %c4_i32 : i32 to index
    %c0_205 = arith.constant 0 : index
    %c0_206 = arith.constant 0 : index
    %402 = vector.load %arg2[%401, %c0_205, %c0_206] : memref<8x2x20xf32, #tpu.memory_space<vmem>>, vector<1x2x20xf32>
    %403 = vector.shape_cast %402 : vector<1x2x20xf32> to vector<2x20xf32>
    %c0_207 = arith.constant 0 : index
    %c0_208 = arith.constant 0 : index
    %404 = vector.load %arg7[%c0_207, %c0_208] : memref<64x20xf32, #tpu.memory_space<vmem>>, vector<64x20xf32>
    %cst_209 = arith.constant dense<0.000000e+00> : vector<2x20xf32>
    %405 = tpu.matmul %398, %404, %cst_209 {dimension_numbers = #tpu.dot_dimension_numbers<[1], [0], [0], [1], [0, 0, 1, 1], [], []>} : vector<2x64xf32>, vector<64x20xf32>, vector<2x20xf32> -> vector<2x20xf32>
    %406 = arith.addf %403, %405 : vector<2x20xf32>
    %407 = arith.index_cast %c4_i32 : i32 to index
    %c0_210 = arith.constant 0 : index
    %c0_211 = arith.constant 0 : index
    %408 = vector.load %arg8[%407, %c0_210, %c0_211] : memref<8x2x20xf32, #tpu.memory_space<vmem>>, vector<1x2x20xf32>
    %409 = vector.shape_cast %408 : vector<1x2x20xf32> to vector<2x20xf32>
    %410 = vector.shape_cast %406 : vector<2x20xf32> to vector<1x2x20xf32>
    tpu.vector_store %arg8[%407, %c0_210, %c0_211], %410 {strides = array<i32>} : memref<8x2x20xf32, #tpu.memory_space<vmem>>, vector<1x2x20xf32>,
    %c5_i32 = arith.constant 5 : i32
    %411 = arith.index_cast %c5_i32 : i32 to index
    %c0_212 = arith.constant 0 : index
    %c0_213 = arith.constant 0 : index
    %412 = vector.load %arg1[%411, %c0_212, %c0_213] : memref<8x2x256xf32, #tpu.memory_space<vmem>>, vector<1x2x256xf32>
    %413 = vector.shape_cast %412 : vector<1x2x256xf32> to vector<2x256xf32>
    %c0_214 = arith.constant 0 : index
    %c0_215 = arith.constant 0 : index
    %414 = vector.load %arg9[%c0_214, %c0_215] : memref<2x64xf32, #tpu.memory_space<vmem>>, vector<2x64xf32>
    %c0_216 = arith.constant 0 : index
    %c0_217 = arith.constant 0 : index
    %415 = vector.load %arg3[%c0_216, %c0_217] : memref<64x256xf32, #tpu.memory_space<vmem>>, vector<64x256xf32>
    %cst_218 = arith.constant dense<0.000000e+00> : vector<2x256xf32>
    %416 = tpu.matmul %414, %415, %cst_218 {dimension_numbers = #tpu.dot_dimension_numbers<[1], [0], [0], [1], [0, 0, 1, 1], [], []>} : vector<2x64xf32>, vector<64x256xf32>, vector<2x256xf32> -> vector<2x256xf32>
    %417 = arith.addf %413, %416 : vector<2x256xf32>
    %c0_219 = arith.constant 0 : index
    %c0_220 = arith.constant 0 : index
    %418 = vector.load %arg10[%c0_219, %c0_220] : memref<2x64xf32, #tpu.memory_space<vmem>>, vector<2x64xf32>
    %419 = vector.extract_strided_slice %417 {offsets = [0, 0], sizes = [2, 64], strides = [1, 1]} : vector<2x256xf32> to vector<2x64xf32>
    %420 = arith.negf %419 : vector<2x64xf32>
    %421 = math.exp %420 : vector<2x64xf32>
    %cst_221 = arith.constant 1.000000e+00 : f32
    %422 = vector.broadcast %cst_221 : f32 to vector<2x64xf32>
    %423 = arith.addf %422, %421 : vector<2x64xf32>
    %424 = arith.divf %422, %423 : vector<2x64xf32>
    %425 = vector.extract_strided_slice %417 {offsets = [0, 64], sizes = [2, 64], strides = [1, 1]} : vector<2x256xf32> to vector<2x64xf32>
    %426 = arith.negf %425 : vector<2x64xf32>
    %427 = math.exp %426 : vector<2x64xf32>
    %cst_222 = arith.constant 1.000000e+00 : f32
    %428 = vector.broadcast %cst_222 : f32 to vector<2x64xf32>
    %429 = arith.addf %428, %427 : vector<2x64xf32>
    %430 = arith.divf %428, %429 : vector<2x64xf32>
    %431 = vector.extract_strided_slice %417 {offsets = [0, 128], sizes = [2, 64], strides = [1, 1]} : vector<2x256xf32> to vector<2x64xf32>
    %432 = math.tanh %431 : vector<2x64xf32>
    %433 = vector.extract_strided_slice %417 {offsets = [0, 192], sizes = [2, 64], strides = [1, 1]} : vector<2x256xf32> to vector<2x64xf32>
    %434 = arith.negf %433 : vector<2x64xf32>
    %435 = math.exp %434 : vector<2x64xf32>
    %cst_223 = arith.constant 1.000000e+00 : f32
    %436 = vector.broadcast %cst_223 : f32 to vector<2x64xf32>
    %437 = arith.addf %436, %435 : vector<2x64xf32>
    %438 = arith.divf %436, %437 : vector<2x64xf32>
    %439 = arith.mulf %430, %418 : vector<2x64xf32>
    %440 = arith.mulf %424, %432 : vector<2x64xf32>
    %441 = arith.addf %439, %440 : vector<2x64xf32>
    %442 = math.tanh %441 : vector<2x64xf32>
    %443 = arith.mulf %438, %442 : vector<2x64xf32>
    %c0_224 = arith.constant 0 : index
    %c0_225 = arith.constant 0 : index
    %444 = vector.load %arg9[%c0_224, %c0_225] : memref<2x64xf32, #tpu.memory_space<vmem>>, vector<2x64xf32>
    tpu.vector_store %arg9[%c0_224, %c0_225], %443 {strides = array<i32>} : memref<2x64xf32, #tpu.memory_space<vmem>>, vector<2x64xf32>,
    %c0_226 = arith.constant 0 : index
    %c0_227 = arith.constant 0 : index
    %445 = vector.load %arg10[%c0_226, %c0_227] : memref<2x64xf32, #tpu.memory_space<vmem>>, vector<2x64xf32>
    tpu.vector_store %arg10[%c0_226, %c0_227], %441 {strides = array<i32>} : memref<2x64xf32, #tpu.memory_space<vmem>>, vector<2x64xf32>,
    %c0_228 = arith.constant 0 : index
    %c0_229 = arith.constant 0 : index
    %446 = vector.load %arg4[%c0_228, %c0_229] : memref<64x256xf32, #tpu.memory_space<vmem>>, vector<64x256xf32>
    %cst_230 = arith.constant dense<0.000000e+00> : vector<2x256xf32>
    %447 = tpu.matmul %443, %446, %cst_230 {dimension_numbers = #tpu.dot_dimension_numbers<[1], [0], [0], [1], [0, 0, 1, 1], [], []>} : vector<2x64xf32>, vector<64x256xf32>, vector<2x256xf32> -> vector<2x256xf32>
    %c0_231 = arith.constant 0 : index
    %c0_232 = arith.constant 0 : index
    %448 = vector.load %arg11[%c0_231, %c0_232] : memref<2x64xf32, #tpu.memory_space<vmem>>, vector<2x64xf32>
    %c0_233 = arith.constant 0 : index
    %c0_234 = arith.constant 0 : index
    %449 = vector.load %arg5[%c0_233, %c0_234] : memref<64x256xf32, #tpu.memory_space<vmem>>, vector<64x256xf32>
    %cst_235 = arith.constant dense<0.000000e+00> : vector<2x256xf32>
    %450 = tpu.matmul %448, %449, %cst_235 {dimension_numbers = #tpu.dot_dimension_numbers<[1], [0], [0], [1], [0, 0, 1, 1], [], []>} : vector<2x64xf32>, vector<64x256xf32>, vector<2x256xf32> -> vector<2x256xf32>
    %451 = arith.addf %447, %450 : vector<2x256xf32>
    %452 = arith.addf %451, %10 : vector<2x256xf32>
    %c0_236 = arith.constant 0 : index
    %c0_237 = arith.constant 0 : index
    %453 = vector.load %arg12[%c0_236, %c0_237] : memref<2x64xf32, #tpu.memory_space<vmem>>, vector<2x64xf32>
    %454 = vector.extract_strided_slice %452 {offsets = [0, 0], sizes = [2, 64], strides = [1, 1]} : vector<2x256xf32> to vector<2x64xf32>
    %455 = arith.negf %454 : vector<2x64xf32>
    %456 = math.exp %455 : vector<2x64xf32>
    %cst_238 = arith.constant 1.000000e+00 : f32
    %457 = vector.broadcast %cst_238 : f32 to vector<2x64xf32>
    %458 = arith.addf %457, %456 : vector<2x64xf32>
    %459 = arith.divf %457, %458 : vector<2x64xf32>
    %460 = vector.extract_strided_slice %452 {offsets = [0, 64], sizes = [2, 64], strides = [1, 1]} : vector<2x256xf32> to vector<2x64xf32>
    %461 = arith.negf %460 : vector<2x64xf32>
    %462 = math.exp %461 : vector<2x64xf32>
    %cst_239 = arith.constant 1.000000e+00 : f32
    %463 = vector.broadcast %cst_239 : f32 to vector<2x64xf32>
    %464 = arith.addf %463, %462 : vector<2x64xf32>
    %465 = arith.divf %463, %464 : vector<2x64xf32>
    %466 = vector.extract_strided_slice %452 {offsets = [0, 128], sizes = [2, 64], strides = [1, 1]} : vector<2x256xf32> to vector<2x64xf32>
    %467 = math.tanh %466 : vector<2x64xf32>
    %468 = vector.extract_strided_slice %452 {offsets = [0, 192], sizes = [2, 64], strides = [1, 1]} : vector<2x256xf32> to vector<2x64xf32>
    %469 = arith.negf %468 : vector<2x64xf32>
    %470 = math.exp %469 : vector<2x64xf32>
    %cst_240 = arith.constant 1.000000e+00 : f32
    %471 = vector.broadcast %cst_240 : f32 to vector<2x64xf32>
    %472 = arith.addf %471, %470 : vector<2x64xf32>
    %473 = arith.divf %471, %472 : vector<2x64xf32>
    %474 = arith.mulf %465, %453 : vector<2x64xf32>
    %475 = arith.mulf %459, %467 : vector<2x64xf32>
    %476 = arith.addf %474, %475 : vector<2x64xf32>
    %477 = math.tanh %476 : vector<2x64xf32>
    %478 = arith.mulf %473, %477 : vector<2x64xf32>
    %c0_241 = arith.constant 0 : index
    %c0_242 = arith.constant 0 : index
    %479 = vector.load %arg11[%c0_241, %c0_242] : memref<2x64xf32, #tpu.memory_space<vmem>>, vector<2x64xf32>
    tpu.vector_store %arg11[%c0_241, %c0_242], %478 {strides = array<i32>} : memref<2x64xf32, #tpu.memory_space<vmem>>, vector<2x64xf32>,
    %c0_243 = arith.constant 0 : index
    %c0_244 = arith.constant 0 : index
    %480 = vector.load %arg12[%c0_243, %c0_244] : memref<2x64xf32, #tpu.memory_space<vmem>>, vector<2x64xf32>
    tpu.vector_store %arg12[%c0_243, %c0_244], %476 {strides = array<i32>} : memref<2x64xf32, #tpu.memory_space<vmem>>, vector<2x64xf32>,
    %481 = arith.index_cast %c5_i32 : i32 to index
    %c0_245 = arith.constant 0 : index
    %c0_246 = arith.constant 0 : index
    %482 = vector.load %arg2[%481, %c0_245, %c0_246] : memref<8x2x20xf32, #tpu.memory_space<vmem>>, vector<1x2x20xf32>
    %483 = vector.shape_cast %482 : vector<1x2x20xf32> to vector<2x20xf32>
    %c0_247 = arith.constant 0 : index
    %c0_248 = arith.constant 0 : index
    %484 = vector.load %arg7[%c0_247, %c0_248] : memref<64x20xf32, #tpu.memory_space<vmem>>, vector<64x20xf32>
    %cst_249 = arith.constant dense<0.000000e+00> : vector<2x20xf32>
    %485 = tpu.matmul %478, %484, %cst_249 {dimension_numbers = #tpu.dot_dimension_numbers<[1], [0], [0], [1], [0, 0, 1, 1], [], []>} : vector<2x64xf32>, vector<64x20xf32>, vector<2x20xf32> -> vector<2x20xf32>
    %486 = arith.addf %483, %485 : vector<2x20xf32>
    %487 = arith.index_cast %c5_i32 : i32 to index
    %c0_250 = arith.constant 0 : index
    %c0_251 = arith.constant 0 : index
    %488 = vector.load %arg8[%487, %c0_250, %c0_251] : memref<8x2x20xf32, #tpu.memory_space<vmem>>, vector<1x2x20xf32>
    %489 = vector.shape_cast %488 : vector<1x2x20xf32> to vector<2x20xf32>
    %490 = vector.shape_cast %486 : vector<2x20xf32> to vector<1x2x20xf32>
    tpu.vector_store %arg8[%487, %c0_250, %c0_251], %490 {strides = array<i32>} : memref<8x2x20xf32, #tpu.memory_space<vmem>>, vector<1x2x20xf32>,
    %c6_i32 = arith.constant 6 : i32
    %491 = arith.index_cast %c6_i32 : i32 to index
    %c0_252 = arith.constant 0 : index
    %c0_253 = arith.constant 0 : index
    %492 = vector.load %arg1[%491, %c0_252, %c0_253] : memref<8x2x256xf32, #tpu.memory_space<vmem>>, vector<1x2x256xf32>
    %493 = vector.shape_cast %492 : vector<1x2x256xf32> to vector<2x256xf32>
    %c0_254 = arith.constant 0 : index
    %c0_255 = arith.constant 0 : index
    %494 = vector.load %arg9[%c0_254, %c0_255] : memref<2x64xf32, #tpu.memory_space<vmem>>, vector<2x64xf32>
    %c0_256 = arith.constant 0 : index
    %c0_257 = arith.constant 0 : index
    %495 = vector.load %arg3[%c0_256, %c0_257] : memref<64x256xf32, #tpu.memory_space<vmem>>, vector<64x256xf32>
    %cst_258 = arith.constant dense<0.000000e+00> : vector<2x256xf32>
    %496 = tpu.matmul %494, %495, %cst_258 {dimension_numbers = #tpu.dot_dimension_numbers<[1], [0], [0], [1], [0, 0, 1, 1], [], []>} : vector<2x64xf32>, vector<64x256xf32>, vector<2x256xf32> -> vector<2x256xf32>
    %497 = arith.addf %493, %496 : vector<2x256xf32>
    %c0_259 = arith.constant 0 : index
    %c0_260 = arith.constant 0 : index
    %498 = vector.load %arg10[%c0_259, %c0_260] : memref<2x64xf32, #tpu.memory_space<vmem>>, vector<2x64xf32>
    %499 = vector.extract_strided_slice %497 {offsets = [0, 0], sizes = [2, 64], strides = [1, 1]} : vector<2x256xf32> to vector<2x64xf32>
    %500 = arith.negf %499 : vector<2x64xf32>
    %501 = math.exp %500 : vector<2x64xf32>
    %cst_261 = arith.constant 1.000000e+00 : f32
    %502 = vector.broadcast %cst_261 : f32 to vector<2x64xf32>
    %503 = arith.addf %502, %501 : vector<2x64xf32>
    %504 = arith.divf %502, %503 : vector<2x64xf32>
    %505 = vector.extract_strided_slice %497 {offsets = [0, 64], sizes = [2, 64], strides = [1, 1]} : vector<2x256xf32> to vector<2x64xf32>
    %506 = arith.negf %505 : vector<2x64xf32>
    %507 = math.exp %506 : vector<2x64xf32>
    %cst_262 = arith.constant 1.000000e+00 : f32
    %508 = vector.broadcast %cst_262 : f32 to vector<2x64xf32>
    %509 = arith.addf %508, %507 : vector<2x64xf32>
    %510 = arith.divf %508, %509 : vector<2x64xf32>
    %511 = vector.extract_strided_slice %497 {offsets = [0, 128], sizes = [2, 64], strides = [1, 1]} : vector<2x256xf32> to vector<2x64xf32>
    %512 = math.tanh %511 : vector<2x64xf32>
    %513 = vector.extract_strided_slice %497 {offsets = [0, 192], sizes = [2, 64], strides = [1, 1]} : vector<2x256xf32> to vector<2x64xf32>
    %514 = arith.negf %513 : vector<2x64xf32>
    %515 = math.exp %514 : vector<2x64xf32>
    %cst_263 = arith.constant 1.000000e+00 : f32
    %516 = vector.broadcast %cst_263 : f32 to vector<2x64xf32>
    %517 = arith.addf %516, %515 : vector<2x64xf32>
    %518 = arith.divf %516, %517 : vector<2x64xf32>
    %519 = arith.mulf %510, %498 : vector<2x64xf32>
    %520 = arith.mulf %504, %512 : vector<2x64xf32>
    %521 = arith.addf %519, %520 : vector<2x64xf32>
    %522 = math.tanh %521 : vector<2x64xf32>
    %523 = arith.mulf %518, %522 : vector<2x64xf32>
    %c0_264 = arith.constant 0 : index
    %c0_265 = arith.constant 0 : index
    %524 = vector.load %arg9[%c0_264, %c0_265] : memref<2x64xf32, #tpu.memory_space<vmem>>, vector<2x64xf32>
    tpu.vector_store %arg9[%c0_264, %c0_265], %523 {strides = array<i32>} : memref<2x64xf32, #tpu.memory_space<vmem>>, vector<2x64xf32>,
    %c0_266 = arith.constant 0 : index
    %c0_267 = arith.constant 0 : index
    %525 = vector.load %arg10[%c0_266, %c0_267] : memref<2x64xf32, #tpu.memory_space<vmem>>, vector<2x64xf32>
    tpu.vector_store %arg10[%c0_266, %c0_267], %521 {strides = array<i32>} : memref<2x64xf32, #tpu.memory_space<vmem>>, vector<2x64xf32>,
    %c0_268 = arith.constant 0 : index
    %c0_269 = arith.constant 0 : index
    %526 = vector.load %arg4[%c0_268, %c0_269] : memref<64x256xf32, #tpu.memory_space<vmem>>, vector<64x256xf32>
    %cst_270 = arith.constant dense<0.000000e+00> : vector<2x256xf32>
    %527 = tpu.matmul %523, %526, %cst_270 {dimension_numbers = #tpu.dot_dimension_numbers<[1], [0], [0], [1], [0, 0, 1, 1], [], []>} : vector<2x64xf32>, vector<64x256xf32>, vector<2x256xf32> -> vector<2x256xf32>
    %c0_271 = arith.constant 0 : index
    %c0_272 = arith.constant 0 : index
    %528 = vector.load %arg11[%c0_271, %c0_272] : memref<2x64xf32, #tpu.memory_space<vmem>>, vector<2x64xf32>
    %c0_273 = arith.constant 0 : index
    %c0_274 = arith.constant 0 : index
    %529 = vector.load %arg5[%c0_273, %c0_274] : memref<64x256xf32, #tpu.memory_space<vmem>>, vector<64x256xf32>
    %cst_275 = arith.constant dense<0.000000e+00> : vector<2x256xf32>
    %530 = tpu.matmul %528, %529, %cst_275 {dimension_numbers = #tpu.dot_dimension_numbers<[1], [0], [0], [1], [0, 0, 1, 1], [], []>} : vector<2x64xf32>, vector<64x256xf32>, vector<2x256xf32> -> vector<2x256xf32>
    %531 = arith.addf %527, %530 : vector<2x256xf32>
    %532 = arith.addf %531, %10 : vector<2x256xf32>
    %c0_276 = arith.constant 0 : index
    %c0_277 = arith.constant 0 : index
    %533 = vector.load %arg12[%c0_276, %c0_277] : memref<2x64xf32, #tpu.memory_space<vmem>>, vector<2x64xf32>
    %534 = vector.extract_strided_slice %532 {offsets = [0, 0], sizes = [2, 64], strides = [1, 1]} : vector<2x256xf32> to vector<2x64xf32>
    %535 = arith.negf %534 : vector<2x64xf32>
    %536 = math.exp %535 : vector<2x64xf32>
    %cst_278 = arith.constant 1.000000e+00 : f32
    %537 = vector.broadcast %cst_278 : f32 to vector<2x64xf32>
    %538 = arith.addf %537, %536 : vector<2x64xf32>
    %539 = arith.divf %537, %538 : vector<2x64xf32>
    %540 = vector.extract_strided_slice %532 {offsets = [0, 64], sizes = [2, 64], strides = [1, 1]} : vector<2x256xf32> to vector<2x64xf32>
    %541 = arith.negf %540 : vector<2x64xf32>
    %542 = math.exp %541 : vector<2x64xf32>
    %cst_279 = arith.constant 1.000000e+00 : f32
    %543 = vector.broadcast %cst_279 : f32 to vector<2x64xf32>
    %544 = arith.addf %543, %542 : vector<2x64xf32>
    %545 = arith.divf %543, %544 : vector<2x64xf32>
    %546 = vector.extract_strided_slice %532 {offsets = [0, 128], sizes = [2, 64], strides = [1, 1]} : vector<2x256xf32> to vector<2x64xf32>
    %547 = math.tanh %546 : vector<2x64xf32>
    %548 = vector.extract_strided_slice %532 {offsets = [0, 192], sizes = [2, 64], strides = [1, 1]} : vector<2x256xf32> to vector<2x64xf32>
    %549 = arith.negf %548 : vector<2x64xf32>
    %550 = math.exp %549 : vector<2x64xf32>
    %cst_280 = arith.constant 1.000000e+00 : f32
    %551 = vector.broadcast %cst_280 : f32 to vector<2x64xf32>
    %552 = arith.addf %551, %550 : vector<2x64xf32>
    %553 = arith.divf %551, %552 : vector<2x64xf32>
    %554 = arith.mulf %545, %533 : vector<2x64xf32>
    %555 = arith.mulf %539, %547 : vector<2x64xf32>
    %556 = arith.addf %554, %555 : vector<2x64xf32>
    %557 = math.tanh %556 : vector<2x64xf32>
    %558 = arith.mulf %553, %557 : vector<2x64xf32>
    %c0_281 = arith.constant 0 : index
    %c0_282 = arith.constant 0 : index
    %559 = vector.load %arg11[%c0_281, %c0_282] : memref<2x64xf32, #tpu.memory_space<vmem>>, vector<2x64xf32>
    tpu.vector_store %arg11[%c0_281, %c0_282], %558 {strides = array<i32>} : memref<2x64xf32, #tpu.memory_space<vmem>>, vector<2x64xf32>,
    %c0_283 = arith.constant 0 : index
    %c0_284 = arith.constant 0 : index
    %560 = vector.load %arg12[%c0_283, %c0_284] : memref<2x64xf32, #tpu.memory_space<vmem>>, vector<2x64xf32>
    tpu.vector_store %arg12[%c0_283, %c0_284], %556 {strides = array<i32>} : memref<2x64xf32, #tpu.memory_space<vmem>>, vector<2x64xf32>,
    %561 = arith.index_cast %c6_i32 : i32 to index
    %c0_285 = arith.constant 0 : index
    %c0_286 = arith.constant 0 : index
    %562 = vector.load %arg2[%561, %c0_285, %c0_286] : memref<8x2x20xf32, #tpu.memory_space<vmem>>, vector<1x2x20xf32>
    %563 = vector.shape_cast %562 : vector<1x2x20xf32> to vector<2x20xf32>
    %c0_287 = arith.constant 0 : index
    %c0_288 = arith.constant 0 : index
    %564 = vector.load %arg7[%c0_287, %c0_288] : memref<64x20xf32, #tpu.memory_space<vmem>>, vector<64x20xf32>
    %cst_289 = arith.constant dense<0.000000e+00> : vector<2x20xf32>
    %565 = tpu.matmul %558, %564, %cst_289 {dimension_numbers = #tpu.dot_dimension_numbers<[1], [0], [0], [1], [0, 0, 1, 1], [], []>} : vector<2x64xf32>, vector<64x20xf32>, vector<2x20xf32> -> vector<2x20xf32>
    %566 = arith.addf %563, %565 : vector<2x20xf32>
    %567 = arith.index_cast %c6_i32 : i32 to index
    %c0_290 = arith.constant 0 : index
    %c0_291 = arith.constant 0 : index
    %568 = vector.load %arg8[%567, %c0_290, %c0_291] : memref<8x2x20xf32, #tpu.memory_space<vmem>>, vector<1x2x20xf32>
    %569 = vector.shape_cast %568 : vector<1x2x20xf32> to vector<2x20xf32>
    %570 = vector.shape_cast %566 : vector<2x20xf32> to vector<1x2x20xf32>
    tpu.vector_store %arg8[%567, %c0_290, %c0_291], %570 {strides = array<i32>} : memref<8x2x20xf32, #tpu.memory_space<vmem>>, vector<1x2x20xf32>,
    %c7_i32 = arith.constant 7 : i32
    %571 = arith.index_cast %c7_i32 : i32 to index
    %c0_292 = arith.constant 0 : index
    %c0_293 = arith.constant 0 : index
    %572 = vector.load %arg1[%571, %c0_292, %c0_293] : memref<8x2x256xf32, #tpu.memory_space<vmem>>, vector<1x2x256xf32>
    %573 = vector.shape_cast %572 : vector<1x2x256xf32> to vector<2x256xf32>
    %c0_294 = arith.constant 0 : index
    %c0_295 = arith.constant 0 : index
    %574 = vector.load %arg9[%c0_294, %c0_295] : memref<2x64xf32, #tpu.memory_space<vmem>>, vector<2x64xf32>
    %c0_296 = arith.constant 0 : index
    %c0_297 = arith.constant 0 : index
    %575 = vector.load %arg3[%c0_296, %c0_297] : memref<64x256xf32, #tpu.memory_space<vmem>>, vector<64x256xf32>
    %cst_298 = arith.constant dense<0.000000e+00> : vector<2x256xf32>
    %576 = tpu.matmul %574, %575, %cst_298 {dimension_numbers = #tpu.dot_dimension_numbers<[1], [0], [0], [1], [0, 0, 1, 1], [], []>} : vector<2x64xf32>, vector<64x256xf32>, vector<2x256xf32> -> vector<2x256xf32>
    %577 = arith.addf %573, %576 : vector<2x256xf32>
    %c0_299 = arith.constant 0 : index
    %c0_300 = arith.constant 0 : index
    %578 = vector.load %arg10[%c0_299, %c0_300] : memref<2x64xf32, #tpu.memory_space<vmem>>, vector<2x64xf32>
    %579 = vector.extract_strided_slice %577 {offsets = [0, 0], sizes = [2, 64], strides = [1, 1]} : vector<2x256xf32> to vector<2x64xf32>
    %580 = arith.negf %579 : vector<2x64xf32>
    %581 = math.exp %580 : vector<2x64xf32>
    %cst_301 = arith.constant 1.000000e+00 : f32
    %582 = vector.broadcast %cst_301 : f32 to vector<2x64xf32>
    %583 = arith.addf %582, %581 : vector<2x64xf32>
    %584 = arith.divf %582, %583 : vector<2x64xf32>
    %585 = vector.extract_strided_slice %577 {offsets = [0, 64], sizes = [2, 64], strides = [1, 1]} : vector<2x256xf32> to vector<2x64xf32>
    %586 = arith.negf %585 : vector<2x64xf32>
    %587 = math.exp %586 : vector<2x64xf32>
    %cst_302 = arith.constant 1.000000e+00 : f32
    %588 = vector.broadcast %cst_302 : f32 to vector<2x64xf32>
    %589 = arith.addf %588, %587 : vector<2x64xf32>
    %590 = arith.divf %588, %589 : vector<2x64xf32>
    %591 = vector.extract_strided_slice %577 {offsets = [0, 128], sizes = [2, 64], strides = [1, 1]} : vector<2x256xf32> to vector<2x64xf32>
    %592 = math.tanh %591 : vector<2x64xf32>
    %593 = vector.extract_strided_slice %577 {offsets = [0, 192], sizes = [2, 64], strides = [1, 1]} : vector<2x256xf32> to vector<2x64xf32>
    %594 = arith.negf %593 : vector<2x64xf32>
    %595 = math.exp %594 : vector<2x64xf32>
    %cst_303 = arith.constant 1.000000e+00 : f32
    %596 = vector.broadcast %cst_303 : f32 to vector<2x64xf32>
    %597 = arith.addf %596, %595 : vector<2x64xf32>
    %598 = arith.divf %596, %597 : vector<2x64xf32>
    %599 = arith.mulf %590, %578 : vector<2x64xf32>
    %600 = arith.mulf %584, %592 : vector<2x64xf32>
    %601 = arith.addf %599, %600 : vector<2x64xf32>
    %602 = math.tanh %601 : vector<2x64xf32>
    %603 = arith.mulf %598, %602 : vector<2x64xf32>
    %c0_304 = arith.constant 0 : index
    %c0_305 = arith.constant 0 : index
    %604 = vector.load %arg9[%c0_304, %c0_305] : memref<2x64xf32, #tpu.memory_space<vmem>>, vector<2x64xf32>
    tpu.vector_store %arg9[%c0_304, %c0_305], %603 {strides = array<i32>} : memref<2x64xf32, #tpu.memory_space<vmem>>, vector<2x64xf32>,
    %c0_306 = arith.constant 0 : index
    %c0_307 = arith.constant 0 : index
    %605 = vector.load %arg10[%c0_306, %c0_307] : memref<2x64xf32, #tpu.memory_space<vmem>>, vector<2x64xf32>
    tpu.vector_store %arg10[%c0_306, %c0_307], %601 {strides = array<i32>} : memref<2x64xf32, #tpu.memory_space<vmem>>, vector<2x64xf32>,
    %c0_308 = arith.constant 0 : index
    %c0_309 = arith.constant 0 : index
    %606 = vector.load %arg4[%c0_308, %c0_309] : memref<64x256xf32, #tpu.memory_space<vmem>>, vector<64x256xf32>
    %cst_310 = arith.constant dense<0.000000e+00> : vector<2x256xf32>
    %607 = tpu.matmul %603, %606, %cst_310 {dimension_numbers = #tpu.dot_dimension_numbers<[1], [0], [0], [1], [0, 0, 1, 1], [], []>} : vector<2x64xf32>, vector<64x256xf32>, vector<2x256xf32> -> vector<2x256xf32>
    %c0_311 = arith.constant 0 : index
    %c0_312 = arith.constant 0 : index
    %608 = vector.load %arg11[%c0_311, %c0_312] : memref<2x64xf32, #tpu.memory_space<vmem>>, vector<2x64xf32>
    %c0_313 = arith.constant 0 : index
    %c0_314 = arith.constant 0 : index
    %609 = vector.load %arg5[%c0_313, %c0_314] : memref<64x256xf32, #tpu.memory_space<vmem>>, vector<64x256xf32>
    %cst_315 = arith.constant dense<0.000000e+00> : vector<2x256xf32>
    %610 = tpu.matmul %608, %609, %cst_315 {dimension_numbers = #tpu.dot_dimension_numbers<[1], [0], [0], [1], [0, 0, 1, 1], [], []>} : vector<2x64xf32>, vector<64x256xf32>, vector<2x256xf32> -> vector<2x256xf32>
    %611 = arith.addf %607, %610 : vector<2x256xf32>
    %612 = arith.addf %611, %10 : vector<2x256xf32>
    %c0_316 = arith.constant 0 : index
    %c0_317 = arith.constant 0 : index
    %613 = vector.load %arg12[%c0_316, %c0_317] : memref<2x64xf32, #tpu.memory_space<vmem>>, vector<2x64xf32>
    %614 = vector.extract_strided_slice %612 {offsets = [0, 0], sizes = [2, 64], strides = [1, 1]} : vector<2x256xf32> to vector<2x64xf32>
    %615 = arith.negf %614 : vector<2x64xf32>
    %616 = math.exp %615 : vector<2x64xf32>
    %cst_318 = arith.constant 1.000000e+00 : f32
    %617 = vector.broadcast %cst_318 : f32 to vector<2x64xf32>
    %618 = arith.addf %617, %616 : vector<2x64xf32>
    %619 = arith.divf %617, %618 : vector<2x64xf32>
    %620 = vector.extract_strided_slice %612 {offsets = [0, 64], sizes = [2, 64], strides = [1, 1]} : vector<2x256xf32> to vector<2x64xf32>
    %621 = arith.negf %620 : vector<2x64xf32>
    %622 = math.exp %621 : vector<2x64xf32>
    %cst_319 = arith.constant 1.000000e+00 : f32
    %623 = vector.broadcast %cst_319 : f32 to vector<2x64xf32>
    %624 = arith.addf %623, %622 : vector<2x64xf32>
    %625 = arith.divf %623, %624 : vector<2x64xf32>
    %626 = vector.extract_strided_slice %612 {offsets = [0, 128], sizes = [2, 64], strides = [1, 1]} : vector<2x256xf32> to vector<2x64xf32>
    %627 = math.tanh %626 : vector<2x64xf32>
    %628 = vector.extract_strided_slice %612 {offsets = [0, 192], sizes = [2, 64], strides = [1, 1]} : vector<2x256xf32> to vector<2x64xf32>
    %629 = arith.negf %628 : vector<2x64xf32>
    %630 = math.exp %629 : vector<2x64xf32>
    %cst_320 = arith.constant 1.000000e+00 : f32
    %631 = vector.broadcast %cst_320 : f32 to vector<2x64xf32>
    %632 = arith.addf %631, %630 : vector<2x64xf32>
    %633 = arith.divf %631, %632 : vector<2x64xf32>
    %634 = arith.mulf %625, %613 : vector<2x64xf32>
    %635 = arith.mulf %619, %627 : vector<2x64xf32>
    %636 = arith.addf %634, %635 : vector<2x64xf32>
    %637 = math.tanh %636 : vector<2x64xf32>
    %638 = arith.mulf %633, %637 : vector<2x64xf32>
    %c0_321 = arith.constant 0 : index
    %c0_322 = arith.constant 0 : index
    %639 = vector.load %arg11[%c0_321, %c0_322] : memref<2x64xf32, #tpu.memory_space<vmem>>, vector<2x64xf32>
    tpu.vector_store %arg11[%c0_321, %c0_322], %638 {strides = array<i32>} : memref<2x64xf32, #tpu.memory_space<vmem>>, vector<2x64xf32>,
    %c0_323 = arith.constant 0 : index
    %c0_324 = arith.constant 0 : index
    %640 = vector.load %arg12[%c0_323, %c0_324] : memref<2x64xf32, #tpu.memory_space<vmem>>, vector<2x64xf32>
    tpu.vector_store %arg12[%c0_323, %c0_324], %636 {strides = array<i32>} : memref<2x64xf32, #tpu.memory_space<vmem>>, vector<2x64xf32>,
    %641 = arith.index_cast %c7_i32 : i32 to index
    %c0_325 = arith.constant 0 : index
    %c0_326 = arith.constant 0 : index
    %642 = vector.load %arg2[%641, %c0_325, %c0_326] : memref<8x2x20xf32, #tpu.memory_space<vmem>>, vector<1x2x20xf32>
    %643 = vector.shape_cast %642 : vector<1x2x20xf32> to vector<2x20xf32>
    %c0_327 = arith.constant 0 : index
    %c0_328 = arith.constant 0 : index
    %644 = vector.load %arg7[%c0_327, %c0_328] : memref<64x20xf32, #tpu.memory_space<vmem>>, vector<64x20xf32>
    %cst_329 = arith.constant dense<0.000000e+00> : vector<2x20xf32>
    %645 = tpu.matmul %638, %644, %cst_329 {dimension_numbers = #tpu.dot_dimension_numbers<[1], [0], [0], [1], [0, 0, 1, 1], [], []>} : vector<2x64xf32>, vector<64x20xf32>, vector<2x20xf32> -> vector<2x20xf32>
    %646 = arith.addf %643, %645 : vector<2x20xf32>
    %647 = arith.index_cast %c7_i32 : i32 to index
    %c0_330 = arith.constant 0 : index
    %c0_331 = arith.constant 0 : index
    %648 = vector.load %arg8[%647, %c0_330, %c0_331] : memref<8x2x20xf32, #tpu.memory_space<vmem>>, vector<1x2x20xf32>
    %649 = vector.shape_cast %648 : vector<1x2x20xf32> to vector<2x20xf32>
    %650 = vector.shape_cast %646 : vector<2x20xf32> to vector<1x2x20xf32>
    tpu.vector_store %arg8[%647, %c0_330, %c0_331], %650 {strides = array<i32>} : memref<8x2x20xf32, #tpu.memory_space<vmem>>, vector<1x2x20xf32>,
    %c8_i32 = arith.constant 8 : i32
    return
  }
  func.func @transform_0(%arg0: i32) -> (i32, i32, i32) {
    %c0_i32 = arith.constant 0 : i32
    %c0_i32_0 = arith.constant 0 : i32
    %c0_i32_1 = arith.constant 0 : i32
    %c0_i32_2 = arith.constant 0 : i32
    return %c0_i32, %c0_i32_0, %c0_i32_1 : i32, i32, i32
  }
  func.func @transform_1(%arg0: i32) -> (i32, i32, i32) {
    %c0_i32 = arith.constant 0 : i32
    %c0_i32_0 = arith.constant 0 : i32
    %c0_i32_1 = arith.constant 0 : i32
    %c0_i32_2 = arith.constant 0 : i32
    return %c0_i32, %c0_i32_0, %c0_i32_1 : i32, i32, i32
  }
  func.func @transform_2(%arg0: i32) -> (i32, i32) {
    %c0_i32 = arith.constant 0 : i32
    %c0_i32_0 = arith.constant 0 : i32
    %c0_i32_1 = arith.constant 0 : i32
    return %c0_i32, %c0_i32_0 : i32, i32
  }
  func.func @transform_3(%arg0: i32) -> (i32, i32) {
    %c0_i32 = arith.constant 0 : i32
    %c0_i32_0 = arith.constant 0 : i32
    %c0_i32_1 = arith.constant 0 : i32
    return %c0_i32, %c0_i32_0 : i32, i32
  }
  func.func @transform_4(%arg0: i32) -> (i32, i32) {
    %c0_i32 = arith.constant 0 : i32
    %c0_i32_0 = arith.constant 0 : i32
    %c0_i32_1 = arith.constant 0 : i32
    return %c0_i32, %c0_i32_0 : i32, i32
  }
  func.func @transform_5(%arg0: i32) -> (i32, i32) {
    %c0_i32 = arith.constant 0 : i32
    %c0_i32_0 = arith.constant 0 : i32
    %c0_i32_1 = arith.constant 0 : i32
    return %c0_i32, %c0_i32_0 : i32, i32
  }
  func.func @transform_6(%arg0: i32) -> (i32, i32) {
    %c0_i32 = arith.constant 0 : i32
    %c0_i32_0 = arith.constant 0 : i32
    %c0_i32_1 = arith.constant 0 : i32
    return %c0_i32, %c0_i32_0 : i32, i32
  }
  func.func @transform_7(%arg0: i32) -> (i32, i32, i32) {
    %c0_i32 = arith.constant 0 : i32
    %c0_i32_0 = arith.constant 0 : i32
    %c0_i32_1 = arith.constant 0 : i32
    %c0_i32_2 = arith.constant 0 : i32
    return %c0_i32, %c0_i32_0, %c0_i32_1 : i32, i32, i32
  }
}

</mosaic_0001>

<llo_original>
// kernel: tacotron2_decoder_forward.3
$region0: #{tacotron2_decoder_forward.3}
  #allocation0 [shape = 'u32[]', space=smem, size = 0x4, offset = 0x4, fixed_abs, tag = 'smem constant byte address 0x4 - core index']
  #allocation1 [shape = 'u32[144,128]{1,0:T(1,128)}', space=vmem, size = 0x12000, scoped, tag = 'internal scratch']
  %s0 = inlined_call_operand.vmem [shape: f32[16,20], index: 0, kind: input, shape index: {}]
  %s1 = inlined_call_operand.vmem [shape: f32[16,48], index: 1, kind: input, shape index: {}]
  %s2 = inlined_call_operand.vmem [shape: f32[20,32], index: 2, kind: input, shape index: {}]
  %s3 = inlined_call_operand.vmem [shape: f32[1,32], index: 3, kind: input, shape index: {}]
  %s4 = inlined_call_operand.hbm [shape: f32[32,32], index: 4, kind: input, shape index: {}]
  %s5 = inlined_call_operand.hbm [shape: f32[1,32], index: 5, kind: input, shape index: {}]
  %s6 = inlined_call_operand.vmem [shape: f32[48,256], index: 6, kind: input, shape index: {}]
  %s7 = inlined_call_operand.vmem [shape: f32[32,256], index: 7, kind: input, shape index: {}]
  %s8 = inlined_call_operand.hbm [shape: f32[1,256], index: 8, kind: input, shape index: {}]
  %s9 = inlined_call_operand.vmem [shape: f32[48,20], index: 9, kind: input, shape index: {}]
  %s10 = inlined_call_operand.vmem [shape: f32[16,256], index: 10, kind: output, shape index: {0}]
  %s11 = inlined_call_operand.vmem [shape: f32[16,20], index: 11, kind: output, shape index: {1}]
  %12 = xla_tuple %s10, %s11
  %s13 = sld [smem:[#allocation0]]
  $region70: #{tacotron2_decoder_forward.3} parent=0
    _
  %s15 = ssub.s32 1, %s13
  %s16 = scalar_select 0, %s15, %s13
  $region1: #{tacotron2_decoder_forward.3} parent=0
    #allocation2 [shape = 'u8[16384]{0}', space=vmem, size = 0x4000, scoped, tag = 'input window, operand 4, single buffered']
    #allocation3 [shape = 's32[1]{0}', space=sflag, size = 0x4, scoped, tag = 'scoped memory for tacotron2_decoder_forward.3']
    #allocation4 [shape = 'u8[512]{0}', space=vmem, size = 0x400, scoped, tag = 'input window, operand 5, single buffered']
    #allocation5 [shape = 's32[1]{0}', space=sflag, size = 0x4, scoped, tag = 'scoped memory for tacotron2_decoder_forward.3']
    #allocation6 [shape = 'u8[1024]{0}', space=vmem, size = 0x400, scoped, tag = 'input window, operand 8, single buffered']
    %17 = vsyncpa [#allocation3], 0
    %18 = vsyncpa [#allocation5], 0
    // Predicated region
    $region2: #{tacotron2_decoder_forward.3} parent=1 // pred_check
      _
    $region3: #{tacotron2_decoder_forward.3} parent=1 // pred_check_branch
      %20 = sbr.rel (0) target = $region5
    $region4: #{tacotron2_decoder_forward.3} parent=1 // pred_region
      _
    $region5: #{tacotron2_decoder_forward.3} parent=1 // pred_fallthru
      _
    // Predicated region
    $region6: #{tacotron2_decoder_forward.3} parent=1 // pred_check
      _
    $region7: #{tacotron2_decoder_forward.3} parent=1 // pred_check_branch
      %22 = sbr.rel (0) target = $region9
    $region8: #{tacotron2_decoder_forward.3} parent=1 // pred_region
      _
    $region9: #{tacotron2_decoder_forward.3} parent=1 // pred_fallthru
      _
    // Predicated region
    $region10: #{tacotron2_decoder_forward.3} parent=1 // pred_check
      _
    $region11: #{tacotron2_decoder_forward.3} parent=1 // pred_check_branch
      %24 = sbr.rel (0) target = $region13
    $region12: #{tacotron2_decoder_forward.3} parent=1 // pred_region
      _
    $region13: #{tacotron2_decoder_forward.3} parent=1 // pred_fallthru
      _
    // Predicated region
    $region14: #{tacotron2_decoder_forward.3} parent=1 // pred_check
      _
    $region15: #{tacotron2_decoder_forward.3} parent=1 // pred_check_branch
      %26 = sbr.rel (0) target = $region17
    $region16: #{tacotron2_decoder_forward.3} parent=1 // pred_region
      _
    $region17: #{tacotron2_decoder_forward.3} parent=1 // pred_fallthru
      _
    // Predicated region
    $region18: #{tacotron2_decoder_forward.3} parent=1 // pred_check
      _
    $region19: #{tacotron2_decoder_forward.3} parent=1 // pred_check_branch
      %28 = sbr.rel (0) target = $region21
    $region20: #{tacotron2_decoder_forward.3} parent=1 // pred_region
      %s30 = ssub.s32 512, 512
      %31 = vsyncadd [#allocation3], %s30
      %s32 = sshll.u32 [#allocation2], 4
      %s33 = int_to_ptr.vmem [resolvable:$true] %s32
      %38 = dma.hbm_to_vmem [thread:$0]  %s4, 512, %s33, [#allocation3], 128, 128, 8
    $region21: #{tacotron2_decoder_forward.3} parent=1 // pred_fallthru
      _
    // Predicated region
    $region22: #{tacotron2_decoder_forward.3} parent=1 // pred_check
      _
    $region23: #{tacotron2_decoder_forward.3} parent=1 // pred_check_branch
      %40 = sbr.rel (0) target = $region25
    $region24: #{tacotron2_decoder_forward.3} parent=1 // pred_region
      %s42 = ssub.s32 16, 16
      %43 = vsyncadd [#allocation5], %s42
      %s45 = sshll.u32 [#allocation4], 4
      %s46 = int_to_ptr.vmem [resolvable:$true] %s45
      %48 = dma.hbm_to_vmem [thread:$0]  %s5, 16, %s46, [#allocation5]
    $region25: #{tacotron2_decoder_forward.3} parent=1 // pred_fallthru
      _
    // Predicated region
    $region26: #{tacotron2_decoder_forward.3} parent=1 // pred_check
      _
    $region27: #{tacotron2_decoder_forward.3} parent=1 // pred_check_branch
      %50 = sbr.rel (0) target = $region29
    $region28: #{tacotron2_decoder_forward.3} parent=1 // pred_region
      _
    $region29: #{tacotron2_decoder_forward.3} parent=1 // pred_fallthru
      _
    // Predicated region
    $region30: #{tacotron2_decoder_forward.3} parent=1 // pred_check
      _
    $region31: #{tacotron2_decoder_forward.3} parent=1 // pred_check_branch
      %52 = sbr.rel (0) target = $region33
    $region32: #{tacotron2_decoder_forward.3} parent=1 // pred_region
      _
    $region33: #{tacotron2_decoder_forward.3} parent=1 // pred_fallthru
      _
    // Predicated region
    $region34: #{tacotron2_decoder_forward.3} parent=1 // pred_check
      _
    $region35: #{tacotron2_decoder_forward.3} parent=1 // pred_check_branch
      %54 = sbr.rel (0) target = $region37
    $region36: #{tacotron2_decoder_forward.3} parent=1 // pred_region
      %s56 = ssub.s32 32, 32
      %57 = vsyncadd [#allocation5], %s56
      %s59 = sshll.u32 [#allocation6], 4
      %s60 = int_to_ptr.vmem [resolvable:$true] %s59
      %62 = dma.hbm_to_vmem [thread:$0]  %s8, 32, %s60, [#allocation5]
    $region37: #{tacotron2_decoder_forward.3} parent=1 // pred_fallthru
      _
    // Predicated region
    $region38: #{tacotron2_decoder_forward.3} parent=1 // pred_check
      _
    $region39: #{tacotron2_decoder_forward.3} parent=1 // pred_check_branch
      %64 = sbr.rel (0) target = $region41
    $region40: #{tacotron2_decoder_forward.3} parent=1 // pred_region
      _
    $region41: #{tacotron2_decoder_forward.3} parent=1 // pred_fallthru
      _
    // Predicated region
    $region42: #{tacotron2_decoder_forward.3} parent=1 // pred_check
      _
    $region43: #{tacotron2_decoder_forward.3} parent=1 // pred_check_branch
      %66 = sbr.rel (0) target = $region45
    $region44: #{tacotron2_decoder_forward.3} parent=1 // pred_region
      %67 = dma.done [#allocation3], 512
    $region45: #{tacotron2_decoder_forward.3} parent=1 // pred_fallthru
      _
    // Predicated region
    $region46: #{tacotron2_decoder_forward.3} parent=1 // pred_check
      _
    $region47: #{tacotron2_decoder_forward.3} parent=1 // pred_check_branch
      %69 = sbr.rel (0) target = $region49
    $region48: #{tacotron2_decoder_forward.3} parent=1 // pred_region
      %70 = dma.done [#allocation5], 16
    $region49: #{tacotron2_decoder_forward.3} parent=1 // pred_fallthru
      _
    // Predicated region
    $region50: #{tacotron2_decoder_forward.3} parent=1 // pred_check
      _
    $region51: #{tacotron2_decoder_forward.3} parent=1 // pred_check_branch
      %72 = sbr.rel (0) target = $region53
    $region52: #{tacotron2_decoder_forward.3} parent=1 // pred_region
      %73 = dma.done [#allocation5], 32
    $region53: #{tacotron2_decoder_forward.3} parent=1 // pred_fallthru
      _
    %v74 = vld [vmem:[%s0] sm:$0xff]
    %v75 = vld [vmem:[%s0 + $0x8] sm:$0xff]
    %v76 = vld [vmem:[%s2] sm:$0xff]
    %v77 = vld [vmem:[%s2 + $0x8] sm:$0xff]
    %v78 = vld [vmem:[%s2 + $0x10] sm:$0xf]
    %v79 = vld [vmem:[%s3] sm:$0x1]
    %v81 = vlaneseq
    %v82 = vshrl.u32 %v81, 7
    %v83 = vsub.s32 0, %v82
    %v84 = vrot.slane %v79, %v83
    %vm86 = vcmask 162816
    %v88 = vsel %vm86, %v74, 0
    %v91 = vsel %vm86, %v75, 0
    %vm93 = vcmask 1043456
    %v95 = vsel %vm93, %v78, 0
    %97 = vmatprep.subr.mxu0 0.0
    %98 = vmatpush1.msra.mxu0 %v76
    %99 = vmatprep.subr.mxu0 0.0
    %100 = vmatpush1.msra.mxu0 %v77
    %101 = vmatprep.subr.mxu0 0.0
    %102 = vmatpush1.msra.mxu0 %v95
    %103 = vmatprep.subr.mxu0 0.0
    %104 = vmatpush1.msra.mxu0 0.0
    %105 = vmatprep.subr.mxu0 0.0
    %106 = vmatpush1.msra.mxu0 0.0
    %107 = vmatprep.subr.mxu0 0.0
    %108 = vmatpush1.msra.mxu0 0.0
    %109 = vmatprep.subr.mxu0 0.0
    %110 = vmatpush1.msra.mxu0 0.0
    %111 = vmatprep.subr.mxu0 0.0
    %112 = vmatpush1.msra.mxu0 0.0
    %113 = vmatprep.subr.mxu0 0.0
    %114 = vmatpush1.msra.mxu0 0.0
    %115 = vmatprep.subr.mxu0 0.0
    %116 = vmatpush1.msra.mxu0 0.0
    %117 = vmatprep.subr.mxu0 0.0
    %118 = vmatpush1.msra.mxu0 0.0
    %119 = vmatprep.subr.mxu0 0.0
    %120 = vmatpush1.msra.mxu0 0.0
    %121 = vmatprep.subr.mxu0 0.0
    %122 = vmatpush1.msra.mxu0 0.0
    %123 = vmatprep.subr.mxu0 0.0
    %124 = vmatpush1.msra.mxu0 0.0
    %125 = vmatprep.subr.mxu0 0.0
    %126 = vmatpush1.msra.mxu0 0.0
    %127 = vmatprep.subr.mxu0 0.0
    %128 = vmatpush1.msra.mxu0 0.0
    %129 = vmatprep.subr.mxu0 0.0
    %130 = vmatpush1.msra.mxu0 0.0
    %131 = vmatprep.subr.mxu0 0.0
    %132 = vmatpush1.msra.mxu0 0.0
    %133 = vmatprep.subr.mxu0 0.0
    %134 = vmatpush1.msra.mxu0 0.0
    %135 = vmatprep.subr.mxu0 0.0
    %136 = vmatpush1.msra.mxu0 0.0
    %137 = vmatprep.subr.mxu0 0.0
    %138 = vmatpush1.msra.mxu0 0.0
    %139 = vmatprep.subr.mxu0 0.0
    %140 = vmatpush1.msra.mxu0 0.0
    %141 = vmatprep.subr.mxu0 0.0
    %142 = vmatpush1.msra.mxu0 0.0
    %143 = vmatprep.subr.mxu0 0.0
    %144 = vmatpush1.msra.mxu0 0.0
    %145 = vmatprep.subr.mxu0 0.0
    %146 = vmatpush1.msra.mxu0 0.0
    %147 = vmatprep.subr.mxu0 0.0
    %148 = vmatpush1.msra.mxu0 0.0
    %149 = vmatprep.subr.mxu0 0.0
    %150 = vmatpush1.msra.mxu0 0.0
    %151 = vmatprep.subr.mxu0 0.0
    %152 = vmatpush1.msra.mxu0 0.0
    %153 = vmatprep.subr.mxu0 0.0
    %154 = vmatpush1.msra.mxu0 0.0
    %155 = vmatprep.subr.mxu0 0.0
    %156 = vmatpush1.msra.mxu0 0.0
    %157 = vmatprep.subr.mxu0 0.0
    %158 = vmatpush1.msra.mxu0 0.0
    %159 = vmatprep.subr.mxu0 0.0
    %160 = vmatpush1.msra.mxu0 0.0
    %161 = vmatprep.mubr.f32.mxu0 0.0
    %162 = vmatmul.mubr.f32.gmra.mrb[0].mxu0 %v88
    %v163 = vpop.f32.mrb[0].mxu0
    %v164 = vadd.f32 %v84, %v163
    %v165 = vpop.f32.mrb[0].mxu0
    %166 = vmatprep.mubr.f32.mxu0 0.0
    %167 = vmatmul.mubr.f32.gmra.mrb[0].mxu0 %v91
    %v168 = vpop.f32.mrb[0].mxu0
    %v169 = vadd.f32 %v84, %v168
    %v170 = vpop.f32.mrb[0].mxu0
    %171 = vdwg.mxu0
    %v172 = vmax.f32 %v164, 0.0
    %v173 = vmax.f32 %v169, 0.0
    %v174 = vld [vmem:[#allocation2] sm:$0xff]
    %v175 = vld [vmem:[#allocation2 + $0x8] sm:$0xff]
    %v176 = vld [vmem:[#allocation2 + $0x10] sm:$0xff]
    %v177 = vld [vmem:[#allocation2 + $0x18] sm:$0xff]
    %v178 = vld [vmem:[#allocation4] sm:$0x1]
    %v180 = vlaneseq
    %v181 = vshrl.u32 %v180, 7
    %v182 = vsub.s32 0, %v181
    %v183 = vrot.slane %v178, %v182
    %vm185 = vcmask 261120
    %v187 = vsel %vm185, %v172, 0
    %v190 = vsel %vm185, %v173, 0
    %192 = vmatprep.subr.mxu0 0.0
    %193 = vmatpush1.msra.mxu0 %v174
    %194 = vmatprep.subr.mxu0 0.0
    %195 = vmatpush1.msra.mxu0 %v175
    %196 = vmatprep.subr.mxu0 0.0
    %197 = vmatpush1.msra.mxu0 %v176
    %198 = vmatprep.subr.mxu0 0.0
    %199 = vmatpush1.msra.mxu0 %v177
    %200 = vmatprep.subr.mxu0 0.0
    %201 = vmatpush1.msra.mxu0 0.0
    %202 = vmatprep.subr.mxu0 0.0
    %203 = vmatpush1.msra.mxu0 0.0
    %204 = vmatprep.subr.mxu0 0.0
    %205 = vmatpush1.msra.mxu0 0.0
    %206 = vmatprep.subr.mxu0 0.0
    %207 = vmatpush1.msra.mxu0 0.0
    %208 = vmatprep.subr.mxu0 0.0
    %209 = vmatpush1.msra.mxu0 0.0
    %210 = vmatprep.subr.mxu0 0.0
    %211 = vmatpush1.msra.mxu0 0.0
    %212 = vmatprep.subr.mxu0 0.0
    %213 = vmatpush1.msra.mxu0 0.0
    %214 = vmatprep.subr.mxu0 0.0
    %215 = vmatpush1.msra.mxu0 0.0
    %216 = vmatprep.subr.mxu0 0.0
    %217 = vmatpush1.msra.mxu0 0.0
    %218 = vmatprep.subr.mxu0 0.0
    %219 = vmatpush1.msra.mxu0 0.0
    %220 = vmatprep.subr.mxu0 0.0
    %221 = vmatpush1.msra.mxu0 0.0
    %222 = vmatprep.subr.mxu0 0.0
    %223 = vmatpush1.msra.mxu0 0.0
    %224 = vmatprep.subr.mxu0 0.0
    %225 = vmatpush1.msra.mxu0 0.0
    %226 = vmatprep.subr.mxu0 0.0
    %227 = vmatpush1.msra.mxu0 0.0
    %228 = vmatprep.subr.mxu0 0.0
    %229 = vmatpush1.msra.mxu0 0.0
    %230 = vmatprep.subr.mxu0 0.0
    %231 = vmatpush1.msra.mxu0 0.0
    %232 = vmatprep.subr.mxu0 0.0
    %233 = vmatpush1.msra.mxu0 0.0
    %234 = vmatprep.subr.mxu0 0.0
    %235 = vmatpush1.msra.mxu0 0.0
    %236 = vmatprep.subr.mxu0 0.0
    %237 = vmatpush1.msra.mxu0 0.0
    %238 = vmatprep.subr.mxu0 0.0
    %239 = vmatpush1.msra.mxu0 0.0
    %240 = vmatprep.subr.mxu0 0.0
    %241 = vmatpush1.msra.mxu0 0.0
    %242 = vmatprep.subr.mxu0 0.0
    %243 = vmatpush1.msra.mxu0 0.0
    %244 = vmatprep.subr.mxu0 0.0
    %245 = vmatpush1.msra.mxu0 0.0
    %246 = vmatprep.subr.mxu0 0.0
    %247 = vmatpush1.msra.mxu0 0.0
    %248 = vmatprep.subr.mxu0 0.0
    %249 = vmatpush1.msra.mxu0 0.0
    %250 = vmatprep.subr.mxu0 0.0
    %251 = vmatpush1.msra.mxu0 0.0
    %252 = vmatprep.subr.mxu0 0.0
    %253 = vmatpush1.msra.mxu0 0.0
    %254 = vmatprep.subr.mxu0 0.0
    %255 = vmatpush1.msra.mxu0 0.0
    %256 = vmatprep.mubr.f32.mxu0 0.0
    %257 = vmatmul.mubr.f32.gmra.mrb[0].mxu0 %v187
    %v258 = vpop.f32.mrb[0].mxu0
    %v259 = vadd.f32 %v183, %v258
    %v260 = vpop.f32.mrb[0].mxu0
    %261 = vmatprep.mubr.f32.mxu0 0.0
    %262 = vmatmul.mubr.f32.gmra.mrb[0].mxu0 %v190
    %v263 = vpop.f32.mrb[0].mxu0
    %v264 = vadd.f32 %v183, %v263
    %v265 = vpop.f32.mrb[0].mxu0
    %266 = vdwg.mxu0
    %v267 = vmax.f32 %v259, 0.0
    %v268 = vmax.f32 %v264, 0.0
    %v269 = vld [vmem:[%s1] sm:$0xff]
    %v270 = vld [vmem:[%s1 + $0x8] sm:$0xff]
    %v271 = vld [vmem:[%s6] sm:$0xff]
    %v272 = vld [vmem:[%s6 + $0x8] sm:$0xff]
    %v273 = vld [vmem:[%s6 + $0x10] sm:$0xff]
    %v274 = vld [vmem:[%s6 + $0x18] sm:$0xff]
    %v275 = vld [vmem:[%s6 + $0x20] sm:$0xff]
    %v276 = vld [vmem:[%s6 + $0x28] sm:$0xff]
    %v277 = vld [vmem:[%s6 + $0x30] sm:$0xff]
    %v278 = vld [vmem:[%s6 + $0x38] sm:$0xff]
    %v279 = vld [vmem:[%s6 + $0x40] sm:$0xff]
    %v280 = vld [vmem:[%s6 + $0x48] sm:$0xff]
    %v281 = vld [vmem:[%s6 + $0x50] sm:$0xff]
    %v282 = vld [vmem:[%s6 + $0x58] sm:$0xff]
    %v283 = vld [vmem:[%s7] sm:$0xff]
    %v284 = vld [vmem:[%s7 + $0x8] sm:$0xff]
    %v285 = vld [vmem:[%s7 + $0x10] sm:$0xff]
    %v286 = vld [vmem:[%s7 + $0x18] sm:$0xff]
    %v287 = vld [vmem:[%s7 + $0x20] sm:$0xff]
    %v288 = vld [vmem:[%s7 + $0x28] sm:$0xff]
    %v289 = vld [vmem:[%s7 + $0x30] sm:$0xff]
    %v290 = vld [vmem:[%s7 + $0x38] sm:$0xff]
    %v292 = vsel %vm185, %v267, 0
    %v295 = vsel %vm185, %v268, 0
    %297 = vmatprep.subr.mxu0 %v284
    %298 = vmatpush1.msra.mxu0 %v283
    %299 = vmatprep.subr.mxu0 %v286
    %300 = vmatpush1.msra.mxu0 %v285
    %301 = vmatprep.subr.mxu0 %v288
    %302 = vmatpush1.msra.mxu0 %v287
    %303 = vmatprep.subr.mxu0 %v290
    %304 = vmatpush1.msra.mxu0 %v289
    %305 = vmatprep.subr.mxu0 0.0
    %306 = vmatpush1.msra.mxu0 0.0
    %307 = vmatprep.subr.mxu0 0.0
    %308 = vmatpush1.msra.mxu0 0.0
    %309 = vmatprep.subr.mxu0 0.0
    %310 = vmatpush1.msra.mxu0 0.0
    %311 = vmatprep.subr.mxu0 0.0
    %312 = vmatpush1.msra.mxu0 0.0
    %313 = vmatprep.subr.mxu0 0.0
    %314 = vmatpush1.msra.mxu0 0.0
    %315 = vmatprep.subr.mxu0 0.0
    %316 = vmatpush1.msra.mxu0 0.0
    %317 = vmatprep.subr.mxu0 0.0
    %318 = vmatpush1.msra.mxu0 0.0
    %319 = vmatprep.subr.mxu0 0.0
    %320 = vmatpush1.msra.mxu0 0.0
    %321 = vmatprep.subr.mxu0 0.0
    %322 = vmatpush1.msra.mxu0 0.0
    %323 = vmatprep.subr.mxu0 0.0
    %324 = vmatpush1.msra.mxu0 0.0
    %325 = vmatprep.subr.mxu0 0.0
    %326 = vmatpush1.msra.mxu0 0.0
    %327 = vmatprep.subr.mxu0 0.0
    %328 = vmatpush1.msra.mxu0 0.0
    %329 = vmatprep.subr.mxu0 0.0
    %330 = vmatpush1.msra.mxu0 0.0
    %331 = vmatprep.subr.mxu0 0.0
    %332 = vmatpush1.msra.mxu0 0.0
    %333 = vmatprep.subr.mxu0 0.0
    %334 = vmatpush1.msra.mxu0 0.0
    %335 = vmatprep.subr.mxu0 0.0
    %336 = vmatpush1.msra.mxu0 0.0
    %337 = vmatprep.subr.mxu0 0.0
    %338 = vmatpush1.msra.mxu0 0.0
    %339 = vmatprep.subr.mxu0 0.0
    %340 = vmatpush1.msra.mxu0 0.0
    %341 = vmatprep.subr.mxu0 0.0
    %342 = vmatpush1.msra.mxu0 0.0
    %343 = vmatprep.subr.mxu0 0.0
    %344 = vmatpush1.msra.mxu0 0.0
    %345 = vmatprep.subr.mxu0 0.0
    %346 = vmatpush1.msra.mxu0 0.0
    %347 = vmatprep.subr.mxu0 0.0
    %348 = vmatpush1.msra.mxu0 0.0
    %349 = vmatprep.subr.mxu0 0.0
    %350 = vmatpush1.msra.mxu0 0.0
    %351 = vmatprep.subr.mxu0 0.0
    %352 = vmatpush1.msra.mxu0 0.0
    %353 = vmatprep.subr.mxu0 0.0
    %354 = vmatpush1.msra.mxu0 0.0
    %355 = vmatprep.subr.mxu0 0.0
    %356 = vmatpush1.msra.mxu0 0.0
    %357 = vmatprep.subr.mxu0 0.0
    %358 = vmatpush1.msra.mxu0 0.0
    %359 = vmatprep.subr.mxu0 0.0
    %360 = vmatpush1.msra.mxu0 0.0
    %361 = vmatprep.mubr.f32.mxu0 0.0
    %362 = vmatmul.mubr.f32.gmra.mrb[0].mxu0 %v292
    %v363 = vpop.f32.mrb[0].mxu0
    %v364 = vadd.f32 0.0, %v363
    %v365 = vpop.f32.mrb[0].mxu0
    %v366 = vadd.f32 0.0, %v365
    %367 = vmatprep.mubr.f32.mxu0 0.0
    %368 = vmatmul.mubr.f32.gmra.mrb[0].mxu0 %v295
    %v369 = vpop.f32.mrb[0].mxu0
    %v370 = vadd.f32 0.0, %v369
    %v371 = vpop.f32.mrb[0].mxu0
    %v372 = vadd.f32 0.0, %v371
    %373 = vdwg.mxu0
    %vm374 = vcmask 392192
    %v376 = vsel %vm374, %v269, 0
    %v379 = vsel %vm374, %v270, 0
    %381 = vmatprep.subr.mxu0 %v272
    %382 = vmatpush1.msra.mxu0 %v271
    %383 = vmatprep.subr.mxu0 %v274
    %384 = vmatpush1.msra.mxu0 %v273
    %385 = vmatprep.subr.mxu0 %v276
    %386 = vmatpush1.msra.mxu0 %v275
    %387 = vmatprep.subr.mxu0 %v278
    %388 = vmatpush1.msra.mxu0 %v277
    %389 = vmatprep.subr.mxu0 %v280
    %390 = vmatpush1.msra.mxu0 %v279
    %391 = vmatprep.subr.mxu0 %v282
    %392 = vmatpush1.msra.mxu0 %v281
    %393 = vmatprep.subr.mxu0 0.0
    %394 = vmatpush1.msra.mxu0 0.0
    %395 = vmatprep.subr.mxu0 0.0
    %396 = vmatpush1.msra.mxu0 0.0
    %397 = vmatprep.subr.mxu0 0.0
    %398 = vmatpush1.msra.mxu0 0.0
    %399 = vmatprep.subr.mxu0 0.0
    %400 = vmatpush1.msra.mxu0 0.0
    %401 = vmatprep.subr.mxu0 0.0
    %402 = vmatpush1.msra.mxu0 0.0
    %403 = vmatprep.subr.mxu0 0.0
    %404 = vmatpush1.msra.mxu0 0.0
    %405 = vmatprep.subr.mxu0 0.0
    %406 = vmatpush1.msra.mxu0 0.0
    %407 = vmatprep.subr.mxu0 0.0
    %408 = vmatpush1.msra.mxu0 0.0
    %409 = vmatprep.subr.mxu0 0.0
    %410 = vmatpush1.msra.mxu0 0.0
    %411 = vmatprep.subr.mxu0 0.0
    %412 = vmatpush1.msra.mxu0 0.0
    %413 = vmatprep.subr.mxu0 0.0
    %414 = vmatpush1.msra.mxu0 0.0
    %415 = vmatprep.subr.mxu0 0.0
    %416 = vmatpush1.msra.mxu0 0.0
    %417 = vmatprep.subr.mxu0 0.0
    %418 = vmatpush1.msra.mxu0 0.0
    %419 = vmatprep.subr.mxu0 0.0
    %420 = vmatpush1.msra.mxu0 0.0
    %421 = vmatprep.subr.mxu0 0.0
    %422 = vmatpush1.msra.mxu0 0.0
    %423 = vmatprep.subr.mxu0 0.0
    %424 = vmatpush1.msra.mxu0 0.0
    %425 = vmatprep.subr.mxu0 0.0
    %426 = vmatpush1.msra.mxu0 0.0
    %427 = vmatprep.subr.mxu0 0.0
    %428 = vmatpush1.msra.mxu0 0.0
    %429 = vmatprep.subr.mxu0 0.0
    %430 = vmatpush1.msra.mxu0 0.0
    %431 = vmatprep.subr.mxu0 0.0
    %432 = vmatpush1.msra.mxu0 0.0
    %433 = vmatprep.subr.mxu0 0.0
    %434 = vmatpush1.msra.mxu0 0.0
    %435 = vmatprep.subr.mxu0 0.0
    %436 = vmatpush1.msra.mxu0 0.0
    %437 = vmatprep.subr.mxu0 0.0
    %438 = vmatpush1.msra.mxu0 0.0
    %439 = vmatprep.subr.mxu0 0.0
    %440 = vmatpush1.msra.mxu0 0.0
    %441 = vmatprep.subr.mxu0 0.0
    %442 = vmatpush1.msra.mxu0 0.0
    %443 = vmatprep.subr.mxu0 0.0
    %444 = vmatpush1.msra.mxu0 0.0
    %445 = vmatprep.mubr.f32.mxu0 0.0
    %446 = vmatmul.mubr.f32.gmra.mrb[0].mxu0 %v376
    %v447 = vpop.f32.mrb[0].mxu0
    %v448 = vadd.f32 %v364, %v447
    %v449 = vpop.f32.mrb[0].mxu0
    %v450 = vadd.f32 %v366, %v449
    %451 = vmatprep.mubr.f32.mxu0 0.0
    %452 = vmatmul.mubr.f32.gmra.mrb[0].mxu0 %v379
    %v453 = vpop.f32.mrb[0].mxu0
    %v454 = vadd.f32 %v370, %v453
    %v455 = vpop.f32.mrb[0].mxu0
    %v456 = vadd.f32 %v372, %v455
    %457 = vdwg.mxu0
    %v458 = vld [vmem:[#allocation6] sm:$0x3]
    %v460 = vlaneseq
    %v461 = vshrl.u32 %v460, 7
    %v462 = vsub.s32 0, %v461
    %v463 = vrot.slane %v458, %v462
    %v464 = vlaneseq
    %v465 = vshrl.u32 %v464, 7
    %v466 = vsub.s32 1, %v465
    %v467 = vrot.slane %v458, %v466
    %v470 = vadd.f32 %v448, %v463
    %v471 = vadd.f32 %v450, %v467
    %v472 = vadd.f32 %v454, %v463
    %v473 = vadd.f32 %v456, %v467
    %474 = vst [vmem:[%s10] sm:$0xff] %v470
    %475 = vst [vmem:[%s10 + $0x8] sm:$0xff] %v471
    %476 = vst [vmem:[%s10 + $0x10] sm:$0xff] %v472
    %477 = vst [vmem:[%s10 + $0x18] sm:$0xff] %v473
    %v478 = vld [vmem:[%s9] sm:$0xff]
    %v479 = vld [vmem:[%s9 + $0x8] sm:$0xff]
    %v480 = vld [vmem:[%s9 + $0x10] sm:$0xff]
    %v481 = vld [vmem:[%s9 + $0x18] sm:$0xff]
    %v482 = vld [vmem:[%s9 + $0x20] sm:$0xff]
    %v483 = vld [vmem:[%s9 + $0x28] sm:$0xff]
    %484 = vmatprep.subr.mxu0 0.0
    %485 = vmatpush1.msra.mxu0 %v478
    %486 = vmatprep.subr.mxu0 0.0
    %487 = vmatpush1.msra.mxu0 %v479
    %488 = vmatprep.subr.mxu0 0.0
    %489 = vmatpush1.msra.mxu0 %v480
    %490 = vmatprep.subr.mxu0 0.0
    %491 = vmatpush1.msra.mxu0 %v481
    %492 = vmatprep.subr.mxu0 0.0
    %493 = vmatpush1.msra.mxu0 %v482
    %494 = vmatprep.subr.mxu0 0.0
    %495 = vmatpush1.msra.mxu0 %v483
    %496 = vmatprep.subr.mxu0 0.0
    %497 = vmatpush1.msra.mxu0 0.0
    %498 = vmatprep.subr.mxu0 0.0
    %499 = vmatpush1.msra.mxu0 0.0
    %500 = vmatprep.subr.mxu0 0.0
    %501 = vmatpush1.msra.mxu0 0.0
    %502 = vmatprep.subr.mxu0 0.0
    %503 = vmatpush1.msra.mxu0 0.0
    %504 = vmatprep.subr.mxu0 0.0
    %505 = vmatpush1.msra.mxu0 0.0
    %506 = vmatprep.subr.mxu0 0.0
    %507 = vmatpush1.msra.mxu0 0.0
    %508 = vmatprep.subr.mxu0 0.0
    %509 = vmatpush1.msra.mxu0 0.0
    %510 = vmatprep.subr.mxu0 0.0
    %511 = vmatpush1.msra.mxu0 0.0
    %512 = vmatprep.subr.mxu0 0.0
    %513 = vmatpush1.msra.mxu0 0.0
    %514 = vmatprep.subr.mxu0 0.0
    %515 = vmatpush1.msra.mxu0 0.0
    %516 = vmatprep.subr.mxu0 0.0
    %517 = vmatpush1.msra.mxu0 0.0
    %518 = vmatprep.subr.mxu0 0.0
    %519 = vmatpush1.msra.mxu0 0.0
    %520 = vmatprep.subr.mxu0 0.0
    %521 = vmatpush1.msra.mxu0 0.0
    %522 = vmatprep.subr.mxu0 0.0
    %523 = vmatpush1.msra.mxu0 0.0
    %524 = vmatprep.subr.mxu0 0.0
    %525 = vmatpush1.msra.mxu0 0.0
    %526 = vmatprep.subr.mxu0 0.0
    %527 = vmatpush1.msra.mxu0 0.0
    %528 = vmatprep.subr.mxu0 0.0
    %529 = vmatpush1.msra.mxu0 0.0
    %530 = vmatprep.subr.mxu0 0.0
    %531 = vmatpush1.msra.mxu0 0.0
    %532 = vmatprep.subr.mxu0 0.0
    %533 = vmatpush1.msra.mxu0 0.0
    %534 = vmatprep.subr.mxu0 0.0
    %535 = vmatpush1.msra.mxu0 0.0
    %536 = vmatprep.subr.mxu0 0.0
    %537 = vmatpush1.msra.mxu0 0.0
    %538 = vmatprep.subr.mxu0 0.0
    %539 = vmatpush1.msra.mxu0 0.0
    %540 = vmatprep.subr.mxu0 0.0
    %541 = vmatpush1.msra.mxu0 0.0
    %542 = vmatprep.subr.mxu0 0.0
    %543 = vmatpush1.msra.mxu0 0.0
    %544 = vmatprep.subr.mxu0 0.0
    %545 = vmatpush1.msra.mxu0 0.0
    %546 = vmatprep.subr.mxu0 0.0
    %547 = vmatpush1.msra.mxu0 0.0
    %548 = vmatprep.mubr.f32.mxu0 0.0
    %549 = vmatmul.mubr.f32.gmra.mrb[0].mxu0 %v376
    %v550 = vpop.f32.mrb[0].mxu0
    %v551 = vadd.f32 0.0, %v550
    %v552 = vpop.f32.mrb[0].mxu0
    %553 = vmatprep.mubr.f32.mxu0 0.0
    %554 = vmatmul.mubr.f32.gmra.mrb[0].mxu0 %v379
    %v555 = vpop.f32.mrb[0].mxu0
    %v556 = vadd.f32 0.0, %v555
    %v557 = vpop.f32.mrb[0].mxu0
    %558 = vdwg.mxu0
    %559 = vst.msk [vmem:[%s11] sm:$0xff] %vm86, %v551
    %560 = vst.msk [vmem:[%s11 + $0x8] sm:$0xff] %vm86, %v556
    // Predicated region
    $region54: #{tacotron2_decoder_forward.3} parent=1 // pred_check
      _
    $region55: #{tacotron2_decoder_forward.3} parent=1 // pred_check_branch
      %562 = sbr.rel (0) target = $region57
    $region56: #{tacotron2_decoder_forward.3} parent=1 // pred_region
      _
    $region57: #{tacotron2_decoder_forward.3} parent=1 // pred_fallthru
      _
    // Predicated region
    $region58: #{tacotron2_decoder_forward.3} parent=1 // pred_check
      _
    $region59: #{tacotron2_decoder_forward.3} parent=1 // pred_check_branch
      %564 = sbr.rel (0) target = $region61
    $region60: #{tacotron2_decoder_forward.3} parent=1 // pred_region
      _
    $region61: #{tacotron2_decoder_forward.3} parent=1 // pred_fallthru
      _
    // Predicated region
    $region62: #{tacotron2_decoder_forward.3} parent=1 // pred_check
      _
    $region63: #{tacotron2_decoder_forward.3} parent=1 // pred_check_branch
      %566 = sbr.rel (0) target = $region65
    $region64: #{tacotron2_decoder_forward.3} parent=1 // pred_region
      _
    $region65: #{tacotron2_decoder_forward.3} parent=1 // pred_fallthru
      _
    // Predicated region
    $region66: #{tacotron2_decoder_forward.3} parent=1 // pred_check
      _
    $region67: #{tacotron2_decoder_forward.3} parent=1 // pred_check_branch
      %568 = sbr.rel (0) target = $region69
    $region68: #{tacotron2_decoder_forward.3} parent=1 // pred_region
      _
    $region69: #{tacotron2_decoder_forward.3} parent=1 // pred_fallthru
      _
    %569 = vsyncpa [#allocation3], 1
    %570 = vsyncpa [#allocation5], 1

// kernel: tacotron2_decoder_forward.5
$region0: #{tacotron2_decoder_forward.5}
  #allocation0 [shape = 'u32[]', space=smem, size = 0x4, offset = 0x4, fixed_abs, tag = 'smem constant byte address 0x4 - core index']
  #allocation1 [shape = 'u32[144,128]{1,0:T(1,128)}', space=vmem, size = 0x12000, scoped, tag = 'internal scratch']
  #allocation2 [shape = 'f32[12,20]{1,0:T(8,128)}', space=vmem, size = 0x2000, scoped, tag = 'scratch operand']
  #allocation3 [shape = 'f32[12,32]{1,0:T(8,128)}', space=vmem, size = 0x2000, scoped, tag = 'scratch operand']
  #allocation4 [shape = 'f32[12,32]{1,0:T(8,128)}', space=vmem, size = 0x2000, scoped, tag = 'scratch operand']
  %s0 = inlined_call_operand.vmem [shape: f32[2,8,20], index: 0, kind: input, shape index: {}]
  %s1 = inlined_call_operand.vmem [shape: f32[100,32], index: 1, kind: input, shape index: {}]
  %s2 = inlined_call_operand.vmem [shape: f32[160,32], index: 2, kind: input, shape index: {}]
  %s3 = inlined_call_operand.vmem [shape: f32[160,20], index: 3, kind: input, shape index: {}]
  %s4 = inlined_call_operand.vmem [shape: s32[2,1], index: 4, kind: input, shape index: {}]
  %s5 = inlined_call_operand.hbm [shape: f32[2,8,20], index: 5, kind: output, shape index: {0}]
  %s6 = inlined_call_operand.hbm [shape: f32[2,8,20], index: 6, kind: output, shape index: {1}]
  %7 = xla_tuple %s5, %s6
  %s8 = sld [smem:[#allocation0]]
  $region38: #{tacotron2_decoder_forward.5} parent=0
    _
  %s10 = ssub.s32 1, %s8
  %s11 = scalar_select 0, %s10, %s8
  $region1: #{tacotron2_decoder_forward.5} parent=0
    #allocation5 [shape = 'u8[8192]{0}', space=vmem, size = 0x2000, scoped, tag = 'output window, operand 0, single buffered']
    #allocation6 [shape = 's32[1]{0}', space=sflag, size = 0x4, scoped, tag = 'scoped memory for tacotron2_decoder_forward.5']
    #allocation7 [shape = 'u8[8192]{0}', space=vmem, size = 0x2000, scoped, tag = 'output window, operand 1, single buffered']
    #allocation8 [shape = 's32[1]{0}', space=sflag, size = 0x4, scoped, tag = 'scoped memory for tacotron2_decoder_forward.5']
    %12 = vsyncpa [#allocation6], 0
    %13 = vsyncpa [#allocation8], 0
    // Predicated region
    $region2: #{tacotron2_decoder_forward.5} parent=1 // pred_check
      _
    $region3: #{tacotron2_decoder_forward.5} parent=1 // pred_check_branch
      %15 = sbr.rel (0) target = $region5
    $region4: #{tacotron2_decoder_forward.5} parent=1 // pred_region
      _
    $region5: #{tacotron2_decoder_forward.5} parent=1 // pred_fallthru
      _
    // Predicated region
    $region6: #{tacotron2_decoder_forward.5} parent=1 // pred_check
      _
    $region7: #{tacotron2_decoder_forward.5} parent=1 // pred_check_branch
      %17 = sbr.rel (0) target = $region9
    $region8: #{tacotron2_decoder_forward.5} parent=1 // pred_region
      _
    $region9: #{tacotron2_decoder_forward.5} parent=1 // pred_fallthru
      _
    // Predicated region
    $region10: #{tacotron2_decoder_forward.5} parent=1 // pred_check
      _
    $region11: #{tacotron2_decoder_forward.5} parent=1 // pred_check_branch
      %19 = sbr.rel (0) target = $region13
    $region12: #{tacotron2_decoder_forward.5} parent=1 // pred_region
      _
    $region13: #{tacotron2_decoder_forward.5} parent=1 // pred_fallthru
      _
    // Predicated region
    $region14: #{tacotron2_decoder_forward.5} parent=1 // pred_check
      _
    $region15: #{tacotron2_decoder_forward.5} parent=1 // pred_check_branch
      %21 = sbr.rel (0) target = $region17
    $region16: #{tacotron2_decoder_forward.5} parent=1 // pred_region
      _
    $region17: #{tacotron2_decoder_forward.5} parent=1 // pred_fallthru
      _
    // Predicated region
    $region18: #{tacotron2_decoder_forward.5} parent=1 // pred_check
      _
    $region19: #{tacotron2_decoder_forward.5} parent=1 // pred_check_branch
      %23 = sbr.rel (0) target = $region21
    $region20: #{tacotron2_decoder_forward.5} parent=1 // pred_region
      _
    $region21: #{tacotron2_decoder_forward.5} parent=1 // pred_fallthru
      _
    %vm24 = vcmask 162816
    %25 = vst.msk [vmem:[#allocation2] sm:$0xff] %vm24, 0.0
    %vm26 = vcmask 158720
    %27 = vst.msk [vmem:[#allocation2 + $0x8] sm:$0xf] %vm26, 0.0
    %vm28 = vcmask 261120
    %29 = vst.msk [vmem:[#allocation3] sm:$0xff] %vm28, 0.0
    %vm30 = vcmask 257024
    %31 = vst.msk [vmem:[#allocation3 + $0x8] sm:$0xf] %vm30, 0.0
    %32 = vst.msk [vmem:[#allocation4] sm:$0xff] %vm28, 0.0
    %33 = vst.msk [vmem:[#allocation4 + $0x8] sm:$0xf] %vm30, 0.0
    %v34 = vld [vmem:[%s0] sm:$0xff]
    %35 = vst.msk [vmem:[#allocation2 + $0x2] sm:$0xff] %vm24, %v34
    %v36 = vld [vmem:[#allocation2] sm:$0xff]
    %v37 = vld [vmem:[#allocation2 + $0x1] sm:$0xff]
    %v38 = vld [vmem:[#allocation2 + $0x2] sm:$0xff]
    %v39 = vld [vmem:[#allocation2 + $0x3] sm:$0xff]
    %v40 = vld [vmem:[#allocation2 + $0x4] sm:$0xff]
    %42 = vrot.lane.b32.xlu0 %v37, 20
    %v43 = vpop.permute.xlu0 %42
    %46 = vrot.lane.b32.xlu0 %v38, 40
    %v47 = vpop.permute.xlu0 %46
    %50 = vrot.lane.b32.xlu0 %v39, 60
    %v51 = vpop.permute.xlu0 %50
    %54 = vrot.lane.b32.xlu0 %v40, 80
    %v55 = vpop.permute.xlu0 %54
    %v57 = vsel %vm24, %v36, %v43
    %vm58 = vcmask 326656
    %v59 = vsel %vm58, %v57, %v47
    %vm60 = vcmask 490496
    %v61 = vsel %vm60, %v59, %v51
    %vm62 = vcmask 654336
    %v63 = vsel %vm62, %v61, %v55
    %v64 = vld [vmem:[%s1] sm:$0xff]
    %v65 = vld [vmem:[%s1 + $0x8] sm:$0xff]
    %v66 = vld [vmem:[%s1 + $0x10] sm:$0xff]
    %v67 = vld [vmem:[%s1 + $0x18] sm:$0xff]
    %v68 = vld [vmem:[%s1 + $0x20] sm:$0xff]
    %v69 = vld [vmem:[%s1 + $0x28] sm:$0xff]
    %v70 = vld [vmem:[%s1 + $0x30] sm:$0xff]
    %v71 = vld [vmem:[%s1 + $0x38] sm:$0xff]
    %v72 = vld [vmem:[%s1 + $0x40] sm:$0xff]
    %v73 = vld [vmem:[%s1 + $0x48] sm:$0xff]
    %v74 = vld [vmem:[%s1 + $0x50] sm:$0xff]
    %v75 = vld [vmem:[%s1 + $0x58] sm:$0xff]
    %v76 = vld [vmem:[%s1 + $0x60] sm:$0xf]
    %vm77 = vcmask 818176
    %v79 = vsel %vm77, %v63, 0
    %vm81 = vcmask 1043456
    %v83 = vsel %vm81, %v76, 0
    %85 = vmatprep.subr.mxu0 0.0
    %86 = vmatpush1.msra.mxu0 %v64
    %87 = vmatprep.subr.mxu0 0.0
    %88 = vmatpush1.msra.mxu0 %v65
    %89 = vmatprep.subr.mxu0 0.0
    %90 = vmatpush1.msra.mxu0 %v66
    %91 = vmatprep.subr.mxu0 0.0
    %92 = vmatpush1.msra.mxu0 %v67
    %93 = vmatprep.subr.mxu0 0.0
    %94 = vmatpush1.msra.mxu0 %v68
    %95 = vmatprep.subr.mxu0 0.0
    %96 = vmatpush1.msra.mxu0 %v69
    %97 = vmatprep.subr.mxu0 0.0
    %98 = vmatpush1.msra.mxu0 %v70
    %99 = vmatprep.subr.mxu0 0.0
    %100 = vmatpush1.msra.mxu0 %v71
    %101 = vmatprep.subr.mxu0 0.0
    %102 = vmatpush1.msra.mxu0 %v72
    %103 = vmatprep.subr.mxu0 0.0
    %104 = vmatpush1.msra.mxu0 %v73
    %105 = vmatprep.subr.mxu0 0.0
    %106 = vmatpush1.msra.mxu0 %v74
    %107 = vmatprep.subr.mxu0 0.0
    %108 = vmatpush1.msra.mxu0 %v75
    %109 = vmatprep.subr.mxu0 0.0
    %110 = vmatpush1.msra.mxu0 %v83
    %111 = vmatprep.subr.mxu0 0.0
    %112 = vmatpush1.msra.mxu0 0.0
    %113 = vmatprep.subr.mxu0 0.0
    %114 = vmatpush1.msra.mxu0 0.0
    %115 = vmatprep.subr.mxu0 0.0
    %116 = vmatpush1.msra.mxu0 0.0
    %117 = vmatprep.subr.mxu0 0.0
    %118 = vmatpush1.msra.mxu0 0.0
    %119 = vmatprep.subr.mxu0 0.0
    %120 = vmatpush1.msra.mxu0 0.0
    %121 = vmatprep.subr.mxu0 0.0
    %122 = vmatpush1.msra.mxu0 0.0
    %123 = vmatprep.subr.mxu0 0.0
    %124 = vmatpush1.msra.mxu0 0.0
    %125 = vmatprep.subr.mxu0 0.0
    %126 = vmatpush1.msra.mxu0 0.0
    %127 = vmatprep.subr.mxu0 0.0
    %128 = vmatpush1.msra.mxu0 0.0
    %129 = vmatprep.subr.mxu0 0.0
    %130 = vmatpush1.msra.mxu0 0.0
    %131 = vmatprep.subr.mxu0 0.0
    %132 = vmatpush1.msra.mxu0 0.0
    %133 = vmatprep.subr.mxu0 0.0
    %134 = vmatpush1.msra.mxu0 0.0
    %135 = vmatprep.subr.mxu0 0.0
    %136 = vmatpush1.msra.mxu0 0.0
    %137 = vmatprep.subr.mxu0 0.0
    %138 = vmatpush1.msra.mxu0 0.0
    %139 = vmatprep.subr.mxu0 0.0
    %140 = vmatpush1.msra.mxu0 0.0
    %141 = vmatprep.subr.mxu0 0.0
    %142 = vmatpush1.msra.mxu0 0.0
    %143 = vmatprep.subr.mxu0 0.0
    %144 = vmatpush1.msra.mxu0 0.0
    %145 = vmatprep.subr.mxu0 0.0
    %146 = vmatpush1.msra.mxu0 0.0
    %147 = vmatprep.subr.mxu0 0.0
    %148 = vmatpush1.msra.mxu0 0.0
    %149 = vmatprep.mubr.f32.mxu0 0.0
    %150 = vmatmul.mubr.f32.gmra.mrb[0].mxu0 %v79
    %v151 = vpop.f32.mrb[0].mxu0
    %v152 = vadd.f32 0.0, %v151
    %v153 = vpop.f32.mrb[0].mxu0
    %154 = vdwg.mxu0
    %v155 = vtanh.pop %v152
    %156 = vst.msk [vmem:[#allocation3 + $0x2] sm:$0xff] %vm28, %v155
    %v157 = vld [vmem:[#allocation3] sm:$0xff]
    %v158 = vld [vmem:[#allocation3 + $0x1] sm:$0xff]
    %v159 = vld [vmem:[#allocation3 + $0x2] sm:$0xff]
    %v160 = vld [vmem:[#allocation3 + $0x3] sm:$0xff]
    %v161 = vld [vmem:[#allocation3 + $0x4] sm:$0xff]
    %163 = vrot.lane.b32.xlu0 %v158, 32
    %v164 = vpop.permute.xlu0 %163
    %167 = vrot.lane.b32.xlu0 %v159, 64
    %v168 = vpop.permute.xlu0 %167
    %171 = vrot.lane.b32.xlu0 %v160, 96
    %v172 = vpop.permute.xlu0 %171
    %v174 = vsel %vm28, %v157, %v164
    %vm175 = vcmask 523264
    %v176 = vsel %vm175, %v174, %v168
    %vm177 = vcmask 785408
    %v178 = vsel %vm177, %v176, %v172
    %v179 = vld [vmem:[%s2] sm:$0xff]
    %v180 = vld [vmem:[%s2 + $0x8] sm:$0xff]
    %v181 = vld [vmem:[%s2 + $0x10] sm:$0xff]
    %v182 = vld [vmem:[%s2 + $0x18] sm:$0xff]
    %v183 = vld [vmem:[%s2 + $0x20] sm:$0xff]
    %v184 = vld [vmem:[%s2 + $0x28] sm:$0xff]
    %v185 = vld [vmem:[%s2 + $0x30] sm:$0xff]
    %v186 = vld [vmem:[%s2 + $0x38] sm:$0xff]
    %v187 = vld [vmem:[%s2 + $0x40] sm:$0xff]
    %v188 = vld [vmem:[%s2 + $0x48] sm:$0xff]
    %v189 = vld [vmem:[%s2 + $0x50] sm:$0xff]
    %v190 = vld [vmem:[%s2 + $0x58] sm:$0xff]
    %v191 = vld [vmem:[%s2 + $0x60] sm:$0xff]
    %v192 = vld [vmem:[%s2 + $0x68] sm:$0xff]
    %v193 = vld [vmem:[%s2 + $0x70] sm:$0xff]
    %v194 = vld [vmem:[%s2 + $0x78] sm:$0xff]
    %v195 = vld [vmem:[%s2 + $0x80] sm:$0xff]
    %v196 = vld [vmem:[%s2 + $0x88] sm:$0xff]
    %v197 = vld [vmem:[%s2 + $0x90] sm:$0xff]
    %v198 = vld [vmem:[%s2 + $0x98] sm:$0xff]
    %v200 = vsel %vm28, %v161, 0
    %202 = vmatprep.subr.mxu0 0.0
    %203 = vmatpush1.msra.mxu0 %v179
    %204 = vmatprep.subr.mxu0 0.0
    %205 = vmatpush1.msra.mxu0 %v180
    %206 = vmatprep.subr.mxu0 0.0
    %207 = vmatpush1.msra.mxu0 %v181
    %208 = vmatprep.subr.mxu0 0.0
    %209 = vmatpush1.msra.mxu0 %v182
    %210 = vmatprep.subr.mxu0 0.0
    %211 = vmatpush1.msra.mxu0 %v183
    %212 = vmatprep.subr.mxu0 0.0
    %213 = vmatpush1.msra.mxu0 %v184
    %214 = vmatprep.subr.mxu0 0.0
    %215 = vmatpush1.msra.mxu0 %v185
    %216 = vmatprep.subr.mxu0 0.0
    %217 = vmatpush1.msra.mxu0 %v186
    %218 = vmatprep.subr.mxu0 0.0
    %219 = vmatpush1.msra.mxu0 %v187
    %220 = vmatprep.subr.mxu0 0.0
    %221 = vmatpush1.msra.mxu0 %v188
    %222 = vmatprep.subr.mxu0 0.0
    %223 = vmatpush1.msra.mxu0 %v189
    %224 = vmatprep.subr.mxu0 0.0
    %225 = vmatpush1.msra.mxu0 %v190
    %226 = vmatprep.subr.mxu0 0.0
    %227 = vmatpush1.msra.mxu0 %v191
    %228 = vmatprep.subr.mxu0 0.0
    %229 = vmatpush1.msra.mxu0 %v192
    %230 = vmatprep.subr.mxu0 0.0
    %231 = vmatpush1.msra.mxu0 %v193
    %232 = vmatprep.subr.mxu0 0.0
    %233 = vmatpush1.msra.mxu0 %v194
    %234 = vmatprep.subr.mxu0 0.0
    %235 = vmatpush1.msra.mxu0 %v195
    %236 = vmatprep.subr.mxu0 0.0
    %237 = vmatpush1.msra.mxu0 %v196
    %238 = vmatprep.subr.mxu0 0.0
    %239 = vmatpush1.msra.mxu0 %v197
    %240 = vmatprep.subr.mxu0 0.0
    %241 = vmatpush1.msra.mxu0 %v198
    %242 = vmatprep.subr.mxu0 0.0
    %243 = vmatpush1.msra.mxu0 0.0
    %244 = vmatprep.subr.mxu0 0.0
    %245 = vmatpush1.msra.mxu0 0.0
    %246 = vmatprep.subr.mxu0 0.0
    %247 = vmatpush1.msra.mxu0 0.0
    %248 = vmatprep.subr.mxu0 0.0
    %249 = vmatpush1.msra.mxu0 0.0
    %250 = vmatprep.subr.mxu0 0.0
    %251 = vmatpush1.msra.mxu0 0.0
    %252 = vmatprep.subr.mxu0 0.0
    %253 = vmatpush1.msra.mxu0 0.0
    %254 = vmatprep.subr.mxu0 0.0
    %255 = vmatpush1.msra.mxu0 0.0
    %256 = vmatprep.subr.mxu0 0.0
    %257 = vmatpush1.msra.mxu0 0.0
    %258 = vmatprep.subr.mxu0 0.0
    %259 = vmatpush1.msra.mxu0 0.0
    %260 = vmatprep.subr.mxu0 0.0
    %261 = vmatpush1.msra.mxu0 0.0
    %262 = vmatprep.subr.mxu0 0.0
    %263 = vmatpush1.msra.mxu0 0.0
    %264 = vmatprep.subr.mxu0 0.0
    %265 = vmatpush1.msra.mxu0 0.0
    %266 = vmatprep.mubr.f32.mxu0 %v200
    %267 = vmatmul.mubr.f32.gmra.mrb[0].mxu0 %v178
    %v268 = vpop.f32.mrb[0].mxu0
    %v269 = vadd.f32 0.0, %v268
    %v270 = vpop.f32.mrb[0].mxu0
    %271 = vdwg.mxu0
    %v272 = vtanh.pop %v269
    %273 = vst.msk [vmem:[#allocation4 + $0x2] sm:$0xff] %vm28, %v272
    %v274 = vld [vmem:[#allocation4] sm:$0xff]
    %v275 = vld [vmem:[#allocation4 + $0x1] sm:$0xff]
    %v276 = vld [vmem:[#allocation4 + $0x2] sm:$0xff]
    %v277 = vld [vmem:[#allocation4 + $0x3] sm:$0xff]
    %v278 = vld [vmem:[#allocation4 + $0x4] sm:$0xff]
    %280 = vrot.lane.b32.xlu0 %v275, 32
    %v281 = vpop.permute.xlu0 %280
    %284 = vrot.lane.b32.xlu0 %v276, 64
    %v285 = vpop.permute.xlu0 %284
    %288 = vrot.lane.b32.xlu0 %v277, 96
    %v289 = vpop.permute.xlu0 %288
    %v291 = vsel %vm28, %v274, %v281
    %v292 = vsel %vm175, %v291, %v285
    %v293 = vsel %vm177, %v292, %v289
    %v294 = vld [vmem:[%s3] sm:$0xff]
    %v295 = vld [vmem:[%s3 + $0x8] sm:$0xff]
    %v296 = vld [vmem:[%s3 + $0x10] sm:$0xff]
    %v297 = vld [vmem:[%s3 + $0x18] sm:$0xff]
    %v298 = vld [vmem:[%s3 + $0x20] sm:$0xff]
    %v299 = vld [vmem:[%s3 + $0x28] sm:$0xff]
    %v300 = vld [vmem:[%s3 + $0x30] sm:$0xff]
    %v301 = vld [vmem:[%s3 + $0x38] sm:$0xff]
    %v302 = vld [vmem:[%s3 + $0x40] sm:$0xff]
    %v303 = vld [vmem:[%s3 + $0x48] sm:$0xff]
    %v304 = vld [vmem:[%s3 + $0x50] sm:$0xff]
    %v305 = vld [vmem:[%s3 + $0x58] sm:$0xff]
    %v306 = vld [vmem:[%s3 + $0x60] sm:$0xff]
    %v307 = vld [vmem:[%s3 + $0x68] sm:$0xff]
    %v308 = vld [vmem:[%s3 + $0x70] sm:$0xff]
    %v309 = vld [vmem:[%s3 + $0x78] sm:$0xff]
    %v310 = vld [vmem:[%s3 + $0x80] sm:$0xff]
    %v311 = vld [vmem:[%s3 + $0x88] sm:$0xff]
    %v312 = vld [vmem:[%s3 + $0x90] sm:$0xff]
    %v313 = vld [vmem:[%s3 + $0x98] sm:$0xff]
    %v315 = vsel %vm28, %v278, 0
    %317 = vmatprep.subr.mxu0 0.0
    %318 = vmatpush1.msra.mxu0 %v294
    %319 = vmatprep.subr.mxu0 0.0
    %320 = vmatpush1.msra.mxu0 %v295
    %321 = vmatprep.subr.mxu0 0.0
    %322 = vmatpush1.msra.mxu0 %v296
    %323 = vmatprep.subr.mxu0 0.0
    %324 = vmatpush1.msra.mxu0 %v297
    %325 = vmatprep.subr.mxu0 0.0
    %326 = vmatpush1.msra.mxu0 %v298
    %327 = vmatprep.subr.mxu0 0.0
    %328 = vmatpush1.msra.mxu0 %v299
    %329 = vmatprep.subr.mxu0 0.0
    %330 = vmatpush1.msra.mxu0 %v300
    %331 = vmatprep.subr.mxu0 0.0
    %332 = vmatpush1.msra.mxu0 %v301
    %333 = vmatprep.subr.mxu0 0.0
    %334 = vmatpush1.msra.mxu0 %v302
    %335 = vmatprep.subr.mxu0 0.0
    %336 = vmatpush1.msra.mxu0 %v303
    %337 = vmatprep.subr.mxu0 0.0
    %338 = vmatpush1.msra.mxu0 %v304
    %339 = vmatprep.subr.mxu0 0.0
    %340 = vmatpush1.msra.mxu0 %v305
    %341 = vmatprep.subr.mxu0 0.0
    %342 = vmatpush1.msra.mxu0 %v306
    %343 = vmatprep.subr.mxu0 0.0
    %344 = vmatpush1.msra.mxu0 %v307
    %345 = vmatprep.subr.mxu0 0.0
    %346 = vmatpush1.msra.mxu0 %v308
    %347 = vmatprep.subr.mxu0 0.0
    %348 = vmatpush1.msra.mxu0 %v309
    %349 = vmatprep.subr.mxu0 0.0
    %350 = vmatpush1.msra.mxu0 %v310
    %351 = vmatprep.subr.mxu0 0.0
    %352 = vmatpush1.msra.mxu0 %v311
    %353 = vmatprep.subr.mxu0 0.0
    %354 = vmatpush1.msra.mxu0 %v312
    %355 = vmatprep.subr.mxu0 0.0
    %356 = vmatpush1.msra.mxu0 %v313
    %357 = vmatprep.subr.mxu0 0.0
    %358 = vmatpush1.msra.mxu0 0.0
    %359 = vmatprep.subr.mxu0 0.0
    %360 = vmatpush1.msra.mxu0 0.0
    %361 = vmatprep.subr.mxu0 0.0
    %362 = vmatpush1.msra.mxu0 0.0
    %363 = vmatprep.subr.mxu0 0.0
    %364 = vmatpush1.msra.mxu0 0.0
    %365 = vmatprep.subr.mxu0 0.0
    %366 = vmatpush1.msra.mxu0 0.0
    %367 = vmatprep.subr.mxu0 0.0
    %368 = vmatpush1.msra.mxu0 0.0
    %369 = vmatprep.subr.mxu0 0.0
    %370 = vmatpush1.msra.mxu0 0.0
    %371 = vmatprep.subr.mxu0 0.0
    %372 = vmatpush1.msra.mxu0 0.0
    %373 = vmatprep.subr.mxu0 0.0
    %374 = vmatpush1.msra.mxu0 0.0
    %375 = vmatprep.subr.mxu0 0.0
    %376 = vmatpush1.msra.mxu0 0.0
    %377 = vmatprep.subr.mxu0 0.0
    %378 = vmatpush1.msra.mxu0 0.0
    %379 = vmatprep.subr.mxu0 0.0
    %380 = vmatpush1.msra.mxu0 0.0
    %381 = vmatprep.mubr.f32.mxu0 %v315
    %382 = vmatmul.mubr.f32.gmra.mrb[0].mxu0 %v293
    %v383 = vpop.f32.mrb[0].mxu0
    %v384 = vadd.f32 0.0, %v383
    %v385 = vpop.f32.mrb[0].mxu0
    %386 = vdwg.mxu0
    %387 = vst.msk [vmem:[#allocation5] sm:$0xff] %vm24, %v384
    %s388 = scalar_lea.vmem %s0, 8
    %v389 = vld [vmem:[%s388] sm:$0xff]
    %390 = vst.msk [vmem:[#allocation2 + $0x2] sm:$0xff] %vm24, %v389
    %v391 = vld [vmem:[#allocation2] sm:$0xff]
    %v392 = vld [vmem:[#allocation2 + $0x1] sm:$0xff]
    %v393 = vld [vmem:[#allocation2 + $0x2] sm:$0xff]
    %v394 = vld [vmem:[#allocation2 + $0x3] sm:$0xff]
    %v395 = vld [vmem:[#allocation2 + $0x4] sm:$0xff]
    %397 = vrot.lane.b32.xlu0 %v392, 20
    %v398 = vpop.permute.xlu0 %397
    %401 = vrot.lane.b32.xlu0 %v393, 40
    %v402 = vpop.permute.xlu0 %401
    %405 = vrot.lane.b32.xlu0 %v394, 60
    %v406 = vpop.permute.xlu0 %405
    %409 = vrot.lane.b32.xlu0 %v395, 80
    %v410 = vpop.permute.xlu0 %409
    %v412 = vsel %vm24, %v391, %v398
    %v413 = vsel %vm58, %v412, %v402
    %v414 = vsel %vm60, %v413, %v406
    %v415 = vsel %vm62, %v414, %v410
    %v416 = vld [vmem:[%s1] sm:$0xff]
    %v417 = vld [vmem:[%s1 + $0x8] sm:$0xff]
    %v418 = vld [vmem:[%s1 + $0x10] sm:$0xff]
    %v419 = vld [vmem:[%s1 + $0x18] sm:$0xff]
    %v420 = vld [vmem:[%s1 + $0x20] sm:$0xff]
    %v421 = vld [vmem:[%s1 + $0x28] sm:$0xff]
    %v422 = vld [vmem:[%s1 + $0x30] sm:$0xff]
    %v423 = vld [vmem:[%s1 + $0x38] sm:$0xff]
    %v424 = vld [vmem:[%s1 + $0x40] sm:$0xff]
    %v425 = vld [vmem:[%s1 + $0x48] sm:$0xff]
    %v426 = vld [vmem:[%s1 + $0x50] sm:$0xff]
    %v427 = vld [vmem:[%s1 + $0x58] sm:$0xff]
    %v428 = vld [vmem:[%s1 + $0x60] sm:$0xf]
    %v430 = vsel %vm77, %v415, 0
    %v433 = vsel %vm81, %v428, 0
    %435 = vmatprep.subr.mxu0 0.0
    %436 = vmatpush1.msra.mxu0 %v416
    %437 = vmatprep.subr.mxu0 0.0
    %438 = vmatpush1.msra.mxu0 %v417
    %439 = vmatprep.subr.mxu0 0.0
    %440 = vmatpush1.msra.mxu0 %v418
    %441 = vmatprep.subr.mxu0 0.0
    %442 = vmatpush1.msra.mxu0 %v419
    %443 = vmatprep.subr.mxu0 0.0
    %444 = vmatpush1.msra.mxu0 %v420
    %445 = vmatprep.subr.mxu0 0.0
    %446 = vmatpush1.msra.mxu0 %v421
    %447 = vmatprep.subr.mxu0 0.0
    %448 = vmatpush1.msra.mxu0 %v422
    %449 = vmatprep.subr.mxu0 0.0
    %450 = vmatpush1.msra.mxu0 %v423
    %451 = vmatprep.subr.mxu0 0.0
    %452 = vmatpush1.msra.mxu0 %v424
    %453 = vmatprep.subr.mxu0 0.0
    %454 = vmatpush1.msra.mxu0 %v425
    %455 = vmatprep.subr.mxu0 0.0
    %456 = vmatpush1.msra.mxu0 %v426
    %457 = vmatprep.subr.mxu0 0.0
    %458 = vmatpush1.msra.mxu0 %v427
    %459 = vmatprep.subr.mxu0 0.0
    %460 = vmatpush1.msra.mxu0 %v433
    %461 = vmatprep.subr.mxu0 0.0
    %462 = vmatpush1.msra.mxu0 0.0
    %463 = vmatprep.subr.mxu0 0.0
    %464 = vmatpush1.msra.mxu0 0.0
    %465 = vmatprep.subr.mxu0 0.0
    %466 = vmatpush1.msra.mxu0 0.0
    %467 = vmatprep.subr.mxu0 0.0
    %468 = vmatpush1.msra.mxu0 0.0
    %469 = vmatprep.subr.mxu0 0.0
    %470 = vmatpush1.msra.mxu0 0.0
    %471 = vmatprep.subr.mxu0 0.0
    %472 = vmatpush1.msra.mxu0 0.0
    %473 = vmatprep.subr.mxu0 0.0
    %474 = vmatpush1.msra.mxu0 0.0
    %475 = vmatprep.subr.mxu0 0.0
    %476 = vmatpush1.msra.mxu0 0.0
    %477 = vmatprep.subr.mxu0 0.0
    %478 = vmatpush1.msra.mxu0 0.0
    %479 = vmatprep.subr.mxu0 0.0
    %480 = vmatpush1.msra.mxu0 0.0
    %481 = vmatprep.subr.mxu0 0.0
    %482 = vmatpush1.msra.mxu0 0.0
    %483 = vmatprep.subr.mxu0 0.0
    %484 = vmatpush1.msra.mxu0 0.0
    %485 = vmatprep.subr.mxu0 0.0
    %486 = vmatpush1.msra.mxu0 0.0
    %487 = vmatprep.subr.mxu0 0.0
    %488 = vmatpush1.msra.mxu0 0.0
    %489 = vmatprep.subr.mxu0 0.0
    %490 = vmatpush1.msra.mxu0 0.0
    %491 = vmatprep.subr.mxu0 0.0
    %492 = vmatpush1.msra.mxu0 0.0
    %493 = vmatprep.subr.mxu0 0.0
    %494 = vmatpush1.msra.mxu0 0.0
    %495 = vmatprep.subr.mxu0 0.0
    %496 = vmatpush1.msra.mxu0 0.0
    %497 = vmatprep.subr.mxu0 0.0
    %498 = vmatpush1.msra.mxu0 0.0
    %499 = vmatprep.mubr.f32.mxu0 0.0
    %500 = vmatmul.mubr.f32.gmra.mrb[0].mxu0 %v430
    %v501 = vpop.f32.mrb[0].mxu0
    %v502 = vadd.f32 0.0, %v501
    %v503 = vpop.f32.mrb[0].mxu0
    %504 = vdwg.mxu0
    %v505 = vtanh.pop %v502
    %506 = vst.msk [vmem:[#allocation3 + $0x2] sm:$0xff] %vm28, %v505
    %v507 = vld [vmem:[#allocation3] sm:$0xff]
    %v508 = vld [vmem:[#allocation3 + $0x1] sm:$0xff]
    %v509 = vld [vmem:[#allocation3 + $0x2] sm:$0xff]
    %v510 = vld [vmem:[#allocation3 + $0x3] sm:$0xff]
    %v511 = vld [vmem:[#allocation3 + $0x4] sm:$0xff]
    %513 = vrot.lane.b32.xlu0 %v508, 32
    %v514 = vpop.permute.xlu0 %513
    %517 = vrot.lane.b32.xlu0 %v509, 64
    %v518 = vpop.permute.xlu0 %517
    %521 = vrot.lane.b32.xlu0 %v510, 96
    %v522 = vpop.permute.xlu0 %521
    %v524 = vsel %vm28, %v507, %v514
    %v525 = vsel %vm175, %v524, %v518
    %v526 = vsel %vm177, %v525, %v522
    %v527 = vld [vmem:[%s2] sm:$0xff]
    %v528 = vld [vmem:[%s2 + $0x8] sm:$0xff]
    %v529 = vld [vmem:[%s2 + $0x10] sm:$0xff]
    %v530 = vld [vmem:[%s2 + $0x18] sm:$0xff]
    %v531 = vld [vmem:[%s2 + $0x20] sm:$0xff]
    %v532 = vld [vmem:[%s2 + $0x28] sm:$0xff]
    %v533 = vld [vmem:[%s2 + $0x30] sm:$0xff]
    %v534 = vld [vmem:[%s2 + $0x38] sm:$0xff]
    %v535 = vld [vmem:[%s2 + $0x40] sm:$0xff]
    %v536 = vld [vmem:[%s2 + $0x48] sm:$0xff]
    %v537 = vld [vmem:[%s2 + $0x50] sm:$0xff]
    %v538 = vld [vmem:[%s2 + $0x58] sm:$0xff]
    %v539 = vld [vmem:[%s2 + $0x60] sm:$0xff]
    %v540 = vld [vmem:[%s2 + $0x68] sm:$0xff]
    %v541 = vld [vmem:[%s2 + $0x70] sm:$0xff]
    %v542 = vld [vmem:[%s2 + $0x78] sm:$0xff]
    %v543 = vld [vmem:[%s2 + $0x80] sm:$0xff]
    %v544 = vld [vmem:[%s2 + $0x88] sm:$0xff]
    %v545 = vld [vmem:[%s2 + $0x90] sm:$0xff]
    %v546 = vld [vmem:[%s2 + $0x98] sm:$0xff]
    %v548 = vsel %vm28, %v511, 0
    %550 = vmatprep.subr.mxu0 0.0
    %551 = vmatpush1.msra.mxu0 %v527
    %552 = vmatprep.subr.mxu0 0.0
    %553 = vmatpush1.msra.mxu0 %v528
    %554 = vmatprep.subr.mxu0 0.0
    %555 = vmatpush1.msra.mxu0 %v529
    %556 = vmatprep.subr.mxu0 0.0
    %557 = vmatpush1.msra.mxu0 %v530
    %558 = vmatprep.subr.mxu0 0.0
    %559 = vmatpush1.msra.mxu0 %v531
    %560 = vmatprep.subr.mxu0 0.0
    %561 = vmatpush1.msra.mxu0 %v532
    %562 = vmatprep.subr.mxu0 0.0
    %563 = vmatpush1.msra.mxu0 %v533
    %564 = vmatprep.subr.mxu0 0.0
    %565 = vmatpush1.msra.mxu0 %v534
    %566 = vmatprep.subr.mxu0 0.0
    %567 = vmatpush1.msra.mxu0 %v535
    %568 = vmatprep.subr.mxu0 0.0
    %569 = vmatpush1.msra.mxu0 %v536
    %570 = vmatprep.subr.mxu0 0.0
    %571 = vmatpush1.msra.mxu0 %v537
    %572 = vmatprep.subr.mxu0 0.0
    %573 = vmatpush1.msra.mxu0 %v538
    %574 = vmatprep.subr.mxu0 0.0
    %575 = vmatpush1.msra.mxu0 %v539
    %576 = vmatprep.subr.mxu0 0.0
    %577 = vmatpush1.msra.mxu0 %v540
    %578 = vmatprep.subr.mxu0 0.0
    %579 = vmatpush1.msra.mxu0 %v541
    %580 = vmatprep.subr.mxu0 0.0
    %581 = vmatpush1.msra.mxu0 %v542
    %582 = vmatprep.subr.mxu0 0.0
    %583 = vmatpush1.msra.mxu0 %v543
    %584 = vmatprep.subr.mxu0 0.0
    %585 = vmatpush1.msra.mxu0 %v544
    %586 = vmatprep.subr.mxu0 0.0
    %587 = vmatpush1.msra.mxu0 %v545
    %588 = vmatprep.subr.mxu0 0.0
    %589 = vmatpush1.msra.mxu0 %v546
    %590 = vmatprep.subr.mxu0 0.0
    %591 = vmatpush1.msra.mxu0 0.0
    %592 = vmatprep.subr.mxu0 0.0
    %593 = vmatpush1.msra.mxu0 0.0
    %594 = vmatprep.subr.mxu0 0.0
    %595 = vmatpush1.msra.mxu0 0.0
    %596 = vmatprep.subr.mxu0 0.0
    %597 = vmatpush1.msra.mxu0 0.0
    %598 = vmatprep.subr.mxu0 0.0
    %599 = vmatpush1.msra.mxu0 0.0
    %600 = vmatprep.subr.mxu0 0.0
    %601 = vmatpush1.msra.mxu0 0.0
    %602 = vmatprep.subr.mxu0 0.0
    %603 = vmatpush1.msra.mxu0 0.0
    %604 = vmatprep.subr.mxu0 0.0
    %605 = vmatpush1.msra.mxu0 0.0
    %606 = vmatprep.subr.mxu0 0.0
    %607 = vmatpush1.msra.mxu0 0.0
    %608 = vmatprep.subr.mxu0 0.0
    %609 = vmatpush1.msra.mxu0 0.0
    %610 = vmatprep.subr.mxu0 0.0
    %611 = vmatpush1.msra.mxu0 0.0
    %612 = vmatprep.subr.mxu0 0.0
    %613 = vmatpush1.msra.mxu0 0.0
    %614 = vmatprep.mubr.f32.mxu0 %v548
    %615 = vmatmul.mubr.f32.gmra.mrb[0].mxu0 %v526
    %v616 = vpop.f32.mrb[0].mxu0
    %v617 = vadd.f32 0.0, %v616
    %v618 = vpop.f32.mrb[0].mxu0
    %619 = vdwg.mxu0
    %v620 = vtanh.pop %v617
    %621 = vst.msk [vmem:[#allocation4 + $0x2] sm:$0xff] %vm28, %v620
    %v622 = vld [vmem:[#allocation4] sm:$0xff]
    %v623 = vld [vmem:[#allocation4 + $0x1] sm:$0xff]
    %v624 = vld [vmem:[#allocation4 + $0x2] sm:$0xff]
    %v625 = vld [vmem:[#allocation4 + $0x3] sm:$0xff]
    %v626 = vld [vmem:[#allocation4 + $0x4] sm:$0xff]
    %628 = vrot.lane.b32.xlu0 %v623, 32
    %v629 = vpop.permute.xlu0 %628
    %632 = vrot.lane.b32.xlu0 %v624, 64
    %v633 = vpop.permute.xlu0 %632
    %636 = vrot.lane.b32.xlu0 %v625, 96
    %v637 = vpop.permute.xlu0 %636
    %v639 = vsel %vm28, %v622, %v629
    %v640 = vsel %vm175, %v639, %v633
    %v641 = vsel %vm177, %v640, %v637
    %v642 = vld [vmem:[%s3] sm:$0xff]
    %v643 = vld [vmem:[%s3 + $0x8] sm:$0xff]
    %v644 = vld [vmem:[%s3 + $0x10] sm:$0xff]
    %v645 = vld [vmem:[%s3 + $0x18] sm:$0xff]
    %v646 = vld [vmem:[%s3 + $0x20] sm:$0xff]
    %v647 = vld [vmem:[%s3 + $0x28] sm:$0xff]
    %v648 = vld [vmem:[%s3 + $0x30] sm:$0xff]
    %v649 = vld [vmem:[%s3 + $0x38] sm:$0xff]
    %v650 = vld [vmem:[%s3 + $0x40] sm:$0xff]
    %v651 = vld [vmem:[%s3 + $0x48] sm:$0xff]
    %v652 = vld [vmem:[%s3 + $0x50] sm:$0xff]
    %v653 = vld [vmem:[%s3 + $0x58] sm:$0xff]
    %v654 = vld [vmem:[%s3 + $0x60] sm:$0xff]
    %v655 = vld [vmem:[%s3 + $0x68] sm:$0xff]
    %v656 = vld [vmem:[%s3 + $0x70] sm:$0xff]
    %v657 = vld [vmem:[%s3 + $0x78] sm:$0xff]
    %v658 = vld [vmem:[%s3 + $0x80] sm:$0xff]
    %v659 = vld [vmem:[%s3 + $0x88] sm:$0xff]
    %v660 = vld [vmem:[%s3 + $0x90] sm:$0xff]
    %v661 = vld [vmem:[%s3 + $0x98] sm:$0xff]
    %v663 = vsel %vm28, %v626, 0
    %665 = vmatprep.subr.mxu0 0.0
    %666 = vmatpush1.msra.mxu0 %v642
    %667 = vmatprep.subr.mxu0 0.0
    %668 = vmatpush1.msra.mxu0 %v643
    %669 = vmatprep.subr.mxu0 0.0
    %670 = vmatpush1.msra.mxu0 %v644
    %671 = vmatprep.subr.mxu0 0.0
    %672 = vmatpush1.msra.mxu0 %v645
    %673 = vmatprep.subr.mxu0 0.0
    %674 = vmatpush1.msra.mxu0 %v646
    %675 = vmatprep.subr.mxu0 0.0
    %676 = vmatpush1.msra.mxu0 %v647
    %677 = vmatprep.subr.mxu0 0.0
    %678 = vmatpush1.msra.mxu0 %v648
    %679 = vmatprep.subr.mxu0 0.0
    %680 = vmatpush1.msra.mxu0 %v649
    %681 = vmatprep.subr.mxu0 0.0
    %682 = vmatpush1.msra.mxu0 %v650
    %683 = vmatprep.subr.mxu0 0.0
    %684 = vmatpush1.msra.mxu0 %v651
    %685 = vmatprep.subr.mxu0 0.0
    %686 = vmatpush1.msra.mxu0 %v652
    %687 = vmatprep.subr.mxu0 0.0
    %688 = vmatpush1.msra.mxu0 %v653
    %689 = vmatprep.subr.mxu0 0.0
    %690 = vmatpush1.msra.mxu0 %v654
    %691 = vmatprep.subr.mxu0 0.0
    %692 = vmatpush1.msra.mxu0 %v655
    %693 = vmatprep.subr.mxu0 0.0
    %694 = vmatpush1.msra.mxu0 %v656
    %695 = vmatprep.subr.mxu0 0.0
    %696 = vmatpush1.msra.mxu0 %v657
    %697 = vmatprep.subr.mxu0 0.0
    %698 = vmatpush1.msra.mxu0 %v658
    %699 = vmatprep.subr.mxu0 0.0
    %700 = vmatpush1.msra.mxu0 %v659
    %701 = vmatprep.subr.mxu0 0.0
    %702 = vmatpush1.msra.mxu0 %v660
    %703 = vmatprep.subr.mxu0 0.0
    %704 = vmatpush1.msra.mxu0 %v661
    %705 = vmatprep.subr.mxu0 0.0
    %706 = vmatpush1.msra.mxu0 0.0
    %707 = vmatprep.subr.mxu0 0.0
    %708 = vmatpush1.msra.mxu0 0.0
    %709 = vmatprep.subr.mxu0 0.0
    %710 = vmatpush1.msra.mxu0 0.0
    %711 = vmatprep.subr.mxu0 0.0
    %712 = vmatpush1.msra.mxu0 0.0
    %713 = vmatprep.subr.mxu0 0.0
    %714 = vmatpush1.msra.mxu0 0.0
    %715 = vmatprep.subr.mxu0 0.0
    %716 = vmatpush1.msra.mxu0 0.0
    %717 = vmatprep.subr.mxu0 0.0
    %718 = vmatpush1.msra.mxu0 0.0
    %719 = vmatprep.subr.mxu0 0.0
    %720 = vmatpush1.msra.mxu0 0.0
    %721 = vmatprep.subr.mxu0 0.0
    %722 = vmatpush1.msra.mxu0 0.0
    %723 = vmatprep.subr.mxu0 0.0
    %724 = vmatpush1.msra.mxu0 0.0
    %725 = vmatprep.subr.mxu0 0.0
    %726 = vmatpush1.msra.mxu0 0.0
    %727 = vmatprep.subr.mxu0 0.0
    %728 = vmatpush1.msra.mxu0 0.0
    %729 = vmatprep.mubr.f32.mxu0 %v663
    %730 = vmatmul.mubr.f32.gmra.mrb[0].mxu0 %v641
    %v731 = vpop.f32.mrb[0].mxu0
    %v732 = vadd.f32 0.0, %v731
    %v733 = vpop.f32.mrb[0].mxu0
    %734 = vdwg.mxu0
    %s735 = scalar_lea.vmem [#allocation5], 8
    %736 = vst.msk [vmem:[%s735] sm:$0xff] %vm24, %v732
    %v737 = vld [vmem:[%s4] sm:$0x3]
    %v738 = vlaneseq
    %v739 = vand.u32 %v738, 127
    %740 = vset.pattern.permute.xlu0 0
    %741 = vperm.xlu0 %740, %v737
    %v742 = vpop.permute.xlu0 %741
    %vm743 = vcmp.lt.s32.totalorder %v739, %v742
    %v744 = vsel %vm743, 1, 0
    %v745 = vcvt.s32.f32 %v744
    %v746 = vlaneseq
    %v747 = vshrl.u32 %v746, 7
    %v748 = vsub.s32 0, %v747
    %v749 = vrot.slane %v745, %v748
    %751 = vbcast.lane.b32.xlu0 %v749, 256
    %v752 = vpop.permute.xlu0 %751
    %v753 = vlaneseq
    %v754 = vshrl.u32 %v753, 7
    %v755 = vsub.s32 1, %v754
    %v756 = vrot.slane %v745, %v755
    %758 = vbcast.lane.b32.xlu0 %v756, 256
    %v759 = vpop.permute.xlu0 %758
    %v760 = vld [vmem:[%s0] sm:$0xff]
    %v761 = vld [vmem:[%s0 + $0x8] sm:$0xff]
    %v762 = vld [vmem:[#allocation5] sm:$0xff]
    %v763 = vld [vmem:[#allocation5 + $0x8] sm:$0xff]
    %v764 = vadd.f32 %v760, %v762
    %v765 = vadd.f32 %v761, %v763
    %v766 = vmul.f32 %v764, %v752
    %v767 = vmul.f32 %v765, %v759
    %768 = vst.msk [vmem:[#allocation5] sm:$0xff] %vm24, %v766
    %769 = vst.msk [vmem:[#allocation5 + $0x8] sm:$0xff] %vm24, %v767
    %v770 = vmul.f32 %v760, %v752
    %v771 = vmul.f32 %v761, %v759
    %772 = vst.msk [vmem:[#allocation7] sm:$0xff] %vm24, %v770
    %773 = vst.msk [vmem:[#allocation7 + $0x8] sm:$0xff] %vm24, %v771
    // Predicated region
    $region22: #{tacotron2_decoder_forward.5} parent=1 // pred_check
      _
    $region23: #{tacotron2_decoder_forward.5} parent=1 // pred_check_branch
      %775 = sbr.rel (0) target = $region25
    $region24: #{tacotron2_decoder_forward.5} parent=1 // pred_region
      %s777 = ssub.s32 256, 256
      %778 = vsyncadd [#allocation6], %s777
      %s779 = sshll.u32 [#allocation5], 4
      %s780 = int_to_ptr.vmem [resolvable:$true] %s779
      %785 = dma.vmem_to_hbm [thread:$0]  %s780, 256, %s5, [#allocation6], 128, 128, 8
    $region25: #{tacotron2_decoder_forward.5} parent=1 // pred_fallthru
      _
    // Predicated region
    $region26: #{tacotron2_decoder_forward.5} parent=1 // pred_check
      _
    $region27: #{tacotron2_decoder_forward.5} parent=1 // pred_check_branch
      %787 = sbr.rel (0) target = $region29
    $region28: #{tacotron2_decoder_forward.5} parent=1 // pred_region
      %s789 = ssub.s32 256, 256
      %790 = vsyncadd [#allocation8], %s789
      %s791 = sshll.u32 [#allocation7], 4
      %s792 = int_to_ptr.vmem [resolvable:$true] %s791
      %797 = dma.vmem_to_hbm [thread:$0]  %s792, 256, %s6, [#allocation8], 128, 128, 8
    $region29: #{tacotron2_decoder_forward.5} parent=1 // pred_fallthru
      _
    // Predicated region
    $region30: #{tacotron2_decoder_forward.5} parent=1 // pred_check
      _
    $region31: #{tacotron2_decoder_forward.5} parent=1 // pred_check_branch
      %799 = sbr.rel (0) target = $region33
    $region32: #{tacotron2_decoder_forward.5} parent=1 // pred_region
      %800 = dma.done [#allocation6], 256
    $region33: #{tacotron2_decoder_forward.5} parent=1 // pred_fallthru
      _
    // Predicated region
    $region34: #{tacotron2_decoder_forward.5} parent=1 // pred_check
      _
    $region35: #{tacotron2_decoder_forward.5} parent=1 // pred_check_branch
      %802 = sbr.rel (0) target = $region37
    $region36: #{tacotron2_decoder_forward.5} parent=1 // pred_region
      %803 = dma.done [#allocation8], 256
    $region37: #{tacotron2_decoder_forward.5} parent=1 // pred_fallthru
      _
    %804 = vsyncpa [#allocation6], 1
    %805 = vsyncpa [#allocation8], 1

// kernel: tacotron2_decoder_forward.4
$region0: #{tacotron2_decoder_forward.4}
  #allocation0 [shape = 'u32[]', space=smem, size = 0x4, offset = 0x4, fixed_abs, tag = 'smem constant byte address 0x4 - core index']
  #allocation1 [shape = 'u32[144,128]{1,0:T(1,128)}', space=vmem, size = 0x12000, scoped, tag = 'internal scratch']
  #allocation2 [shape = 'f32[2,64]{1,0:T(2,128)}', space=vmem, size = 0x400, scoped, tag = 'scratch operand']
  #allocation3 [shape = 'f32[2,64]{1,0:T(2,128)}', space=vmem, size = 0x400, scoped, tag = 'scratch operand']
  #allocation4 [shape = 'f32[2,64]{1,0:T(2,128)}', space=vmem, size = 0x400, scoped, tag = 'scratch operand']
  #allocation5 [shape = 'f32[2,64]{1,0:T(2,128)}', space=vmem, size = 0x400, scoped, tag = 'scratch operand']
  %s0 = inlined_call_operand.vmem [shape: f32[8,2,256], index: 0, kind: input, shape index: {}]
  %s1 = inlined_call_operand.vmem [shape: f32[8,2,20], index: 1, kind: input, shape index: {}]
  %s2 = inlined_call_operand.vmem [shape: f32[64,256], index: 2, kind: input, shape index: {}]
  %s3 = inlined_call_operand.vmem [shape: f32[64,256], index: 3, kind: input, shape index: {}]
  %s4 = inlined_call_operand.vmem [shape: f32[64,256], index: 4, kind: input, shape index: {}]
  %s5 = inlined_call_operand.hbm [shape: f32[1,256], index: 5, kind: input, shape index: {}]
  %s6 = inlined_call_operand.hbm [shape: f32[64,20], index: 6, kind: input, shape index: {}]
  %s7 = inlined_call_operand.vmem [shape: f32[8,2,20], index: 7, kind: output, shape index: {}]
  %s8 = sld [smem:[#allocation0]]
  $region46: #{tacotron2_decoder_forward.4} parent=0
    _
  %s10 = ssub.s32 1, %s8
  %s11 = scalar_select 0, %s10, %s8
  $region1: #{tacotron2_decoder_forward.4} parent=0
    #allocation6 [shape = 'u8[1024]{0}', space=vmem, size = 0x400, scoped, tag = 'input window, operand 5, single buffered']
    #allocation7 [shape = 's32[1]{0}', space=sflag, size = 0x4, scoped, tag = 'scoped memory for tacotron2_decoder_forward.4']
    #allocation8 [shape = 'u8[32768]{0}', space=vmem, size = 0x8000, scoped, tag = 'input window, operand 6, single buffered']
    #allocation9 [shape = 's32[1]{0}', space=sflag, size = 0x4, scoped, tag = 'scoped memory for tacotron2_decoder_forward.4']
    %12 = vsyncpa [#allocation7], 0
    %13 = vsyncpa [#allocation9], 0
    // Predicated region
    $region2: #{tacotron2_decoder_forward.4} parent=1 // pred_check
      _
    $region3: #{tacotron2_decoder_forward.4} parent=1 // pred_check_branch
      %15 = sbr.rel (0) target = $region5
    $region4: #{tacotron2_decoder_forward.4} parent=1 // pred_region
      _
    $region5: #{tacotron2_decoder_forward.4} parent=1 // pred_fallthru
      _
    // Predicated region
    $region6: #{tacotron2_decoder_forward.4} parent=1 // pred_check
      _
    $region7: #{tacotron2_decoder_forward.4} parent=1 // pred_check_branch
      %17 = sbr.rel (0) target = $region9
    $region8: #{tacotron2_decoder_forward.4} parent=1 // pred_region
      _
    $region9: #{tacotron2_decoder_forward.4} parent=1 // pred_fallthru
      _
    // Predicated region
    $region10: #{tacotron2_decoder_forward.4} parent=1 // pred_check
      _
    $region11: #{tacotron2_decoder_forward.4} parent=1 // pred_check_branch
      %19 = sbr.rel (0) target = $region13
    $region12: #{tacotron2_decoder_forward.4} parent=1 // pred_region
      _
    $region13: #{tacotron2_decoder_forward.4} parent=1 // pred_fallthru
      _
    // Predicated region
    $region14: #{tacotron2_decoder_forward.4} parent=1 // pred_check
      _
    $region15: #{tacotron2_decoder_forward.4} parent=1 // pred_check_branch
      %21 = sbr.rel (0) target = $region17
    $region16: #{tacotron2_decoder_forward.4} parent=1 // pred_region
      _
    $region17: #{tacotron2_decoder_forward.4} parent=1 // pred_fallthru
      _
    // Predicated region
    $region18: #{tacotron2_decoder_forward.4} parent=1 // pred_check
      _
    $region19: #{tacotron2_decoder_forward.4} parent=1 // pred_check_branch
      %23 = sbr.rel (0) target = $region21
    $region20: #{tacotron2_decoder_forward.4} parent=1 // pred_region
      _
    $region21: #{tacotron2_decoder_forward.4} parent=1 // pred_fallthru
      _
    // Predicated region
    $region22: #{tacotron2_decoder_forward.4} parent=1 // pred_check
      _
    $region23: #{tacotron2_decoder_forward.4} parent=1 // pred_check_branch
      %25 = sbr.rel (0) target = $region25
    $region24: #{tacotron2_decoder_forward.4} parent=1 // pred_region
      %s27 = ssub.s32 32, 32
      %28 = vsyncadd [#allocation7], %s27
      %s30 = sshll.u32 [#allocation6], 4
      %s31 = int_to_ptr.vmem [resolvable:$true] %s30
      %33 = dma.hbm_to_vmem [thread:$0]  %s5, 32, %s31, [#allocation7]
    $region25: #{tacotron2_decoder_forward.4} parent=1 // pred_fallthru
      _
    // Predicated region
    $region26: #{tacotron2_decoder_forward.4} parent=1 // pred_check
      _
    $region27: #{tacotron2_decoder_forward.4} parent=1 // pred_check_branch
      %35 = sbr.rel (0) target = $region29
    $region28: #{tacotron2_decoder_forward.4} parent=1 // pred_region
      %s37 = ssub.s32 1024, 1024
      %38 = vsyncadd [#allocation9], %s37
      %s39 = sshll.u32 [#allocation8], 4
      %s40 = int_to_ptr.vmem [resolvable:$true] %s39
      %45 = dma.hbm_to_vmem [thread:$0]  %s6, 1024, %s40, [#allocation9], 128, 128, 8
    $region29: #{tacotron2_decoder_forward.4} parent=1 // pred_fallthru
      _
    // Predicated region
    $region30: #{tacotron2_decoder_forward.4} parent=1 // pred_check
      _
    $region31: #{tacotron2_decoder_forward.4} parent=1 // pred_check_branch
      %47 = sbr.rel (0) target = $region33
    $region32: #{tacotron2_decoder_forward.4} parent=1 // pred_region
      %48 = dma.done [#allocation7], 32
    $region33: #{tacotron2_decoder_forward.4} parent=1 // pred_fallthru
      _
    // Predicated region
    $region34: #{tacotron2_decoder_forward.4} parent=1 // pred_check
      _
    $region35: #{tacotron2_decoder_forward.4} parent=1 // pred_check_branch
      %50 = sbr.rel (0) target = $region37
    $region36: #{tacotron2_decoder_forward.4} parent=1 // pred_region
      %51 = dma.done [#allocation9], 1024
    $region37: #{tacotron2_decoder_forward.4} parent=1 // pred_fallthru
      _
    %vm52 = vcmask 517120
    %53 = vst.msk [vmem:[#allocation2] sm:$0x3] %vm52, 0.0
    %54 = vst.msk [vmem:[#allocation3] sm:$0x3] %vm52, 0.0
    %55 = vst.msk [vmem:[#allocation4] sm:$0x3] %vm52, 0.0
    %56 = vst.msk [vmem:[#allocation5] sm:$0x3] %vm52, 0.0
    %v57 = vld [vmem:[#allocation6] sm:$0x3]
    %v59 = vlaneseq
    %v60 = vshrl.u32 %v59, 7
    %v61 = vsub.s32 0, %v60
    %v62 = vrot.slane %v57, %v61
    %v63 = vlaneseq
    %v64 = vshrl.u32 %v63, 7
    %v65 = vsub.s32 1, %v64
    %v66 = vrot.slane %v57, %v65
    %v69 = vld [vmem:[%s0] sm:$0xf]
    %v70 = vld [vmem:[#allocation2] sm:$0x3]
    %v71 = vld [vmem:[%s2] sm:$0xff]
    %v72 = vld [vmem:[%s2 + $0x8] sm:$0xff]
    %v73 = vld [vmem:[%s2 + $0x10] sm:$0xff]
    %v74 = vld [vmem:[%s2 + $0x18] sm:$0xff]
    %v75 = vld [vmem:[%s2 + $0x20] sm:$0xff]
    %v76 = vld [vmem:[%s2 + $0x28] sm:$0xff]
    %v77 = vld [vmem:[%s2 + $0x30] sm:$0xff]
    %v78 = vld [vmem:[%s2 + $0x38] sm:$0xff]
    %v79 = vld [vmem:[%s2 + $0x40] sm:$0xff]
    %v80 = vld [vmem:[%s2 + $0x48] sm:$0xff]
    %v81 = vld [vmem:[%s2 + $0x50] sm:$0xff]
    %v82 = vld [vmem:[%s2 + $0x58] sm:$0xff]
    %v83 = vld [vmem:[%s2 + $0x60] sm:$0xff]
    %v84 = vld [vmem:[%s2 + $0x68] sm:$0xff]
    %v85 = vld [vmem:[%s2 + $0x70] sm:$0xff]
    %v86 = vld [vmem:[%s2 + $0x78] sm:$0xff]
    %vm87 = vcmask 523264
    %v89 = vsel %vm87, %v70, 0
    %91 = vmatprep.subr.mxu0 %v72
    %92 = vmatpush1.msra.mxu0 %v71
    %93 = vmatprep.subr.mxu0 %v74
    %94 = vmatpush1.msra.mxu0 %v73
    %95 = vmatprep.subr.mxu0 %v76
    %96 = vmatpush1.msra.mxu0 %v75
    %97 = vmatprep.subr.mxu0 %v78
    %98 = vmatpush1.msra.mxu0 %v77
    %99 = vmatprep.subr.mxu0 %v80
    %100 = vmatpush1.msra.mxu0 %v79
    %101 = vmatprep.subr.mxu0 %v82
    %102 = vmatpush1.msra.mxu0 %v81
    %103 = vmatprep.subr.mxu0 %v84
    %104 = vmatpush1.msra.mxu0 %v83
    %105 = vmatprep.subr.mxu0 %v86
    %106 = vmatpush1.msra.mxu0 %v85
    %107 = vmatprep.subr.mxu0 0.0
    %108 = vmatpush1.msra.mxu0 0.0
    %109 = vmatprep.subr.mxu0 0.0
    %110 = vmatpush1.msra.mxu0 0.0
    %111 = vmatprep.subr.mxu0 0.0
    %112 = vmatpush1.msra.mxu0 0.0
    %113 = vmatprep.subr.mxu0 0.0
    %114 = vmatpush1.msra.mxu0 0.0
    %115 = vmatprep.subr.mxu0 0.0
    %116 = vmatpush1.msra.mxu0 0.0
    %117 = vmatprep.subr.mxu0 0.0
    %118 = vmatpush1.msra.mxu0 0.0
    %119 = vmatprep.subr.mxu0 0.0
    %120 = vmatpush1.msra.mxu0 0.0
    %121 = vmatprep.subr.mxu0 0.0
    %122 = vmatpush1.msra.mxu0 0.0
    %123 = vmatprep.subr.mxu0 0.0
    %124 = vmatpush1.msra.mxu0 0.0
    %125 = vmatprep.subr.mxu0 0.0
    %126 = vmatpush1.msra.mxu0 0.0
    %127 = vmatprep.subr.mxu0 0.0
    %128 = vmatpush1.msra.mxu0 0.0
    %129 = vmatprep.subr.mxu0 0.0
    %130 = vmatpush1.msra.mxu0 0.0
    %131 = vmatprep.subr.mxu0 0.0
    %132 = vmatpush1.msra.mxu0 0.0
    %133 = vmatprep.subr.mxu0 0.0
    %134 = vmatpush1.msra.mxu0 0.0
    %135 = vmatprep.subr.mxu0 0.0
    %136 = vmatpush1.msra.mxu0 0.0
    %137 = vmatprep.subr.mxu0 0.0
    %138 = vmatpush1.msra.mxu0 0.0
    %139 = vmatprep.subr.mxu0 0.0
    %140 = vmatpush1.msra.mxu0 0.0
    %141 = vmatprep.subr.mxu0 0.0
    %142 = vmatpush1.msra.mxu0 0.0
    %143 = vmatprep.subr.mxu0 0.0
    %144 = vmatpush1.msra.mxu0 0.0
    %145 = vmatprep.subr.mxu0 0.0
    %146 = vmatpush1.msra.mxu0 0.0
    %147 = vmatprep.subr.mxu0 0.0
    %148 = vmatpush1.msra.mxu0 0.0
    %149 = vmatprep.subr.mxu0 0.0
    %150 = vmatpush1.msra.mxu0 0.0
    %151 = vmatprep.subr.mxu0 0.0
    %152 = vmatpush1.msra.mxu0 0.0
    %153 = vmatprep.subr.mxu0 0.0
    %154 = vmatpush1.msra.mxu0 0.0
    %155 = vmatprep.mubr.f32.mxu0 0.0
    %156 = vmatmul.mubr.f32.gmra.mrb[0].mxu0 %v89
    %v157 = vpop.f32.mrb[0].mxu0
    %v158 = vadd.f32 0.0, %v157
    %v159 = vpop.f32.mrb[0].mxu0
    %v160 = vadd.f32 0.0, %v159
    %161 = vdwg.mxu0
    %v164 = vcombine.low %v158, %v160
    %v166 = vunpack.c.l.s4 1983009808
    %v167 = vunpack.c.0.s8 %v166
    %v168 = vlaneseq
    %v169 = vshrl.u32 %v168, 7
    %v170 = vsub.s32 %v167, %v169
    %v171 = vrot.slane %v164, %v170
    %v173 = vadd.f32 %v69, %v171
    %v174 = vld [vmem:[#allocation3] sm:$0x3]
    %v175 = vxor.u32 %v173, 2147483648
    %v176 = vmul.f32 %v175, 1.442695
    %v177 = vpow.pop %v176
    %v178 = vadd.f32 %v177, 1.0
    %v179 = vrcp.pop %v178
    %v180 = vmul.f32 1.0, %v179
    %v182 = vrot.slane %v173, 2
    %v184 = vtanh.pop %v182
    %185 = vrot.lane.b32.xlu0 %v173, 64
    %v186 = vpop.permute.xlu0 %185
    %v187 = vrot.slane %v186, 2
    %v189 = vxor.u32 %v187, 2147483648
    %v190 = vmul.f32 %v189, 1.442695
    %v191 = vpow.pop %v190
    %v192 = vadd.f32 %v191, 1.0
    %v193 = vrcp.pop %v192
    %v194 = vmul.f32 1.0, %v193
    %v197 = vunpack.c.l.s4 1983009808
    %v198 = vunpack.c.0.s8 %v197
    %v199 = vlaneseq
    %v200 = vshrl.u32 %v199, 7
    %v201 = vsub.s32 %v198, %v200
    %v202 = vrot.slane %v174, %v201
    %203 = vrot.lane.b32.xlu0 %v202, 64
    %v204 = vpop.permute.xlu0 %203
    %v206 = vmul.f32 %v180, %v204
    %v207 = vmul.f32 %v180, %v184
    %209 = vrot.lane.b32.xlu0 %v207, 64
    %v210 = vpop.permute.xlu0 %209
    %v212 = vadd.f32 %v206, %v210
    %v213 = vtanh.pop %v212
    %215 = vrot.lane.b32.xlu0 %v213, 64
    %v216 = vpop.permute.xlu0 %215
    %v218 = vmul.f32 %v194, %v216
    %219 = vst.msk [vmem:[#allocation2] sm:$0x3] %vm52, %v218
    %v222 = vunpack.c.l.s4 1983009808
    %v223 = vunpack.c.0.s8 %v222
    %v224 = vlaneseq
    %v225 = vshrl.u32 %v224, 7
    %v226 = vsub.s32 %v223, %v225
    %v227 = vrot.slane %v212, %v226
    %228 = vrot.lane.b32.xlu0 %v227, 64
    %v229 = vpop.permute.xlu0 %228
    %231 = vst.msk [vmem:[#allocation3] sm:$0x3] %vm52, %v229
    %v232 = vld [vmem:[%s3] sm:$0xff]
    %v233 = vld [vmem:[%s3 + $0x8] sm:$0xff]
    %v234 = vld [vmem:[%s3 + $0x10] sm:$0xff]
    %v235 = vld [vmem:[%s3 + $0x18] sm:$0xff]
    %v236 = vld [vmem:[%s3 + $0x20] sm:$0xff]
    %v237 = vld [vmem:[%s3 + $0x28] sm:$0xff]
    %v238 = vld [vmem:[%s3 + $0x30] sm:$0xff]
    %v239 = vld [vmem:[%s3 + $0x38] sm:$0xff]
    %v240 = vld [vmem:[%s3 + $0x40] sm:$0xff]
    %v241 = vld [vmem:[%s3 + $0x48] sm:$0xff]
    %v242 = vld [vmem:[%s3 + $0x50] sm:$0xff]
    %v243 = vld [vmem:[%s3 + $0x58] sm:$0xff]
    %v244 = vld [vmem:[%s3 + $0x60] sm:$0xff]
    %v245 = vld [vmem:[%s3 + $0x68] sm:$0xff]
    %v246 = vld [vmem:[%s3 + $0x70] sm:$0xff]
    %v247 = vld [vmem:[%s3 + $0x78] sm:$0xff]
    %v248 = vld [vmem:[#allocation4] sm:$0x3]
    %v249 = vld [vmem:[%s4] sm:$0xff]
    %v250 = vld [vmem:[%s4 + $0x8] sm:$0xff]
    %v251 = vld [vmem:[%s4 + $0x10] sm:$0xff]
    %v252 = vld [vmem:[%s4 + $0x18] sm:$0xff]
    %v253 = vld [vmem:[%s4 + $0x20] sm:$0xff]
    %v254 = vld [vmem:[%s4 + $0x28] sm:$0xff]
    %v255 = vld [vmem:[%s4 + $0x30] sm:$0xff]
    %v256 = vld [vmem:[%s4 + $0x38] sm:$0xff]
    %v257 = vld [vmem:[%s4 + $0x40] sm:$0xff]
    %v258 = vld [vmem:[%s4 + $0x48] sm:$0xff]
    %v259 = vld [vmem:[%s4 + $0x50] sm:$0xff]
    %v260 = vld [vmem:[%s4 + $0x58] sm:$0xff]
    %v261 = vld [vmem:[%s4 + $0x60] sm:$0xff]
    %v262 = vld [vmem:[%s4 + $0x68] sm:$0xff]
    %v263 = vld [vmem:[%s4 + $0x70] sm:$0xff]
    %v264 = vld [vmem:[%s4 + $0x78] sm:$0xff]
    %v266 = vsel %vm87, %v248, 0
    %268 = vmatprep.subr.mxu0 %v250
    %269 = vmatpush1.msra.mxu0 %v249
    %270 = vmatprep.subr.mxu0 %v252
    %271 = vmatpush1.msra.mxu0 %v251
    %272 = vmatprep.subr.mxu0 %v254
    %273 = vmatpush1.msra.mxu0 %v253
    %274 = vmatprep.subr.mxu0 %v256
    %275 = vmatpush1.msra.mxu0 %v255
    %276 = vmatprep.subr.mxu0 %v258
    %277 = vmatpush1.msra.mxu0 %v257
    %278 = vmatprep.subr.mxu0 %v260
    %279 = vmatpush1.msra.mxu0 %v259
    %280 = vmatprep.subr.mxu0 %v262
    %281 = vmatpush1.msra.mxu0 %v261
    %282 = vmatprep.subr.mxu0 %v264
    %283 = vmatpush1.msra.mxu0 %v263
    %284 = vmatprep.subr.mxu0 0.0
    %285 = vmatpush1.msra.mxu0 0.0
    %286 = vmatprep.subr.mxu0 0.0
    %287 = vmatpush1.msra.mxu0 0.0
    %288 = vmatprep.subr.mxu0 0.0
    %289 = vmatpush1.msra.mxu0 0.0
    %290 = vmatprep.subr.mxu0 0.0
    %291 = vmatpush1.msra.mxu0 0.0
    %292 = vmatprep.subr.mxu0 0.0
    %293 = vmatpush1.msra.mxu0 0.0
    %294 = vmatprep.subr.mxu0 0.0
    %295 = vmatpush1.msra.mxu0 0.0
    %296 = vmatprep.subr.mxu0 0.0
    %297 = vmatpush1.msra.mxu0 0.0
    %298 = vmatprep.subr.mxu0 0.0
    %299 = vmatpush1.msra.mxu0 0.0
    %300 = vmatprep.subr.mxu0 0.0
    %301 = vmatpush1.msra.mxu0 0.0
    %302 = vmatprep.subr.mxu0 0.0
    %303 = vmatpush1.msra.mxu0 0.0
    %304 = vmatprep.subr.mxu0 0.0
    %305 = vmatpush1.msra.mxu0 0.0
    %306 = vmatprep.subr.mxu0 0.0
    %307 = vmatpush1.msra.mxu0 0.0
    %308 = vmatprep.subr.mxu0 0.0
    %309 = vmatpush1.msra.mxu0 0.0
    %310 = vmatprep.subr.mxu0 0.0
    %311 = vmatpush1.msra.mxu0 0.0
    %312 = vmatprep.subr.mxu0 0.0
    %313 = vmatpush1.msra.mxu0 0.0
    %314 = vmatprep.subr.mxu0 0.0
    %315 = vmatpush1.msra.mxu0 0.0
    %316 = vmatprep.subr.mxu0 0.0
    %317 = vmatpush1.msra.mxu0 0.0
    %318 = vmatprep.subr.mxu0 0.0
    %319 = vmatpush1.msra.mxu0 0.0
    %320 = vmatprep.subr.mxu0 0.0
    %321 = vmatpush1.msra.mxu0 0.0
    %322 = vmatprep.subr.mxu0 0.0
    %323 = vmatpush1.msra.mxu0 0.0
    %324 = vmatprep.subr.mxu0 0.0
    %325 = vmatpush1.msra.mxu0 0.0
    %326 = vmatprep.subr.mxu0 0.0
    %327 = vmatpush1.msra.mxu0 0.0
    %328 = vmatprep.subr.mxu0 0.0
    %329 = vmatpush1.msra.mxu0 0.0
    %330 = vmatprep.subr.mxu0 0.0
    %331 = vmatpush1.msra.mxu0 0.0
    %332 = vmatprep.mubr.f32.mxu0 0.0
    %333 = vmatmul.mubr.f32.gmra.mrb[0].mxu0 %v266
    %v334 = vpop.f32.mrb[0].mxu0
    %v335 = vadd.f32 0.0, %v334
    %v336 = vpop.f32.mrb[0].mxu0
    %v337 = vadd.f32 0.0, %v336
    %338 = vdwg.mxu0
    %v340 = vsel %vm87, %v218, 0
    %342 = vmatprep.subr.mxu0 %v233
    %343 = vmatpush1.msra.mxu0 %v232
    %344 = vmatprep.subr.mxu0 %v235
    %345 = vmatpush1.msra.mxu0 %v234
    %346 = vmatprep.subr.mxu0 %v237
    %347 = vmatpush1.msra.mxu0 %v236
    %348 = vmatprep.subr.mxu0 %v239
    %349 = vmatpush1.msra.mxu0 %v238
    %350 = vmatprep.subr.mxu0 %v241
    %351 = vmatpush1.msra.mxu0 %v240
    %352 = vmatprep.subr.mxu0 %v243
    %353 = vmatpush1.msra.mxu0 %v242
    %354 = vmatprep.subr.mxu0 %v245
    %355 = vmatpush1.msra.mxu0 %v244
    %356 = vmatprep.subr.mxu0 %v247
    %357 = vmatpush1.msra.mxu0 %v246
    %358 = vmatprep.subr.mxu0 0.0
    %359 = vmatpush1.msra.mxu0 0.0
    %360 = vmatprep.subr.mxu0 0.0
    %361 = vmatpush1.msra.mxu0 0.0
    %362 = vmatprep.subr.mxu0 0.0
    %363 = vmatpush1.msra.mxu0 0.0
    %364 = vmatprep.subr.mxu0 0.0
    %365 = vmatpush1.msra.mxu0 0.0
    %366 = vmatprep.subr.mxu0 0.0
    %367 = vmatpush1.msra.mxu0 0.0
    %368 = vmatprep.subr.mxu0 0.0
    %369 = vmatpush1.msra.mxu0 0.0
    %370 = vmatprep.subr.mxu0 0.0
    %371 = vmatpush1.msra.mxu0 0.0
    %372 = vmatprep.subr.mxu0 0.0
    %373 = vmatpush1.msra.mxu0 0.0
    %374 = vmatprep.subr.mxu0 0.0
    %375 = vmatpush1.msra.mxu0 0.0
    %376 = vmatprep.subr.mxu0 0.0
    %377 = vmatpush1.msra.mxu0 0.0
    %378 = vmatprep.subr.mxu0 0.0
    %379 = vmatpush1.msra.mxu0 0.0
    %380 = vmatprep.subr.mxu0 0.0
    %381 = vmatpush1.msra.mxu0 0.0
    %382 = vmatprep.subr.mxu0 0.0
    %383 = vmatpush1.msra.mxu0 0.0
    %384 = vmatprep.subr.mxu0 0.0
    %385 = vmatpush1.msra.mxu0 0.0
    %386 = vmatprep.subr.mxu0 0.0
    %387 = vmatpush1.msra.mxu0 0.0
    %388 = vmatprep.subr.mxu0 0.0
    %389 = vmatpush1.msra.mxu0 0.0
    %390 = vmatprep.subr.mxu0 0.0
    %391 = vmatpush1.msra.mxu0 0.0
    %392 = vmatprep.subr.mxu0 0.0
    %393 = vmatpush1.msra.mxu0 0.0
    %394 = vmatprep.subr.mxu0 0.0
    %395 = vmatpush1.msra.mxu0 0.0
    %396 = vmatprep.subr.mxu0 0.0
    %397 = vmatpush1.msra.mxu0 0.0
    %398 = vmatprep.subr.mxu0 0.0
    %399 = vmatpush1.msra.mxu0 0.0
    %400 = vmatprep.subr.mxu0 0.0
    %401 = vmatpush1.msra.mxu0 0.0
    %402 = vmatprep.subr.mxu0 0.0
    %403 = vmatpush1.msra.mxu0 0.0
    %404 = vmatprep.subr.mxu0 0.0
    %405 = vmatpush1.msra.mxu0 0.0
    %406 = vmatprep.mubr.f32.mxu0 0.0
    %407 = vmatmul.mubr.f32.gmra.mrb[0].mxu0 %v340
    %v408 = vpop.f32.mrb[0].mxu0
    %v409 = vadd.f32 %v335, %v408
    %v410 = vpop.f32.mrb[0].mxu0
    %v411 = vadd.f32 %v337, %v410
    %412 = vdwg.mxu0
    %v413 = vadd.f32 %v409, %v62
    %v414 = vadd.f32 %v411, %v66
    %v415 = vld [vmem:[#allocation5] sm:$0x3]
    %v416 = vxor.u32 %v413, 2147483648
    %v417 = vmul.f32 %v416, 1.442695
    %v418 = vpow.pop %v417
    %v419 = vadd.f32 %v418, 1.0
    %v420 = vrcp.pop %v419
    %v421 = vmul.f32 1.0, %v420
    %v422 = vtanh.pop %v414
    %v423 = vxor.u32 %v414, 2147483648
    %v424 = vmul.f32 %v423, 1.442695
    %v425 = vpow.pop %v424
    %v426 = vadd.f32 %v425, 1.0
    %v427 = vrcp.pop %v426
    %v428 = vmul.f32 1.0, %v427
    %430 = vrot.lane.b32.xlu0 %v415, 64
    %v431 = vpop.permute.xlu0 %430
    %v433 = vmul.f32 %v421, %v431
    %v434 = vmul.f32 %v421, %v422
    %436 = vrot.lane.b32.xlu0 %v434, 64
    %v437 = vpop.permute.xlu0 %436
    %v439 = vadd.f32 %v433, %v437
    %v440 = vtanh.pop %v439
    %v441 = vmul.f32 %v428, %v440
    %443 = vrot.lane.b32.xlu0 %v441, 64
    %v444 = vpop.permute.xlu0 %443
    %446 = vst.msk [vmem:[#allocation4] sm:$0x3] %vm52, %v444
    %448 = vrot.lane.b32.xlu0 %v439, 64
    %v449 = vpop.permute.xlu0 %448
    %451 = vst.msk [vmem:[#allocation5] sm:$0x3] %vm52, %v449
    %v452 = vld [vmem:[%s1] sm:$0x3]
    %v453 = vld [vmem:[#allocation8] sm:$0xff]
    %v454 = vld [vmem:[#allocation8 + $0x8] sm:$0xff]
    %v455 = vld [vmem:[#allocation8 + $0x10] sm:$0xff]
    %v456 = vld [vmem:[#allocation8 + $0x18] sm:$0xff]
    %v457 = vld [vmem:[#allocation8 + $0x20] sm:$0xff]
    %v458 = vld [vmem:[#allocation8 + $0x28] sm:$0xff]
    %v459 = vld [vmem:[#allocation8 + $0x30] sm:$0xff]
    %v460 = vld [vmem:[#allocation8 + $0x38] sm:$0xff]
    %v461 = vsel %vm87, %v444, 0
    %463 = vmatprep.subr.mxu0 0.0
    %464 = vmatpush1.msra.mxu0 %v453
    %465 = vmatprep.subr.mxu0 0.0
    %466 = vmatpush1.msra.mxu0 %v454
    %467 = vmatprep.subr.mxu0 0.0
    %468 = vmatpush1.msra.mxu0 %v455
    %469 = vmatprep.subr.mxu0 0.0
    %470 = vmatpush1.msra.mxu0 %v456
    %471 = vmatprep.subr.mxu0 0.0
    %472 = vmatpush1.msra.mxu0 %v457
    %473 = vmatprep.subr.mxu0 0.0
    %474 = vmatpush1.msra.mxu0 %v458
    %475 = vmatprep.subr.mxu0 0.0
    %476 = vmatpush1.msra.mxu0 %v459
    %477 = vmatprep.subr.mxu0 0.0
    %478 = vmatpush1.msra.mxu0 %v460
    %479 = vmatprep.subr.mxu0 0.0
    %480 = vmatpush1.msra.mxu0 0.0
    %481 = vmatprep.subr.mxu0 0.0
    %482 = vmatpush1.msra.mxu0 0.0
    %483 = vmatprep.subr.mxu0 0.0
    %484 = vmatpush1.msra.mxu0 0.0
    %485 = vmatprep.subr.mxu0 0.0
    %486 = vmatpush1.msra.mxu0 0.0
    %487 = vmatprep.subr.mxu0 0.0
    %488 = vmatpush1.msra.mxu0 0.0
    %489 = vmatprep.subr.mxu0 0.0
    %490 = vmatpush1.msra.mxu0 0.0
    %491 = vmatprep.subr.mxu0 0.0
    %492 = vmatpush1.msra.mxu0 0.0
    %493 = vmatprep.subr.mxu0 0.0
    %494 = vmatpush1.msra.mxu0 0.0
    %495 = vmatprep.subr.mxu0 0.0
    %496 = vmatpush1.msra.mxu0 0.0
    %497 = vmatprep.subr.mxu0 0.0
    %498 = vmatpush1.msra.mxu0 0.0
    %499 = vmatprep.subr.mxu0 0.0
    %500 = vmatpush1.msra.mxu0 0.0
    %501 = vmatprep.subr.mxu0 0.0
    %502 = vmatpush1.msra.mxu0 0.0
    %503 = vmatprep.subr.mxu0 0.0
    %504 = vmatpush1.msra.mxu0 0.0
    %505 = vmatprep.subr.mxu0 0.0
    %506 = vmatpush1.msra.mxu0 0.0
    %507 = vmatprep.subr.mxu0 0.0
    %508 = vmatpush1.msra.mxu0 0.0
    %509 = vmatprep.subr.mxu0 0.0
    %510 = vmatpush1.msra.mxu0 0.0
    %511 = vmatprep.subr.mxu0 0.0
    %512 = vmatpush1.msra.mxu0 0.0
    %513 = vmatprep.subr.mxu0 0.0
    %514 = vmatpush1.msra.mxu0 0.0
    %515 = vmatprep.subr.mxu0 0.0
    %516 = vmatpush1.msra.mxu0 0.0
    %517 = vmatprep.subr.mxu0 0.0
    %518 = vmatpush1.msra.mxu0 0.0
    %519 = vmatprep.subr.mxu0 0.0
    %520 = vmatpush1.msra.mxu0 0.0
    %521 = vmatprep.subr.mxu0 0.0
    %522 = vmatpush1.msra.mxu0 0.0
    %523 = vmatprep.subr.mxu0 0.0
    %524 = vmatpush1.msra.mxu0 0.0
    %525 = vmatprep.subr.mxu0 0.0
    %526 = vmatpush1.msra.mxu0 0.0
    %527 = vmatprep.mubr.f32.mxu0 0.0
    %528 = vmatmul.mubr.f32.gmra.mrb[0].mxu0 %v461
    %v529 = vpop.f32.mrb[0].mxu0
    %v530 = vadd.f32 0.0, %v529
    %v531 = vpop.f32.mrb[0].mxu0
    %532 = vdwg.mxu0
    %v533 = vadd.f32 %v452, %v530
    %vm534 = vcmask 156672
    %535 = vst.msk [vmem:[%s7] sm:$0x3] %vm534, %v533
    %s536 = scalar_lea.vmem %s0, 4
    %v537 = vld [vmem:[%s536] sm:$0xf]
    %v538 = vld [vmem:[#allocation2] sm:$0x3]
    %v539 = vld [vmem:[%s2] sm:$0xff]
    %v540 = vld [vmem:[%s2 + $0x8] sm:$0xff]
    %v541 = vld [vmem:[%s2 + $0x10] sm:$0xff]
    %v542 = vld [vmem:[%s2 + $0x18] sm:$0xff]
    %v543 = vld [vmem:[%s2 + $0x20] sm:$0xff]
    %v544 = vld [vmem:[%s2 + $0x28] sm:$0xff]
    %v545 = vld [vmem:[%s2 + $0x30] sm:$0xff]
    %v546 = vld [vmem:[%s2 + $0x38] sm:$0xff]
    %v547 = vld [vmem:[%s2 + $0x40] sm:$0xff]
    %v548 = vld [vmem:[%s2 + $0x48] sm:$0xff]
    %v549 = vld [vmem:[%s2 + $0x50] sm:$0xff]
    %v550 = vld [vmem:[%s2 + $0x58] sm:$0xff]
    %v551 = vld [vmem:[%s2 + $0x60] sm:$0xff]
    %v552 = vld [vmem:[%s2 + $0x68] sm:$0xff]
    %v553 = vld [vmem:[%s2 + $0x70] sm:$0xff]
    %v554 = vld [vmem:[%s2 + $0x78] sm:$0xff]
    %v556 = vsel %vm87, %v538, 0
    %558 = vmatprep.subr.mxu0 %v540
    %559 = vmatpush1.msra.mxu0 %v539
    %560 = vmatprep.subr.mxu0 %v542
    %561 = vmatpush1.msra.mxu0 %v541
    %562 = vmatprep.subr.mxu0 %v544
    %563 = vmatpush1.msra.mxu0 %v543
    %564 = vmatprep.subr.mxu0 %v546
    %565 = vmatpush1.msra.mxu0 %v545
    %566 = vmatprep.subr.mxu0 %v548
    %567 = vmatpush1.msra.mxu0 %v547
    %568 = vmatprep.subr.mxu0 %v550
    %569 = vmatpush1.msra.mxu0 %v549
    %570 = vmatprep.subr.mxu0 %v552
    %571 = vmatpush1.msra.mxu0 %v551
    %572 = vmatprep.subr.mxu0 %v554
    %573 = vmatpush1.msra.mxu0 %v553
    %574 = vmatprep.subr.mxu0 0.0
    %575 = vmatpush1.msra.mxu0 0.0
    %576 = vmatprep.subr.mxu0 0.0
    %577 = vmatpush1.msra.mxu0 0.0
    %578 = vmatprep.subr.mxu0 0.0
    %579 = vmatpush1.msra.mxu0 0.0
    %580 = vmatprep.subr.mxu0 0.0
    %581 = vmatpush1.msra.mxu0 0.0
    %582 = vmatprep.subr.mxu0 0.0
    %583 = vmatpush1.msra.mxu0 0.0
    %584 = vmatprep.subr.mxu0 0.0
    %585 = vmatpush1.msra.mxu0 0.0
    %586 = vmatprep.subr.mxu0 0.0
    %587 = vmatpush1.msra.mxu0 0.0
    %588 = vmatprep.subr.mxu0 0.0
    %589 = vmatpush1.msra.mxu0 0.0
    %590 = vmatprep.subr.mxu0 0.0
    %591 = vmatpush1.msra.mxu0 0.0
    %592 = vmatprep.subr.mxu0 0.0
    %593 = vmatpush1.msra.mxu0 0.0
    %594 = vmatprep.subr.mxu0 0.0
    %595 = vmatpush1.msra.mxu0 0.0
    %596 = vmatprep.subr.mxu0 0.0
    %597 = vmatpush1.msra.mxu0 0.0
    %598 = vmatprep.subr.mxu0 0.0
    %599 = vmatpush1.msra.mxu0 0.0
    %600 = vmatprep.subr.mxu0 0.0
    %601 = vmatpush1.msra.mxu0 0.0
    %602 = vmatprep.subr.mxu0 0.0
    %603 = vmatpush1.msra.mxu0 0.0
    %604 = vmatprep.subr.mxu0 0.0
    %605 = vmatpush1.msra.mxu0 0.0
    %606 = vmatprep.subr.mxu0 0.0
    %607 = vmatpush1.msra.mxu0 0.0
    %608 = vmatprep.subr.mxu0 0.0
    %609 = vmatpush1.msra.mxu0 0.0
    %610 = vmatprep.subr.mxu0 0.0
    %611 = vmatpush1.msra.mxu0 0.0
    %612 = vmatprep.subr.mxu0 0.0
    %613 = vmatpush1.msra.mxu0 0.0
    %614 = vmatprep.subr.mxu0 0.0
    %615 = vmatpush1.msra.mxu0 0.0
    %616 = vmatprep.subr.mxu0 0.0
    %617 = vmatpush1.msra.mxu0 0.0
    %618 = vmatprep.subr.mxu0 0.0
    %619 = vmatpush1.msra.mxu0 0.0
    %620 = vmatprep.subr.mxu0 0.0
    %621 = vmatpush1.msra.mxu0 0.0
    %622 = vmatprep.mubr.f32.mxu0 0.0
    %623 = vmatmul.mubr.f32.gmra.mrb[0].mxu0 %v556
    %v624 = vpop.f32.mrb[0].mxu0
    %v625 = vadd.f32 0.0, %v624
    %v626 = vpop.f32.mrb[0].mxu0
    %v627 = vadd.f32 0.0, %v626
    %628 = vdwg.mxu0
    %v631 = vcombine.low %v625, %v627
    %v633 = vunpack.c.l.s4 1983009808
    %v634 = vunpack.c.0.s8 %v633
    %v635 = vlaneseq
    %v636 = vshrl.u32 %v635, 7
    %v637 = vsub.s32 %v634, %v636
    %v638 = vrot.slane %v631, %v637
    %v640 = vadd.f32 %v537, %v638
    %v641 = vld [vmem:[#allocation3] sm:$0x3]
    %v642 = vxor.u32 %v640, 2147483648
    %v643 = vmul.f32 %v642, 1.442695
    %v644 = vpow.pop %v643
    %v645 = vadd.f32 %v644, 1.0
    %v646 = vrcp.pop %v645
    %v647 = vmul.f32 1.0, %v646
    %v649 = vrot.slane %v640, 2
    %v651 = vtanh.pop %v649
    %652 = vrot.lane.b32.xlu0 %v640, 64
    %v653 = vpop.permute.xlu0 %652
    %v654 = vrot.slane %v653, 2
    %v656 = vxor.u32 %v654, 2147483648
    %v657 = vmul.f32 %v656, 1.442695
    %v658 = vpow.pop %v657
    %v659 = vadd.f32 %v658, 1.0
    %v660 = vrcp.pop %v659
    %v661 = vmul.f32 1.0, %v660
    %v664 = vunpack.c.l.s4 1983009808
    %v665 = vunpack.c.0.s8 %v664
    %v666 = vlaneseq
    %v667 = vshrl.u32 %v666, 7
    %v668 = vsub.s32 %v665, %v667
    %v669 = vrot.slane %v641, %v668
    %670 = vrot.lane.b32.xlu0 %v669, 64
    %v671 = vpop.permute.xlu0 %670
    %v673 = vmul.f32 %v647, %v671
    %v674 = vmul.f32 %v647, %v651
    %676 = vrot.lane.b32.xlu0 %v674, 64
    %v677 = vpop.permute.xlu0 %676
    %v679 = vadd.f32 %v673, %v677
    %v680 = vtanh.pop %v679
    %682 = vrot.lane.b32.xlu0 %v680, 64
    %v683 = vpop.permute.xlu0 %682
    %v685 = vmul.f32 %v661, %v683
    %686 = vst.msk [vmem:[#allocation2] sm:$0x3] %vm52, %v685
    %v689 = vunpack.c.l.s4 1983009808
    %v690 = vunpack.c.0.s8 %v689
    %v691 = vlaneseq
    %v692 = vshrl.u32 %v691, 7
    %v693 = vsub.s32 %v690, %v692
    %v694 = vrot.slane %v679, %v693
    %695 = vrot.lane.b32.xlu0 %v694, 64
    %v696 = vpop.permute.xlu0 %695
    %698 = vst.msk [vmem:[#allocation3] sm:$0x3] %vm52, %v696
    %v699 = vld [vmem:[%s3] sm:$0xff]
    %v700 = vld [vmem:[%s3 + $0x8] sm:$0xff]
    %v701 = vld [vmem:[%s3 + $0x10] sm:$0xff]
    %v702 = vld [vmem:[%s3 + $0x18] sm:$0xff]
    %v703 = vld [vmem:[%s3 + $0x20] sm:$0xff]
    %v704 = vld [vmem:[%s3 + $0x28] sm:$0xff]
    %v705 = vld [vmem:[%s3 + $0x30] sm:$0xff]
    %v706 = vld [vmem:[%s3 + $0x38] sm:$0xff]
    %v707 = vld [vmem:[%s3 + $0x40] sm:$0xff]
    %v708 = vld [vmem:[%s3 + $0x48] sm:$0xff]
    %v709 = vld [vmem:[%s3 + $0x50] sm:$0xff]
    %v710 = vld [vmem:[%s3 + $0x58] sm:$0xff]
    %v711 = vld [vmem:[%s3 + $0x60] sm:$0xff]
    %v712 = vld [vmem:[%s3 + $0x68] sm:$0xff]
    %v713 = vld [vmem:[%s3 + $0x70] sm:$0xff]
    %v714 = vld [vmem:[%s3 + $0x78] sm:$0xff]
    %v715 = vld [vmem:[#allocation4] sm:$0x3]
    %v716 = vld [vmem:[%s4] sm:$0xff]
    %v717 = vld [vmem:[%s4 + $0x8] sm:$0xff]
    %v718 = vld [vmem:[%s4 + $0x10] sm:$0xff]
    %v719 = vld [vmem:[%s4 + $0x18] sm:$0xff]
    %v720 = vld [vmem:[%s4 + $0x20] sm:$0xff]
    %v721 = vld [vmem:[%s4 + $0x28] sm:$0xff]
    %v722 = vld [vmem:[%s4 + $0x30] sm:$0xff]
    %v723 = vld [vmem:[%s4 + $0x38] sm:$0xff]
    %v724 = vld [vmem:[%s4 + $0x40] sm:$0xff]
    %v725 = vld [vmem:[%s4 + $0x48] sm:$0xff]
    %v726 = vld [vmem:[%s4 + $0x50] sm:$0xff]
    %v727 = vld [vmem:[%s4 + $0x58] sm:$0xff]
    %v728 = vld [vmem:[%s4 + $0x60] sm:$0xff]
    %v729 = vld [vmem:[%s4 + $0x68] sm:$0xff]
    %v730 = vld [vmem:[%s4 + $0x70] sm:$0xff]
    %v731 = vld [vmem:[%s4 + $0x78] sm:$0xff]
    %v733 = vsel %vm87, %v715, 0
    %735 = vmatprep.subr.mxu0 %v717
    %736 = vmatpush1.msra.mxu0 %v716
    %737 = vmatprep.subr.mxu0 %v719
    %738 = vmatpush1.msra.mxu0 %v718
    %739 = vmatprep.subr.mxu0 %v721
    %740 = vmatpush1.msra.mxu0 %v720
    %741 = vmatprep.subr.mxu0 %v723
    %742 = vmatpush1.msra.mxu0 %v722
    %743 = vmatprep.subr.mxu0 %v725
    %744 = vmatpush1.msra.mxu0 %v724
    %745 = vmatprep.subr.mxu0 %v727
    %746 = vmatpush1.msra.mxu0 %v726
    %747 = vmatprep.subr.mxu0 %v729
    %748 = vmatpush1.msra.mxu0 %v728
    %749 = vmatprep.subr.mxu0 %v731
    %750 = vmatpush1.msra.mxu0 %v730
    %751 = vmatprep.subr.mxu0 0.0
    %752 = vmatpush1.msra.mxu0 0.0
    %753 = vmatprep.subr.mxu0 0.0
    %754 = vmatpush1.msra.mxu0 0.0
    %755 = vmatprep.subr.mxu0 0.0
    %756 = vmatpush1.msra.mxu0 0.0
    %757 = vmatprep.subr.mxu0 0.0
    %758 = vmatpush1.msra.mxu0 0.0
    %759 = vmatprep.subr.mxu0 0.0
    %760 = vmatpush1.msra.mxu0 0.0
    %761 = vmatprep.subr.mxu0 0.0
    %762 = vmatpush1.msra.mxu0 0.0
    %763 = vmatprep.subr.mxu0 0.0
    %764 = vmatpush1.msra.mxu0 0.0
    %765 = vmatprep.subr.mxu0 0.0
    %766 = vmatpush1.msra.mxu0 0.0
    %767 = vmatprep.subr.mxu0 0.0
    %768 = vmatpush1.msra.mxu0 0.0
    %769 = vmatprep.subr.mxu0 0.0
    %770 = vmatpush1.msra.mxu0 0.0
    %771 = vmatprep.subr.mxu0 0.0
    %772 = vmatpush1.msra.mxu0 0.0
    %773 = vmatprep.subr.mxu0 0.0
    %774 = vmatpush1.msra.mxu0 0.0
    %775 = vmatprep.subr.mxu0 0.0
    %776 = vmatpush1.msra.mxu0 0.0
    %777 = vmatprep.subr.mxu0 0.0
    %778 = vmatpush1.msra.mxu0 0.0
    %779 = vmatprep.subr.mxu0 0.0
    %780 = vmatpush1.msra.mxu0 0.0
    %781 = vmatprep.subr.mxu0 0.0
    %782 = vmatpush1.msra.mxu0 0.0
    %783 = vmatprep.subr.mxu0 0.0
    %784 = vmatpush1.msra.mxu0 0.0
    %785 = vmatprep.subr.mxu0 0.0
    %786 = vmatpush1.msra.mxu0 0.0
    %787 = vmatprep.subr.mxu0 0.0
    %788 = vmatpush1.msra.mxu0 0.0
    %789 = vmatprep.subr.mxu0 0.0
    %790 = vmatpush1.msra.mxu0 0.0
    %791 = vmatprep.subr.mxu0 0.0
    %792 = vmatpush1.msra.mxu0 0.0
    %793 = vmatprep.subr.mxu0 0.0
    %794 = vmatpush1.msra.mxu0 0.0
    %795 = vmatprep.subr.mxu0 0.0
    %796 = vmatpush1.msra.mxu0 0.0
    %797 = vmatprep.subr.mxu0 0.0
    %798 = vmatpush1.msra.mxu0 0.0
    %799 = vmatprep.mubr.f32.mxu0 0.0
    %800 = vmatmul.mubr.f32.gmra.mrb[0].mxu0 %v733
    %v801 = vpop.f32.mrb[0].mxu0
    %v802 = vadd.f32 0.0, %v801
    %v803 = vpop.f32.mrb[0].mxu0
    %v804 = vadd.f32 0.0, %v803
    %805 = vdwg.mxu0
    %v807 = vsel %vm87, %v685, 0
    %809 = vmatprep.subr.mxu0 %v700
    %810 = vmatpush1.msra.mxu0 %v699
    %811 = vmatprep.subr.mxu0 %v702
    %812 = vmatpush1.msra.mxu0 %v701
    %813 = vmatprep.subr.mxu0 %v704
    %814 = vmatpush1.msra.mxu0 %v703
    %815 = vmatprep.subr.mxu0 %v706
    %816 = vmatpush1.msra.mxu0 %v705
    %817 = vmatprep.subr.mxu0 %v708
    %818 = vmatpush1.msra.mxu0 %v707
    %819 = vmatprep.subr.mxu0 %v710
    %820 = vmatpush1.msra.mxu0 %v709
    %821 = vmatprep.subr.mxu0 %v712
    %822 = vmatpush1.msra.mxu0 %v711
    %823 = vmatprep.subr.mxu0 %v714
    %824 = vmatpush1.msra.mxu0 %v713
    %825 = vmatprep.subr.mxu0 0.0
    %826 = vmatpush1.msra.mxu0 0.0
    %827 = vmatprep.subr.mxu0 0.0
    %828 = vmatpush1.msra.mxu0 0.0
    %829 = vmatprep.subr.mxu0 0.0
    %830 = vmatpush1.msra.mxu0 0.0
    %831 = vmatprep.subr.mxu0 0.0
    %832 = vmatpush1.msra.mxu0 0.0
    %833 = vmatprep.subr.mxu0 0.0
    %834 = vmatpush1.msra.mxu0 0.0
    %835 = vmatprep.subr.mxu0 0.0
    %836 = vmatpush1.msra.mxu0 0.0
    %837 = vmatprep.subr.mxu0 0.0
    %838 = vmatpush1.msra.mxu0 0.0
    %839 = vmatprep.subr.mxu0 0.0
    %840 = vmatpush1.msra.mxu0 0.0
    %841 = vmatprep.subr.mxu0 0.0
    %842 = vmatpush1.msra.mxu0 0.0
    %843 = vmatprep.subr.mxu0 0.0
    %844 = vmatpush1.msra.mxu0 0.0
    %845 = vmatprep.subr.mxu0 0.0
    %846 = vmatpush1.msra.mxu0 0.0
    %847 = vmatprep.subr.mxu0 0.0
    %848 = vmatpush1.msra.mxu0 0.0
    %849 = vmatprep.subr.mxu0 0.0
    %850 = vmatpush1.msra.mxu0 0.0
    %851 = vmatprep.subr.mxu0 0.0
    %852 = vmatpush1.msra.mxu0 0.0
    %853 = vmatprep.subr.mxu0 0.0
    %854 = vmatpush1.msra.mxu0 0.0
    %855 = vmatprep.subr.mxu0 0.0
    %856 = vmatpush1.msra.mxu0 0.0
    %857 = vmatprep.subr.mxu0 0.0
    %858 = vmatpush1.msra.mxu0 0.0
    %859 = vmatprep.subr.mxu0 0.0
    %860 = vmatpush1.msra.mxu0 0.0
    %861 = vmatprep.subr.mxu0 0.0
    %862 = vmatpush1.msra.mxu0 0.0
    %863 = vmatprep.subr.mxu0 0.0
    %864 = vmatpush1.msra.mxu0 0.0
    %865 = vmatprep.subr.mxu0 0.0
    %866 = vmatpush1.msra.mxu0 0.0
    %867 = vmatprep.subr.mxu0 0.0
    %868 = vmatpush1.msra.mxu0 0.0
    %869 = vmatprep.subr.mxu0 0.0
    %870 = vmatpush1.msra.mxu0 0.0
    %871 = vmatprep.subr.mxu0 0.0
    %872 = vmatpush1.msra.mxu0 0.0
    %873 = vmatprep.mubr.f32.mxu0 0.0
    %874 = vmatmul.mubr.f32.gmra.mrb[0].mxu0 %v807
    %v875 = vpop.f32.mrb[0].mxu0
    %v876 = vadd.f32 %v802, %v875
    %v877 = vpop.f32.mrb[0].mxu0
    %v878 = vadd.f32 %v804, %v877
    %879 = vdwg.mxu0
    %v880 = vadd.f32 %v876, %v62
    %v881 = vadd.f32 %v878, %v66
    %v882 = vld [vmem:[#allocation5] sm:$0x3]
    %v883 = vxor.u32 %v880, 2147483648
    %v884 = vmul.f32 %v883, 1.442695
    %v885 = vpow.pop %v884
    %v886 = vadd.f32 %v885, 1.0
    %v887 = vrcp.pop %v886
    %v888 = vmul.f32 1.0, %v887
    %v889 = vtanh.pop %v881
    %v890 = vxor.u32 %v881, 2147483648
    %v891 = vmul.f32 %v890, 1.442695
    %v892 = vpow.pop %v891
    %v893 = vadd.f32 %v892, 1.0
    %v894 = vrcp.pop %v893
    %v895 = vmul.f32 1.0, %v894
    %897 = vrot.lane.b32.xlu0 %v882, 64
    %v898 = vpop.permute.xlu0 %897
    %v900 = vmul.f32 %v888, %v898
    %v901 = vmul.f32 %v888, %v889
    %903 = vrot.lane.b32.xlu0 %v901, 64
    %v904 = vpop.permute.xlu0 %903
    %v906 = vadd.f32 %v900, %v904
    %v907 = vtanh.pop %v906
    %v908 = vmul.f32 %v895, %v907
    %910 = vrot.lane.b32.xlu0 %v908, 64
    %v911 = vpop.permute.xlu0 %910
    %913 = vst.msk [vmem:[#allocation4] sm:$0x3] %vm52, %v911
    %915 = vrot.lane.b32.xlu0 %v906, 64
    %v916 = vpop.permute.xlu0 %915
    %918 = vst.msk [vmem:[#allocation5] sm:$0x3] %vm52, %v916
    %s919 = scalar_lea.vmem %s1, 2
    %v920 = vld [vmem:[%s919] sm:$0x3]
    %v921 = vld [vmem:[#allocation8] sm:$0xff]
    %v922 = vld [vmem:[#allocation8 + $0x8] sm:$0xff]
    %v923 = vld [vmem:[#allocation8 + $0x10] sm:$0xff]
    %v924 = vld [vmem:[#allocation8 + $0x18] sm:$0xff]
    %v925 = vld [vmem:[#allocation8 + $0x20] sm:$0xff]
    %v926 = vld [vmem:[#allocation8 + $0x28] sm:$0xff]
    %v927 = vld [vmem:[#allocation8 + $0x30] sm:$0xff]
    %v928 = vld [vmem:[#allocation8 + $0x38] sm:$0xff]
    %v929 = vsel %vm87, %v911, 0
    %931 = vmatprep.subr.mxu0 0.0
    %932 = vmatpush1.msra.mxu0 %v921
    %933 = vmatprep.subr.mxu0 0.0
    %934 = vmatpush1.msra.mxu0 %v922
    %935 = vmatprep.subr.mxu0 0.0
    %936 = vmatpush1.msra.mxu0 %v923
    %937 = vmatprep.subr.mxu0 0.0
    %938 = vmatpush1.msra.mxu0 %v924
    %939 = vmatprep.subr.mxu0 0.0
    %940 = vmatpush1.msra.mxu0 %v925
    %941 = vmatprep.subr.mxu0 0.0
    %942 = vmatpush1.msra.mxu0 %v926
    %943 = vmatprep.subr.mxu0 0.0
    %944 = vmatpush1.msra.mxu0 %v927
    %945 = vmatprep.subr.mxu0 0.0
    %946 = vmatpush1.msra.mxu0 %v928
    %947 = vmatprep.subr.mxu0 0.0
    %948 = vmatpush1.msra.mxu0 0.0
    %949 = vmatprep.subr.mxu0 0.0
    %950 = vmatpush1.msra.mxu0 0.0
    %951 = vmatprep.subr.mxu0 0.0
    %952 = vmatpush1.msra.mxu0 0.0
    %953 = vmatprep.subr.mxu0 0.0
    %954 = vmatpush1.msra.mxu0 0.0
    %955 = vmatprep.subr.mxu0 0.0
    %956 = vmatpush1.msra.mxu0 0.0
    %957 = vmatprep.subr.mxu0 0.0
    %958 = vmatpush1.msra.mxu0 0.0
    %959 = vmatprep.subr.mxu0 0.0
    %960 = vmatpush1.msra.mxu0 0.0
    %961 = vmatprep.subr.mxu0 0.0
    %962 = vmatpush1.msra.mxu0 0.0
    %963 = vmatprep.subr.mxu0 0.0
    %964 = vmatpush1.msra.mxu0 0.0
    %965 = vmatprep.subr.mxu0 0.0
    %966 = vmatpush1.msra.mxu0 0.0
    %967 = vmatprep.subr.mxu0 0.0
    %968 = vmatpush1.msra.mxu0 0.0
    %969 = vmatprep.subr.mxu0 0.0
    %970 = vmatpush1.msra.mxu0 0.0
    %971 = vmatprep.subr.mxu0 0.0
    %972 = vmatpush1.msra.mxu0 0.0
    %973 = vmatprep.subr.mxu0 0.0
    %974 = vmatpush1.msra.mxu0 0.0
    %975 = vmatprep.subr.mxu0 0.0
    %976 = vmatpush1.msra.mxu0 0.0
    %977 = vmatprep.subr.mxu0 0.0
    %978 = vmatpush1.msra.mxu0 0.0
    %979 = vmatprep.subr.mxu0 0.0
    %980 = vmatpush1.msra.mxu0 0.0
    %981 = vmatprep.subr.mxu0 0.0
    %982 = vmatpush1.msra.mxu0 0.0
    %983 = vmatprep.subr.mxu0 0.0
    %984 = vmatpush1.msra.mxu0 0.0
    %985 = vmatprep.subr.mxu0 0.0
    %986 = vmatpush1.msra.mxu0 0.0
    %987 = vmatprep.subr.mxu0 0.0
    %988 = vmatpush1.msra.mxu0 0.0
    %989 = vmatprep.subr.mxu0 0.0
    %990 = vmatpush1.msra.mxu0 0.0
    %991 = vmatprep.subr.mxu0 0.0
    %992 = vmatpush1.msra.mxu0 0.0
    %993 = vmatprep.subr.mxu0 0.0
    %994 = vmatpush1.msra.mxu0 0.0
    %995 = vmatprep.mubr.f32.mxu0 0.0
    %996 = vmatmul.mubr.f32.gmra.mrb[0].mxu0 %v929
    %v997 = vpop.f32.mrb[0].mxu0
    %v998 = vadd.f32 0.0, %v997
    %v999 = vpop.f32.mrb[0].mxu0
    %1000 = vdwg.mxu0
    %v1001 = vadd.f32 %v920, %v998
    %s1002 = scalar_lea.vmem %s7, 2
    %1003 = vst.msk [vmem:[%s1002] sm:$0x3] %vm534, %v1001
    %s1004 = scalar_lea.vmem %s0, 8
    %v1005 = vld [vmem:[%s1004] sm:$0xf]
    %v1006 = vld [vmem:[#allocation2] sm:$0x3]
    %v1007 = vld [vmem:[%s2] sm:$0xff]
    %v1008 = vld [vmem:[%s2 + $0x8] sm:$0xff]
    %v1009 = vld [vmem:[%s2 + $0x10] sm:$0xff]
    %v1010 = vld [vmem:[%s2 + $0x18] sm:$0xff]
    %v1011 = vld [vmem:[%s2 + $0x20] sm:$0xff]
    %v1012 = vld [vmem:[%s2 + $0x28] sm:$0xff]
    %v1013 = vld [vmem:[%s2 + $0x30] sm:$0xff]
    %v1014 = vld [vmem:[%s2 + $0x38] sm:$0xff]
    %v1015 = vld [vmem:[%s2 + $0x40] sm:$0xff]
    %v1016 = vld [vmem:[%s2 + $0x48] sm:$0xff]
    %v1017 = vld [vmem:[%s2 + $0x50] sm:$0xff]
    %v1018 = vld [vmem:[%s2 + $0x58] sm:$0xff]
    %v1019 = vld [vmem:[%s2 + $0x60] sm:$0xff]
    %v1020 = vld [vmem:[%s2 + $0x68] sm:$0xff]
    %v1021 = vld [vmem:[%s2 + $0x70] sm:$0xff]
    %v1022 = vld [vmem:[%s2 + $0x78] sm:$0xff]
    %v1024 = vsel %vm87, %v1006, 0
    %1026 = vmatprep.subr.mxu0 %v1008
    %1027 = vmatpush1.msra.mxu0 %v1007
    %1028 = vmatprep.subr.mxu0 %v1010
    %1029 = vmatpush1.msra.mxu0 %v1009
    %1030 = vmatprep.subr.mxu0 %v1012
    %1031 = vmatpush1.msra.mxu0 %v1011
    %1032 = vmatprep.subr.mxu0 %v1014
    %1033 = vmatpush1.msra.mxu0 %v1013
    %1034 = vmatprep.subr.mxu0 %v1016
    %1035 = vmatpush1.msra.mxu0 %v1015
    %1036 = vmatprep.subr.mxu0 %v1018
    %1037 = vmatpush1.msra.mxu0 %v1017
    %1038 = vmatprep.subr.mxu0 %v1020
    %1039 = vmatpush1.msra.mxu0 %v1019
    %1040 = vmatprep.subr.mxu0 %v1022
    %1041 = vmatpush1.msra.mxu0 %v1021
    %1042 = vmatprep.subr.mxu0 0.0
    %1043 = vmatpush1.msra.mxu0 0.0
    %1044 = vmatprep.subr.mxu0 0.0
    %1045 = vmatpush1.msra.mxu0 0.0
    %1046 = vmatprep.subr.mxu0 0.0
    %1047 = vmatpush1.msra.mxu0 0.0
    %1048 = vmatprep.subr.mxu0 0.0
    %1049 = vmatpush1.msra.mxu0 0.0
    %1050 = vmatprep.subr.mxu0 0.0
    %1051 = vmatpush1.msra.mxu0 0.0
    %1052 = vmatprep.subr.mxu0 0.0
    %1053 = vmatpush1.msra.mxu0 0.0
    %1054 = vmatprep.subr.mxu0 0.0
    %1055 = vmatpush1.msra.mxu0 0.0
    %1056 = vmatprep.subr.mxu0 0.0
    %1057 = vmatpush1.msra.mxu0 0.0
    %1058 = vmatprep.subr.mxu0 0.0
    %1059 = vmatpush1.msra.mxu0 0.0
    %1060 = vmatprep.subr.mxu0 0.0
    %1061 = vmatpush1.msra.mxu0 0.0
    %1062 = vmatprep.subr.mxu0 0.0
    %1063 = vmatpush1.msra.mxu0 0.0
    %1064 = vmatprep.subr.mxu0 0.0
    %1065 = vmatpush1.msra.mxu0 0.0
    %1066 = vmatprep.subr.mxu0 0.0
    %1067 = vmatpush1.msra.mxu0 0.0
    %1068 = vmatprep.subr.mxu0 0.0
    %1069 = vmatpush1.msra.mxu0 0.0
    %1070 = vmatprep.subr.mxu0 0.0
    %1071 = vmatpush1.msra.mxu0 0.0
    %1072 = vmatprep.subr.mxu0 0.0
    %1073 = vmatpush1.msra.mxu0 0.0
    %1074 = vmatprep.subr.mxu0 0.0
    %1075 = vmatpush1.msra.mxu0 0.0
    %1076 = vmatprep.subr.mxu0 0.0
    %1077 = vmatpush1.msra.mxu0 0.0
    %1078 = vmatprep.subr.mxu0 0.0
    %1079 = vmatpush1.msra.mxu0 0.0
    %1080 = vmatprep.subr.mxu0 0.0
    %1081 = vmatpush1.msra.mxu0 0.0
    %1082 = vmatprep.subr.mxu0 0.0
    %1083 = vmatpush1.msra.mxu0 0.0
    %1084 = vmatprep.subr.mxu0 0.0
    %1085 = vmatpush1.msra.mxu0 0.0
    %1086 = vmatprep.subr.mxu0 0.0
    %1087 = vmatpush1.msra.mxu0 0.0
    %1088 = vmatprep.subr.mxu0 0.0
    %1089 = vmatpush1.msra.mxu0 0.0
    %1090 = vmatprep.mubr.f32.mxu0 0.0
    %1091 = vmatmul.mubr.f32.gmra.mrb[0].mxu0 %v1024
    %v1092 = vpop.f32.mrb[0].mxu0
    %v1093 = vadd.f32 0.0, %v1092
    %v1094 = vpop.f32.mrb[0].mxu0
    %v1095 = vadd.f32 0.0, %v1094
    %1096 = vdwg.mxu0
    %v1099 = vcombine.low %v1093, %v1095
    %v1101 = vunpack.c.l.s4 1983009808
    %v1102 = vunpack.c.0.s8 %v1101
    %v1103 = vlaneseq
    %v1104 = vshrl.u32 %v1103, 7
    %v1105 = vsub.s32 %v1102, %v1104
    %v1106 = vrot.slane %v1099, %v1105
    %v1108 = vadd.f32 %v1005, %v1106
    %v1109 = vld [vmem:[#allocation3] sm:$0x3]
    %v1110 = vxor.u32 %v1108, 2147483648
    %v1111 = vmul.f32 %v1110, 1.442695
    %v1112 = vpow.pop %v1111
    %v1113 = vadd.f32 %v1112, 1.0
    %v1114 = vrcp.pop %v1113
    %v1115 = vmul.f32 1.0, %v1114
    %v1117 = vrot.slane %v1108, 2
    %v1119 = vtanh.pop %v1117
    %1120 = vrot.lane.b32.xlu0 %v1108, 64
    %v1121 = vpop.permute.xlu0 %1120
    %v1122 = vrot.slane %v1121, 2
    %v1124 = vxor.u32 %v1122, 2147483648
    %v1125 = vmul.f32 %v1124, 1.442695
    %v1126 = vpow.pop %v1125
    %v1127 = vadd.f32 %v1126, 1.0
    %v1128 = vrcp.pop %v1127
    %v1129 = vmul.f32 1.0, %v1128
    %v1132 = vunpack.c.l.s4 1983009808
    %v1133 = vunpack.c.0.s8 %v1132
    %v1134 = vlaneseq
    %v1135 = vshrl.u32 %v1134, 7
    %v1136 = vsub.s32 %v1133, %v1135
    %v1137 = vrot.slane %v1109, %v1136
    %1138 = vrot.lane.b32.xlu0 %v1137, 64
    %v1139 = vpop.permute.xlu0 %1138
    %v1141 = vmul.f32 %v1115, %v1139
    %v1142 = vmul.f32 %v1115, %v1119
    %1144 = vrot.lane.b32.xlu0 %v1142, 64
    %v1145 = vpop.permute.xlu0 %1144
    %v1147 = vadd.f32 %v1141, %v1145
    %v1148 = vtanh.pop %v1147
    %1150 = vrot.lane.b32.xlu0 %v1148, 64
    %v1151 = vpop.permute.xlu0 %1150
    %v1153 = vmul.f32 %v1129, %v1151
    %1154 = vst.msk [vmem:[#allocation2] sm:$0x3] %vm52, %v1153
    %v1157 = vunpack.c.l.s4 1983009808
    %v1158 = vunpack.c.0.s8 %v1157
    %v1159 = vlaneseq
    %v1160 = vshrl.u32 %v1159, 7
    %v1161 = vsub.s32 %v1158, %v1160
    %v1162 = vrot.slane %v1147, %v1161
    %1163 = vrot.lane.b32.xlu0 %v1162, 64
    %v1164 = vpop.permute.xlu0 %1163
    %1166 = vst.msk [vmem:[#allocation3] sm:$0x3] %vm52, %v1164
    %v1167 = vld [vmem:[%s3] sm:$0xff]
    %v1168 = vld [vmem:[%s3 + $0x8] sm:$0xff]
    %v1169 = vld [vmem:[%s3 + $0x10] sm:$0xff]
    %v1170 = vld [vmem:[%s3 + $0x18] sm:$0xff]
    %v1171 = vld [vmem:[%s3 + $0x20] sm:$0xff]
    %v1172 = vld [vmem:[%s3 + $0x28] sm:$0xff]
    %v1173 = vld [vmem:[%s3 + $0x30] sm:$0xff]
    %v1174 = vld [vmem:[%s3 + $0x38] sm:$0xff]
    %v1175 = vld [vmem:[%s3 + $0x40] sm:$0xff]
    %v1176 = vld [vmem:[%s3 + $0x48] sm:$0xff]
    %v1177 = vld [vmem:[%s3 + $0x50] sm:$0xff]
    %v1178 = vld [vmem:[%s3 + $0x58] sm:$0xff]
    %v1179 = vld [vmem:[%s3 + $0x60] sm:$0xff]
    %v1180 = vld [vmem:[%s3 + $0x68] sm:$0xff]
    %v1181 = vld [vmem:[%s3 + $0x70] sm:$0xff]
    %v1182 = vld [vmem:[%s3 + $0x78] sm:$0xff]
    %v1183 = vld [vmem:[#allocation4] sm:$0x3]
    %v1184 = vld [vmem:[%s4] sm:$0xff]
    %v1185 = vld [vmem:[%s4 + $0x8] sm:$0xff]
    %v1186 = vld [vmem:[%s4 + $0x10] sm:$0xff]
    %v1187 = vld [vmem:[%s4 + $0x18] sm:$0xff]
    %v1188 = vld [vmem:[%s4 + $0x20] sm:$0xff]
    %v1189 = vld [vmem:[%s4 + $0x28] sm:$0xff]
    %v1190 = vld [vmem:[%s4 + $0x30] sm:$0xff]
    %v1191 = vld [vmem:[%s4 + $0x38] sm:$0xff]
    %v1192 = vld [vmem:[%s4 + $0x40] sm:$0xff]
    %v1193 = vld [vmem:[%s4 + $0x48] sm:$0xff]
    %v1194 = vld [vmem:[%s4 + $0x50] sm:$0xff]
    %v1195 = vld [vmem:[%s4 + $0x58] sm:$0xff]
    %v1196 = vld [vmem:[%s4 + $0x60] sm:$0xff]
    %v1197 = vld [vmem:[%s4 + $0x68] sm:$0xff]
    %v1198 = vld [vmem:[%s4 + $0x70] sm:$0xff]
    %v1199 = vld [vmem:[%s4 + $0x78] sm:$0xff]
    %v1201 = vsel %vm87, %v1183, 0
    %1203 = vmatprep.subr.mxu0 %v1185
    %1204 = vmatpush1.msra.mxu0 %v1184
    %1205 = vmatprep.subr.mxu0 %v1187
    %1206 = vmatpush1.msra.mxu0 %v1186
    %1207 = vmatprep.subr.mxu0 %v1189
    %1208 = vmatpush1.msra.mxu0 %v1188
    %1209 = vmatprep.subr.mxu0 %v1191
    %1210 = vmatpush1.msra.mxu0 %v1190
    %1211 = vmatprep.subr.mxu0 %v1193
    %1212 = vmatpush1.msra.mxu0 %v1192
    %1213 = vmatprep.subr.mxu0 %v1195
    %1214 = vmatpush1.msra.mxu0 %v1194
    %1215 = vmatprep.subr.mxu0 %v1197
    %1216 = vmatpush1.msra.mxu0 %v1196
    %1217 = vmatprep.subr.mxu0 %v1199
    %1218 = vmatpush1.msra.mxu0 %v1198
    %1219 = vmatprep.subr.mxu0 0.0
    %1220 = vmatpush1.msra.mxu0 0.0
    %1221 = vmatprep.subr.mxu0 0.0
    %1222 = vmatpush1.msra.mxu0 0.0
    %1223 = vmatprep.subr.mxu0 0.0
    %1224 = vmatpush1.msra.mxu0 0.0
    %1225 = vmatprep.subr.mxu0 0.0
    %1226 = vmatpush1.msra.mxu0 0.0
    %1227 = vmatprep.subr.mxu0 0.0
    %1228 = vmatpush1.msra.mxu0 0.0
    %1229 = vmatprep.subr.mxu0 0.0
    %1230 = vmatpush1.msra.mxu0 0.0
    %1231 = vmatprep.subr.mxu0 0.0
    %1232 = vmatpush1.msra.mxu0 0.0
    %1233 = vmatprep.subr.mxu0 0.0
    %1234 = vmatpush1.msra.mxu0 0.0
    %1235 = vmatprep.subr.mxu0 0.0
    %1236 = vmatpush1.msra.mxu0 0.0
    %1237 = vmatprep.subr.mxu0 0.0
    %1238 = vmatpush1.msra.mxu0 0.0
    %1239 = vmatprep.subr.mxu0 0.0
    %1240 = vmatpush1.msra.mxu0 0.0
    %1241 = vmatprep.subr.mxu0 0.0
    %1242 = vmatpush1.msra.mxu0 0.0
    %1243 = vmatprep.subr.mxu0 0.0
    %1244 = vmatpush1.msra.mxu0 0.0
    %1245 = vmatprep.subr.mxu0 0.0
    %1246 = vmatpush1.msra.mxu0 0.0
    %1247 = vmatprep.subr.mxu0 0.0
    %1248 = vmatpush1.msra.mxu0 0.0
    %1249 = vmatprep.subr.mxu0 0.0
    %1250 = vmatpush1.msra.mxu0 0.0
    %1251 = vmatprep.subr.mxu0 0.0
    %1252 = vmatpush1.msra.mxu0 0.0
    %1253 = vmatprep.subr.mxu0 0.0
    %1254 = vmatpush1.msra.mxu0 0.0
    %1255 = vmatprep.subr.mxu0 0.0
    %1256 = vmatpush1.msra.mxu0 0.0
    %1257 = vmatprep.subr.mxu0 0.0
    %1258 = vmatpush1.msra.mxu0 0.0
    %1259 = vmatprep.subr.mxu0 0.0
    %1260 = vmatpush1.msra.mxu0 0.0
    %1261 = vmatprep.subr.mxu0 0.0
    %1262 = vmatpush1.msra.mxu0 0.0
    %1263 = vmatprep.subr.mxu0 0.0
    %1264 = vmatpush1.msra.mxu0 0.0
    %1265 = vmatprep.subr.mxu0 0.0
    %1266 = vmatpush1.msra.mxu0 0.0
    %1267 = vmatprep.mubr.f32.mxu0 0.0
    %1268 = vmatmul.mubr.f32.gmra.mrb[0].mxu0 %v1201
    %v1269 = vpop.f32.mrb[0].mxu0
    %v1270 = vadd.f32 0.0, %v1269
    %v1271 = vpop.f32.mrb[0].mxu0
    %v1272 = vadd.f32 0.0, %v1271
    %1273 = vdwg.mxu0
    %v1275 = vsel %vm87, %v1153, 0
    %1277 = vmatprep.subr.mxu0 %v1168
    %1278 = vmatpush1.msra.mxu0 %v1167
    %1279 = vmatprep.subr.mxu0 %v1170
    %1280 = vmatpush1.msra.mxu0 %v1169
    %1281 = vmatprep.subr.mxu0 %v1172
    %1282 = vmatpush1.msra.mxu0 %v1171
    %1283 = vmatprep.subr.mxu0 %v1174
    %1284 = vmatpush1.msra.mxu0 %v1173
    %1285 = vmatprep.subr.mxu0 %v1176
    %1286 = vmatpush1.msra.mxu0 %v1175
    %1287 = vmatprep.subr.mxu0 %v1178
    %1288 = vmatpush1.msra.mxu0 %v1177
    %1289 = vmatprep.subr.mxu0 %v1180
    %1290 = vmatpush1.msra.mxu0 %v1179
    %1291 = vmatprep.subr.mxu0 %v1182
    %1292 = vmatpush1.msra.mxu0 %v1181
    %1293 = vmatprep.subr.mxu0 0.0
    %1294 = vmatpush1.msra.mxu0 0.0
    %1295 = vmatprep.subr.mxu0 0.0
    %1296 = vmatpush1.msra.mxu0 0.0
    %1297 = vmatprep.subr.mxu0 0.0
    %1298 = vmatpush1.msra.mxu0 0.0
    %1299 = vmatprep.subr.mxu0 0.0
    %1300 = vmatpush1.msra.mxu0 0.0
    %1301 = vmatprep.subr.mxu0 0.0
    %1302 = vmatpush1.msra.mxu0 0.0
    %1303 = vmatprep.subr.mxu0 0.0
    %1304 = vmatpush1.msra.mxu0 0.0
    %1305 = vmatprep.subr.mxu0 0.0
    %1306 = vmatpush1.msra.mxu0 0.0
    %1307 = vmatprep.subr.mxu0 0.0
    %1308 = vmatpush1.msra.mxu0 0.0
    %1309 = vmatprep.subr.mxu0 0.0
    %1310 = vmatpush1.msra.mxu0 0.0
    %1311 = vmatprep.subr.mxu0 0.0
    %1312 = vmatpush1.msra.mxu0 0.0
    %1313 = vmatprep.subr.mxu0 0.0
    %1314 = vmatpush1.msra.mxu0 0.0
    %1315 = vmatprep.subr.mxu0 0.0
    %1316 = vmatpush1.msra.mxu0 0.0
    %1317 = vmatprep.subr.mxu0 0.0
    %1318 = vmatpush1.msra.mxu0 0.0
    %1319 = vmatprep.subr.mxu0 0.0
    %1320 = vmatpush1.msra.mxu0 0.0
    %1321 = vmatprep.subr.mxu0 0.0
    %1322 = vmatpush1.msra.mxu0 0.0
    %1323 = vmatprep.subr.mxu0 0.0
    %1324 = vmatpush1.msra.mxu0 0.0
    %1325 = vmatprep.subr.mxu0 0.0
    %1326 = vmatpush1.msra.mxu0 0.0
    %1327 = vmatprep.subr.mxu0 0.0
    %1328 = vmatpush1.msra.mxu0 0.0
    %1329 = vmatprep.subr.mxu0 0.0
    %1330 = vmatpush1.msra.mxu0 0.0
    %1331 = vmatprep.subr.mxu0 0.0
    %1332 = vmatpush1.msra.mxu0 0.0
    %1333 = vmatprep.subr.mxu0 0.0
    %1334 = vmatpush1.msra.mxu0 0.0
    %1335 = vmatprep.subr.mxu0 0.0
    %1336 = vmatpush1.msra.mxu0 0.0
    %1337 = vmatprep.subr.mxu0 0.0
    %1338 = vmatpush1.msra.mxu0 0.0
    %1339 = vmatprep.subr.mxu0 0.0
    %1340 = vmatpush1.msra.mxu0 0.0
    %1341 = vmatprep.mubr.f32.mxu0 0.0
    %1342 = vmatmul.mubr.f32.gmra.mrb[0].mxu0 %v1275
    %v1343 = vpop.f32.mrb[0].mxu0
    %v1344 = vadd.f32 %v1270, %v1343
    %v1345 = vpop.f32.mrb[0].mxu0
    %v1346 = vadd.f32 %v1272, %v1345
    %1347 = vdwg.mxu0
    %v1348 = vadd.f32 %v1344, %v62
    %v1349 = vadd.f32 %v1346, %v66
    %v1350 = vld [vmem:[#allocation5] sm:$0x3]
    %v1351 = vxor.u32 %v1348, 2147483648
    %v1352 = vmul.f32 %v1351, 1.442695
    %v1353 = vpow.pop %v1352
    %v1354 = vadd.f32 %v1353, 1.0
    %v1355 = vrcp.pop %v1354
    %v1356 = vmul.f32 1.0, %v1355
    %v1357 = vtanh.pop %v1349
    %v1358 = vxor.u32 %v1349, 2147483648
    %v1359 = vmul.f32 %v1358, 1.442695
    %v1360 = vpow.pop %v1359
    %v1361 = vadd.f32 %v1360, 1.0
    %v1362 = vrcp.pop %v1361
    %v1363 = vmul.f32 1.0, %v1362
    %1365 = vrot.lane.b32.xlu0 %v1350, 64
    %v1366 = vpop.permute.xlu0 %1365
    %v1368 = vmul.f32 %v1356, %v1366
    %v1369 = vmul.f32 %v1356, %v1357
    %1371 = vrot.lane.b32.xlu0 %v1369, 64
    %v1372 = vpop.permute.xlu0 %1371
    %v1374 = vadd.f32 %v1368, %v1372
    %v1375 = vtanh.pop %v1374
    %v1376 = vmul.f32 %v1363, %v1375
    %1378 = vrot.lane.b32.xlu0 %v1376, 64
    %v1379 = vpop.permute.xlu0 %1378
    %1381 = vst.msk [vmem:[#allocation4] sm:$0x3] %vm52, %v1379
    %1383 = vrot.lane.b32.xlu0 %v1374, 64
    %v1384 = vpop.permute.xlu0 %1383
    %1386 = vst.msk [vmem:[#allocation5] sm:$0x3] %vm52, %v1384
    %s1387 = scalar_lea.vmem %s1, 4
    %v1388 = vld [vmem:[%s1387] sm:$0x3]
    %v1389 = vld [vmem:[#allocation8] sm:$0xff]
    %v1390 = vld [vmem:[#allocation8 + $0x8] sm:$0xff]
    %v1391 = vld [vmem:[#allocation8 + $0x10] sm:$0xff]
    %v1392 = vld [vmem:[#allocation8 + $0x18] sm:$0xff]
    %v1393 = vld [vmem:[#allocation8 + $0x20] sm:$0xff]
    %v1394 = vld [vmem:[#allocation8 + $0x28] sm:$0xff]
    %v1395 = vld [vmem:[#allocation8 + $0x30] sm:$0xff]
    %v1396 = vld [vmem:[#allocation8 + $0x38] sm:$0xff]
    %v1397 = vsel %vm87, %v1379, 0
    %1399 = vmatprep.subr.mxu0 0.0
    %1400 = vmatpush1.msra.mxu0 %v1389
    %1401 = vmatprep.subr.mxu0 0.0
    %1402 = vmatpush1.msra.mxu0 %v1390
    %1403 = vmatprep.subr.mxu0 0.0
    %1404 = vmatpush1.msra.mxu0 %v1391
    %1405 = vmatprep.subr.mxu0 0.0
    %1406 = vmatpush1.msra.mxu0 %v1392
    %1407 = vmatprep.subr.mxu0 0.0
    %1408 = vmatpush1.msra.mxu0 %v1393
    %1409 = vmatprep.subr.mxu0 0.0
    %1410 = vmatpush1.msra.mxu0 %v1394
    %1411 = vmatprep.subr.mxu0 0.0
    %1412 = vmatpush1.msra.mxu0 %v1395
    %1413 = vmatprep.subr.mxu0 0.0
    %1414 = vmatpush1.msra.mxu0 %v1396
    %1415 = vmatprep.subr.mxu0 0.0
    %1416 = vmatpush1.msra.mxu0 0.0
    %1417 = vmatprep.subr.mxu0 0.0
    %1418 = vmatpush1.msra.mxu0 0.0
    %1419 = vmatprep.subr.mxu0 0.0
    %1420 = vmatpush1.msra.mxu0 0.0
    %1421 = vmatprep.subr.mxu0 0.0
    %1422 = vmatpush1.msra.mxu0 0.0
    %1423 = vmatprep.subr.mxu0 0.0
    %1424 = vmatpush1.msra.mxu0 0.0
    %1425 = vmatprep.subr.mxu0 0.0
    %1426 = vmatpush1.msra.mxu0 0.0
    %1427 = vmatprep.subr.mxu0 0.0
    %1428 = vmatpush1.msra.mxu0 0.0
    %1429 = vmatprep.subr.mxu0 0.0
    %1430 = vmatpush1.msra.mxu0 0.0
    %1431 = vmatprep.subr.mxu0 0.0
    %1432 = vmatpush1.msra.mxu0 0.0
    %1433 = vmatprep.subr.mxu0 0.0
    %1434 = vmatpush1.msra.mxu0 0.0
    %1435 = vmatprep.subr.mxu0 0.0
    %1436 = vmatpush1.msra.mxu0 0.0
    %1437 = vmatprep.subr.mxu0 0.0
    %1438 = vmatpush1.msra.mxu0 0.0
    %1439 = vmatprep.subr.mxu0 0.0
    %1440 = vmatpush1.msra.mxu0 0.0
    %1441 = vmatprep.subr.mxu0 0.0
    %1442 = vmatpush1.msra.mxu0 0.0
    %1443 = vmatprep.subr.mxu0 0.0
    %1444 = vmatpush1.msra.mxu0 0.0
    %1445 = vmatprep.subr.mxu0 0.0
    %1446 = vmatpush1.msra.mxu0 0.0
    %1447 = vmatprep.subr.mxu0 0.0
    %1448 = vmatpush1.msra.mxu0 0.0
    %1449 = vmatprep.subr.mxu0 0.0
    %1450 = vmatpush1.msra.mxu0 0.0
    %1451 = vmatprep.subr.mxu0 0.0
    %1452 = vmatpush1.msra.mxu0 0.0
    %1453 = vmatprep.subr.mxu0 0.0
    %1454 = vmatpush1.msra.mxu0 0.0
    %1455 = vmatprep.subr.mxu0 0.0
    %1456 = vmatpush1.msra.mxu0 0.0
    %1457 = vmatprep.subr.mxu0 0.0
    %1458 = vmatpush1.msra.mxu0 0.0
    %1459 = vmatprep.subr.mxu0 0.0
    %1460 = vmatpush1.msra.mxu0 0.0
    %1461 = vmatprep.subr.mxu0 0.0
    %1462 = vmatpush1.msra.mxu0 0.0
    %1463 = vmatprep.mubr.f32.mxu0 0.0
    %1464 = vmatmul.mubr.f32.gmra.mrb[0].mxu0 %v1397
    %v1465 = vpop.f32.mrb[0].mxu0
    %v1466 = vadd.f32 0.0, %v1465
    %v1467 = vpop.f32.mrb[0].mxu0
    %1468 = vdwg.mxu0
    %v1469 = vadd.f32 %v1388, %v1466
    %s1470 = scalar_lea.vmem %s7, 4
    %1471 = vst.msk [vmem:[%s1470] sm:$0x3] %vm534, %v1469
    %s1472 = scalar_lea.vmem %s0, 12
    %v1473 = vld [vmem:[%s1472] sm:$0xf]
    %v1474 = vld [vmem:[#allocation2] sm:$0x3]
    %v1475 = vld [vmem:[%s2] sm:$0xff]
    %v1476 = vld [vmem:[%s2 + $0x8] sm:$0xff]
    %v1477 = vld [vmem:[%s2 + $0x10] sm:$0xff]
    %v1478 = vld [vmem:[%s2 + $0x18] sm:$0xff]
    %v1479 = vld [vmem:[%s2 + $0x20] sm:$0xff]
    %v1480 = vld [vmem:[%s2 + $0x28] sm:$0xff]
    %v1481 = vld [vmem:[%s2 + $0x30] sm:$0xff]
    %v1482 = vld [vmem:[%s2 + $0x38] sm:$0xff]
    %v1483 = vld [vmem:[%s2 + $0x40] sm:$0xff]
    %v1484 = vld [vmem:[%s2 + $0x48] sm:$0xff]
    %v1485 = vld [vmem:[%s2 + $0x50] sm:$0xff]
    %v1486 = vld [vmem:[%s2 + $0x58] sm:$0xff]
    %v1487 = vld [vmem:[%s2 + $0x60] sm:$0xff]
    %v1488 = vld [vmem:[%s2 + $0x68] sm:$0xff]
    %v1489 = vld [vmem:[%s2 + $0x70] sm:$0xff]
    %v1490 = vld [vmem:[%s2 + $0x78] sm:$0xff]
    %v1492 = vsel %vm87, %v1474, 0
    %1494 = vmatprep.subr.mxu0 %v1476
    %1495 = vmatpush1.msra.mxu0 %v1475
    %1496 = vmatprep.subr.mxu0 %v1478
    %1497 = vmatpush1.msra.mxu0 %v1477
    %1498 = vmatprep.subr.mxu0 %v1480
    %1499 = vmatpush1.msra.mxu0 %v1479
    %1500 = vmatprep.subr.mxu0 %v1482
    %1501 = vmatpush1.msra.mxu0 %v1481
    %1502 = vmatprep.subr.mxu0 %v1484
    %1503 = vmatpush1.msra.mxu0 %v1483
    %1504 = vmatprep.subr.mxu0 %v1486
    %1505 = vmatpush1.msra.mxu0 %v1485
    %1506 = vmatprep.subr.mxu0 %v1488
    %1507 = vmatpush1.msra.mxu0 %v1487
    %1508 = vmatprep.subr.mxu0 %v1490
    %1509 = vmatpush1.msra.mxu0 %v1489
    %1510 = vmatprep.subr.mxu0 0.0
    %1511 = vmatpush1.msra.mxu0 0.0
    %1512 = vmatprep.subr.mxu0 0.0
    %1513 = vmatpush1.msra.mxu0 0.0
    %1514 = vmatprep.subr.mxu0 0.0
    %1515 = vmatpush1.msra.mxu0 0.0
    %1516 = vmatprep.subr.mxu0 0.0
    %1517 = vmatpush1.msra.mxu0 0.0
    %1518 = vmatprep.subr.mxu0 0.0
    %1519 = vmatpush1.msra.mxu0 0.0
    %1520 = vmatprep.subr.mxu0 0.0
    %1521 = vmatpush1.msra.mxu0 0.0
    %1522 = vmatprep.subr.mxu0 0.0
    %1523 = vmatpush1.msra.mxu0 0.0
    %1524 = vmatprep.subr.mxu0 0.0
    %1525 = vmatpush1.msra.mxu0 0.0
    %1526 = vmatprep.subr.mxu0 0.0
    %1527 = vmatpush1.msra.mxu0 0.0
    %1528 = vmatprep.subr.mxu0 0.0
    %1529 = vmatpush1.msra.mxu0 0.0
    %1530 = vmatprep.subr.mxu0 0.0
    %1531 = vmatpush1.msra.mxu0 0.0
    %1532 = vmatprep.subr.mxu0 0.0
    %1533 = vmatpush1.msra.mxu0 0.0
    %1534 = vmatprep.subr.mxu0 0.0
    %1535 = vmatpush1.msra.mxu0 0.0
    %1536 = vmatprep.subr.mxu0 0.0
    %1537 = vmatpush1.msra.mxu0 0.0
    %1538 = vmatprep.subr.mxu0 0.0
    %1539 = vmatpush1.msra.mxu0 0.0
    %1540 = vmatprep.subr.mxu0 0.0
    %1541 = vmatpush1.msra.mxu0 0.0
    %1542 = vmatprep.subr.mxu0 0.0
    %1543 = vmatpush1.msra.mxu0 0.0
    %1544 = vmatprep.subr.mxu0 0.0
    %1545 = vmatpush1.msra.mxu0 0.0
    %1546 = vmatprep.subr.mxu0 0.0
    %1547 = vmatpush1.msra.mxu0 0.0
    %1548 = vmatprep.subr.mxu0 0.0
    %1549 = vmatpush1.msra.mxu0 0.0
    %1550 = vmatprep.subr.mxu0 0.0
    %1551 = vmatpush1.msra.mxu0 0.0
    %1552 = vmatprep.subr.mxu0 0.0
    %1553 = vmatpush1.msra.mxu0 0.0
    %1554 = vmatprep.subr.mxu0 0.0
    %1555 = vmatpush1.msra.mxu0 0.0
    %1556 = vmatprep.subr.mxu0 0.0
    %1557 = vmatpush1.msra.mxu0 0.0
    %1558 = vmatprep.mubr.f32.mxu0 0.0
    %1559 = vmatmul.mubr.f32.gmra.mrb[0].mxu0 %v1492
    %v1560 = vpop.f32.mrb[0].mxu0
    %v1561 = vadd.f32 0.0, %v1560
    %v1562 = vpop.f32.mrb[0].mxu0
    %v1563 = vadd.f32 0.0, %v1562
    %1564 = vdwg.mxu0
    %v1567 = vcombine.low %v1561, %v1563
    %v1569 = vunpack.c.l.s4 1983009808
    %v1570 = vunpack.c.0.s8 %v1569
    %v1571 = vlaneseq
    %v1572 = vshrl.u32 %v1571, 7
    %v1573 = vsub.s32 %v1570, %v1572
    %v1574 = vrot.slane %v1567, %v1573
    %v1576 = vadd.f32 %v1473, %v1574
    %v1577 = vld [vmem:[#allocation3] sm:$0x3]
    %v1578 = vxor.u32 %v1576, 2147483648
    %v1579 = vmul.f32 %v1578, 1.442695
    %v1580 = vpow.pop %v1579
    %v1581 = vadd.f32 %v1580, 1.0
    %v1582 = vrcp.pop %v1581
    %v1583 = vmul.f32 1.0, %v1582
    %v1585 = vrot.slane %v1576, 2
    %v1587 = vtanh.pop %v1585
    %1588 = vrot.lane.b32.xlu0 %v1576, 64
    %v1589 = vpop.permute.xlu0 %1588
    %v1590 = vrot.slane %v1589, 2
    %v1592 = vxor.u32 %v1590, 2147483648
    %v1593 = vmul.f32 %v1592, 1.442695
    %v1594 = vpow.pop %v1593
    %v1595 = vadd.f32 %v1594, 1.0
    %v1596 = vrcp.pop %v1595
    %v1597 = vmul.f32 1.0, %v1596
    %v1600 = vunpack.c.l.s4 1983009808
    %v1601 = vunpack.c.0.s8 %v1600
    %v1602 = vlaneseq
    %v1603 = vshrl.u32 %v1602, 7
    %v1604 = vsub.s32 %v1601, %v1603
    %v1605 = vrot.slane %v1577, %v1604
    %1606 = vrot.lane.b32.xlu0 %v1605, 64
    %v1607 = vpop.permute.xlu0 %1606
    %v1609 = vmul.f32 %v1583, %v1607
    %v1610 = vmul.f32 %v1583, %v1587
    %1612 = vrot.lane.b32.xlu0 %v1610, 64
    %v1613 = vpop.permute.xlu0 %1612
    %v1615 = vadd.f32 %v1609, %v1613
    %v1616 = vtanh.pop %v1615
    %1618 = vrot.lane.b32.xlu0 %v1616, 64
    %v1619 = vpop.permute.xlu0 %1618
    %v1621 = vmul.f32 %v1597, %v1619
    %1622 = vst.msk [vmem:[#allocation2] sm:$0x3] %vm52, %v1621
    %v1625 = vunpack.c.l.s4 1983009808
    %v1626 = vunpack.c.0.s8 %v1625
    %v1627 = vlaneseq
    %v1628 = vshrl.u32 %v1627, 7
    %v1629 = vsub.s32 %v1626, %v1628
    %v1630 = vrot.slane %v1615, %v1629
    %1631 = vrot.lane.b32.xlu0 %v1630, 64
    %v1632 = vpop.permute.xlu0 %1631
    %1634 = vst.msk [vmem:[#allocation3] sm:$0x3] %vm52, %v1632
    %v1635 = vld [vmem:[%s3] sm:$0xff]
    %v1636 = vld [vmem:[%s3 + $0x8] sm:$0xff]
    %v1637 = vld [vmem:[%s3 + $0x10] sm:$0xff]
    %v1638 = vld [vmem:[%s3 + $0x18] sm:$0xff]
    %v1639 = vld [vmem:[%s3 + $0x20] sm:$0xff]
    %v1640 = vld [vmem:[%s3 + $0x28] sm:$0xff]
    %v1641 = vld [vmem:[%s3 + $0x30] sm:$0xff]
    %v1642 = vld [vmem:[%s3 + $0x38] sm:$0xff]
    %v1643 = vld [vmem:[%s3 + $0x40] sm:$0xff]
    %v1644 = vld [vmem:[%s3 + $0x48] sm:$0xff]
    %v1645 = vld [vmem:[%s3 + $0x50] sm:$0xff]
    %v1646 = vld [vmem:[%s3 + $0x58] sm:$0xff]
    %v1647 = vld [vmem:[%s3 + $0x60] sm:$0xff]
    %v1648 = vld [vmem:[%s3 + $0x68] sm:$0xff]
    %v1649 = vld [vmem:[%s3 + $0x70] sm:$0xff]
    %v1650 = vld [vmem:[%s3 + $0x78] sm:$0xff]
    %v1651 = vld [vmem:[#allocation4] sm:$0x3]
    %v1652 = vld [vmem:[%s4] sm:$0xff]
    %v1653 = vld [vmem:[%s4 + $0x8] sm:$0xff]
    %v1654 = vld [vmem:[%s4 + $0x10] sm:$0xff]
    %v1655 = vld [vmem:[%s4 + $0x18] sm:$0xff]
    %v1656 = vld [vmem:[%s4 + $0x20] sm:$0xff]
    %v1657 = vld [vmem:[%s4 + $0x28] sm:$0xff]
    %v1658 = vld [vmem:[%s4 + $0x30] sm:$0xff]
    %v1659 = vld [vmem:[%s4 + $0x38] sm:$0xff]
    %v1660 = vld [vmem:[%s4 + $0x40] sm:$0xff]
    %v1661 = vld [vmem:[%s4 + $0x48] sm:$0xff]
    %v1662 = vld [vmem:[%s4 + $0x50] sm:$0xff]
    %v1663 = vld [vmem:[%s4 + $0x58] sm:$0xff]
    %v1664 = vld [vmem:[%s4 + $0x60] sm:$0xff]
    %v1665 = vld [vmem:[%s4 + $0x68] sm:$0xff]
    %v1666 = vld [vmem:[%s4 + $0x70] sm:$0xff]
    %v1667 = vld [vmem:[%s4 + $0x78] sm:$0xff]
    %v1669 = vsel %vm87, %v1651, 0
    %1671 = vmatprep.subr.mxu0 %v1653
    %1672 = vmatpush1.msra.mxu0 %v1652
    %1673 = vmatprep.subr.mxu0 %v1655
    %1674 = vmatpush1.msra.mxu0 %v1654
    %1675 = vmatprep.subr.mxu0 %v1657
    %1676 = vmatpush1.msra.mxu0 %v1656
    %1677 = vmatprep.subr.mxu0 %v1659
    %1678 = vmatpush1.msra.mxu0 %v1658
    %1679 = vmatprep.subr.mxu0 %v1661
    %1680 = vmatpush1.msra.mxu0 %v1660
    %1681 = vmatprep.subr.mxu0 %v1663
    %1682 = vmatpush1.msra.mxu0 %v1662
    %1683 = vmatprep.subr.mxu0 %v1665
    %1684 = vmatpush1.msra.mxu0 %v1664
    %1685 = vmatprep.subr.mxu0 %v1667
    %1686 = vmatpush1.msra.mxu0 %v1666
    %1687 = vmatprep.subr.mxu0 0.0
    %1688 = vmatpush1.msra.mxu0 0.0
    %1689 = vmatprep.subr.mxu0 0.0
    %1690 = vmatpush1.msra.mxu0 0.0
    %1691 = vmatprep.subr.mxu0 0.0
    %1692 = vmatpush1.msra.mxu0 0.0
    %1693 = vmatprep.subr.mxu0 0.0
    %1694 = vmatpush1.msra.mxu0 0.0
    %1695 = vmatprep.subr.mxu0 0.0
    %1696 = vmatpush1.msra.mxu0 0.0
    %1697 = vmatprep.subr.mxu0 0.0
    %1698 = vmatpush1.msra.mxu0 0.0
    %1699 = vmatprep.subr.mxu0 0.0
    %1700 = vmatpush1.msra.mxu0 0.0
    %1701 = vmatprep.subr.mxu0 0.0
    %1702 = vmatpush1.msra.mxu0 0.0
    %1703 = vmatprep.subr.mxu0 0.0
    %1704 = vmatpush1.msra.mxu0 0.0
    %1705 = vmatprep.subr.mxu0 0.0
    %1706 = vmatpush1.msra.mxu0 0.0
    %1707 = vmatprep.subr.mxu0 0.0
    %1708 = vmatpush1.msra.mxu0 0.0
    %1709 = vmatprep.subr.mxu0 0.0
    %1710 = vmatpush1.msra.mxu0 0.0
    %1711 = vmatprep.subr.mxu0 0.0
    %1712 = vmatpush1.msra.mxu0 0.0
    %1713 = vmatprep.subr.mxu0 0.0
    %1714 = vmatpush1.msra.mxu0 0.0
    %1715 = vmatprep.subr.mxu0 0.0
    %1716 = vmatpush1.msra.mxu0 0.0
    %1717 = vmatprep.subr.mxu0 0.0
    %1718 = vmatpush1.msra.mxu0 0.0
    %1719 = vmatprep.subr.mxu0 0.0
    %1720 = vmatpush1.msra.mxu0 0.0
    %1721 = vmatprep.subr.mxu0 0.0
    %1722 = vmatpush1.msra.mxu0 0.0
    %1723 = vmatprep.subr.mxu0 0.0
    %1724 = vmatpush1.msra.mxu0 0.0
    %1725 = vmatprep.subr.mxu0 0.0
    %1726 = vmatpush1.msra.mxu0 0.0
    %1727 = vmatprep.subr.mxu0 0.0
    %1728 = vmatpush1.msra.mxu0 0.0
    %1729 = vmatprep.subr.mxu0 0.0
    %1730 = vmatpush1.msra.mxu0 0.0
    %1731 = vmatprep.subr.mxu0 0.0
    %1732 = vmatpush1.msra.mxu0 0.0
    %1733 = vmatprep.subr.mxu0 0.0
    %1734 = vmatpush1.msra.mxu0 0.0
    %1735 = vmatprep.mubr.f32.mxu0 0.0
    %1736 = vmatmul.mubr.f32.gmra.mrb[0].mxu0 %v1669
    %v1737 = vpop.f32.mrb[0].mxu0
    %v1738 = vadd.f32 0.0, %v1737
    %v1739 = vpop.f32.mrb[0].mxu0
    %v1740 = vadd.f32 0.0, %v1739
    %1741 = vdwg.mxu0
    %v1743 = vsel %vm87, %v1621, 0
    %1745 = vmatprep.subr.mxu0 %v1636
    %1746 = vmatpush1.msra.mxu0 %v1635
    %1747 = vmatprep.subr.mxu0 %v1638
    %1748 = vmatpush1.msra.mxu0 %v1637
    %1749 = vmatprep.subr.mxu0 %v1640
    %1750 = vmatpush1.msra.mxu0 %v1639
    %1751 = vmatprep.subr.mxu0 %v1642
    %1752 = vmatpush1.msra.mxu0 %v1641
    %1753 = vmatprep.subr.mxu0 %v1644
    %1754 = vmatpush1.msra.mxu0 %v1643
    %1755 = vmatprep.subr.mxu0 %v1646
    %1756 = vmatpush1.msra.mxu0 %v1645
    %1757 = vmatprep.subr.mxu0 %v1648
    %1758 = vmatpush1.msra.mxu0 %v1647
    %1759 = vmatprep.subr.mxu0 %v1650
    %1760 = vmatpush1.msra.mxu0 %v1649
    %1761 = vmatprep.subr.mxu0 0.0
    %1762 = vmatpush1.msra.mxu0 0.0
    %1763 = vmatprep.subr.mxu0 0.0
    %1764 = vmatpush1.msra.mxu0 0.0
    %1765 = vmatprep.subr.mxu0 0.0
    %1766 = vmatpush1.msra.mxu0 0.0
    %1767 = vmatprep.subr.mxu0 0.0
    %1768 = vmatpush1.msra.mxu0 0.0
    %1769 = vmatprep.subr.mxu0 0.0
    %1770 = vmatpush1.msra.mxu0 0.0
    %1771 = vmatprep.subr.mxu0 0.0
    %1772 = vmatpush1.msra.mxu0 0.0
    %1773 = vmatprep.subr.mxu0 0.0
    %1774 = vmatpush1.msra.mxu0 0.0
    %1775 = vmatprep.subr.mxu0 0.0
    %1776 = vmatpush1.msra.mxu0 0.0
    %1777 = vmatprep.subr.mxu0 0.0
    %1778 = vmatpush1.msra.mxu0 0.0
    %1779 = vmatprep.subr.mxu0 0.0
    %1780 = vmatpush1.msra.mxu0 0.0
    %1781 = vmatprep.subr.mxu0 0.0
    %1782 = vmatpush1.msra.mxu0 0.0
    %1783 = vmatprep.subr.mxu0 0.0
    %1784 = vmatpush1.msra.mxu0 0.0
    %1785 = vmatprep.subr.mxu0 0.0
    %1786 = vmatpush1.msra.mxu0 0.0
    %1787 = vmatprep.subr.mxu0 0.0
    %1788 = vmatpush1.msra.mxu0 0.0
    %1789 = vmatprep.subr.mxu0 0.0
    %1790 = vmatpush1.msra.mxu0 0.0
    %1791 = vmatprep.subr.mxu0 0.0
    %1792 = vmatpush1.msra.mxu0 0.0
    %1793 = vmatprep.subr.mxu0 0.0
    %1794 = vmatpush1.msra.mxu0 0.0
    %1795 = vmatprep.subr.mxu0 0.0
    %1796 = vmatpush1.msra.mxu0 0.0
    %1797 = vmatprep.subr.mxu0 0.0
    %1798 = vmatpush1.msra.mxu0 0.0
    %1799 = vmatprep.subr.mxu0 0.0
    %1800 = vmatpush1.msra.mxu0 0.0
    %1801 = vmatprep.subr.mxu0 0.0
    %1802 = vmatpush1.msra.mxu0 0.0
    %1803 = vmatprep.subr.mxu0 0.0
    %1804 = vmatpush1.msra.mxu0 0.0
    %1805 = vmatprep.subr.mxu0 0.0
    %1806 = vmatpush1.msra.mxu0 0.0
    %1807 = vmatprep.subr.mxu0 0.0
    %1808 = vmatpush1.msra.mxu0 0.0
    %1809 = vmatprep.mubr.f32.mxu0 0.0
    %1810 = vmatmul.mubr.f32.gmra.mrb[0].mxu0 %v1743
    %v1811 = vpop.f32.mrb[0].mxu0
    %v1812 = vadd.f32 %v1738, %v1811
    %v1813 = vpop.f32.mrb[0].mxu0
    %v1814 = vadd.f32 %v1740, %v1813
    %1815 = vdwg.mxu0
    %v1816 = vadd.f32 %v1812, %v62
    %v1817 = vadd.f32 %v1814, %v66
    %v1818 = vld [vmem:[#allocation5] sm:$0x3]
    %v1819 = vxor.u32 %v1816, 2147483648
    %v1820 = vmul.f32 %v1819, 1.442695
    %v1821 = vpow.pop %v1820
    %v1822 = vadd.f32 %v1821, 1.0
    %v1823 = vrcp.pop %v1822
    %v1824 = vmul.f32 1.0, %v1823
    %v1825 = vtanh.pop %v1817
    %v1826 = vxor.u32 %v1817, 2147483648
    %v1827 = vmul.f32 %v1826, 1.442695
    %v1828 = vpow.pop %v1827
    %v1829 = vadd.f32 %v1828, 1.0
    %v1830 = vrcp.pop %v1829
    %v1831 = vmul.f32 1.0, %v1830
    %1833 = vrot.lane.b32.xlu0 %v1818, 64
    %v1834 = vpop.permute.xlu0 %1833
    %v1836 = vmul.f32 %v1824, %v1834
    %v1837 = vmul.f32 %v1824, %v1825
    %1839 = vrot.lane.b32.xlu0 %v1837, 64
    %v1840 = vpop.permute.xlu0 %1839
    %v1842 = vadd.f32 %v1836, %v1840
    %v1843 = vtanh.pop %v1842
    %v1844 = vmul.f32 %v1831, %v1843
    %1846 = vrot.lane.b32.xlu0 %v1844, 64
    %v1847 = vpop.permute.xlu0 %1846
    %1849 = vst.msk [vmem:[#allocation4] sm:$0x3] %vm52, %v1847
    %1851 = vrot.lane.b32.xlu0 %v1842, 64
    %v1852 = vpop.permute.xlu0 %1851
    %1854 = vst.msk [vmem:[#allocation5] sm:$0x3] %vm52, %v1852
    %s1855 = scalar_lea.vmem %s1, 6
    %v1856 = vld [vmem:[%s1855] sm:$0x3]
    %v1857 = vld [vmem:[#allocation8] sm:$0xff]
    %v1858 = vld [vmem:[#allocation8 + $0x8] sm:$0xff]
    %v1859 = vld [vmem:[#allocation8 + $0x10] sm:$0xff]
    %v1860 = vld [vmem:[#allocation8 + $0x18] sm:$0xff]
    %v1861 = vld [vmem:[#allocation8 + $0x20] sm:$0xff]
    %v1862 = vld [vmem:[#allocation8 + $0x28] sm:$0xff]
    %v1863 = vld [vmem:[#allocation8 + $0x30] sm:$0xff]
    %v1864 = vld [vmem:[#allocation8 + $0x38] sm:$0xff]
    %v1865 = vsel %vm87, %v1847, 0
    %1867 = vmatprep.subr.mxu0 0.0
    %1868 = vmatpush1.msra.mxu0 %v1857
    %1869 = vmatprep.subr.mxu0 0.0
    %1870 = vmatpush1.msra.mxu0 %v1858
    %1871 = vmatprep.subr.mxu0 0.0
    %1872 = vmatpush1.msra.mxu0 %v1859
    %1873 = vmatprep.subr.mxu0 0.0
    %1874 = vmatpush1.msra.mxu0 %v1860
    %1875 = vmatprep.subr.mxu0 0.0
    %1876 = vmatpush1.msra.mxu0 %v1861
    %1877 = vmatprep.subr.mxu0 0.0
    %1878 = vmatpush1.msra.mxu0 %v1862
    %1879 = vmatprep.subr.mxu0 0.0
    %1880 = vmatpush1.msra.mxu0 %v1863
    %1881 = vmatprep.subr.mxu0 0.0
    %1882 = vmatpush1.msra.mxu0 %v1864
    %1883 = vmatprep.subr.mxu0 0.0
    %1884 = vmatpush1.msra.mxu0 0.0
    %1885 = vmatprep.subr.mxu0 0.0
    %1886 = vmatpush1.msra.mxu0 0.0
    %1887 = vmatprep.subr.mxu0 0.0
    %1888 = vmatpush1.msra.mxu0 0.0
    %1889 = vmatprep.subr.mxu0 0.0
    %1890 = vmatpush1.msra.mxu0 0.0
    %1891 = vmatprep.subr.mxu0 0.0
    %1892 = vmatpush1.msra.mxu0 0.0
    %1893 = vmatprep.subr.mxu0 0.0
    %1894 = vmatpush1.msra.mxu0 0.0
    %1895 = vmatprep.subr.mxu0 0.0
    %1896 = vmatpush1.msra.mxu0 0.0
    %1897 = vmatprep.subr.mxu0 0.0
    %1898 = vmatpush1.msra.mxu0 0.0
    %1899 = vmatprep.subr.mxu0 0.0
    %1900 = vmatpush1.msra.mxu0 0.0
    %1901 = vmatprep.subr.mxu0 0.0
    %1902 = vmatpush1.msra.mxu0 0.0
    %1903 = vmatprep.subr.mxu0 0.0
    %1904 = vmatpush1.msra.mxu0 0.0
    %1905 = vmatprep.subr.mxu0 0.0
    %1906 = vmatpush1.msra.mxu0 0.0
    %1907 = vmatprep.subr.mxu0 0.0
    %1908 = vmatpush1.msra.mxu0 0.0
    %1909 = vmatprep.subr.mxu0 0.0
    %1910 = vmatpush1.msra.mxu0 0.0
    %1911 = vmatprep.subr.mxu0 0.0
    %1912 = vmatpush1.msra.mxu0 0.0
    %1913 = vmatprep.subr.mxu0 0.0
    %1914 = vmatpush1.msra.mxu0 0.0
    %1915 = vmatprep.subr.mxu0 0.0
    %1916 = vmatpush1.msra.mxu0 0.0
    %1917 = vmatprep.subr.mxu0 0.0
    %1918 = vmatpush1.msra.mxu0 0.0
    %1919 = vmatprep.subr.mxu0 0.0
    %1920 = vmatpush1.msra.mxu0 0.0
    %1921 = vmatprep.subr.mxu0 0.0
    %1922 = vmatpush1.msra.mxu0 0.0
    %1923 = vmatprep.subr.mxu0 0.0
    %1924 = vmatpush1.msra.mxu0 0.0
    %1925 = vmatprep.subr.mxu0 0.0
    %1926 = vmatpush1.msra.mxu0 0.0
    %1927 = vmatprep.subr.mxu0 0.0
    %1928 = vmatpush1.msra.mxu0 0.0
    %1929 = vmatprep.subr.mxu0 0.0
    %1930 = vmatpush1.msra.mxu0 0.0
    %1931 = vmatprep.mubr.f32.mxu0 0.0
    %1932 = vmatmul.mubr.f32.gmra.mrb[0].mxu0 %v1865
    %v1933 = vpop.f32.mrb[0].mxu0
    %v1934 = vadd.f32 0.0, %v1933
    %v1935 = vpop.f32.mrb[0].mxu0
    %1936 = vdwg.mxu0
    %v1937 = vadd.f32 %v1856, %v1934
    %s1938 = scalar_lea.vmem %s7, 6
    %1939 = vst.msk [vmem:[%s1938] sm:$0x3] %vm534, %v1937
    %s1940 = scalar_lea.vmem %s0, 16
    %v1941 = vld [vmem:[%s1940] sm:$0xf]
    %v1942 = vld [vmem:[#allocation2] sm:$0x3]
    %v1943 = vld [vmem:[%s2] sm:$0xff]
    %v1944 = vld [vmem:[%s2 + $0x8] sm:$0xff]
    %v1945 = vld [vmem:[%s2 + $0x10] sm:$0xff]
    %v1946 = vld [vmem:[%s2 + $0x18] sm:$0xff]
    %v1947 = vld [vmem:[%s2 + $0x20] sm:$0xff]
    %v1948 = vld [vmem:[%s2 + $0x28] sm:$0xff]
    %v1949 = vld [vmem:[%s2 + $0x30] sm:$0xff]
    %v1950 = vld [vmem:[%s2 + $0x38] sm:$0xff]
    %v1951 = vld [vmem:[%s2 + $0x40] sm:$0xff]
    %v1952 = vld [vmem:[%s2 + $0x48] sm:$0xff]
    %v1953 = vld [vmem:[%s2 + $0x50] sm:$0xff]
    %v1954 = vld [vmem:[%s2 + $0x58] sm:$0xff]
    %v1955 = vld [vmem:[%s2 + $0x60] sm:$0xff]
    %v1956 = vld [vmem:[%s2 + $0x68] sm:$0xff]
    %v1957 = vld [vmem:[%s2 + $0x70] sm:$0xff]
    %v1958 = vld [vmem:[%s2 + $0x78] sm:$0xff]
    %v1960 = vsel %vm87, %v1942, 0
    %1962 = vmatprep.subr.mxu0 %v1944
    %1963 = vmatpush1.msra.mxu0 %v1943
    %1964 = vmatprep.subr.mxu0 %v1946
    %1965 = vmatpush1.msra.mxu0 %v1945
    %1966 = vmatprep.subr.mxu0 %v1948
    %1967 = vmatpush1.msra.mxu0 %v1947
    %1968 = vmatprep.subr.mxu0 %v1950
    %1969 = vmatpush1.msra.mxu0 %v1949
    %1970 = vmatprep.subr.mxu0 %v1952
    %1971 = vmatpush1.msra.mxu0 %v1951
    %1972 = vmatprep.subr.mxu0 %v1954
    %1973 = vmatpush1.msra.mxu0 %v1953
    %1974 = vmatprep.subr.mxu0 %v1956
    %1975 = vmatpush1.msra.mxu0 %v1955
    %1976 = vmatprep.subr.mxu0 %v1958
    %1977 = vmatpush1.msra.mxu0 %v1957
    %1978 = vmatprep.subr.mxu0 0.0
    %1979 = vmatpush1.msra.mxu0 0.0
    %1980 = vmatprep.subr.mxu0 0.0
    %1981 = vmatpush1.msra.mxu0 0.0
    %1982 = vmatprep.subr.mxu0 0.0
    %1983 = vmatpush1.msra.mxu0 0.0
    %1984 = vmatprep.subr.mxu0 0.0
    %1985 = vmatpush1.msra.mxu0 0.0
    %1986 = vmatprep.subr.mxu0 0.0
    %1987 = vmatpush1.msra.mxu0 0.0
    %1988 = vmatprep.subr.mxu0 0.0
    %1989 = vmatpush1.msra.mxu0 0.0
    %1990 = vmatprep.subr.mxu0 0.0
    %1991 = vmatpush1.msra.mxu0 0.0
    %1992 = vmatprep.subr.mxu0 0.0
    %1993 = vmatpush1.msra.mxu0 0.0
    %1994 = vmatprep.subr.mxu0 0.0
    %1995 = vmatpush1.msra.mxu0 0.0
    %1996 = vmatprep.subr.mxu0 0.0
    %1997 = vmatpush1.msra.mxu0 0.0
    %1998 = vmatprep.subr.mxu0 0.0
    %1999 = vmatpush1.msra.mxu0 0.0
    %2000 = vmatprep.subr.mxu0 0.0
    %2001 = vmatpush1.msra.mxu0 0.0
    %2002 = vmatprep.subr.mxu0 0.0
    %2003 = vmatpush1.msra.mxu0 0.0
    %2004 = vmatprep.subr.mxu0 0.0
    %2005 = vmatpush1.msra.mxu0 0.0
    %2006 = vmatprep.subr.mxu0 0.0
    %2007 = vmatpush1.msra.mxu0 0.0
    %2008 = vmatprep.subr.mxu0 0.0
    %2009 = vmatpush1.msra.mxu0 0.0
    %2010 = vmatprep.subr.mxu0 0.0
    %2011 = vmatpush1.msra.mxu0 0.0
    %2012 = vmatprep.subr.mxu0 0.0
    %2013 = vmatpush1.msra.mxu0 0.0
    %2014 = vmatprep.subr.mxu0 0.0
    %2015 = vmatpush1.msra.mxu0 0.0
    %2016 = vmatprep.subr.mxu0 0.0
    %2017 = vmatpush1.msra.mxu0 0.0
    %2018 = vmatprep.subr.mxu0 0.0
    %2019 = vmatpush1.msra.mxu0 0.0
    %2020 = vmatprep.subr.mxu0 0.0
    %2021 = vmatpush1.msra.mxu0 0.0
    %2022 = vmatprep.subr.mxu0 0.0
    %2023 = vmatpush1.msra.mxu0 0.0
    %2024 = vmatprep.subr.mxu0 0.0
    %2025 = vmatpush1.msra.mxu0 0.0
    %2026 = vmatprep.mubr.f32.mxu0 0.0
    %2027 = vmatmul.mubr.f32.gmra.mrb[0].mxu0 %v1960
    %v2028 = vpop.f32.mrb[0].mxu0
    %v2029 = vadd.f32 0.0, %v2028
    %v2030 = vpop.f32.mrb[0].mxu0
    %v2031 = vadd.f32 0.0, %v2030
    %2032 = vdwg.mxu0
    %v2035 = vcombine.low %v2029, %v2031
    %v2037 = vunpack.c.l.s4 1983009808
    %v2038 = vunpack.c.0.s8 %v2037
    %v2039 = vlaneseq
    %v2040 = vshrl.u32 %v2039, 7
    %v2041 = vsub.s32 %v2038, %v2040
    %v2042 = vrot.slane %v2035, %v2041
    %v2044 = vadd.f32 %v1941, %v2042
    %v2045 = vld [vmem:[#allocation3] sm:$0x3]
    %v2046 = vxor.u32 %v2044, 2147483648
    %v2047 = vmul.f32 %v2046, 1.442695
    %v2048 = vpow.pop %v2047
    %v2049 = vadd.f32 %v2048, 1.0
    %v2050 = vrcp.pop %v2049
    %v2051 = vmul.f32 1.0, %v2050
    %v2053 = vrot.slane %v2044, 2
    %v2055 = vtanh.pop %v2053
    %2056 = vrot.lane.b32.xlu0 %v2044, 64
    %v2057 = vpop.permute.xlu0 %2056
    %v2058 = vrot.slane %v2057, 2
    %v2060 = vxor.u32 %v2058, 2147483648
    %v2061 = vmul.f32 %v2060, 1.442695
    %v2062 = vpow.pop %v2061
    %v2063 = vadd.f32 %v2062, 1.0
    %v2064 = vrcp.pop %v2063
    %v2065 = vmul.f32 1.0, %v2064
    %v2068 = vunpack.c.l.s4 1983009808
    %v2069 = vunpack.c.0.s8 %v2068
    %v2070 = vlaneseq
    %v2071 = vshrl.u32 %v2070, 7
    %v2072 = vsub.s32 %v2069, %v2071
    %v2073 = vrot.slane %v2045, %v2072
    %2074 = vrot.lane.b32.xlu0 %v2073, 64
    %v2075 = vpop.permute.xlu0 %2074
    %v2077 = vmul.f32 %v2051, %v2075
    %v2078 = vmul.f32 %v2051, %v2055
    %2080 = vrot.lane.b32.xlu0 %v2078, 64
    %v2081 = vpop.permute.xlu0 %2080
    %v2083 = vadd.f32 %v2077, %v2081
    %v2084 = vtanh.pop %v2083
    %2086 = vrot.lane.b32.xlu0 %v2084, 64
    %v2087 = vpop.permute.xlu0 %2086
    %v2089 = vmul.f32 %v2065, %v2087
    %2090 = vst.msk [vmem:[#allocation2] sm:$0x3] %vm52, %v2089
    %v2093 = vunpack.c.l.s4 1983009808
    %v2094 = vunpack.c.0.s8 %v2093
    %v2095 = vlaneseq
    %v2096 = vshrl.u32 %v2095, 7
    %v2097 = vsub.s32 %v2094, %v2096
    %v2098 = vrot.slane %v2083, %v2097
    %2099 = vrot.lane.b32.xlu0 %v2098, 64
    %v2100 = vpop.permute.xlu0 %2099
    %2102 = vst.msk [vmem:[#allocation3] sm:$0x3] %vm52, %v2100
    %v2103 = vld [vmem:[%s3] sm:$0xff]
    %v2104 = vld [vmem:[%s3 + $0x8] sm:$0xff]
    %v2105 = vld [vmem:[%s3 + $0x10] sm:$0xff]
    %v2106 = vld [vmem:[%s3 + $0x18] sm:$0xff]
    %v2107 = vld [vmem:[%s3 + $0x20] sm:$0xff]
    %v2108 = vld [vmem:[%s3 + $0x28] sm:$0xff]
    %v2109 = vld [vmem:[%s3 + $0x30] sm:$0xff]
    %v2110 = vld [vmem:[%s3 + $0x38] sm:$0xff]
    %v2111 = vld [vmem:[%s3 + $0x40] sm:$0xff]
    %v2112 = vld [vmem:[%s3 + $0x48] sm:$0xff]
    %v2113 = vld [vmem:[%s3 + $0x50] sm:$0xff]
    %v2114 = vld [vmem:[%s3 + $0x58] sm:$0xff]
    %v2115 = vld [vmem:[%s3 + $0x60] sm:$0xff]
    %v2116 = vld [vmem:[%s3 + $0x68] sm:$0xff]
    %v2117 = vld [vmem:[%s3 + $0x70] sm:$0xff]
    %v2118 = vld [vmem:[%s3 + $0x78] sm:$0xff]
    %v2119 = vld [vmem:[#allocation4] sm:$0x3]
    %v2120 = vld [vmem:[%s4] sm:$0xff]
    %v2121 = vld [vmem:[%s4 + $0x8] sm:$0xff]
    %v2122 = vld [vmem:[%s4 + $0x10] sm:$0xff]
    %v2123 = vld [vmem:[%s4 + $0x18] sm:$0xff]
    %v2124 = vld [vmem:[%s4 + $0x20] sm:$0xff]
    %v2125 = vld [vmem:[%s4 + $0x28] sm:$0xff]
    %v2126 = vld [vmem:[%s4 + $0x30] sm:$0xff]
    %v2127 = vld [vmem:[%s4 + $0x38] sm:$0xff]
    %v2128 = vld [vmem:[%s4 + $0x40] sm:$0xff]
    %v2129 = vld [vmem:[%s4 + $0x48] sm:$0xff]
    %v2130 = vld [vmem:[%s4 + $0x50] sm:$0xff]
    %v2131 = vld [vmem:[%s4 + $0x58] sm:$0xff]
    %v2132 = vld [vmem:[%s4 + $0x60] sm:$0xff]
    %v2133 = vld [vmem:[%s4 + $0x68] sm:$0xff]
    %v2134 = vld [vmem:[%s4 + $0x70] sm:$0xff]
    %v2135 = vld [vmem:[%s4 + $0x78] sm:$0xff]
    %v2137 = vsel %vm87, %v2119, 0
    %2139 = vmatprep.subr.mxu0 %v2121
    %2140 = vmatpush1.msra.mxu0 %v2120
    %2141 = vmatprep.subr.mxu0 %v2123
    %2142 = vmatpush1.msra.mxu0 %v2122
    %2143 = vmatprep.subr.mxu0 %v2125
    %2144 = vmatpush1.msra.mxu0 %v2124
    %2145 = vmatprep.subr.mxu0 %v2127
    %2146 = vmatpush1.msra.mxu0 %v2126
    %2147 = vmatprep.subr.mxu0 %v2129
    %2148 = vmatpush1.msra.mxu0 %v2128
    %2149 = vmatprep.subr.mxu0 %v2131
    %2150 = vmatpush1.msra.mxu0 %v2130
    %2151 = vmatprep.subr.mxu0 %v2133
    %2152 = vmatpush1.msra.mxu0 %v2132
    %2153 = vmatprep.subr.mxu0 %v2135
    %2154 = vmatpush1.msra.mxu0 %v2134
    %2155 = vmatprep.subr.mxu0 0.0
    %2156 = vmatpush1.msra.mxu0 0.0
    %2157 = vmatprep.subr.mxu0 0.0
    %2158 = vmatpush1.msra.mxu0 0.0
    %2159 = vmatprep.subr.mxu0 0.0
    %2160 = vmatpush1.msra.mxu0 0.0
    %2161 = vmatprep.subr.mxu0 0.0
    %2162 = vmatpush1.msra.mxu0 0.0
    %2163 = vmatprep.subr.mxu0 0.0
    %2164 = vmatpush1.msra.mxu0 0.0
    %2165 = vmatprep.subr.mxu0 0.0
    %2166 = vmatpush1.msra.mxu0 0.0
    %2167 = vmatprep.subr.mxu0 0.0
    %2168 = vmatpush1.msra.mxu0 0.0
    %2169 = vmatprep.subr.mxu0 0.0
    %2170 = vmatpush1.msra.mxu0 0.0
    %2171 = vmatprep.subr.mxu0 0.0
    %2172 = vmatpush1.msra.mxu0 0.0
    %2173 = vmatprep.subr.mxu0 0.0
    %2174 = vmatpush1.msra.mxu0 0.0
    %2175 = vmatprep.subr.mxu0 0.0
    %2176 = vmatpush1.msra.mxu0 0.0
    %2177 = vmatprep.subr.mxu0 0.0
    %2178 = vmatpush1.msra.mxu0 0.0
    %2179 = vmatprep.subr.mxu0 0.0
    %2180 = vmatpush1.msra.mxu0 0.0
    %2181 = vmatprep.subr.mxu0 0.0
    %2182 = vmatpush1.msra.mxu0 0.0
    %2183 = vmatprep.subr.mxu0 0.0
    %2184 = vmatpush1.msra.mxu0 0.0
    %2185 = vmatprep.subr.mxu0 0.0
    %2186 = vmatpush1.msra.mxu0 0.0
    %2187 = vmatprep.subr.mxu0 0.0
    %2188 = vmatpush1.msra.mxu0 0.0
    %2189 = vmatprep.subr.mxu0 0.0
    %2190 = vmatpush1.msra.mxu0 0.0
    %2191 = vmatprep.subr.mxu0 0.0
    %2192 = vmatpush1.msra.mxu0 0.0
    %2193 = vmatprep.subr.mxu0 0.0
    %2194 = vmatpush1.msra.mxu0 0.0
    %2195 = vmatprep.subr.mxu0 0.0
    %2196 = vmatpush1.msra.mxu0 0.0
    %2197 = vmatprep.subr.mxu0 0.0
    %2198 = vmatpush1.msra.mxu0 0.0
    %2199 = vmatprep.subr.mxu0 0.0
    %2200 = vmatpush1.msra.mxu0 0.0
    %2201 = vmatprep.subr.mxu0 0.0
    %2202 = vmatpush1.msra.mxu0 0.0
    %2203 = vmatprep.mubr.f32.mxu0 0.0
    %2204 = vmatmul.mubr.f32.gmra.mrb[0].mxu0 %v2137
    %v2205 = vpop.f32.mrb[0].mxu0
    %v2206 = vadd.f32 0.0, %v2205
    %v2207 = vpop.f32.mrb[0].mxu0
    %v2208 = vadd.f32 0.0, %v2207
    %2209 = vdwg.mxu0
    %v2211 = vsel %vm87, %v2089, 0
    %2213 = vmatprep.subr.mxu0 %v2104
    %2214 = vmatpush1.msra.mxu0 %v2103
    %2215 = vmatprep.subr.mxu0 %v2106
    %2216 = vmatpush1.msra.mxu0 %v2105
    %2217 = vmatprep.subr.mxu0 %v2108
    %2218 = vmatpush1.msra.mxu0 %v2107
    %2219 = vmatprep.subr.mxu0 %v2110
    %2220 = vmatpush1.msra.mxu0 %v2109
    %2221 = vmatprep.subr.mxu0 %v2112
    %2222 = vmatpush1.msra.mxu0 %v2111
    %2223 = vmatprep.subr.mxu0 %v2114
    %2224 = vmatpush1.msra.mxu0 %v2113
    %2225 = vmatprep.subr.mxu0 %v2116
    %2226 = vmatpush1.msra.mxu0 %v2115
    %2227 = vmatprep.subr.mxu0 %v2118
    %2228 = vmatpush1.msra.mxu0 %v2117
    %2229 = vmatprep.subr.mxu0 0.0
    %2230 = vmatpush1.msra.mxu0 0.0
    %2231 = vmatprep.subr.mxu0 0.0
    %2232 = vmatpush1.msra.mxu0 0.0
    %2233 = vmatprep.subr.mxu0 0.0
    %2234 = vmatpush1.msra.mxu0 0.0
    %2235 = vmatprep.subr.mxu0 0.0
    %2236 = vmatpush1.msra.mxu0 0.0
    %2237 = vmatprep.subr.mxu0 0.0
    %2238 = vmatpush1.msra.mxu0 0.0
    %2239 = vmatprep.subr.mxu0 0.0
    %2240 = vmatpush1.msra.mxu0 0.0
    %2241 = vmatprep.subr.mxu0 0.0
    %2242 = vmatpush1.msra.mxu0 0.0
    %2243 = vmatprep.subr.mxu0 0.0
    %2244 = vmatpush1.msra.mxu0 0.0
    %2245 = vmatprep.subr.mxu0 0.0
    %2246 = vmatpush1.msra.mxu0 0.0
    %2247 = vmatprep.subr.mxu0 0.0
    %2248 = vmatpush1.msra.mxu0 0.0
    %2249 = vmatprep.subr.mxu0 0.0
    %2250 = vmatpush1.msra.mxu0 0.0
    %2251 = vmatprep.subr.mxu0 0.0
    %2252 = vmatpush1.msra.mxu0 0.0
    %2253 = vmatprep.subr.mxu0 0.0
    %2254 = vmatpush1.msra.mxu0 0.0
    %2255 = vmatprep.subr.mxu0 0.0
    %2256 = vmatpush1.msra.mxu0 0.0
    %2257 = vmatprep.subr.mxu0 0.0
    %2258 = vmatpush1.msra.mxu0 0.0
    %2259 = vmatprep.subr.mxu0 0.0
    %2260 = vmatpush1.msra.mxu0 0.0
    %2261 = vmatprep.subr.mxu0 0.0
    %2262 = vmatpush1.msra.mxu0 0.0
    %2263 = vmatprep.subr.mxu0 0.0
    %2264 = vmatpush1.msra.mxu0 0.0
    %2265 = vmatprep.subr.mxu0 0.0
    %2266 = vmatpush1.msra.mxu0 0.0
    %2267 = vmatprep.subr.mxu0 0.0
    %2268 = vmatpush1.msra.mxu0 0.0
    %2269 = vmatprep.subr.mxu0 0.0
    %2270 = vmatpush1.msra.mxu0 0.0
    %2271 = vmatprep.subr.mxu0 0.0
    %2272 = vmatpush1.msra.mxu0 0.0
    %2273 = vmatprep.subr.mxu0 0.0
    %2274 = vmatpush1.msra.mxu0 0.0
    %2275 = vmatprep.subr.mxu0 0.0
    %2276 = vmatpush1.msra.mxu0 0.0
    %2277 = vmatprep.mubr.f32.mxu0 0.0
    %2278 = vmatmul.mubr.f32.gmra.mrb[0].mxu0 %v2211
    %v2279 = vpop.f32.mrb[0].mxu0
    %v2280 = vadd.f32 %v2206, %v2279
    %v2281 = vpop.f32.mrb[0].mxu0
    %v2282 = vadd.f32 %v2208, %v2281
    %2283 = vdwg.mxu0
    %v2284 = vadd.f32 %v2280, %v62
    %v2285 = vadd.f32 %v2282, %v66
    %v2286 = vld [vmem:[#allocation5] sm:$0x3]
    %v2287 = vxor.u32 %v2284, 2147483648
    %v2288 = vmul.f32 %v2287, 1.442695
    %v2289 = vpow.pop %v2288
    %v2290 = vadd.f32 %v2289, 1.0
    %v2291 = vrcp.pop %v2290
    %v2292 = vmul.f32 1.0, %v2291
    %v2293 = vtanh.pop %v2285
    %v2294 = vxor.u32 %v2285, 2147483648
    %v2295 = vmul.f32 %v2294, 1.442695
    %v2296 = vpow.pop %v2295
    %v2297 = vadd.f32 %v2296, 1.0
    %v2298 = vrcp.pop %v2297
    %v2299 = vmul.f32 1.0, %v2298
    %2301 = vrot.lane.b32.xlu0 %v2286, 64
    %v2302 = vpop.permute.xlu0 %2301
    %v2304 = vmul.f32 %v2292, %v2302
    %v2305 = vmul.f32 %v2292, %v2293
    %2307 = vrot.lane.b32.xlu0 %v2305, 64
    %v2308 = vpop.permute.xlu0 %2307
    %v2310 = vadd.f32 %v2304, %v2308
    %v2311 = vtanh.pop %v2310
    %v2312 = vmul.f32 %v2299, %v2311
    %2314 = vrot.lane.b32.xlu0 %v2312, 64
    %v2315 = vpop.permute.xlu0 %2314
    %2317 = vst.msk [vmem:[#allocation4] sm:$0x3] %vm52, %v2315
    %2319 = vrot.lane.b32.xlu0 %v2310, 64
    %v2320 = vpop.permute.xlu0 %2319
    %2322 = vst.msk [vmem:[#allocation5] sm:$0x3] %vm52, %v2320
    %s2323 = scalar_lea.vmem %s1, 8
    %v2324 = vld [vmem:[%s2323] sm:$0x3]
    %v2325 = vld [vmem:[#allocation8] sm:$0xff]
    %v2326 = vld [vmem:[#allocation8 + $0x8] sm:$0xff]
    %v2327 = vld [vmem:[#allocation8 + $0x10] sm:$0xff]
    %v2328 = vld [vmem:[#allocation8 + $0x18] sm:$0xff]
    %v2329 = vld [vmem:[#allocation8 + $0x20] sm:$0xff]
    %v2330 = vld [vmem:[#allocation8 + $0x28] sm:$0xff]
    %v2331 = vld [vmem:[#allocation8 + $0x30] sm:$0xff]
    %v2332 = vld [vmem:[#allocation8 + $0x38] sm:$0xff]
    %v2333 = vsel %vm87, %v2315, 0
    %2335 = vmatprep.subr.mxu0 0.0
    %2336 = vmatpush1.msra.mxu0 %v2325
    %2337 = vmatprep.subr.mxu0 0.0
    %2338 = vmatpush1.msra.mxu0 %v2326
    %2339 = vmatprep.subr.mxu0 0.0
    %2340 = vmatpush1.msra.mxu0 %v2327
    %2341 = vmatprep.subr.mxu0 0.0
    %2342 = vmatpush1.msra.mxu0 %v2328
    %2343 = vmatprep.subr.mxu0 0.0
    %2344 = vmatpush1.msra.mxu0 %v2329
    %2345 = vmatprep.subr.mxu0 0.0
    %2346 = vmatpush1.msra.mxu0 %v2330
    %2347 = vmatprep.subr.mxu0 0.0
    %2348 = vmatpush1.msra.mxu0 %v2331
    %2349 = vmatprep.subr.mxu0 0.0
    %2350 = vmatpush1.msra.mxu0 %v2332
    %2351 = vmatprep.subr.mxu0 0.0
    %2352 = vmatpush1.msra.mxu0 0.0
    %2353 = vmatprep.subr.mxu0 0.0
    %2354 = vmatpush1.msra.mxu0 0.0
    %2355 = vmatprep.subr.mxu0 0.0
    %2356 = vmatpush1.msra.mxu0 0.0
    %2357 = vmatprep.subr.mxu0 0.0
    %2358 = vmatpush1.msra.mxu0 0.0
    %2359 = vmatprep.subr.mxu0 0.0
    %2360 = vmatpush1.msra.mxu0 0.0
    %2361 = vmatprep.subr.mxu0 0.0
    %2362 = vmatpush1.msra.mxu0 0.0
    %2363 = vmatprep.subr.mxu0 0.0
    %2364 = vmatpush1.msra.mxu0 0.0
    %2365 = vmatprep.subr.mxu0 0.0
    %2366 = vmatpush1.msra.mxu0 0.0
    %2367 = vmatprep.subr.mxu0 0.0
    %2368 = vmatpush1.msra.mxu0 0.0
    %2369 = vmatprep.subr.mxu0 0.0
    %2370 = vmatpush1.msra.mxu0 0.0
    %2371 = vmatprep.subr.mxu0 0.0
    %2372 = vmatpush1.msra.mxu0 0.0
    %2373 = vmatprep.subr.mxu0 0.0
    %2374 = vmatpush1.msra.mxu0 0.0
    %2375 = vmatprep.subr.mxu0 0.0
    %2376 = vmatpush1.msra.mxu0 0.0
    %2377 = vmatprep.subr.mxu0 0.0
    %2378 = vmatpush1.msra.mxu0 0.0
    %2379 = vmatprep.subr.mxu0 0.0
    %2380 = vmatpush1.msra.mxu0 0.0
    %2381 = vmatprep.subr.mxu0 0.0
    %2382 = vmatpush1.msra.mxu0 0.0
    %2383 = vmatprep.subr.mxu0 0.0
    %2384 = vmatpush1.msra.mxu0 0.0
    %2385 = vmatprep.subr.mxu0 0.0
    %2386 = vmatpush1.msra.mxu0 0.0
    %2387 = vmatprep.subr.mxu0 0.0
    %2388 = vmatpush1.msra.mxu0 0.0
    %2389 = vmatprep.subr.mxu0 0.0
    %2390 = vmatpush1.msra.mxu0 0.0
    %2391 = vmatprep.subr.mxu0 0.0
    %2392 = vmatpush1.msra.mxu0 0.0
    %2393 = vmatprep.subr.mxu0 0.0
    %2394 = vmatpush1.msra.mxu0 0.0
    %2395 = vmatprep.subr.mxu0 0.0
    %2396 = vmatpush1.msra.mxu0 0.0
    %2397 = vmatprep.subr.mxu0 0.0
    %2398 = vmatpush1.msra.mxu0 0.0
    %2399 = vmatprep.mubr.f32.mxu0 0.0
    %2400 = vmatmul.mubr.f32.gmra.mrb[0].mxu0 %v2333
    %v2401 = vpop.f32.mrb[0].mxu0
    %v2402 = vadd.f32 0.0, %v2401
    %v2403 = vpop.f32.mrb[0].mxu0
    %2404 = vdwg.mxu0
    %v2405 = vadd.f32 %v2324, %v2402
    %s2406 = scalar_lea.vmem %s7, 8
    %2407 = vst.msk [vmem:[%s2406] sm:$0x3] %vm534, %v2405
    %s2408 = scalar_lea.vmem %s0, 20
    %v2409 = vld [vmem:[%s2408] sm:$0xf]
    %v2410 = vld [vmem:[#allocation2] sm:$0x3]
    %v2411 = vld [vmem:[%s2] sm:$0xff]
    %v2412 = vld [vmem:[%s2 + $0x8] sm:$0xff]
    %v2413 = vld [vmem:[%s2 + $0x10] sm:$0xff]
    %v2414 = vld [vmem:[%s2 + $0x18] sm:$0xff]
    %v2415 = vld [vmem:[%s2 + $0x20] sm:$0xff]
    %v2416 = vld [vmem:[%s2 + $0x28] sm:$0xff]
    %v2417 = vld [vmem:[%s2 + $0x30] sm:$0xff]
    %v2418 = vld [vmem:[%s2 + $0x38] sm:$0xff]
    %v2419 = vld [vmem:[%s2 + $0x40] sm:$0xff]
    %v2420 = vld [vmem:[%s2 + $0x48] sm:$0xff]
    %v2421 = vld [vmem:[%s2 + $0x50] sm:$0xff]
    %v2422 = vld [vmem:[%s2 + $0x58] sm:$0xff]
    %v2423 = vld [vmem:[%s2 + $0x60] sm:$0xff]
    %v2424 = vld [vmem:[%s2 + $0x68] sm:$0xff]
    %v2425 = vld [vmem:[%s2 + $0x70] sm:$0xff]
    %v2426 = vld [vmem:[%s2 + $0x78] sm:$0xff]
    %v2428 = vsel %vm87, %v2410, 0
    %2430 = vmatprep.subr.mxu0 %v2412
    %2431 = vmatpush1.msra.mxu0 %v2411
    %2432 = vmatprep.subr.mxu0 %v2414
    %2433 = vmatpush1.msra.mxu0 %v2413
    %2434 = vmatprep.subr.mxu0 %v2416
    %2435 = vmatpush1.msra.mxu0 %v2415
    %2436 = vmatprep.subr.mxu0 %v2418
    %2437 = vmatpush1.msra.mxu0 %v2417
    %2438 = vmatprep.subr.mxu0 %v2420
    %2439 = vmatpush1.msra.mxu0 %v2419
    %2440 = vmatprep.subr.mxu0 %v2422
    %2441 = vmatpush1.msra.mxu0 %v2421
    %2442 = vmatprep.subr.mxu0 %v2424
    %2443 = vmatpush1.msra.mxu0 %v2423
    %2444 = vmatprep.subr.mxu0 %v2426
    %2445 = vmatpush1.msra.mxu0 %v2425
    %2446 = vmatprep.subr.mxu0 0.0
    %2447 = vmatpush1.msra.mxu0 0.0
    %2448 = vmatprep.subr.mxu0 0.0
    %2449 = vmatpush1.msra.mxu0 0.0
    %2450 = vmatprep.subr.mxu0 0.0
    %2451 = vmatpush1.msra.mxu0 0.0
    %2452 = vmatprep.subr.mxu0 0.0
    %2453 = vmatpush1.msra.mxu0 0.0
    %2454 = vmatprep.subr.mxu0 0.0
    %2455 = vmatpush1.msra.mxu0 0.0
    %2456 = vmatprep.subr.mxu0 0.0
    %2457 = vmatpush1.msra.mxu0 0.0
    %2458 = vmatprep.subr.mxu0 0.0
    %2459 = vmatpush1.msra.mxu0 0.0
    %2460 = vmatprep.subr.mxu0 0.0
    %2461 = vmatpush1.msra.mxu0 0.0
    %2462 = vmatprep.subr.mxu0 0.0
    %2463 = vmatpush1.msra.mxu0 0.0
    %2464 = vmatprep.subr.mxu0 0.0
    %2465 = vmatpush1.msra.mxu0 0.0
    %2466 = vmatprep.subr.mxu0 0.0
    %2467 = vmatpush1.msra.mxu0 0.0
    %2468 = vmatprep.subr.mxu0 0.0
    %2469 = vmatpush1.msra.mxu0 0.0
    %2470 = vmatprep.subr.mxu0 0.0
    %2471 = vmatpush1.msra.mxu0 0.0
    %2472 = vmatprep.subr.mxu0 0.0
    %2473 = vmatpush1.msra.mxu0 0.0
    %2474 = vmatprep.subr.mxu0 0.0
    %2475 = vmatpush1.msra.mxu0 0.0
    %2476 = vmatprep.subr.mxu0 0.0
    %2477 = vmatpush1.msra.mxu0 0.0
    %2478 = vmatprep.subr.mxu0 0.0
    %2479 = vmatpush1.msra.mxu0 0.0
    %2480 = vmatprep.subr.mxu0 0.0
    %2481 = vmatpush1.msra.mxu0 0.0
    %2482 = vmatprep.subr.mxu0 0.0
    %2483 = vmatpush1.msra.mxu0 0.0
    %2484 = vmatprep.subr.mxu0 0.0
    %2485 = vmatpush1.msra.mxu0 0.0
    %2486 = vmatprep.subr.mxu0 0.0
    %2487 = vmatpush1.msra.mxu0 0.0
    %2488 = vmatprep.subr.mxu0 0.0
    %2489 = vmatpush1.msra.mxu0 0.0
    %2490 = vmatprep.subr.mxu0 0.0
    %2491 = vmatpush1.msra.mxu0 0.0
    %2492 = vmatprep.subr.mxu0 0.0
    %2493 = vmatpush1.msra.mxu0 0.0
    %2494 = vmatprep.mubr.f32.mxu0 0.0
    %2495 = vmatmul.mubr.f32.gmra.mrb[0].mxu0 %v2428
    %v2496 = vpop.f32.mrb[0].mxu0
    %v2497 = vadd.f32 0.0, %v2496
    %v2498 = vpop.f32.mrb[0].mxu0
    %v2499 = vadd.f32 0.0, %v2498
    %2500 = vdwg.mxu0
    %v2503 = vcombine.low %v2497, %v2499
    %v2505 = vunpack.c.l.s4 1983009808
    %v2506 = vunpack.c.0.s8 %v2505
    %v2507 = vlaneseq
    %v2508 = vshrl.u32 %v2507, 7
    %v2509 = vsub.s32 %v2506, %v2508
    %v2510 = vrot.slane %v2503, %v2509
    %v2512 = vadd.f32 %v2409, %v2510
    %v2513 = vld [vmem:[#allocation3] sm:$0x3]
    %v2514 = vxor.u32 %v2512, 2147483648
    %v2515 = vmul.f32 %v2514, 1.442695
    %v2516 = vpow.pop %v2515
    %v2517 = vadd.f32 %v2516, 1.0
    %v2518 = vrcp.pop %v2517
    %v2519 = vmul.f32 1.0, %v2518
    %v2521 = vrot.slane %v2512, 2
    %v2523 = vtanh.pop %v2521
    %2524 = vrot.lane.b32.xlu0 %v2512, 64
    %v2525 = vpop.permute.xlu0 %2524
    %v2526 = vrot.slane %v2525, 2
    %v2528 = vxor.u32 %v2526, 2147483648
    %v2529 = vmul.f32 %v2528, 1.442695
    %v2530 = vpow.pop %v2529
    %v2531 = vadd.f32 %v2530, 1.0
    %v2532 = vrcp.pop %v2531
    %v2533 = vmul.f32 1.0, %v2532
    %v2536 = vunpack.c.l.s4 1983009808
    %v2537 = vunpack.c.0.s8 %v2536
    %v2538 = vlaneseq
    %v2539 = vshrl.u32 %v2538, 7
    %v2540 = vsub.s32 %v2537, %v2539
    %v2541 = vrot.slane %v2513, %v2540
    %2542 = vrot.lane.b32.xlu0 %v2541, 64
    %v2543 = vpop.permute.xlu0 %2542
    %v2545 = vmul.f32 %v2519, %v2543
    %v2546 = vmul.f32 %v2519, %v2523
    %2548 = vrot.lane.b32.xlu0 %v2546, 64
    %v2549 = vpop.permute.xlu0 %2548
    %v2551 = vadd.f32 %v2545, %v2549
    %v2552 = vtanh.pop %v2551
    %2554 = vrot.lane.b32.xlu0 %v2552, 64
    %v2555 = vpop.permute.xlu0 %2554
    %v2557 = vmul.f32 %v2533, %v2555
    %2558 = vst.msk [vmem:[#allocation2] sm:$0x3] %vm52, %v2557
    %v2561 = vunpack.c.l.s4 1983009808
    %v2562 = vunpack.c.0.s8 %v2561
    %v2563 = vlaneseq
    %v2564 = vshrl.u32 %v2563, 7
    %v2565 = vsub.s32 %v2562, %v2564
    %v2566 = vrot.slane %v2551, %v2565
    %2567 = vrot.lane.b32.xlu0 %v2566, 64
    %v2568 = vpop.permute.xlu0 %2567
    %2570 = vst.msk [vmem:[#allocation3] sm:$0x3] %vm52, %v2568
    %v2571 = vld [vmem:[%s3] sm:$0xff]
    %v2572 = vld [vmem:[%s3 + $0x8] sm:$0xff]
    %v2573 = vld [vmem:[%s3 + $0x10] sm:$0xff]
    %v2574 = vld [vmem:[%s3 + $0x18] sm:$0xff]
    %v2575 = vld [vmem:[%s3 + $0x20] sm:$0xff]
    %v2576 = vld [vmem:[%s3 + $0x28] sm:$0xff]
    %v2577 = vld [vmem:[%s3 + $0x30] sm:$0xff]
    %v2578 = vld [vmem:[%s3 + $0x38] sm:$0xff]
    %v2579 = vld [vmem:[%s3 + $0x40] sm:$0xff]
    %v2580 = vld [vmem:[%s3 + $0x48] sm:$0xff]
    %v2581 = vld [vmem:[%s3 + $0x50] sm:$0xff]
    %v2582 = vld [vmem:[%s3 + $0x58] sm:$0xff]
    %v2583 = vld [vmem:[%s3 + $0x60] sm:$0xff]
    %v2584 = vld [vmem:[%s3 + $0x68] sm:$0xff]
    %v2585 = vld [vmem:[%s3 + $0x70] sm:$0xff]
    %v2586 = vld [vmem:[%s3 + $0x78] sm:$0xff]
    %v2587 = vld [vmem:[#allocation4] sm:$0x3]
    %v2588 = vld [vmem:[%s4] sm:$0xff]
    %v2589 = vld [vmem:[%s4 + $0x8] sm:$0xff]
    %v2590 = vld [vmem:[%s4 + $0x10] sm:$0xff]
    %v2591 = vld [vmem:[%s4 + $0x18] sm:$0xff]
    %v2592 = vld [vmem:[%s4 + $0x20] sm:$0xff]
    %v2593 = vld [vmem:[%s4 + $0x28] sm:$0xff]
    %v2594 = vld [vmem:[%s4 + $0x30] sm:$0xff]
    %v2595 = vld [vmem:[%s4 + $0x38] sm:$0xff]
    %v2596 = vld [vmem:[%s4 + $0x40] sm:$0xff]
    %v2597 = vld [vmem:[%s4 + $0x48] sm:$0xff]
    %v2598 = vld [vmem:[%s4 + $0x50] sm:$0xff]
    %v2599 = vld [vmem:[%s4 + $0x58] sm:$0xff]
    %v2600 = vld [vmem:[%s4 + $0x60] sm:$0xff]
    %v2601 = vld [vmem:[%s4 + $0x68] sm:$0xff]
    %v2602 = vld [vmem:[%s4 + $0x70] sm:$0xff]
    %v2603 = vld [vmem:[%s4 + $0x78] sm:$0xff]
    %v2605 = vsel %vm87, %v2587, 0
    %2607 = vmatprep.subr.mxu0 %v2589
    %2608 = vmatpush1.msra.mxu0 %v2588
    %2609 = vmatprep.subr.mxu0 %v2591
    %2610 = vmatpush1.msra.mxu0 %v2590
    %2611 = vmatprep.subr.mxu0 %v2593
    %2612 = vmatpush1.msra.mxu0 %v2592
    %2613 = vmatprep.subr.mxu0 %v2595
    %2614 = vmatpush1.msra.mxu0 %v2594
    %2615 = vmatprep.subr.mxu0 %v2597
    %2616 = vmatpush1.msra.mxu0 %v2596
    %2617 = vmatprep.subr.mxu0 %v2599
    %2618 = vmatpush1.msra.mxu0 %v2598
    %2619 = vmatprep.subr.mxu0 %v2601
    %2620 = vmatpush1.msra.mxu0 %v2600
    %2621 = vmatprep.subr.mxu0 %v2603
    %2622 = vmatpush1.msra.mxu0 %v2602
    %2623 = vmatprep.subr.mxu0 0.0
    %2624 = vmatpush1.msra.mxu0 0.0
    %2625 = vmatprep.subr.mxu0 0.0
    %2626 = vmatpush1.msra.mxu0 0.0
    %2627 = vmatprep.subr.mxu0 0.0
    %2628 = vmatpush1.msra.mxu0 0.0
    %2629 = vmatprep.subr.mxu0 0.0
    %2630 = vmatpush1.msra.mxu0 0.0
    %2631 = vmatprep.subr.mxu0 0.0
    %2632 = vmatpush1.msra.mxu0 0.0
    %2633 = vmatprep.subr.mxu0 0.0
    %2634 = vmatpush1.msra.mxu0 0.0
    %2635 = vmatprep.subr.mxu0 0.0
    %2636 = vmatpush1.msra.mxu0 0.0
    %2637 = vmatprep.subr.mxu0 0.0
    %2638 = vmatpush1.msra.mxu0 0.0
    %2639 = vmatprep.subr.mxu0 0.0
    %2640 = vmatpush1.msra.mxu0 0.0
    %2641 = vmatprep.subr.mxu0 0.0
    %2642 = vmatpush1.msra.mxu0 0.0
    %2643 = vmatprep.subr.mxu0 0.0
    %2644 = vmatpush1.msra.mxu0 0.0
    %2645 = vmatprep.subr.mxu0 0.0
    %2646 = vmatpush1.msra.mxu0 0.0
    %2647 = vmatprep.subr.mxu0 0.0
    %2648 = vmatpush1.msra.mxu0 0.0
    %2649 = vmatprep.subr.mxu0 0.0
    %2650 = vmatpush1.msra.mxu0 0.0
    %2651 = vmatprep.subr.mxu0 0.0
    %2652 = vmatpush1.msra.mxu0 0.0
    %2653 = vmatprep.subr.mxu0 0.0
    %2654 = vmatpush1.msra.mxu0 0.0
    %2655 = vmatprep.subr.mxu0 0.0
    %2656 = vmatpush1.msra.mxu0 0.0
    %2657 = vmatprep.subr.mxu0 0.0
    %2658 = vmatpush1.msra.mxu0 0.0
    %2659 = vmatprep.subr.mxu0 0.0
    %2660 = vmatpush1.msra.mxu0 0.0
    %2661 = vmatprep.subr.mxu0 0.0
    %2662 = vmatpush1.msra.mxu0 0.0
    %2663 = vmatprep.subr.mxu0 0.0
    %2664 = vmatpush1.msra.mxu0 0.0
    %2665 = vmatprep.subr.mxu0 0.0
    %2666 = vmatpush1.msra.mxu0 0.0
    %2667 = vmatprep.subr.mxu0 0.0
    %2668 = vmatpush1.msra.mxu0 0.0
    %2669 = vmatprep.subr.mxu0 0.0
    %2670 = vmatpush1.msra.mxu0 0.0
    %2671 = vmatprep.mubr.f32.mxu0 0.0
    %2672 = vmatmul.mubr.f32.gmra.mrb[0].mxu0 %v2605
    %v2673 = vpop.f32.mrb[0].mxu0
    %v2674 = vadd.f32 0.0, %v2673
    %v2675 = vpop.f32.mrb[0].mxu0
    %v2676 = vadd.f32 0.0, %v2675
    %2677 = vdwg.mxu0
    %v2679 = vsel %vm87, %v2557, 0
    %2681 = vmatprep.subr.mxu0 %v2572
    %2682 = vmatpush1.msra.mxu0 %v2571
    %2683 = vmatprep.subr.mxu0 %v2574
    %2684 = vmatpush1.msra.mxu0 %v2573
    %2685 = vmatprep.subr.mxu0 %v2576
    %2686 = vmatpush1.msra.mxu0 %v2575
    %2687 = vmatprep.subr.mxu0 %v2578
    %2688 = vmatpush1.msra.mxu0 %v2577
    %2689 = vmatprep.subr.mxu0 %v2580
    %2690 = vmatpush1.msra.mxu0 %v2579
    %2691 = vmatprep.subr.mxu0 %v2582
    %2692 = vmatpush1.msra.mxu0 %v2581
    %2693 = vmatprep.subr.mxu0 %v2584
    %2694 = vmatpush1.msra.mxu0 %v2583
    %2695 = vmatprep.subr.mxu0 %v2586
    %2696 = vmatpush1.msra.mxu0 %v2585
    %2697 = vmatprep.subr.mxu0 0.0
    %2698 = vmatpush1.msra.mxu0 0.0
    %2699 = vmatprep.subr.mxu0 0.0
    %2700 = vmatpush1.msra.mxu0 0.0
    %2701 = vmatprep.subr.mxu0 0.0
    %2702 = vmatpush1.msra.mxu0 0.0
    %2703 = vmatprep.subr.mxu0 0.0
    %2704 = vmatpush1.msra.mxu0 0.0
    %2705 = vmatprep.subr.mxu0 0.0
    %2706 = vmatpush1.msra.mxu0 0.0
    %2707 = vmatprep.subr.mxu0 0.0
    %2708 = vmatpush1.msra.mxu0 0.0
    %2709 = vmatprep.subr.mxu0 0.0
    %2710 = vmatpush1.msra.mxu0 0.0
    %2711 = vmatprep.subr.mxu0 0.0
    %2712 = vmatpush1.msra.mxu0 0.0
    %2713 = vmatprep.subr.mxu0 0.0
    %2714 = vmatpush1.msra.mxu0 0.0
    %2715 = vmatprep.subr.mxu0 0.0
    %2716 = vmatpush1.msra.mxu0 0.0
    %2717 = vmatprep.subr.mxu0 0.0
    %2718 = vmatpush1.msra.mxu0 0.0
    %2719 = vmatprep.subr.mxu0 0.0
    %2720 = vmatpush1.msra.mxu0 0.0
    %2721 = vmatprep.subr.mxu0 0.0
    %2722 = vmatpush1.msra.mxu0 0.0
    %2723 = vmatprep.subr.mxu0 0.0
    %2724 = vmatpush1.msra.mxu0 0.0
    %2725 = vmatprep.subr.mxu0 0.0
    %2726 = vmatpush1.msra.mxu0 0.0
    %2727 = vmatprep.subr.mxu0 0.0
    %2728 = vmatpush1.msra.mxu0 0.0
    %2729 = vmatprep.subr.mxu0 0.0
    %2730 = vmatpush1.msra.mxu0 0.0
    %2731 = vmatprep.subr.mxu0 0.0
    %2732 = vmatpush1.msra.mxu0 0.0
    %2733 = vmatprep.subr.mxu0 0.0
    %2734 = vmatpush1.msra.mxu0 0.0
    %2735 = vmatprep.subr.mxu0 0.0
    %2736 = vmatpush1.msra.mxu0 0.0
    %2737 = vmatprep.subr.mxu0 0.0
    %2738 = vmatpush1.msra.mxu0 0.0
    %2739 = vmatprep.subr.mxu0 0.0
    %2740 = vmatpush1.msra.mxu0 0.0
    %2741 = vmatprep.subr.mxu0 0.0
    %2742 = vmatpush1.msra.mxu0 0.0
    %2743 = vmatprep.subr.mxu0 0.0
    %2744 = vmatpush1.msra.mxu0 0.0
    %2745 = vmatprep.mubr.f32.mxu0 0.0
    %2746 = vmatmul.mubr.f32.gmra.mrb[0].mxu0 %v2679
    %v2747 = vpop.f32.mrb[0].mxu0
    %v2748 = vadd.f32 %v2674, %v2747
    %v2749 = vpop.f32.mrb[0].mxu0
    %v2750 = vadd.f32 %v2676, %v2749
    %2751 = vdwg.mxu0
    %v2752 = vadd.f32 %v2748, %v62
    %v2753 = vadd.f32 %v2750, %v66
    %v2754 = vld [vmem:[#allocation5] sm:$0x3]
    %v2755 = vxor.u32 %v2752, 2147483648
    %v2756 = vmul.f32 %v2755, 1.442695
    %v2757 = vpow.pop %v2756
    %v2758 = vadd.f32 %v2757, 1.0
    %v2759 = vrcp.pop %v2758
    %v2760 = vmul.f32 1.0, %v2759
    %v2761 = vtanh.pop %v2753
    %v2762 = vxor.u32 %v2753, 2147483648
    %v2763 = vmul.f32 %v2762, 1.442695
    %v2764 = vpow.pop %v2763
    %v2765 = vadd.f32 %v2764, 1.0
    %v2766 = vrcp.pop %v2765
    %v2767 = vmul.f32 1.0, %v2766
    %2769 = vrot.lane.b32.xlu0 %v2754, 64
    %v2770 = vpop.permute.xlu0 %2769
    %v2772 = vmul.f32 %v2760, %v2770
    %v2773 = vmul.f32 %v2760, %v2761
    %2775 = vrot.lane.b32.xlu0 %v2773, 64
    %v2776 = vpop.permute.xlu0 %2775
    %v2778 = vadd.f32 %v2772, %v2776
    %v2779 = vtanh.pop %v2778
    %v2780 = vmul.f32 %v2767, %v2779
    %2782 = vrot.lane.b32.xlu0 %v2780, 64
    %v2783 = vpop.permute.xlu0 %2782
    %2785 = vst.msk [vmem:[#allocation4] sm:$0x3] %vm52, %v2783
    %2787 = vrot.lane.b32.xlu0 %v2778, 64
    %v2788 = vpop.permute.xlu0 %2787
    %2790 = vst.msk [vmem:[#allocation5] sm:$0x3] %vm52, %v2788
    %s2791 = scalar_lea.vmem %s1, 10
    %v2792 = vld [vmem:[%s2791] sm:$0x3]
    %v2793 = vld [vmem:[#allocation8] sm:$0xff]
    %v2794 = vld [vmem:[#allocation8 + $0x8] sm:$0xff]
    %v2795 = vld [vmem:[#allocation8 + $0x10] sm:$0xff]
    %v2796 = vld [vmem:[#allocation8 + $0x18] sm:$0xff]
    %v2797 = vld [vmem:[#allocation8 + $0x20] sm:$0xff]
    %v2798 = vld [vmem:[#allocation8 + $0x28] sm:$0xff]
    %v2799 = vld [vmem:[#allocation8 + $0x30] sm:$0xff]
    %v2800 = vld [vmem:[#allocation8 + $0x38] sm:$0xff]
    %v2801 = vsel %vm87, %v2783, 0
    %2803 = vmatprep.subr.mxu0 0.0
    %2804 = vmatpush1.msra.mxu0 %v2793
    %2805 = vmatprep.subr.mxu0 0.0
    %2806 = vmatpush1.msra.mxu0 %v2794
    %2807 = vmatprep.subr.mxu0 0.0
    %2808 = vmatpush1.msra.mxu0 %v2795
    %2809 = vmatprep.subr.mxu0 0.0
    %2810 = vmatpush1.msra.mxu0 %v2796
    %2811 = vmatprep.subr.mxu0 0.0
    %2812 = vmatpush1.msra.mxu0 %v2797
    %2813 = vmatprep.subr.mxu0 0.0
    %2814 = vmatpush1.msra.mxu0 %v2798
    %2815 = vmatprep.subr.mxu0 0.0
    %2816 = vmatpush1.msra.mxu0 %v2799
    %2817 = vmatprep.subr.mxu0 0.0
    %2818 = vmatpush1.msra.mxu0 %v2800
    %2819 = vmatprep.subr.mxu0 0.0
    %2820 = vmatpush1.msra.mxu0 0.0
    %2821 = vmatprep.subr.mxu0 0.0
    %2822 = vmatpush1.msra.mxu0 0.0
    %2823 = vmatprep.subr.mxu0 0.0
    %2824 = vmatpush1.msra.mxu0 0.0
    %2825 = vmatprep.subr.mxu0 0.0
    %2826 = vmatpush1.msra.mxu0 0.0
    %2827 = vmatprep.subr.mxu0 0.0
    %2828 = vmatpush1.msra.mxu0 0.0
    %2829 = vmatprep.subr.mxu0 0.0
    %2830 = vmatpush1.msra.mxu0 0.0
    %2831 = vmatprep.subr.mxu0 0.0
    %2832 = vmatpush1.msra.mxu0 0.0
    %2833 = vmatprep.subr.mxu0 0.0
    %2834 = vmatpush1.msra.mxu0 0.0
    %2835 = vmatprep.subr.mxu0 0.0
    %2836 = vmatpush1.msra.mxu0 0.0
    %2837 = vmatprep.subr.mxu0 0.0
    %2838 = vmatpush1.msra.mxu0 0.0
    %2839 = vmatprep.subr.mxu0 0.0
    %2840 = vmatpush1.msra.mxu0 0.0
    %2841 = vmatprep.subr.mxu0 0.0
    %2842 = vmatpush1.msra.mxu0 0.0
    %2843 = vmatprep.subr.mxu0 0.0
    %2844 = vmatpush1.msra.mxu0 0.0
    %2845 = vmatprep.subr.mxu0 0.0
    %2846 = vmatpush1.msra.mxu0 0.0
    %2847 = vmatprep.subr.mxu0 0.0
    %2848 = vmatpush1.msra.mxu0 0.0
    %2849 = vmatprep.subr.mxu0 0.0
    %2850 = vmatpush1.msra.mxu0 0.0
    %2851 = vmatprep.subr.mxu0 0.0
    %2852 = vmatpush1.msra.mxu0 0.0
    %2853 = vmatprep.subr.mxu0 0.0
    %2854 = vmatpush1.msra.mxu0 0.0
    %2855 = vmatprep.subr.mxu0 0.0
    %2856 = vmatpush1.msra.mxu0 0.0
    %2857 = vmatprep.subr.mxu0 0.0
    %2858 = vmatpush1.msra.mxu0 0.0
    %2859 = vmatprep.subr.mxu0 0.0
    %2860 = vmatpush1.msra.mxu0 0.0
    %2861 = vmatprep.subr.mxu0 0.0
    %2862 = vmatpush1.msra.mxu0 0.0
    %2863 = vmatprep.subr.mxu0 0.0
    %2864 = vmatpush1.msra.mxu0 0.0
    %2865 = vmatprep.subr.mxu0 0.0
    %2866 = vmatpush1.msra.mxu0 0.0
    %2867 = vmatprep.mubr.f32.mxu0 0.0
    %2868 = vmatmul.mubr.f32.gmra.mrb[0].mxu0 %v2801
    %v2869 = vpop.f32.mrb[0].mxu0
    %v2870 = vadd.f32 0.0, %v2869
    %v2871 = vpop.f32.mrb[0].mxu0
    %2872 = vdwg.mxu0
    %v2873 = vadd.f32 %v2792, %v2870
    %s2874 = scalar_lea.vmem %s7, 10
    %2875 = vst.msk [vmem:[%s2874] sm:$0x3] %vm534, %v2873
    %s2876 = scalar_lea.vmem %s0, 24
    %v2877 = vld [vmem:[%s2876] sm:$0xf]
    %v2878 = vld [vmem:[#allocation2] sm:$0x3]
    %v2879 = vld [vmem:[%s2] sm:$0xff]
    %v2880 = vld [vmem:[%s2 + $0x8] sm:$0xff]
    %v2881 = vld [vmem:[%s2 + $0x10] sm:$0xff]
    %v2882 = vld [vmem:[%s2 + $0x18] sm:$0xff]
    %v2883 = vld [vmem:[%s2 + $0x20] sm:$0xff]
    %v2884 = vld [vmem:[%s2 + $0x28] sm:$0xff]
    %v2885 = vld [vmem:[%s2 + $0x30] sm:$0xff]
    %v2886 = vld [vmem:[%s2 + $0x38] sm:$0xff]
    %v2887 = vld [vmem:[%s2 + $0x40] sm:$0xff]
    %v2888 = vld [vmem:[%s2 + $0x48] sm:$0xff]
    %v2889 = vld [vmem:[%s2 + $0x50] sm:$0xff]
    %v2890 = vld [vmem:[%s2 + $0x58] sm:$0xff]
    %v2891 = vld [vmem:[%s2 + $0x60] sm:$0xff]
    %v2892 = vld [vmem:[%s2 + $0x68] sm:$0xff]
    %v2893 = vld [vmem:[%s2 + $0x70] sm:$0xff]
    %v2894 = vld [vmem:[%s2 + $0x78] sm:$0xff]
    %v2896 = vsel %vm87, %v2878, 0
    %2898 = vmatprep.subr.mxu0 %v2880
    %2899 = vmatpush1.msra.mxu0 %v2879
    %2900 = vmatprep.subr.mxu0 %v2882
    %2901 = vmatpush1.msra.mxu0 %v2881
    %2902 = vmatprep.subr.mxu0 %v2884
    %2903 = vmatpush1.msra.mxu0 %v2883
    %2904 = vmatprep.subr.mxu0 %v2886
    %2905 = vmatpush1.msra.mxu0 %v2885
    %2906 = vmatprep.subr.mxu0 %v2888
    %2907 = vmatpush1.msra.mxu0 %v2887
    %2908 = vmatprep.subr.mxu0 %v2890
    %2909 = vmatpush1.msra.mxu0 %v2889
    %2910 = vmatprep.subr.mxu0 %v2892
    %2911 = vmatpush1.msra.mxu0 %v2891
    %2912 = vmatprep.subr.mxu0 %v2894
    %2913 = vmatpush1.msra.mxu0 %v2893
    %2914 = vmatprep.subr.mxu0 0.0
    %2915 = vmatpush1.msra.mxu0 0.0
    %2916 = vmatprep.subr.mxu0 0.0
    %2917 = vmatpush1.msra.mxu0 0.0
    %2918 = vmatprep.subr.mxu0 0.0
    %2919 = vmatpush1.msra.mxu0 0.0
    %2920 = vmatprep.subr.mxu0 0.0
    %2921 = vmatpush1.msra.mxu0 0.0
    %2922 = vmatprep.subr.mxu0 0.0
    %2923 = vmatpush1.msra.mxu0 0.0
    %2924 = vmatprep.subr.mxu0 0.0
    %2925 = vmatpush1.msra.mxu0 0.0
    %2926 = vmatprep.subr.mxu0 0.0
    %2927 = vmatpush1.msra.mxu0 0.0
    %2928 = vmatprep.subr.mxu0 0.0
    %2929 = vmatpush1.msra.mxu0 0.0
    %2930 = vmatprep.subr.mxu0 0.0
    %2931 = vmatpush1.msra.mxu0 0.0
    %2932 = vmatprep.subr.mxu0 0.0
    %2933 = vmatpush1.msra.mxu0 0.0
    %2934 = vmatprep.subr.mxu0 0.0
    %2935 = vmatpush1.msra.mxu0 0.0
    %2936 = vmatprep.subr.mxu0 0.0
    %2937 = vmatpush1.msra.mxu0 0.0
    %2938 = vmatprep.subr.mxu0 0.0
    %2939 = vmatpush1.msra.mxu0 0.0
    %2940 = vmatprep.subr.mxu0 0.0
    %2941 = vmatpush1.msra.mxu0 0.0
    %2942 = vmatprep.subr.mxu0 0.0
    %2943 = vmatpush1.msra.mxu0 0.0
    %2944 = vmatprep.subr.mxu0 0.0
    %2945 = vmatpush1.msra.mxu0 0.0
    %2946 = vmatprep.subr.mxu0 0.0
    %2947 = vmatpush1.msra.mxu0 0.0
    %2948 = vmatprep.subr.mxu0 0.0
    %2949 = vmatpush1.msra.mxu0 0.0
    %2950 = vmatprep.subr.mxu0 0.0
    %2951 = vmatpush1.msra.mxu0 0.0
    %2952 = vmatprep.subr.mxu0 0.0
    %2953 = vmatpush1.msra.mxu0 0.0
    %2954 = vmatprep.subr.mxu0 0.0
    %2955 = vmatpush1.msra.mxu0 0.0
    %2956 = vmatprep.subr.mxu0 0.0
    %2957 = vmatpush1.msra.mxu0 0.0
    %2958 = vmatprep.subr.mxu0 0.0
    %2959 = vmatpush1.msra.mxu0 0.0
    %2960 = vmatprep.subr.mxu0 0.0
    %2961 = vmatpush1.msra.mxu0 0.0
    %2962 = vmatprep.mubr.f32.mxu0 0.0
    %2963 = vmatmul.mubr.f32.gmra.mrb[0].mxu0 %v2896
    %v2964 = vpop.f32.mrb[0].mxu0
    %v2965 = vadd.f32 0.0, %v2964
    %v2966 = vpop.f32.mrb[0].mxu0
    %v2967 = vadd.f32 0.0, %v2966
    %2968 = vdwg.mxu0
    %v2971 = vcombine.low %v2965, %v2967
    %v2973 = vunpack.c.l.s4 1983009808
    %v2974 = vunpack.c.0.s8 %v2973
    %v2975 = vlaneseq
    %v2976 = vshrl.u32 %v2975, 7
    %v2977 = vsub.s32 %v2974, %v2976
    %v2978 = vrot.slane %v2971, %v2977
    %v2980 = vadd.f32 %v2877, %v2978
    %v2981 = vld [vmem:[#allocation3] sm:$0x3]
    %v2982 = vxor.u32 %v2980, 2147483648
    %v2983 = vmul.f32 %v2982, 1.442695
    %v2984 = vpow.pop %v2983
    %v2985 = vadd.f32 %v2984, 1.0
    %v2986 = vrcp.pop %v2985
    %v2987 = vmul.f32 1.0, %v2986
    %v2989 = vrot.slane %v2980, 2
    %v2991 = vtanh.pop %v2989
    %2992 = vrot.lane.b32.xlu0 %v2980, 64
    %v2993 = vpop.permute.xlu0 %2992
    %v2994 = vrot.slane %v2993, 2
    %v2996 = vxor.u32 %v2994, 2147483648
    %v2997 = vmul.f32 %v2996, 1.442695
    %v2998 = vpow.pop %v2997
    %v2999 = vadd.f32 %v2998, 1.0
    %v3000 = vrcp.pop %v2999
    %v3001 = vmul.f32 1.0, %v3000
    %v3004 = vunpack.c.l.s4 1983009808
    %v3005 = vunpack.c.0.s8 %v3004
    %v3006 = vlaneseq
    %v3007 = vshrl.u32 %v3006, 7
    %v3008 = vsub.s32 %v3005, %v3007
    %v3009 = vrot.slane %v2981, %v3008
    %3010 = vrot.lane.b32.xlu0 %v3009, 64
    %v3011 = vpop.permute.xlu0 %3010
    %v3013 = vmul.f32 %v2987, %v3011
    %v3014 = vmul.f32 %v2987, %v2991
    %3016 = vrot.lane.b32.xlu0 %v3014, 64
    %v3017 = vpop.permute.xlu0 %3016
    %v3019 = vadd.f32 %v3013, %v3017
    %v3020 = vtanh.pop %v3019
    %3022 = vrot.lane.b32.xlu0 %v3020, 64
    %v3023 = vpop.permute.xlu0 %3022
    %v3025 = vmul.f32 %v3001, %v3023
    %3026 = vst.msk [vmem:[#allocation2] sm:$0x3] %vm52, %v3025
    %v3029 = vunpack.c.l.s4 1983009808
    %v3030 = vunpack.c.0.s8 %v3029
    %v3031 = vlaneseq
    %v3032 = vshrl.u32 %v3031, 7
    %v3033 = vsub.s32 %v3030, %v3032
    %v3034 = vrot.slane %v3019, %v3033
    %3035 = vrot.lane.b32.xlu0 %v3034, 64
    %v3036 = vpop.permute.xlu0 %3035
    %3038 = vst.msk [vmem:[#allocation3] sm:$0x3] %vm52, %v3036
    %v3039 = vld [vmem:[%s3] sm:$0xff]
    %v3040 = vld [vmem:[%s3 + $0x8] sm:$0xff]
    %v3041 = vld [vmem:[%s3 + $0x10] sm:$0xff]
    %v3042 = vld [vmem:[%s3 + $0x18] sm:$0xff]
    %v3043 = vld [vmem:[%s3 + $0x20] sm:$0xff]
    %v3044 = vld [vmem:[%s3 + $0x28] sm:$0xff]
    %v3045 = vld [vmem:[%s3 + $0x30] sm:$0xff]
    %v3046 = vld [vmem:[%s3 + $0x38] sm:$0xff]
    %v3047 = vld [vmem:[%s3 + $0x40] sm:$0xff]
    %v3048 = vld [vmem:[%s3 + $0x48] sm:$0xff]
    %v3049 = vld [vmem:[%s3 + $0x50] sm:$0xff]
    %v3050 = vld [vmem:[%s3 + $0x58] sm:$0xff]
    %v3051 = vld [vmem:[%s3 + $0x60] sm:$0xff]
    %v3052 = vld [vmem:[%s3 + $0x68] sm:$0xff]
    %v3053 = vld [vmem:[%s3 + $0x70] sm:$0xff]
    %v3054 = vld [vmem:[%s3 + $0x78] sm:$0xff]
    %v3055 = vld [vmem:[#allocation4] sm:$0x3]
    %v3056 = vld [vmem:[%s4] sm:$0xff]
    %v3057 = vld [vmem:[%s4 + $0x8] sm:$0xff]
    %v3058 = vld [vmem:[%s4 + $0x10] sm:$0xff]
    %v3059 = vld [vmem:[%s4 + $0x18] sm:$0xff]
    %v3060 = vld [vmem:[%s4 + $0x20] sm:$0xff]
    %v3061 = vld [vmem:[%s4 + $0x28] sm:$0xff]
    %v3062 = vld [vmem:[%s4 + $0x30] sm:$0xff]
    %v3063 = vld [vmem:[%s4 + $0x38] sm:$0xff]
    %v3064 = vld [vmem:[%s4 + $0x40] sm:$0xff]
    %v3065 = vld [vmem:[%s4 + $0x48] sm:$0xff]
    %v3066 = vld [vmem:[%s4 + $0x50] sm:$0xff]
    %v3067 = vld [vmem:[%s4 + $0x58] sm:$0xff]
    %v3068 = vld [vmem:[%s4 + $0x60] sm:$0xff]
    %v3069 = vld [vmem:[%s4 + $0x68] sm:$0xff]
    %v3070 = vld [vmem:[%s4 + $0x70] sm:$0xff]
    %v3071 = vld [vmem:[%s4 + $0x78] sm:$0xff]
    %v3073 = vsel %vm87, %v3055, 0
    %3075 = vmatprep.subr.mxu0 %v3057
    %3076 = vmatpush1.msra.mxu0 %v3056
    %3077 = vmatprep.subr.mxu0 %v3059
    %3078 = vmatpush1.msra.mxu0 %v3058
    %3079 = vmatprep.subr.mxu0 %v3061
    %3080 = vmatpush1.msra.mxu0 %v3060
    %3081 = vmatprep.subr.mxu0 %v3063
    %3082 = vmatpush1.msra.mxu0 %v3062
    %3083 = vmatprep.subr.mxu0 %v3065
    %3084 = vmatpush1.msra.mxu0 %v3064
    %3085 = vmatprep.subr.mxu0 %v3067
    %3086 = vmatpush1.msra.mxu0 %v3066
    %3087 = vmatprep.subr.mxu0 %v3069
    %3088 = vmatpush1.msra.mxu0 %v3068
    %3089 = vmatprep.subr.mxu0 %v3071
    %3090 = vmatpush1.msra.mxu0 %v3070
    %3091 = vmatprep.subr.mxu0 0.0
    %3092 = vmatpush1.msra.mxu0 0.0
    %3093 = vmatprep.subr.mxu0 0.0
    %3094 = vmatpush1.msra.mxu0 0.0
    %3095 = vmatprep.subr.mxu0 0.0
    %3096 = vmatpush1.msra.mxu0 0.0
    %3097 = vmatprep.subr.mxu0 0.0
    %3098 = vmatpush1.msra.mxu0 0.0
    %3099 = vmatprep.subr.mxu0 0.0
    %3100 = vmatpush1.msra.mxu0 0.0
    %3101 = vmatprep.subr.mxu0 0.0
    %3102 = vmatpush1.msra.mxu0 0.0
    %3103 = vmatprep.subr.mxu0 0.0
    %3104 = vmatpush1.msra.mxu0 0.0
    %3105 = vmatprep.subr.mxu0 0.0
    %3106 = vmatpush1.msra.mxu0 0.0
    %3107 = vmatprep.subr.mxu0 0.0
    %3108 = vmatpush1.msra.mxu0 0.0
    %3109 = vmatprep.subr.mxu0 0.0
    %3110 = vmatpush1.msra.mxu0 0.0
    %3111 = vmatprep.subr.mxu0 0.0
    %3112 = vmatpush1.msra.mxu0 0.0
    %3113 = vmatprep.subr.mxu0 0.0
    %3114 = vmatpush1.msra.mxu0 0.0
    %3115 = vmatprep.subr.mxu0 0.0
    %3116 = vmatpush1.msra.mxu0 0.0
    %3117 = vmatprep.subr.mxu0 0.0
    %3118 = vmatpush1.msra.mxu0 0.0
    %3119 = vmatprep.subr.mxu0 0.0
    %3120 = vmatpush1.msra.mxu0 0.0
    %3121 = vmatprep.subr.mxu0 0.0
    %3122 = vmatpush1.msra.mxu0 0.0
    %3123 = vmatprep.subr.mxu0 0.0
    %3124 = vmatpush1.msra.mxu0 0.0
    %3125 = vmatprep.subr.mxu0 0.0
    %3126 = vmatpush1.msra.mxu0 0.0
    %3127 = vmatprep.subr.mxu0 0.0
    %3128 = vmatpush1.msra.mxu0 0.0
    %3129 = vmatprep.subr.mxu0 0.0
    %3130 = vmatpush1.msra.mxu0 0.0
    %3131 = vmatprep.subr.mxu0 0.0
    %3132 = vmatpush1.msra.mxu0 0.0
    %3133 = vmatprep.subr.mxu0 0.0
    %3134 = vmatpush1.msra.mxu0 0.0
    %3135 = vmatprep.subr.mxu0 0.0
    %3136 = vmatpush1.msra.mxu0 0.0
    %3137 = vmatprep.subr.mxu0 0.0
    %3138 = vmatpush1.msra.mxu0 0.0
    %3139 = vmatprep.mubr.f32.mxu0 0.0
    %3140 = vmatmul.mubr.f32.gmra.mrb[0].mxu0 %v3073
    %v3141 = vpop.f32.mrb[0].mxu0
    %v3142 = vadd.f32 0.0, %v3141
    %v3143 = vpop.f32.mrb[0].mxu0
    %v3144 = vadd.f32 0.0, %v3143
    %3145 = vdwg.mxu0
    %v3147 = vsel %vm87, %v3025, 0
    %3149 = vmatprep.subr.mxu0 %v3040
    %3150 = vmatpush1.msra.mxu0 %v3039
    %3151 = vmatprep.subr.mxu0 %v3042
    %3152 = vmatpush1.msra.mxu0 %v3041
    %3153 = vmatprep.subr.mxu0 %v3044
    %3154 = vmatpush1.msra.mxu0 %v3043
    %3155 = vmatprep.subr.mxu0 %v3046
    %3156 = vmatpush1.msra.mxu0 %v3045
    %3157 = vmatprep.subr.mxu0 %v3048
    %3158 = vmatpush1.msra.mxu0 %v3047
    %3159 = vmatprep.subr.mxu0 %v3050
    %3160 = vmatpush1.msra.mxu0 %v3049
    %3161 = vmatprep.subr.mxu0 %v3052
    %3162 = vmatpush1.msra.mxu0 %v3051
    %3163 = vmatprep.subr.mxu0 %v3054
    %3164 = vmatpush1.msra.mxu0 %v3053
    %3165 = vmatprep.subr.mxu0 0.0
    %3166 = vmatpush1.msra.mxu0 0.0
    %3167 = vmatprep.subr.mxu0 0.0
    %3168 = vmatpush1.msra.mxu0 0.0
    %3169 = vmatprep.subr.mxu0 0.0
    %3170 = vmatpush1.msra.mxu0 0.0
    %3171 = vmatprep.subr.mxu0 0.0
    %3172 = vmatpush1.msra.mxu0 0.0
    %3173 = vmatprep.subr.mxu0 0.0
    %3174 = vmatpush1.msra.mxu0 0.0
    %3175 = vmatprep.subr.mxu0 0.0
    %3176 = vmatpush1.msra.mxu0 0.0
    %3177 = vmatprep.subr.mxu0 0.0
    %3178 = vmatpush1.msra.mxu0 0.0
    %3179 = vmatprep.subr.mxu0 0.0
    %3180 = vmatpush1.msra.mxu0 0.0
    %3181 = vmatprep.subr.mxu0 0.0
    %3182 = vmatpush1.msra.mxu0 0.0
    %3183 = vmatprep.subr.mxu0 0.0
    %3184 = vmatpush1.msra.mxu0 0.0
    %3185 = vmatprep.subr.mxu0 0.0
    %3186 = vmatpush1.msra.mxu0 0.0
    %3187 = vmatprep.subr.mxu0 0.0
    %3188 = vmatpush1.msra.mxu0 0.0
    %3189 = vmatprep.subr.mxu0 0.0
    %3190 = vmatpush1.msra.mxu0 0.0
    %3191 = vmatprep.subr.mxu0 0.0
    %3192 = vmatpush1.msra.mxu0 0.0
    %3193 = vmatprep.subr.mxu0 0.0
    %3194 = vmatpush1.msra.mxu0 0.0
    %3195 = vmatprep.subr.mxu0 0.0
    %3196 = vmatpush1.msra.mxu0 0.0
    %3197 = vmatprep.subr.mxu0 0.0
    %3198 = vmatpush1.msra.mxu0 0.0
    %3199 = vmatprep.subr.mxu0 0.0
    %3200 = vmatpush1.msra.mxu0 0.0
    %3201 = vmatprep.subr.mxu0 0.0
    %3202 = vmatpush1.msra.mxu0 0.0
    %3203 = vmatprep.subr.mxu0 0.0
    %3204 = vmatpush1.msra.mxu0 0.0
    %3205 = vmatprep.subr.mxu0 0.0
    %3206 = vmatpush1.msra.mxu0 0.0
    %3207 = vmatprep.subr.mxu0 0.0
    %3208 = vmatpush1.msra.mxu0 0.0
    %3209 = vmatprep.subr.mxu0 0.0
    %3210 = vmatpush1.msra.mxu0 0.0
    %3211 = vmatprep.subr.mxu0 0.0
    %3212 = vmatpush1.msra.mxu0 0.0
    %3213 = vmatprep.mubr.f32.mxu0 0.0
    %3214 = vmatmul.mubr.f32.gmra.mrb[0].mxu0 %v3147
    %v3215 = vpop.f32.mrb[0].mxu0
    %v3216 = vadd.f32 %v3142, %v3215
    %v3217 = vpop.f32.mrb[0].mxu0
    %v3218 = vadd.f32 %v3144, %v3217
    %3219 = vdwg.mxu0
    %v3220 = vadd.f32 %v3216, %v62
    %v3221 = vadd.f32 %v3218, %v66
    %v3222 = vld [vmem:[#allocation5] sm:$0x3]
    %v3223 = vxor.u32 %v3220, 2147483648
    %v3224 = vmul.f32 %v3223, 1.442695
    %v3225 = vpow.pop %v3224
    %v3226 = vadd.f32 %v3225, 1.0
    %v3227 = vrcp.pop %v3226
    %v3228 = vmul.f32 1.0, %v3227
    %v3229 = vtanh.pop %v3221
    %v3230 = vxor.u32 %v3221, 2147483648
    %v3231 = vmul.f32 %v3230, 1.442695
    %v3232 = vpow.pop %v3231
    %v3233 = vadd.f32 %v3232, 1.0
    %v3234 = vrcp.pop %v3233
    %v3235 = vmul.f32 1.0, %v3234
    %3237 = vrot.lane.b32.xlu0 %v3222, 64
    %v3238 = vpop.permute.xlu0 %3237
    %v3240 = vmul.f32 %v3228, %v3238
    %v3241 = vmul.f32 %v3228, %v3229
    %3243 = vrot.lane.b32.xlu0 %v3241, 64
    %v3244 = vpop.permute.xlu0 %3243
    %v3246 = vadd.f32 %v3240, %v3244
    %v3247 = vtanh.pop %v3246
    %v3248 = vmul.f32 %v3235, %v3247
    %3250 = vrot.lane.b32.xlu0 %v3248, 64
    %v3251 = vpop.permute.xlu0 %3250
    %3253 = vst.msk [vmem:[#allocation4] sm:$0x3] %vm52, %v3251
    %3255 = vrot.lane.b32.xlu0 %v3246, 64
    %v3256 = vpop.permute.xlu0 %3255
    %3258 = vst.msk [vmem:[#allocation5] sm:$0x3] %vm52, %v3256
    %s3259 = scalar_lea.vmem %s1, 12
    %v3260 = vld [vmem:[%s3259] sm:$0x3]
    %v3261 = vld [vmem:[#allocation8] sm:$0xff]
    %v3262 = vld [vmem:[#allocation8 + $0x8] sm:$0xff]
    %v3263 = vld [vmem:[#allocation8 + $0x10] sm:$0xff]
    %v3264 = vld [vmem:[#allocation8 + $0x18] sm:$0xff]
    %v3265 = vld [vmem:[#allocation8 + $0x20] sm:$0xff]
    %v3266 = vld [vmem:[#allocation8 + $0x28] sm:$0xff]
    %v3267 = vld [vmem:[#allocation8 + $0x30] sm:$0xff]
    %v3268 = vld [vmem:[#allocation8 + $0x38] sm:$0xff]
    %v3269 = vsel %vm87, %v3251, 0
    %3271 = vmatprep.subr.mxu0 0.0
    %3272 = vmatpush1.msra.mxu0 %v3261
    %3273 = vmatprep.subr.mxu0 0.0
    %3274 = vmatpush1.msra.mxu0 %v3262
    %3275 = vmatprep.subr.mxu0 0.0
    %3276 = vmatpush1.msra.mxu0 %v3263
    %3277 = vmatprep.subr.mxu0 0.0
    %3278 = vmatpush1.msra.mxu0 %v3264
    %3279 = vmatprep.subr.mxu0 0.0
    %3280 = vmatpush1.msra.mxu0 %v3265
    %3281 = vmatprep.subr.mxu0 0.0
    %3282 = vmatpush1.msra.mxu0 %v3266
    %3283 = vmatprep.subr.mxu0 0.0
    %3284 = vmatpush1.msra.mxu0 %v3267
    %3285 = vmatprep.subr.mxu0 0.0
    %3286 = vmatpush1.msra.mxu0 %v3268
    %3287 = vmatprep.subr.mxu0 0.0
    %3288 = vmatpush1.msra.mxu0 0.0
    %3289 = vmatprep.subr.mxu0 0.0
    %3290 = vmatpush1.msra.mxu0 0.0
    %3291 = vmatprep.subr.mxu0 0.0
    %3292 = vmatpush1.msra.mxu0 0.0
    %3293 = vmatprep.subr.mxu0 0.0
    %3294 = vmatpush1.msra.mxu0 0.0
    %3295 = vmatprep.subr.mxu0 0.0
    %3296 = vmatpush1.msra.mxu0 0.0
    %3297 = vmatprep.subr.mxu0 0.0
    %3298 = vmatpush1.msra.mxu0 0.0
    %3299 = vmatprep.subr.mxu0 0.0
    %3300 = vmatpush1.msra.mxu0 0.0
    %3301 = vmatprep.subr.mxu0 0.0
    %3302 = vmatpush1.msra.mxu0 0.0
    %3303 = vmatprep.subr.mxu0 0.0
    %3304 = vmatpush1.msra.mxu0 0.0
    %3305 = vmatprep.subr.mxu0 0.0
    %3306 = vmatpush1.msra.mxu0 0.0
    %3307 = vmatprep.subr.mxu0 0.0
    %3308 = vmatpush1.msra.mxu0 0.0
    %3309 = vmatprep.subr.mxu0 0.0
    %3310 = vmatpush1.msra.mxu0 0.0
    %3311 = vmatprep.subr.mxu0 0.0
    %3312 = vmatpush1.msra.mxu0 0.0
    %3313 = vmatprep.subr.mxu0 0.0
    %3314 = vmatpush1.msra.mxu0 0.0
    %3315 = vmatprep.subr.mxu0 0.0
    %3316 = vmatpush1.msra.mxu0 0.0
    %3317 = vmatprep.subr.mxu0 0.0
    %3318 = vmatpush1.msra.mxu0 0.0
    %3319 = vmatprep.subr.mxu0 0.0
    %3320 = vmatpush1.msra.mxu0 0.0
    %3321 = vmatprep.subr.mxu0 0.0
    %3322 = vmatpush1.msra.mxu0 0.0
    %3323 = vmatprep.subr.mxu0 0.0
    %3324 = vmatpush1.msra.mxu0 0.0
    %3325 = vmatprep.subr.mxu0 0.0
    %3326 = vmatpush1.msra.mxu0 0.0
    %3327 = vmatprep.subr.mxu0 0.0
    %3328 = vmatpush1.msra.mxu0 0.0
    %3329 = vmatprep.subr.mxu0 0.0
    %3330 = vmatpush1.msra.mxu0 0.0
    %3331 = vmatprep.subr.mxu0 0.0
    %3332 = vmatpush1.msra.mxu0 0.0
    %3333 = vmatprep.subr.mxu0 0.0
    %3334 = vmatpush1.msra.mxu0 0.0
    %3335 = vmatprep.mubr.f32.mxu0 0.0
    %3336 = vmatmul.mubr.f32.gmra.mrb[0].mxu0 %v3269
    %v3337 = vpop.f32.mrb[0].mxu0
    %v3338 = vadd.f32 0.0, %v3337
    %v3339 = vpop.f32.mrb[0].mxu0
    %3340 = vdwg.mxu0
    %v3341 = vadd.f32 %v3260, %v3338
    %s3342 = scalar_lea.vmem %s7, 12
    %3343 = vst.msk [vmem:[%s3342] sm:$0x3] %vm534, %v3341
    %s3344 = scalar_lea.vmem %s0, 28
    %v3345 = vld [vmem:[%s3344] sm:$0xf]
    %v3346 = vld [vmem:[#allocation2] sm:$0x3]
    %v3347 = vld [vmem:[%s2] sm:$0xff]
    %v3348 = vld [vmem:[%s2 + $0x8] sm:$0xff]
    %v3349 = vld [vmem:[%s2 + $0x10] sm:$0xff]
    %v3350 = vld [vmem:[%s2 + $0x18] sm:$0xff]
    %v3351 = vld [vmem:[%s2 + $0x20] sm:$0xff]
    %v3352 = vld [vmem:[%s2 + $0x28] sm:$0xff]
    %v3353 = vld [vmem:[%s2 + $0x30] sm:$0xff]
    %v3354 = vld [vmem:[%s2 + $0x38] sm:$0xff]
    %v3355 = vld [vmem:[%s2 + $0x40] sm:$0xff]
    %v3356 = vld [vmem:[%s2 + $0x48] sm:$0xff]
    %v3357 = vld [vmem:[%s2 + $0x50] sm:$0xff]
    %v3358 = vld [vmem:[%s2 + $0x58] sm:$0xff]
    %v3359 = vld [vmem:[%s2 + $0x60] sm:$0xff]
    %v3360 = vld [vmem:[%s2 + $0x68] sm:$0xff]
    %v3361 = vld [vmem:[%s2 + $0x70] sm:$0xff]
    %v3362 = vld [vmem:[%s2 + $0x78] sm:$0xff]
    %v3364 = vsel %vm87, %v3346, 0
    %3366 = vmatprep.subr.mxu0 %v3348
    %3367 = vmatpush1.msra.mxu0 %v3347
    %3368 = vmatprep.subr.mxu0 %v3350
    %3369 = vmatpush1.msra.mxu0 %v3349
    %3370 = vmatprep.subr.mxu0 %v3352
    %3371 = vmatpush1.msra.mxu0 %v3351
    %3372 = vmatprep.subr.mxu0 %v3354
    %3373 = vmatpush1.msra.mxu0 %v3353
    %3374 = vmatprep.subr.mxu0 %v3356
    %3375 = vmatpush1.msra.mxu0 %v3355
    %3376 = vmatprep.subr.mxu0 %v3358
    %3377 = vmatpush1.msra.mxu0 %v3357
    %3378 = vmatprep.subr.mxu0 %v3360
    %3379 = vmatpush1.msra.mxu0 %v3359
    %3380 = vmatprep.subr.mxu0 %v3362
    %3381 = vmatpush1.msra.mxu0 %v3361
    %3382 = vmatprep.subr.mxu0 0.0
    %3383 = vmatpush1.msra.mxu0 0.0
    %3384 = vmatprep.subr.mxu0 0.0
    %3385 = vmatpush1.msra.mxu0 0.0
    %3386 = vmatprep.subr.mxu0 0.0
    %3387 = vmatpush1.msra.mxu0 0.0
    %3388 = vmatprep.subr.mxu0 0.0
    %3389 = vmatpush1.msra.mxu0 0.0
    %3390 = vmatprep.subr.mxu0 0.0
    %3391 = vmatpush1.msra.mxu0 0.0
    %3392 = vmatprep.subr.mxu0 0.0
    %3393 = vmatpush1.msra.mxu0 0.0
    %3394 = vmatprep.subr.mxu0 0.0
    %3395 = vmatpush1.msra.mxu0 0.0
    %3396 = vmatprep.subr.mxu0 0.0
    %3397 = vmatpush1.msra.mxu0 0.0
    %3398 = vmatprep.subr.mxu0 0.0
    %3399 = vmatpush1.msra.mxu0 0.0
    %3400 = vmatprep.subr.mxu0 0.0
    %3401 = vmatpush1.msra.mxu0 0.0
    %3402 = vmatprep.subr.mxu0 0.0
    %3403 = vmatpush1.msra.mxu0 0.0
    %3404 = vmatprep.subr.mxu0 0.0
    %3405 = vmatpush1.msra.mxu0 0.0
    %3406 = vmatprep.subr.mxu0 0.0
    %3407 = vmatpush1.msra.mxu0 0.0
    %3408 = vmatprep.subr.mxu0 0.0
    %3409 = vmatpush1.msra.mxu0 0.0
    %3410 = vmatprep.subr.mxu0 0.0
    %3411 = vmatpush1.msra.mxu0 0.0
    %3412 = vmatprep.subr.mxu0 0.0
    %3413 = vmatpush1.msra.mxu0 0.0
    %3414 = vmatprep.subr.mxu0 0.0
    %3415 = vmatpush1.msra.mxu0 0.0
    %3416 = vmatprep.subr.mxu0 0.0
    %3417 = vmatpush1.msra.mxu0 0.0
    %3418 = vmatprep.subr.mxu0 0.0
    %3419 = vmatpush1.msra.mxu0 0.0
    %3420 = vmatprep.subr.mxu0 0.0
    %3421 = vmatpush1.msra.mxu0 0.0
    %3422 = vmatprep.subr.mxu0 0.0
    %3423 = vmatpush1.msra.mxu0 0.0
    %3424 = vmatprep.subr.mxu0 0.0
    %3425 = vmatpush1.msra.mxu0 0.0
    %3426 = vmatprep.subr.mxu0 0.0
    %3427 = vmatpush1.msra.mxu0 0.0
    %3428 = vmatprep.subr.mxu0 0.0
    %3429 = vmatpush1.msra.mxu0 0.0
    %3430 = vmatprep.mubr.f32.mxu0 0.0
    %3431 = vmatmul.mubr.f32.gmra.mrb[0].mxu0 %v3364
    %v3432 = vpop.f32.mrb[0].mxu0
    %v3433 = vadd.f32 0.0, %v3432
    %v3434 = vpop.f32.mrb[0].mxu0
    %v3435 = vadd.f32 0.0, %v3434
    %3436 = vdwg.mxu0
    %v3439 = vcombine.low %v3433, %v3435
    %v3441 = vunpack.c.l.s4 1983009808
    %v3442 = vunpack.c.0.s8 %v3441
    %v3443 = vlaneseq
    %v3444 = vshrl.u32 %v3443, 7
    %v3445 = vsub.s32 %v3442, %v3444
    %v3446 = vrot.slane %v3439, %v3445
    %v3448 = vadd.f32 %v3345, %v3446
    %v3449 = vld [vmem:[#allocation3] sm:$0x3]
    %v3450 = vxor.u32 %v3448, 2147483648
    %v3451 = vmul.f32 %v3450, 1.442695
    %v3452 = vpow.pop %v3451
    %v3453 = vadd.f32 %v3452, 1.0
    %v3454 = vrcp.pop %v3453
    %v3455 = vmul.f32 1.0, %v3454
    %v3457 = vrot.slane %v3448, 2
    %v3459 = vtanh.pop %v3457
    %3460 = vrot.lane.b32.xlu0 %v3448, 64
    %v3461 = vpop.permute.xlu0 %3460
    %v3462 = vrot.slane %v3461, 2
    %v3464 = vxor.u32 %v3462, 2147483648
    %v3465 = vmul.f32 %v3464, 1.442695
    %v3466 = vpow.pop %v3465
    %v3467 = vadd.f32 %v3466, 1.0
    %v3468 = vrcp.pop %v3467
    %v3469 = vmul.f32 1.0, %v3468
    %v3472 = vunpack.c.l.s4 1983009808
    %v3473 = vunpack.c.0.s8 %v3472
    %v3474 = vlaneseq
    %v3475 = vshrl.u32 %v3474, 7
    %v3476 = vsub.s32 %v3473, %v3475
    %v3477 = vrot.slane %v3449, %v3476
    %3478 = vrot.lane.b32.xlu0 %v3477, 64
    %v3479 = vpop.permute.xlu0 %3478
    %v3481 = vmul.f32 %v3455, %v3479
    %v3482 = vmul.f32 %v3455, %v3459
    %3484 = vrot.lane.b32.xlu0 %v3482, 64
    %v3485 = vpop.permute.xlu0 %3484
    %v3487 = vadd.f32 %v3481, %v3485
    %v3488 = vtanh.pop %v3487
    %3490 = vrot.lane.b32.xlu0 %v3488, 64
    %v3491 = vpop.permute.xlu0 %3490
    %v3493 = vmul.f32 %v3469, %v3491
    %3494 = vst.msk [vmem:[#allocation2] sm:$0x3] %vm52, %v3493
    %v3497 = vunpack.c.l.s4 1983009808
    %v3498 = vunpack.c.0.s8 %v3497
    %v3499 = vlaneseq
    %v3500 = vshrl.u32 %v3499, 7
    %v3501 = vsub.s32 %v3498, %v3500
    %v3502 = vrot.slane %v3487, %v3501
    %3503 = vrot.lane.b32.xlu0 %v3502, 64
    %v3504 = vpop.permute.xlu0 %3503
    %3506 = vst.msk [vmem:[#allocation3] sm:$0x3] %vm52, %v3504
    %v3507 = vld [vmem:[%s3] sm:$0xff]
    %v3508 = vld [vmem:[%s3 + $0x8] sm:$0xff]
    %v3509 = vld [vmem:[%s3 + $0x10] sm:$0xff]
    %v3510 = vld [vmem:[%s3 + $0x18] sm:$0xff]
    %v3511 = vld [vmem:[%s3 + $0x20] sm:$0xff]
    %v3512 = vld [vmem:[%s3 + $0x28] sm:$0xff]
    %v3513 = vld [vmem:[%s3 + $0x30] sm:$0xff]
    %v3514 = vld [vmem:[%s3 + $0x38] sm:$0xff]
    %v3515 = vld [vmem:[%s3 + $0x40] sm:$0xff]
    %v3516 = vld [vmem:[%s3 + $0x48] sm:$0xff]
    %v3517 = vld [vmem:[%s3 + $0x50] sm:$0xff]
    %v3518 = vld [vmem:[%s3 + $0x58] sm:$0xff]
    %v3519 = vld [vmem:[%s3 + $0x60] sm:$0xff]
    %v3520 = vld [vmem:[%s3 + $0x68] sm:$0xff]
    %v3521 = vld [vmem:[%s3 + $0x70] sm:$0xff]
    %v3522 = vld [vmem:[%s3 + $0x78] sm:$0xff]
    %v3523 = vld [vmem:[#allocation4] sm:$0x3]
    %v3524 = vld [vmem:[%s4] sm:$0xff]
    %v3525 = vld [vmem:[%s4 + $0x8] sm:$0xff]
    %v3526 = vld [vmem:[%s4 + $0x10] sm:$0xff]
    %v3527 = vld [vmem:[%s4 + $0x18] sm:$0xff]
    %v3528 = vld [vmem:[%s4 + $0x20] sm:$0xff]
    %v3529 = vld [vmem:[%s4 + $0x28] sm:$0xff]
    %v3530 = vld [vmem:[%s4 + $0x30] sm:$0xff]
    %v3531 = vld [vmem:[%s4 + $0x38] sm:$0xff]
    %v3532 = vld [vmem:[%s4 + $0x40] sm:$0xff]
    %v3533 = vld [vmem:[%s4 + $0x48] sm:$0xff]
    %v3534 = vld [vmem:[%s4 + $0x50] sm:$0xff]
    %v3535 = vld [vmem:[%s4 + $0x58] sm:$0xff]
    %v3536 = vld [vmem:[%s4 + $0x60] sm:$0xff]
    %v3537 = vld [vmem:[%s4 + $0x68] sm:$0xff]
    %v3538 = vld [vmem:[%s4 + $0x70] sm:$0xff]
    %v3539 = vld [vmem:[%s4 + $0x78] sm:$0xff]
    %v3541 = vsel %vm87, %v3523, 0
    %3543 = vmatprep.subr.mxu0 %v3525
    %3544 = vmatpush1.msra.mxu0 %v3524
    %3545 = vmatprep.subr.mxu0 %v3527
    %3546 = vmatpush1.msra.mxu0 %v3526
    %3547 = vmatprep.subr.mxu0 %v3529
    %3548 = vmatpush1.msra.mxu0 %v3528
    %3549 = vmatprep.subr.mxu0 %v3531
    %3550 = vmatpush1.msra.mxu0 %v3530
    %3551 = vmatprep.subr.mxu0 %v3533
    %3552 = vmatpush1.msra.mxu0 %v3532
    %3553 = vmatprep.subr.mxu0 %v3535
    %3554 = vmatpush1.msra.mxu0 %v3534
    %3555 = vmatprep.subr.mxu0 %v3537
    %3556 = vmatpush1.msra.mxu0 %v3536
    %3557 = vmatprep.subr.mxu0 %v3539
    %3558 = vmatpush1.msra.mxu0 %v3538
    %3559 = vmatprep.subr.mxu0 0.0
    %3560 = vmatpush1.msra.mxu0 0.0
    %3561 = vmatprep.subr.mxu0 0.0
    %3562 = vmatpush1.msra.mxu0 0.0
    %3563 = vmatprep.subr.mxu0 0.0
    %3564 = vmatpush1.msra.mxu0 0.0
    %3565 = vmatprep.subr.mxu0 0.0
    %3566 = vmatpush1.msra.mxu0 0.0
    %3567 = vmatprep.subr.mxu0 0.0
    %3568 = vmatpush1.msra.mxu0 0.0
    %3569 = vmatprep.subr.mxu0 0.0
    %3570 = vmatpush1.msra.mxu0 0.0
    %3571 = vmatprep.subr.mxu0 0.0
    %3572 = vmatpush1.msra.mxu0 0.0
    %3573 = vmatprep.subr.mxu0 0.0
    %3574 = vmatpush1.msra.mxu0 0.0
    %3575 = vmatprep.subr.mxu0 0.0
    %3576 = vmatpush1.msra.mxu0 0.0
    %3577 = vmatprep.subr.mxu0 0.0
    %3578 = vmatpush1.msra.mxu0 0.0
    %3579 = vmatprep.subr.mxu0 0.0
    %3580 = vmatpush1.msra.mxu0 0.0
    %3581 = vmatprep.subr.mxu0 0.0
    %3582 = vmatpush1.msra.mxu0 0.0
    %3583 = vmatprep.subr.mxu0 0.0
    %3584 = vmatpush1.msra.mxu0 0.0
    %3585 = vmatprep.subr.mxu0 0.0
    %3586 = vmatpush1.msra.mxu0 0.0
    %3587 = vmatprep.subr.mxu0 0.0
    %3588 = vmatpush1.msra.mxu0 0.0
    %3589 = vmatprep.subr.mxu0 0.0
    %3590 = vmatpush1.msra.mxu0 0.0
    %3591 = vmatprep.subr.mxu0 0.0
    %3592 = vmatpush1.msra.mxu0 0.0
    %3593 = vmatprep.subr.mxu0 0.0
    %3594 = vmatpush1.msra.mxu0 0.0
    %3595 = vmatprep.subr.mxu0 0.0
    %3596 = vmatpush1.msra.mxu0 0.0
    %3597 = vmatprep.subr.mxu0 0.0
    %3598 = vmatpush1.msra.mxu0 0.0
    %3599 = vmatprep.subr.mxu0 0.0
    %3600 = vmatpush1.msra.mxu0 0.0
    %3601 = vmatprep.subr.mxu0 0.0
    %3602 = vmatpush1.msra.mxu0 0.0
    %3603 = vmatprep.subr.mxu0 0.0
    %3604 = vmatpush1.msra.mxu0 0.0
    %3605 = vmatprep.subr.mxu0 0.0
    %3606 = vmatpush1.msra.mxu0 0.0
    %3607 = vmatprep.mubr.f32.mxu0 0.0
    %3608 = vmatmul.mubr.f32.gmra.mrb[0].mxu0 %v3541
    %v3609 = vpop.f32.mrb[0].mxu0
    %v3610 = vadd.f32 0.0, %v3609
    %v3611 = vpop.f32.mrb[0].mxu0
    %v3612 = vadd.f32 0.0, %v3611
    %3613 = vdwg.mxu0
    %v3615 = vsel %vm87, %v3493, 0
    %3617 = vmatprep.subr.mxu0 %v3508
    %3618 = vmatpush1.msra.mxu0 %v3507
    %3619 = vmatprep.subr.mxu0 %v3510
    %3620 = vmatpush1.msra.mxu0 %v3509
    %3621 = vmatprep.subr.mxu0 %v3512
    %3622 = vmatpush1.msra.mxu0 %v3511
    %3623 = vmatprep.subr.mxu0 %v3514
    %3624 = vmatpush1.msra.mxu0 %v3513
    %3625 = vmatprep.subr.mxu0 %v3516
    %3626 = vmatpush1.msra.mxu0 %v3515
    %3627 = vmatprep.subr.mxu0 %v3518
    %3628 = vmatpush1.msra.mxu0 %v3517
    %3629 = vmatprep.subr.mxu0 %v3520
    %3630 = vmatpush1.msra.mxu0 %v3519
    %3631 = vmatprep.subr.mxu0 %v3522
    %3632 = vmatpush1.msra.mxu0 %v3521
    %3633 = vmatprep.subr.mxu0 0.0
    %3634 = vmatpush1.msra.mxu0 0.0
    %3635 = vmatprep.subr.mxu0 0.0
    %3636 = vmatpush1.msra.mxu0 0.0
    %3637 = vmatprep.subr.mxu0 0.0
    %3638 = vmatpush1.msra.mxu0 0.0
    %3639 = vmatprep.subr.mxu0 0.0
    %3640 = vmatpush1.msra.mxu0 0.0
    %3641 = vmatprep.subr.mxu0 0.0
    %3642 = vmatpush1.msra.mxu0 0.0
    %3643 = vmatprep.subr.mxu0 0.0
    %3644 = vmatpush1.msra.mxu0 0.0
    %3645 = vmatprep.subr.mxu0 0.0
    %3646 = vmatpush1.msra.mxu0 0.0
    %3647 = vmatprep.subr.mxu0 0.0
    %3648 = vmatpush1.msra.mxu0 0.0
    %3649 = vmatprep.subr.mxu0 0.0
    %3650 = vmatpush1.msra.mxu0 0.0
    %3651 = vmatprep.subr.mxu0 0.0
    %3652 = vmatpush1.msra.mxu0 0.0
    %3653 = vmatprep.subr.mxu0 0.0
    %3654 = vmatpush1.msra.mxu0 0.0
    %3655 = vmatprep.subr.mxu0 0.0
    %3656 = vmatpush1.msra.mxu0 0.0
    %3657 = vmatprep.subr.mxu0 0.0
    %3658 = vmatpush1.msra.mxu0 0.0
    %3659 = vmatprep.subr.mxu0 0.0
    %3660 = vmatpush1.msra.mxu0 0.0
    %3661 = vmatprep.subr.mxu0 0.0
    %3662 = vmatpush1.msra.mxu0 0.0
    %3663 = vmatprep.subr.mxu0 0.0
    %3664 = vmatpush1.msra.mxu0 0.0
    %3665 = vmatprep.subr.mxu0 0.0
    %3666 = vmatpush1.msra.mxu0 0.0
    %3667 = vmatprep.subr.mxu0 0.0
    %3668 = vmatpush1.msra.mxu0 0.0
    %3669 = vmatprep.subr.mxu0 0.0
    %3670 = vmatpush1.msra.mxu0 0.0
    %3671 = vmatprep.subr.mxu0 0.0
    %3672 = vmatpush1.msra.mxu0 0.0
    %3673 = vmatprep.subr.mxu0 0.0
    %3674 = vmatpush1.msra.mxu0 0.0
    %3675 = vmatprep.subr.mxu0 0.0
    %3676 = vmatpush1.msra.mxu0 0.0
    %3677 = vmatprep.subr.mxu0 0.0
    %3678 = vmatpush1.msra.mxu0 0.0
    %3679 = vmatprep.subr.mxu0 0.0
    %3680 = vmatpush1.msra.mxu0 0.0
    %3681 = vmatprep.mubr.f32.mxu0 0.0
    %3682 = vmatmul.mubr.f32.gmra.mrb[0].mxu0 %v3615
    %v3683 = vpop.f32.mrb[0].mxu0
    %v3684 = vadd.f32 %v3610, %v3683
    %v3685 = vpop.f32.mrb[0].mxu0
    %v3686 = vadd.f32 %v3612, %v3685
    %3687 = vdwg.mxu0
    %v3688 = vadd.f32 %v3684, %v62
    %v3689 = vadd.f32 %v3686, %v66
    %v3690 = vld [vmem:[#allocation5] sm:$0x3]
    %v3691 = vxor.u32 %v3688, 2147483648
    %v3692 = vmul.f32 %v3691, 1.442695
    %v3693 = vpow.pop %v3692
    %v3694 = vadd.f32 %v3693, 1.0
    %v3695 = vrcp.pop %v3694
    %v3696 = vmul.f32 1.0, %v3695
    %v3697 = vtanh.pop %v3689
    %v3698 = vxor.u32 %v3689, 2147483648
    %v3699 = vmul.f32 %v3698, 1.442695
    %v3700 = vpow.pop %v3699
    %v3701 = vadd.f32 %v3700, 1.0
    %v3702 = vrcp.pop %v3701
    %v3703 = vmul.f32 1.0, %v3702
    %3705 = vrot.lane.b32.xlu0 %v3690, 64
    %v3706 = vpop.permute.xlu0 %3705
    %v3708 = vmul.f32 %v3696, %v3706
    %v3709 = vmul.f32 %v3696, %v3697
    %3711 = vrot.lane.b32.xlu0 %v3709, 64
    %v3712 = vpop.permute.xlu0 %3711
    %v3714 = vadd.f32 %v3708, %v3712
    %v3715 = vtanh.pop %v3714
    %v3716 = vmul.f32 %v3703, %v3715
    %3718 = vrot.lane.b32.xlu0 %v3716, 64
    %v3719 = vpop.permute.xlu0 %3718
    %3721 = vst.msk [vmem:[#allocation4] sm:$0x3] %vm52, %v3719
    %3723 = vrot.lane.b32.xlu0 %v3714, 64
    %v3724 = vpop.permute.xlu0 %3723
    %3726 = vst.msk [vmem:[#allocation5] sm:$0x3] %vm52, %v3724
    %s3727 = scalar_lea.vmem %s1, 14
    %v3728 = vld [vmem:[%s3727] sm:$0x3]
    %v3729 = vld [vmem:[#allocation8] sm:$0xff]
    %v3730 = vld [vmem:[#allocation8 + $0x8] sm:$0xff]
    %v3731 = vld [vmem:[#allocation8 + $0x10] sm:$0xff]
    %v3732 = vld [vmem:[#allocation8 + $0x18] sm:$0xff]
    %v3733 = vld [vmem:[#allocation8 + $0x20] sm:$0xff]
    %v3734 = vld [vmem:[#allocation8 + $0x28] sm:$0xff]
    %v3735 = vld [vmem:[#allocation8 + $0x30] sm:$0xff]
    %v3736 = vld [vmem:[#allocation8 + $0x38] sm:$0xff]
    %v3737 = vsel %vm87, %v3719, 0
    %3739 = vmatprep.subr.mxu0 0.0
    %3740 = vmatpush1.msra.mxu0 %v3729
    %3741 = vmatprep.subr.mxu0 0.0
    %3742 = vmatpush1.msra.mxu0 %v3730
    %3743 = vmatprep.subr.mxu0 0.0
    %3744 = vmatpush1.msra.mxu0 %v3731
    %3745 = vmatprep.subr.mxu0 0.0
    %3746 = vmatpush1.msra.mxu0 %v3732
    %3747 = vmatprep.subr.mxu0 0.0
    %3748 = vmatpush1.msra.mxu0 %v3733
    %3749 = vmatprep.subr.mxu0 0.0
    %3750 = vmatpush1.msra.mxu0 %v3734
    %3751 = vmatprep.subr.mxu0 0.0
    %3752 = vmatpush1.msra.mxu0 %v3735
    %3753 = vmatprep.subr.mxu0 0.0
    %3754 = vmatpush1.msra.mxu0 %v3736
    %3755 = vmatprep.subr.mxu0 0.0
    %3756 = vmatpush1.msra.mxu0 0.0
    %3757 = vmatprep.subr.mxu0 0.0
    %3758 = vmatpush1.msra.mxu0 0.0
    %3759 = vmatprep.subr.mxu0 0.0
    %3760 = vmatpush1.msra.mxu0 0.0
    %3761 = vmatprep.subr.mxu0 0.0
    %3762 = vmatpush1.msra.mxu0 0.0
    %3763 = vmatprep.subr.mxu0 0.0
    %3764 = vmatpush1.msra.mxu0 0.0
    %3765 = vmatprep.subr.mxu0 0.0
    %3766 = vmatpush1.msra.mxu0 0.0
    %3767 = vmatprep.subr.mxu0 0.0
    %3768 = vmatpush1.msra.mxu0 0.0
    %3769 = vmatprep.subr.mxu0 0.0
    %3770 = vmatpush1.msra.mxu0 0.0
    %3771 = vmatprep.subr.mxu0 0.0
    %3772 = vmatpush1.msra.mxu0 0.0
    %3773 = vmatprep.subr.mxu0 0.0
    %3774 = vmatpush1.msra.mxu0 0.0
    %3775 = vmatprep.subr.mxu0 0.0
    %3776 = vmatpush1.msra.mxu0 0.0
    %3777 = vmatprep.subr.mxu0 0.0
    %3778 = vmatpush1.msra.mxu0 0.0
    %3779 = vmatprep.subr.mxu0 0.0
    %3780 = vmatpush1.msra.mxu0 0.0
    %3781 = vmatprep.subr.mxu0 0.0
    %3782 = vmatpush1.msra.mxu0 0.0
    %3783 = vmatprep.subr.mxu0 0.0
    %3784 = vmatpush1.msra.mxu0 0.0
    %3785 = vmatprep.subr.mxu0 0.0
    %3786 = vmatpush1.msra.mxu0 0.0
    %3787 = vmatprep.subr.mxu0 0.0
    %3788 = vmatpush1.msra.mxu0 0.0
    %3789 = vmatprep.subr.mxu0 0.0
    %3790 = vmatpush1.msra.mxu0 0.0
    %3791 = vmatprep.subr.mxu0 0.0
    %3792 = vmatpush1.msra.mxu0 0.0
    %3793 = vmatprep.subr.mxu0 0.0
    %3794 = vmatpush1.msra.mxu0 0.0
    %3795 = vmatprep.subr.mxu0 0.0
    %3796 = vmatpush1.msra.mxu0 0.0
    %3797 = vmatprep.subr.mxu0 0.0
    %3798 = vmatpush1.msra.mxu0 0.0
    %3799 = vmatprep.subr.mxu0 0.0
    %3800 = vmatpush1.msra.mxu0 0.0
    %3801 = vmatprep.subr.mxu0 0.0
    %3802 = vmatpush1.msra.mxu0 0.0
    %3803 = vmatprep.mubr.f32.mxu0 0.0
    %3804 = vmatmul.mubr.f32.gmra.mrb[0].mxu0 %v3737
    %v3805 = vpop.f32.mrb[0].mxu0
    %v3806 = vadd.f32 0.0, %v3805
    %v3807 = vpop.f32.mrb[0].mxu0
    %3808 = vdwg.mxu0
    %v3809 = vadd.f32 %v3728, %v3806
    %s3810 = scalar_lea.vmem %s7, 14
    %3811 = vst.msk [vmem:[%s3810] sm:$0x3] %vm534, %v3809
    // Predicated region
    $region38: #{tacotron2_decoder_forward.4} parent=1 // pred_check
      _
    $region39: #{tacotron2_decoder_forward.4} parent=1 // pred_check_branch
      %3813 = sbr.rel (0) target = $region41
    $region40: #{tacotron2_decoder_forward.4} parent=1 // pred_region
      _
    $region41: #{tacotron2_decoder_forward.4} parent=1 // pred_fallthru
      _
    // Predicated region
    $region42: #{tacotron2_decoder_forward.4} parent=1 // pred_check
      _
    $region43: #{tacotron2_decoder_forward.4} parent=1 // pred_check_branch
      %3815 = sbr.rel (0) target = $region45
    $region44: #{tacotron2_decoder_forward.4} parent=1 // pred_region
      _
    $region45: #{tacotron2_decoder_forward.4} parent=1 // pred_fallthru
      _
    %3816 = vsyncpa [#allocation7], 1
    %3817 = vsyncpa [#allocation9], 1

</llo_original>
